<compile_context>
chip_gen: v7x
topology: tpu7x:2x2x1
jax: 0.10.0
libtpu: 0.0.40
codegen_flags: <defaults>
</compile_context>

<pallas_src>
import functools
import math

import jax
import jax.numpy as jnp
from jax.experimental import pallas as pl
from jax.experimental.pallas import tpu as pltpu

_EPS = 1e-7
_TEMP = 0.1

# Encoder: 784 -> 631 -> 478 -> 325 -> 172 -> 20   (relu x4, sigmoid)
# Decoder:  20 -> 172 -> 325 -> 478 -> 631 -> 784  (relu x4, sigmoid)
_ENC_DIMS = [784, 631, 478, 325, 172, 20]
_DEC_DIMS = [20, 172, 325, 478, 631, 784]
_ACTS = ["relu", "relu", "relu", "relu", "sigmoid"]


def _pad_up(n, m):
    return ((n + m - 1) // m) * m


# ------------------------- in-kernel uniform noise --------------------------

def _lshr(x, k):
    """Logical right shift on int32 (arithmetic shift + mask of kept bits)."""
    return jnp.bitwise_and(jnp.right_shift(x, k),
                           jnp.int32((1 << (32 - k)) - 1))


def _uniform_noise(shape, row0, seed, salt):
    """Counter-based hash -> u ~ Uniform[0, 1) of `shape`, pure jnp int ops.

    `row0` is the global row offset of this batch tile so masks differ
    across grid steps.
    """
    r = row0 + jax.lax.broadcasted_iota(jnp.int32, shape, 0)
    c = jax.lax.broadcasted_iota(jnp.int32, shape, 1)
    h = r * jnp.int32(shape[1]) + c
    h = h + (seed + jnp.int32(salt + 1)) * jnp.int32(0x61C88647)
    h = h * jnp.int32(0x27D4EB2F)
    h = jnp.bitwise_xor(h, _lshr(h, 15))
    h = h * jnp.int32(0x2545F491)
    h = jnp.bitwise_xor(h, _lshr(h, 13))
    h = h * jnp.int32(0x61C88647)
    h = jnp.bitwise_xor(h, _lshr(h, 16))
    mant = jnp.bitwise_and(h, jnp.int32((1 << 23) - 1))
    return mant.astype(jnp.float32) * jnp.float32(1.0 / (1 << 23))


# ------------------------------ fused kernel --------------------------------

def _fused_autoencoder_kernel(seed_ref, x_ref, *refs, acts, logit_p,
                              inv_retain, tile_b):
    """All 10 ConcreteDropout(Linear + act) layers in one kernel.

    refs = (w0, b0, w1, b1, ..., w9, b9, o_ref).  W are bf16 [din_pad,
    dout_pad] (zero-padded), b are f32 [1, dout_pad].  Activations stay as
    in-kernel values (VMEM/vregs) between layers; only the final [TB, 896]
    slab is stored (lane-dense, unmasked vst).
    """
    n_layers = len(acts)
    o_ref = refs[2 * n_layers]
    seed = seed_ref[0]
    row0 = pl.program_id(0) * jnp.int32(tile_b)

    h = x_ref[...]                                       # [TB, 896] f32
    for layer in range(n_layers):
        w_ref = refs[2 * layer]
        b_ref = refs[2 * layer + 1]

        # Concrete dropout mask: z = sigmoid((logit_p + log(u/(1-u)))/temp)
        u = _uniform_noise(h.shape, row0, seed, layer)
        log_u_ratio = jnp.log((u + _EPS) / (1.0 - u + _EPS))
        z = jax.nn.sigmoid((logit_p + log_u_ratio) * (1.0 / _TEMP))
        xd = h * (1.0 - z) * inv_retain

        # Linear (bf16 MXU operands, f32 accumulate) + bias + activation.
        y = jnp.dot(xd.astype(jnp.bfloat16), w_ref[...],
                    preferred_element_type=jnp.float32)
        y = y + b_ref[...]
        if acts[layer] == "relu":
            h = jnp.maximum(y, 0.0)
        else:  # "sigmoid"
            h = jax.nn.sigmoid(y)

    o_ref[...] = h.astype(o_ref.dtype)


# ------------------------------ parameters ----------------------------------

def _init_linear_padded(key, din, dout):
    """nn.Linear default init U(-1/sqrt(din), 1/sqrt(din)), zero-padded to
    128-lane multiples; W stored bf16, b stored f32.  Zero padding keeps the
    sigmoid(0)=0.5 padding lanes from leaking into real outputs."""
    kw, kb = jax.random.split(key)
    bound = 1.0 / math.sqrt(din)
    w = jax.random.uniform(kw, (din, dout), jnp.float32, -bound, bound)
    b = jax.random.uniform(kb, (1, dout), jnp.float32, -bound, bound)
    dpi, dpo = _pad_up(din, 128), _pad_up(dout, 128)
    w_pad = jnp.zeros((dpi, dpo), jnp.bfloat16).at[:din, :dout].set(
        w.astype(jnp.bfloat16))
    b_pad = jnp.zeros((1, dpo), jnp.float32).at[:, :dout].set(b)
    return w_pad, b_pad


def init_params(key, D=784):
    enc_dims = [D] + _ENC_DIMS[1:]
    dec_dims = _DEC_DIMS[:-1] + [D]
    params = {"encode": [], "decode": []}
    for din, dout in zip(enc_dims[:-1], enc_dims[1:]):
        key, sub = jax.random.split(key)
        params["encode"].append(_init_linear_padded(sub, din, dout))
    for din, dout in zip(dec_dims[:-1], dec_dims[1:]):
        key, sub = jax.random.split(key)
        params["decode"].append(_init_linear_padded(sub, din, dout))
    return params


# ------------------------------- forward ------------------------------------

@functools.partial(jax.jit, static_argnames=("p_drop",))
def dropout_autoencoder_forward(x, params, seed=0, p_drop=0.1):
    """forward(x) = decode(encode(x)) -- one fused Pallas kernel call."""
    layers = list(params["encode"]) + list(params["decode"])
    acts = tuple(_ACTS + _ACTS)

    B, D = x.shape
    tile_b = min(256, _pad_up(B, 8))       # batch tile (>=8 sublanes)
    B_pad = _pad_up(B, tile_b)
    d_in_pad = layers[0][0].shape[0]       # 896
    d_out_pad = layers[-1][0].shape[1]     # 896

    xp = jnp.zeros((B_pad, d_in_pad), jnp.float32).at[:B, :D].set(x)
    seed_arr = jnp.reshape(jnp.asarray(seed, jnp.int32), (1,))

    # p-dependent scalars hoisted to compile-time constants.
    logit_p = math.log(p_drop + _EPS) - math.log(1.0 - p_drop + _EPS)
    inv_retain = 1.0 / (1.0 - p_drop)

    kernel = functools.partial(_fused_autoencoder_kernel, acts=acts,
                               logit_p=logit_p, inv_retain=inv_retain,
                               tile_b=tile_b)

    flat = []
    for w, b in layers:
        flat += [w, b]

    grid = (B_pad // tile_b,)
    in_specs = (
        [pl.BlockSpec(memory_space=pltpu.MemorySpace.SMEM)]            # seed
        + [pl.BlockSpec((tile_b, d_in_pad), lambda i: (i, 0))]         # x tile
        + [pl.BlockSpec(memory_space=pltpu.MemorySpace.VMEM)]          # W, b
        * len(flat))                                                   # (resident)
    out_specs = pl.BlockSpec((tile_b, d_out_pad), lambda i: (i, 0))

    out = pl.pallas_call(
        kernel,
        grid=grid,
        out_shape=jax.ShapeDtypeStruct((B_pad, d_out_pad), jnp.float32),
        in_specs=in_specs,
        out_specs=out_specs,
        compiler_params=pltpu.CompilerParams(
            dimension_semantics=("parallel",),
            vmem_limit_bytes=48 * 1024 * 1024),
    )(seed_arr, xp, *flat)

    return out[:B, :D]


if __name__ == "__main__":
    key = jax.random.PRNGKey(0)
    k_params, k_x = jax.random.split(key)

    D = 784            # module default (MNIST-flattened)
    batch = 8

    params = init_params(k_params, D=D)
    x = jax.random.uniform(k_x, (batch, D), jnp.float32)

    recon = dropout_autoencoder_forward(x, params, seed=0, p_drop=0.1)
    recon = jax.block_until_ready(recon)

    assert recon.shape == (batch, D), recon.shape
    assert recon.dtype == jnp.float32
    assert bool(jnp.all(jnp.isfinite(recon)))
    # Final layer is a sigmoid -> outputs in (0, 1).
    assert bool(jnp.all((recon >= 0.0) & (recon <= 1.0)))

    print("KERNEL_OK")
</pallas_src>

<mosaic_0001>
module attributes {stable_mosaic.version = 11 : i64} {
  func.func @_fused_autoencoder_kernel(%arg0: i32, %arg1: memref<1xi32, #tpu.memory_space<smem>>, %arg2: memref<8x896xf32, #tpu.memory_space<vmem>>, %arg3: memref<896x640xbf16, #tpu.memory_space<vmem>>, %arg4: memref<1x640xf32, #tpu.memory_space<vmem>>, %arg5: memref<640x512xbf16, #tpu.memory_space<vmem>>, %arg6: memref<1x512xf32, #tpu.memory_space<vmem>>, %arg7: memref<512x384xbf16, #tpu.memory_space<vmem>>, %arg8: memref<1x384xf32, #tpu.memory_space<vmem>>, %arg9: memref<384x256xbf16, #tpu.memory_space<vmem>>, %arg10: memref<1x256xf32, #tpu.memory_space<vmem>>, %arg11: memref<256x128xbf16, #tpu.memory_space<vmem>>, %arg12: memref<1x128xf32, #tpu.memory_space<vmem>>, %arg13: memref<128x256xbf16, #tpu.memory_space<vmem>>, %arg14: memref<1x256xf32, #tpu.memory_space<vmem>>, %arg15: memref<256x384xbf16, #tpu.memory_space<vmem>>, %arg16: memref<1x384xf32, #tpu.memory_space<vmem>>, %arg17: memref<384x512xbf16, #tpu.memory_space<vmem>>, %arg18: memref<1x512xf32, #tpu.memory_space<vmem>>, %arg19: memref<512x640xbf16, #tpu.memory_space<vmem>>, %arg20: memref<1x640xf32, #tpu.memory_space<vmem>>, %arg21: memref<640x896xbf16, #tpu.memory_space<vmem>>, %arg22: memref<1x896xf32, #tpu.memory_space<vmem>>, %arg23: memref<8x896xf32, #tpu.memory_space<vmem>>) attributes {dimension_semantics = [#tpu.dimension_semantics<parallel>], iteration_bounds = array<i64: 1>, scalar_prefetch = 0 : i64, scratch_operands = 0 : i64, tpu.core_type = #tpu.core_type<tc>, window_params = [{transform_indices = @transform_0, window_bounds = array<i64: 1>}, {transform_indices = @transform_1, window_bounds = array<i64: 8, 896>}, {pipeline_mode = #tpu.pipeline_mode<synchronous>, transform_indices = @transform_2, window_bounds = array<i64: 896, 640>}, {pipeline_mode = #tpu.pipeline_mode<synchronous>, transform_indices = @transform_3, window_bounds = array<i64: 1, 640>}, {pipeline_mode = #tpu.pipeline_mode<synchronous>, transform_indices = @transform_4, window_bounds = array<i64: 640, 512>}, {pipeline_mode = #tpu.pipeline_mode<synchronous>, transform_indices = @transform_5, window_bounds = array<i64: 1, 512>}, {pipeline_mode = #tpu.pipeline_mode<synchronous>, transform_indices = @transform_6, window_bounds = array<i64: 512, 384>}, {pipeline_mode = #tpu.pipeline_mode<synchronous>, transform_indices = @transform_7, window_bounds = array<i64: 1, 384>}, {pipeline_mode = #tpu.pipeline_mode<synchronous>, transform_indices = @transform_8, window_bounds = array<i64: 384, 256>}, {pipeline_mode = #tpu.pipeline_mode<synchronous>, transform_indices = @transform_9, window_bounds = array<i64: 1, 256>}, {pipeline_mode = #tpu.pipeline_mode<synchronous>, transform_indices = @transform_10, window_bounds = array<i64: 256, 128>}, {pipeline_mode = #tpu.pipeline_mode<synchronous>, transform_indices = @transform_11, window_bounds = array<i64: 1, 128>}, {pipeline_mode = #tpu.pipeline_mode<synchronous>, transform_indices = @transform_12, window_bounds = array<i64: 128, 256>}, {pipeline_mode = #tpu.pipeline_mode<synchronous>, transform_indices = @transform_13, window_bounds = array<i64: 1, 256>}, {pipeline_mode = #tpu.pipeline_mode<synchronous>, transform_indices = @transform_14, window_bounds = array<i64: 256, 384>}, {pipeline_mode = #tpu.pipeline_mode<synchronous>, transform_indices = @transform_15, window_bounds = array<i64: 1, 384>}, {pipeline_mode = #tpu.pipeline_mode<synchronous>, transform_indices = @transform_16, window_bounds = array<i64: 384, 512>}, {pipeline_mode = #tpu.pipeline_mode<synchronous>, transform_indices = @transform_17, window_bounds = array<i64: 1, 512>}, {pipeline_mode = #tpu.pipeline_mode<synchronous>, transform_indices = @transform_18, window_bounds = array<i64: 512, 640>}, {pipeline_mode = #tpu.pipeline_mode<synchronous>, transform_indices = @transform_19, window_bounds = array<i64: 1, 640>}, {pipeline_mode = #tpu.pipeline_mode<synchronous>, transform_indices = @transform_20, window_bounds = array<i64: 640, 896>}, {pipeline_mode = #tpu.pipeline_mode<synchronous>, transform_indices = @transform_21, window_bounds = array<i64: 1, 896>}, {transform_indices = @transform_22, window_bounds = array<i64: 8, 896>}]} {
    %c0 = arith.constant 0 : index
    %0 = memref.load %arg1[%c0] : memref<1xi32, #tpu.memory_space<smem>>
    %c8_i32 = arith.constant 8 : i32
    %1 = arith.muli %arg0, %c8_i32 : i32
    %c0_0 = arith.constant 0 : index
    %c0_1 = arith.constant 0 : index
    %2 = vector.load %arg2[%c0_0, %c0_1] : memref<8x896xf32, #tpu.memory_space<vmem>>, vector<8x896xf32>
    %3 = tpu.iota {dimensions = array<i32: 0>} : vector<8x896xi32>
    %4 = vector.broadcast %1 : i32 to vector<8x896xi32>
    %5 = arith.addi %4, %3 : vector<8x896xi32>
    %6 = tpu.iota {dimensions = array<i32: 1>} : vector<8x896xi32>
    %c896_i32 = arith.constant 896 : i32
    %7 = vector.broadcast %c896_i32 : i32 to vector<8x896xi32>
    %8 = arith.muli %5, %7 : vector<8x896xi32>
    %9 = arith.addi %8, %6 : vector<8x896xi32>
    %c1_i32 = arith.constant 1 : i32
    %10 = arith.addi %0, %c1_i32 : i32
    %c1640531527_i32 = arith.constant 1640531527 : i32
    %11 = arith.muli %10, %c1640531527_i32 : i32
    %12 = vector.broadcast %11 : i32 to vector<8x896xi32>
    %13 = arith.addi %9, %12 : vector<8x896xi32>
    %c668265263_i32 = arith.constant 668265263 : i32
    %14 = vector.broadcast %c668265263_i32 : i32 to vector<8x896xi32>
    %15 = arith.muli %13, %14 : vector<8x896xi32>
    %c15_i32 = arith.constant 15 : i32
    %16 = vector.broadcast %c15_i32 : i32 to vector<8x896xi32>
    %17 = arith.shrsi %15, %16 : vector<8x896xi32>
    %c131071_i32 = arith.constant 131071 : i32
    %18 = vector.broadcast %c131071_i32 : i32 to vector<8x896xi32>
    %19 = arith.andi %17, %18 : vector<8x896xi32>
    %20 = arith.xori %15, %19 : vector<8x896xi32>
    %c625341585_i32 = arith.constant 625341585 : i32
    %21 = vector.broadcast %c625341585_i32 : i32 to vector<8x896xi32>
    %22 = arith.muli %20, %21 : vector<8x896xi32>
    %c13_i32 = arith.constant 13 : i32
    %23 = vector.broadcast %c13_i32 : i32 to vector<8x896xi32>
    %24 = arith.shrsi %22, %23 : vector<8x896xi32>
    %c524287_i32 = arith.constant 524287 : i32
    %25 = vector.broadcast %c524287_i32 : i32 to vector<8x896xi32>
    %26 = arith.andi %24, %25 : vector<8x896xi32>
    %27 = arith.xori %22, %26 : vector<8x896xi32>
    %c1640531527_i32_2 = arith.constant 1640531527 : i32
    %28 = vector.broadcast %c1640531527_i32_2 : i32 to vector<8x896xi32>
    %29 = arith.muli %27, %28 : vector<8x896xi32>
    %c16_i32 = arith.constant 16 : i32
    %30 = vector.broadcast %c16_i32 : i32 to vector<8x896xi32>
    %31 = arith.shrsi %29, %30 : vector<8x896xi32>
    %c65535_i32 = arith.constant 65535 : i32
    %32 = vector.broadcast %c65535_i32 : i32 to vector<8x896xi32>
    %33 = arith.andi %31, %32 : vector<8x896xi32>
    %34 = arith.xori %29, %33 : vector<8x896xi32>
    %c8388607_i32 = arith.constant 8388607 : i32
    %35 = vector.broadcast %c8388607_i32 : i32 to vector<8x896xi32>
    %36 = arith.andi %34, %35 : vector<8x896xi32>
    %37 = arith.sitofp %36 : vector<8x896xi32> to vector<8x896xf32>
    %cst = arith.constant 1.1920929E-7 : f32
    %38 = vector.broadcast %cst : f32 to vector<8x896xf32>
    %39 = arith.mulf %37, %38 : vector<8x896xf32>
    %cst_3 = arith.constant 1.000000e-07 : f32
    %40 = vector.broadcast %cst_3 : f32 to vector<8x896xf32>
    %41 = arith.addf %39, %40 : vector<8x896xf32>
    %cst_4 = arith.constant 1.000000e+00 : f32
    %42 = vector.broadcast %cst_4 : f32 to vector<8x896xf32>
    %43 = arith.subf %42, %39 : vector<8x896xf32>
    %cst_5 = arith.constant 1.000000e-07 : f32
    %44 = vector.broadcast %cst_5 : f32 to vector<8x896xf32>
    %45 = arith.addf %43, %44 : vector<8x896xf32>
    %46 = arith.divf %41, %45 : vector<8x896xf32>
    %47 = math.log %46 : vector<8x896xf32>
    %cst_6 = arith.constant -2.19722366 : f32
    %48 = vector.broadcast %cst_6 : f32 to vector<8x896xf32>
    %49 = arith.addf %48, %47 : vector<8x896xf32>
    %cst_7 = arith.constant 1.000000e+01 : f32
    %50 = vector.broadcast %cst_7 : f32 to vector<8x896xf32>
    %51 = arith.mulf %49, %50 : vector<8x896xf32>
    %52 = arith.negf %51 : vector<8x896xf32>
    %53 = math.exp %52 : vector<8x896xf32>
    %cst_8 = arith.constant 1.000000e+00 : f32
    %54 = vector.broadcast %cst_8 : f32 to vector<8x896xf32>
    %55 = arith.addf %54, %53 : vector<8x896xf32>
    %56 = arith.divf %54, %55 : vector<8x896xf32>
    %cst_9 = arith.constant 1.000000e+00 : f32
    %57 = vector.broadcast %cst_9 : f32 to vector<8x896xf32>
    %58 = arith.subf %57, %56 : vector<8x896xf32>
    %59 = arith.mulf %2, %58 : vector<8x896xf32>
    %cst_10 = arith.constant 1.11111116 : f32
    %60 = vector.broadcast %cst_10 : f32 to vector<8x896xf32>
    %61 = arith.mulf %59, %60 : vector<8x896xf32>
    %62 = arith.truncf %61 : vector<8x896xf32> to vector<8x896xbf16>
    %c0_11 = arith.constant 0 : index
    %c0_12 = arith.constant 0 : index
    %63 = vector.load %arg3[%c0_11, %c0_12] : memref<896x640xbf16, #tpu.memory_space<vmem>>, vector<896x640xbf16>
    %cst_13 = arith.constant dense<0.000000e+00> : vector<8x640xf32>
    %64 = tpu.matmul %62, %63, %cst_13 {dimension_numbers = #tpu.dot_dimension_numbers<[1], [0], [0], [1], [0, 0, 1, 1], [], []>} : vector<8x896xbf16>, vector<896x640xbf16>, vector<8x640xf32> -> vector<8x640xf32>
    %c0_14 = arith.constant 0 : index
    %c0_15 = arith.constant 0 : index
    %65 = vector.load %arg4[%c0_14, %c0_15] : memref<1x640xf32, #tpu.memory_space<vmem>>, vector<1x640xf32>
    %66 = vector.broadcast %65 : vector<1x640xf32> to vector<8x640xf32>
    %67 = arith.addf %64, %66 : vector<8x640xf32>
    %cst_16 = arith.constant 0.000000e+00 : f32
    %68 = vector.broadcast %cst_16 : f32 to vector<8x640xf32>
    %69 = arith.maximumf %67, %68 : vector<8x640xf32>
    %70 = tpu.iota {dimensions = array<i32: 0>} : vector<8x640xi32>
    %71 = vector.broadcast %1 : i32 to vector<8x640xi32>
    %72 = arith.addi %71, %70 : vector<8x640xi32>
    %73 = tpu.iota {dimensions = array<i32: 1>} : vector<8x640xi32>
    %c640_i32 = arith.constant 640 : i32
    %74 = vector.broadcast %c640_i32 : i32 to vector<8x640xi32>
    %75 = arith.muli %72, %74 : vector<8x640xi32>
    %76 = arith.addi %75, %73 : vector<8x640xi32>
    %c2_i32 = arith.constant 2 : i32
    %77 = arith.addi %0, %c2_i32 : i32
    %c1640531527_i32_17 = arith.constant 1640531527 : i32
    %78 = arith.muli %77, %c1640531527_i32_17 : i32
    %79 = vector.broadcast %78 : i32 to vector<8x640xi32>
    %80 = arith.addi %76, %79 : vector<8x640xi32>
    %c668265263_i32_18 = arith.constant 668265263 : i32
    %81 = vector.broadcast %c668265263_i32_18 : i32 to vector<8x640xi32>
    %82 = arith.muli %80, %81 : vector<8x640xi32>
    %c15_i32_19 = arith.constant 15 : i32
    %83 = vector.broadcast %c15_i32_19 : i32 to vector<8x640xi32>
    %84 = arith.shrsi %82, %83 : vector<8x640xi32>
    %c131071_i32_20 = arith.constant 131071 : i32
    %85 = vector.broadcast %c131071_i32_20 : i32 to vector<8x640xi32>
    %86 = arith.andi %84, %85 : vector<8x640xi32>
    %87 = arith.xori %82, %86 : vector<8x640xi32>
    %c625341585_i32_21 = arith.constant 625341585 : i32
    %88 = vector.broadcast %c625341585_i32_21 : i32 to vector<8x640xi32>
    %89 = arith.muli %87, %88 : vector<8x640xi32>
    %c13_i32_22 = arith.constant 13 : i32
    %90 = vector.broadcast %c13_i32_22 : i32 to vector<8x640xi32>
    %91 = arith.shrsi %89, %90 : vector<8x640xi32>
    %c524287_i32_23 = arith.constant 524287 : i32
    %92 = vector.broadcast %c524287_i32_23 : i32 to vector<8x640xi32>
    %93 = arith.andi %91, %92 : vector<8x640xi32>
    %94 = arith.xori %89, %93 : vector<8x640xi32>
    %c1640531527_i32_24 = arith.constant 1640531527 : i32
    %95 = vector.broadcast %c1640531527_i32_24 : i32 to vector<8x640xi32>
    %96 = arith.muli %94, %95 : vector<8x640xi32>
    %c16_i32_25 = arith.constant 16 : i32
    %97 = vector.broadcast %c16_i32_25 : i32 to vector<8x640xi32>
    %98 = arith.shrsi %96, %97 : vector<8x640xi32>
    %c65535_i32_26 = arith.constant 65535 : i32
    %99 = vector.broadcast %c65535_i32_26 : i32 to vector<8x640xi32>
    %100 = arith.andi %98, %99 : vector<8x640xi32>
    %101 = arith.xori %96, %100 : vector<8x640xi32>
    %c8388607_i32_27 = arith.constant 8388607 : i32
    %102 = vector.broadcast %c8388607_i32_27 : i32 to vector<8x640xi32>
    %103 = arith.andi %101, %102 : vector<8x640xi32>
    %104 = arith.sitofp %103 : vector<8x640xi32> to vector<8x640xf32>
    %cst_28 = arith.constant 1.1920929E-7 : f32
    %105 = vector.broadcast %cst_28 : f32 to vector<8x640xf32>
    %106 = arith.mulf %104, %105 : vector<8x640xf32>
    %cst_29 = arith.constant 1.000000e-07 : f32
    %107 = vector.broadcast %cst_29 : f32 to vector<8x640xf32>
    %108 = arith.addf %106, %107 : vector<8x640xf32>
    %cst_30 = arith.constant 1.000000e+00 : f32
    %109 = vector.broadcast %cst_30 : f32 to vector<8x640xf32>
    %110 = arith.subf %109, %106 : vector<8x640xf32>
    %cst_31 = arith.constant 1.000000e-07 : f32
    %111 = vector.broadcast %cst_31 : f32 to vector<8x640xf32>
    %112 = arith.addf %110, %111 : vector<8x640xf32>
    %113 = arith.divf %108, %112 : vector<8x640xf32>
    %114 = math.log %113 : vector<8x640xf32>
    %cst_32 = arith.constant -2.19722366 : f32
    %115 = vector.broadcast %cst_32 : f32 to vector<8x640xf32>
    %116 = arith.addf %115, %114 : vector<8x640xf32>
    %cst_33 = arith.constant 1.000000e+01 : f32
    %117 = vector.broadcast %cst_33 : f32 to vector<8x640xf32>
    %118 = arith.mulf %116, %117 : vector<8x640xf32>
    %119 = arith.negf %118 : vector<8x640xf32>
    %120 = math.exp %119 : vector<8x640xf32>
    %cst_34 = arith.constant 1.000000e+00 : f32
    %121 = vector.broadcast %cst_34 : f32 to vector<8x640xf32>
    %122 = arith.addf %121, %120 : vector<8x640xf32>
    %123 = arith.divf %121, %122 : vector<8x640xf32>
    %cst_35 = arith.constant 1.000000e+00 : f32
    %124 = vector.broadcast %cst_35 : f32 to vector<8x640xf32>
    %125 = arith.subf %124, %123 : vector<8x640xf32>
    %126 = arith.mulf %69, %125 : vector<8x640xf32>
    %cst_36 = arith.constant 1.11111116 : f32
    %127 = vector.broadcast %cst_36 : f32 to vector<8x640xf32>
    %128 = arith.mulf %126, %127 : vector<8x640xf32>
    %129 = arith.truncf %128 : vector<8x640xf32> to vector<8x640xbf16>
    %c0_37 = arith.constant 0 : index
    %c0_38 = arith.constant 0 : index
    %130 = vector.load %arg5[%c0_37, %c0_38] : memref<640x512xbf16, #tpu.memory_space<vmem>>, vector<640x512xbf16>
    %cst_39 = arith.constant dense<0.000000e+00> : vector<8x512xf32>
    %131 = tpu.matmul %129, %130, %cst_39 {dimension_numbers = #tpu.dot_dimension_numbers<[1], [0], [0], [1], [0, 0, 1, 1], [], []>} : vector<8x640xbf16>, vector<640x512xbf16>, vector<8x512xf32> -> vector<8x512xf32>
    %c0_40 = arith.constant 0 : index
    %c0_41 = arith.constant 0 : index
    %132 = vector.load %arg6[%c0_40, %c0_41] : memref<1x512xf32, #tpu.memory_space<vmem>>, vector<1x512xf32>
    %133 = vector.broadcast %132 : vector<1x512xf32> to vector<8x512xf32>
    %134 = arith.addf %131, %133 : vector<8x512xf32>
    %cst_42 = arith.constant 0.000000e+00 : f32
    %135 = vector.broadcast %cst_42 : f32 to vector<8x512xf32>
    %136 = arith.maximumf %134, %135 : vector<8x512xf32>
    %137 = tpu.iota {dimensions = array<i32: 0>} : vector<8x512xi32>
    %138 = vector.broadcast %1 : i32 to vector<8x512xi32>
    %139 = arith.addi %138, %137 : vector<8x512xi32>
    %140 = tpu.iota {dimensions = array<i32: 1>} : vector<8x512xi32>
    %c512_i32 = arith.constant 512 : i32
    %141 = vector.broadcast %c512_i32 : i32 to vector<8x512xi32>
    %142 = arith.muli %139, %141 : vector<8x512xi32>
    %143 = arith.addi %142, %140 : vector<8x512xi32>
    %c3_i32 = arith.constant 3 : i32
    %144 = arith.addi %0, %c3_i32 : i32
    %c1640531527_i32_43 = arith.constant 1640531527 : i32
    %145 = arith.muli %144, %c1640531527_i32_43 : i32
    %146 = vector.broadcast %145 : i32 to vector<8x512xi32>
    %147 = arith.addi %143, %146 : vector<8x512xi32>
    %c668265263_i32_44 = arith.constant 668265263 : i32
    %148 = vector.broadcast %c668265263_i32_44 : i32 to vector<8x512xi32>
    %149 = arith.muli %147, %148 : vector<8x512xi32>
    %c15_i32_45 = arith.constant 15 : i32
    %150 = vector.broadcast %c15_i32_45 : i32 to vector<8x512xi32>
    %151 = arith.shrsi %149, %150 : vector<8x512xi32>
    %c131071_i32_46 = arith.constant 131071 : i32
    %152 = vector.broadcast %c131071_i32_46 : i32 to vector<8x512xi32>
    %153 = arith.andi %151, %152 : vector<8x512xi32>
    %154 = arith.xori %149, %153 : vector<8x512xi32>
    %c625341585_i32_47 = arith.constant 625341585 : i32
    %155 = vector.broadcast %c625341585_i32_47 : i32 to vector<8x512xi32>
    %156 = arith.muli %154, %155 : vector<8x512xi32>
    %c13_i32_48 = arith.constant 13 : i32
    %157 = vector.broadcast %c13_i32_48 : i32 to vector<8x512xi32>
    %158 = arith.shrsi %156, %157 : vector<8x512xi32>
    %c524287_i32_49 = arith.constant 524287 : i32
    %159 = vector.broadcast %c524287_i32_49 : i32 to vector<8x512xi32>
    %160 = arith.andi %158, %159 : vector<8x512xi32>
    %161 = arith.xori %156, %160 : vector<8x512xi32>
    %c1640531527_i32_50 = arith.constant 1640531527 : i32
    %162 = vector.broadcast %c1640531527_i32_50 : i32 to vector<8x512xi32>
    %163 = arith.muli %161, %162 : vector<8x512xi32>
    %c16_i32_51 = arith.constant 16 : i32
    %164 = vector.broadcast %c16_i32_51 : i32 to vector<8x512xi32>
    %165 = arith.shrsi %163, %164 : vector<8x512xi32>
    %c65535_i32_52 = arith.constant 65535 : i32
    %166 = vector.broadcast %c65535_i32_52 : i32 to vector<8x512xi32>
    %167 = arith.andi %165, %166 : vector<8x512xi32>
    %168 = arith.xori %163, %167 : vector<8x512xi32>
    %c8388607_i32_53 = arith.constant 8388607 : i32
    %169 = vector.broadcast %c8388607_i32_53 : i32 to vector<8x512xi32>
    %170 = arith.andi %168, %169 : vector<8x512xi32>
    %171 = arith.sitofp %170 : vector<8x512xi32> to vector<8x512xf32>
    %cst_54 = arith.constant 1.1920929E-7 : f32
    %172 = vector.broadcast %cst_54 : f32 to vector<8x512xf32>
    %173 = arith.mulf %171, %172 : vector<8x512xf32>
    %cst_55 = arith.constant 1.000000e-07 : f32
    %174 = vector.broadcast %cst_55 : f32 to vector<8x512xf32>
    %175 = arith.addf %173, %174 : vector<8x512xf32>
    %cst_56 = arith.constant 1.000000e+00 : f32
    %176 = vector.broadcast %cst_56 : f32 to vector<8x512xf32>
    %177 = arith.subf %176, %173 : vector<8x512xf32>
    %cst_57 = arith.constant 1.000000e-07 : f32
    %178 = vector.broadcast %cst_57 : f32 to vector<8x512xf32>
    %179 = arith.addf %177, %178 : vector<8x512xf32>
    %180 = arith.divf %175, %179 : vector<8x512xf32>
    %181 = math.log %180 : vector<8x512xf32>
    %cst_58 = arith.constant -2.19722366 : f32
    %182 = vector.broadcast %cst_58 : f32 to vector<8x512xf32>
    %183 = arith.addf %182, %181 : vector<8x512xf32>
    %cst_59 = arith.constant 1.000000e+01 : f32
    %184 = vector.broadcast %cst_59 : f32 to vector<8x512xf32>
    %185 = arith.mulf %183, %184 : vector<8x512xf32>
    %186 = arith.negf %185 : vector<8x512xf32>
    %187 = math.exp %186 : vector<8x512xf32>
    %cst_60 = arith.constant 1.000000e+00 : f32
    %188 = vector.broadcast %cst_60 : f32 to vector<8x512xf32>
    %189 = arith.addf %188, %187 : vector<8x512xf32>
    %190 = arith.divf %188, %189 : vector<8x512xf32>
    %cst_61 = arith.constant 1.000000e+00 : f32
    %191 = vector.broadcast %cst_61 : f32 to vector<8x512xf32>
    %192 = arith.subf %191, %190 : vector<8x512xf32>
    %193 = arith.mulf %136, %192 : vector<8x512xf32>
    %cst_62 = arith.constant 1.11111116 : f32
    %194 = vector.broadcast %cst_62 : f32 to vector<8x512xf32>
    %195 = arith.mulf %193, %194 : vector<8x512xf32>
    %196 = arith.truncf %195 : vector<8x512xf32> to vector<8x512xbf16>
    %c0_63 = arith.constant 0 : index
    %c0_64 = arith.constant 0 : index
    %197 = vector.load %arg7[%c0_63, %c0_64] : memref<512x384xbf16, #tpu.memory_space<vmem>>, vector<512x384xbf16>
    %cst_65 = arith.constant dense<0.000000e+00> : vector<8x384xf32>
    %198 = tpu.matmul %196, %197, %cst_65 {dimension_numbers = #tpu.dot_dimension_numbers<[1], [0], [0], [1], [0, 0, 1, 1], [], []>} : vector<8x512xbf16>, vector<512x384xbf16>, vector<8x384xf32> -> vector<8x384xf32>
    %c0_66 = arith.constant 0 : index
    %c0_67 = arith.constant 0 : index
    %199 = vector.load %arg8[%c0_66, %c0_67] : memref<1x384xf32, #tpu.memory_space<vmem>>, vector<1x384xf32>
    %200 = vector.broadcast %199 : vector<1x384xf32> to vector<8x384xf32>
    %201 = arith.addf %198, %200 : vector<8x384xf32>
    %cst_68 = arith.constant 0.000000e+00 : f32
    %202 = vector.broadcast %cst_68 : f32 to vector<8x384xf32>
    %203 = arith.maximumf %201, %202 : vector<8x384xf32>
    %204 = tpu.iota {dimensions = array<i32: 0>} : vector<8x384xi32>
    %205 = vector.broadcast %1 : i32 to vector<8x384xi32>
    %206 = arith.addi %205, %204 : vector<8x384xi32>
    %207 = tpu.iota {dimensions = array<i32: 1>} : vector<8x384xi32>
    %c384_i32 = arith.constant 384 : i32
    %208 = vector.broadcast %c384_i32 : i32 to vector<8x384xi32>
    %209 = arith.muli %206, %208 : vector<8x384xi32>
    %210 = arith.addi %209, %207 : vector<8x384xi32>
    %c4_i32 = arith.constant 4 : i32
    %211 = arith.addi %0, %c4_i32 : i32
    %c1640531527_i32_69 = arith.constant 1640531527 : i32
    %212 = arith.muli %211, %c1640531527_i32_69 : i32
    %213 = vector.broadcast %212 : i32 to vector<8x384xi32>
    %214 = arith.addi %210, %213 : vector<8x384xi32>
    %c668265263_i32_70 = arith.constant 668265263 : i32
    %215 = vector.broadcast %c668265263_i32_70 : i32 to vector<8x384xi32>
    %216 = arith.muli %214, %215 : vector<8x384xi32>
    %c15_i32_71 = arith.constant 15 : i32
    %217 = vector.broadcast %c15_i32_71 : i32 to vector<8x384xi32>
    %218 = arith.shrsi %216, %217 : vector<8x384xi32>
    %c131071_i32_72 = arith.constant 131071 : i32
    %219 = vector.broadcast %c131071_i32_72 : i32 to vector<8x384xi32>
    %220 = arith.andi %218, %219 : vector<8x384xi32>
    %221 = arith.xori %216, %220 : vector<8x384xi32>
    %c625341585_i32_73 = arith.constant 625341585 : i32
    %222 = vector.broadcast %c625341585_i32_73 : i32 to vector<8x384xi32>
    %223 = arith.muli %221, %222 : vector<8x384xi32>
    %c13_i32_74 = arith.constant 13 : i32
    %224 = vector.broadcast %c13_i32_74 : i32 to vector<8x384xi32>
    %225 = arith.shrsi %223, %224 : vector<8x384xi32>
    %c524287_i32_75 = arith.constant 524287 : i32
    %226 = vector.broadcast %c524287_i32_75 : i32 to vector<8x384xi32>
    %227 = arith.andi %225, %226 : vector<8x384xi32>
    %228 = arith.xori %223, %227 : vector<8x384xi32>
    %c1640531527_i32_76 = arith.constant 1640531527 : i32
    %229 = vector.broadcast %c1640531527_i32_76 : i32 to vector<8x384xi32>
    %230 = arith.muli %228, %229 : vector<8x384xi32>
    %c16_i32_77 = arith.constant 16 : i32
    %231 = vector.broadcast %c16_i32_77 : i32 to vector<8x384xi32>
    %232 = arith.shrsi %230, %231 : vector<8x384xi32>
    %c65535_i32_78 = arith.constant 65535 : i32
    %233 = vector.broadcast %c65535_i32_78 : i32 to vector<8x384xi32>
    %234 = arith.andi %232, %233 : vector<8x384xi32>
    %235 = arith.xori %230, %234 : vector<8x384xi32>
    %c8388607_i32_79 = arith.constant 8388607 : i32
    %236 = vector.broadcast %c8388607_i32_79 : i32 to vector<8x384xi32>
    %237 = arith.andi %235, %236 : vector<8x384xi32>
    %238 = arith.sitofp %237 : vector<8x384xi32> to vector<8x384xf32>
    %cst_80 = arith.constant 1.1920929E-7 : f32
    %239 = vector.broadcast %cst_80 : f32 to vector<8x384xf32>
    %240 = arith.mulf %238, %239 : vector<8x384xf32>
    %cst_81 = arith.constant 1.000000e-07 : f32
    %241 = vector.broadcast %cst_81 : f32 to vector<8x384xf32>
    %242 = arith.addf %240, %241 : vector<8x384xf32>
    %cst_82 = arith.constant 1.000000e+00 : f32
    %243 = vector.broadcast %cst_82 : f32 to vector<8x384xf32>
    %244 = arith.subf %243, %240 : vector<8x384xf32>
    %cst_83 = arith.constant 1.000000e-07 : f32
    %245 = vector.broadcast %cst_83 : f32 to vector<8x384xf32>
    %246 = arith.addf %244, %245 : vector<8x384xf32>
    %247 = arith.divf %242, %246 : vector<8x384xf32>
    %248 = math.log %247 : vector<8x384xf32>
    %cst_84 = arith.constant -2.19722366 : f32
    %249 = vector.broadcast %cst_84 : f32 to vector<8x384xf32>
    %250 = arith.addf %249, %248 : vector<8x384xf32>
    %cst_85 = arith.constant 1.000000e+01 : f32
    %251 = vector.broadcast %cst_85 : f32 to vector<8x384xf32>
    %252 = arith.mulf %250, %251 : vector<8x384xf32>
    %253 = arith.negf %252 : vector<8x384xf32>
    %254 = math.exp %253 : vector<8x384xf32>
    %cst_86 = arith.constant 1.000000e+00 : f32
    %255 = vector.broadcast %cst_86 : f32 to vector<8x384xf32>
    %256 = arith.addf %255, %254 : vector<8x384xf32>
    %257 = arith.divf %255, %256 : vector<8x384xf32>
    %cst_87 = arith.constant 1.000000e+00 : f32
    %258 = vector.broadcast %cst_87 : f32 to vector<8x384xf32>
    %259 = arith.subf %258, %257 : vector<8x384xf32>
    %260 = arith.mulf %203, %259 : vector<8x384xf32>
    %cst_88 = arith.constant 1.11111116 : f32
    %261 = vector.broadcast %cst_88 : f32 to vector<8x384xf32>
    %262 = arith.mulf %260, %261 : vector<8x384xf32>
    %263 = arith.truncf %262 : vector<8x384xf32> to vector<8x384xbf16>
    %c0_89 = arith.constant 0 : index
    %c0_90 = arith.constant 0 : index
    %264 = vector.load %arg9[%c0_89, %c0_90] : memref<384x256xbf16, #tpu.memory_space<vmem>>, vector<384x256xbf16>
    %cst_91 = arith.constant dense<0.000000e+00> : vector<8x256xf32>
    %265 = tpu.matmul %263, %264, %cst_91 {dimension_numbers = #tpu.dot_dimension_numbers<[1], [0], [0], [1], [0, 0, 1, 1], [], []>} : vector<8x384xbf16>, vector<384x256xbf16>, vector<8x256xf32> -> vector<8x256xf32>
    %c0_92 = arith.constant 0 : index
    %c0_93 = arith.constant 0 : index
    %266 = vector.load %arg10[%c0_92, %c0_93] : memref<1x256xf32, #tpu.memory_space<vmem>>, vector<1x256xf32>
    %267 = vector.broadcast %266 : vector<1x256xf32> to vector<8x256xf32>
    %268 = arith.addf %265, %267 : vector<8x256xf32>
    %cst_94 = arith.constant 0.000000e+00 : f32
    %269 = vector.broadcast %cst_94 : f32 to vector<8x256xf32>
    %270 = arith.maximumf %268, %269 : vector<8x256xf32>
    %271 = tpu.iota {dimensions = array<i32: 0>} : vector<8x256xi32>
    %272 = vector.broadcast %1 : i32 to vector<8x256xi32>
    %273 = arith.addi %272, %271 : vector<8x256xi32>
    %274 = tpu.iota {dimensions = array<i32: 1>} : vector<8x256xi32>
    %c256_i32 = arith.constant 256 : i32
    %275 = vector.broadcast %c256_i32 : i32 to vector<8x256xi32>
    %276 = arith.muli %273, %275 : vector<8x256xi32>
    %277 = arith.addi %276, %274 : vector<8x256xi32>
    %c5_i32 = arith.constant 5 : i32
    %278 = arith.addi %0, %c5_i32 : i32
    %c1640531527_i32_95 = arith.constant 1640531527 : i32
    %279 = arith.muli %278, %c1640531527_i32_95 : i32
    %280 = vector.broadcast %279 : i32 to vector<8x256xi32>
    %281 = arith.addi %277, %280 : vector<8x256xi32>
    %c668265263_i32_96 = arith.constant 668265263 : i32
    %282 = vector.broadcast %c668265263_i32_96 : i32 to vector<8x256xi32>
    %283 = arith.muli %281, %282 : vector<8x256xi32>
    %c15_i32_97 = arith.constant 15 : i32
    %284 = vector.broadcast %c15_i32_97 : i32 to vector<8x256xi32>
    %285 = arith.shrsi %283, %284 : vector<8x256xi32>
    %c131071_i32_98 = arith.constant 131071 : i32
    %286 = vector.broadcast %c131071_i32_98 : i32 to vector<8x256xi32>
    %287 = arith.andi %285, %286 : vector<8x256xi32>
    %288 = arith.xori %283, %287 : vector<8x256xi32>
    %c625341585_i32_99 = arith.constant 625341585 : i32
    %289 = vector.broadcast %c625341585_i32_99 : i32 to vector<8x256xi32>
    %290 = arith.muli %288, %289 : vector<8x256xi32>
    %c13_i32_100 = arith.constant 13 : i32
    %291 = vector.broadcast %c13_i32_100 : i32 to vector<8x256xi32>
    %292 = arith.shrsi %290, %291 : vector<8x256xi32>
    %c524287_i32_101 = arith.constant 524287 : i32
    %293 = vector.broadcast %c524287_i32_101 : i32 to vector<8x256xi32>
    %294 = arith.andi %292, %293 : vector<8x256xi32>
    %295 = arith.xori %290, %294 : vector<8x256xi32>
    %c1640531527_i32_102 = arith.constant 1640531527 : i32
    %296 = vector.broadcast %c1640531527_i32_102 : i32 to vector<8x256xi32>
    %297 = arith.muli %295, %296 : vector<8x256xi32>
    %c16_i32_103 = arith.constant 16 : i32
    %298 = vector.broadcast %c16_i32_103 : i32 to vector<8x256xi32>
    %299 = arith.shrsi %297, %298 : vector<8x256xi32>
    %c65535_i32_104 = arith.constant 65535 : i32
    %300 = vector.broadcast %c65535_i32_104 : i32 to vector<8x256xi32>
    %301 = arith.andi %299, %300 : vector<8x256xi32>
    %302 = arith.xori %297, %301 : vector<8x256xi32>
    %c8388607_i32_105 = arith.constant 8388607 : i32
    %303 = vector.broadcast %c8388607_i32_105 : i32 to vector<8x256xi32>
    %304 = arith.andi %302, %303 : vector<8x256xi32>
    %305 = arith.sitofp %304 : vector<8x256xi32> to vector<8x256xf32>
    %cst_106 = arith.constant 1.1920929E-7 : f32
    %306 = vector.broadcast %cst_106 : f32 to vector<8x256xf32>
    %307 = arith.mulf %305, %306 : vector<8x256xf32>
    %cst_107 = arith.constant 1.000000e-07 : f32
    %308 = vector.broadcast %cst_107 : f32 to vector<8x256xf32>
    %309 = arith.addf %307, %308 : vector<8x256xf32>
    %cst_108 = arith.constant 1.000000e+00 : f32
    %310 = vector.broadcast %cst_108 : f32 to vector<8x256xf32>
    %311 = arith.subf %310, %307 : vector<8x256xf32>
    %cst_109 = arith.constant 1.000000e-07 : f32
    %312 = vector.broadcast %cst_109 : f32 to vector<8x256xf32>
    %313 = arith.addf %311, %312 : vector<8x256xf32>
    %314 = arith.divf %309, %313 : vector<8x256xf32>
    %315 = math.log %314 : vector<8x256xf32>
    %cst_110 = arith.constant -2.19722366 : f32
    %316 = vector.broadcast %cst_110 : f32 to vector<8x256xf32>
    %317 = arith.addf %316, %315 : vector<8x256xf32>
    %cst_111 = arith.constant 1.000000e+01 : f32
    %318 = vector.broadcast %cst_111 : f32 to vector<8x256xf32>
    %319 = arith.mulf %317, %318 : vector<8x256xf32>
    %320 = arith.negf %319 : vector<8x256xf32>
    %321 = math.exp %320 : vector<8x256xf32>
    %cst_112 = arith.constant 1.000000e+00 : f32
    %322 = vector.broadcast %cst_112 : f32 to vector<8x256xf32>
    %323 = arith.addf %322, %321 : vector<8x256xf32>
    %324 = arith.divf %322, %323 : vector<8x256xf32>
    %cst_113 = arith.constant 1.000000e+00 : f32
    %325 = vector.broadcast %cst_113 : f32 to vector<8x256xf32>
    %326 = arith.subf %325, %324 : vector<8x256xf32>
    %327 = arith.mulf %270, %326 : vector<8x256xf32>
    %cst_114 = arith.constant 1.11111116 : f32
    %328 = vector.broadcast %cst_114 : f32 to vector<8x256xf32>
    %329 = arith.mulf %327, %328 : vector<8x256xf32>
    %330 = arith.truncf %329 : vector<8x256xf32> to vector<8x256xbf16>
    %c0_115 = arith.constant 0 : index
    %c0_116 = arith.constant 0 : index
    %331 = vector.load %arg11[%c0_115, %c0_116] : memref<256x128xbf16, #tpu.memory_space<vmem>>, vector<256x128xbf16>
    %cst_117 = arith.constant dense<0.000000e+00> : vector<8x128xf32>
    %332 = tpu.matmul %330, %331, %cst_117 {dimension_numbers = #tpu.dot_dimension_numbers<[1], [0], [0], [1], [0, 0, 1, 1], [], []>} : vector<8x256xbf16>, vector<256x128xbf16>, vector<8x128xf32> -> vector<8x128xf32>
    %c0_118 = arith.constant 0 : index
    %c0_119 = arith.constant 0 : index
    %333 = vector.load %arg12[%c0_118, %c0_119] : memref<1x128xf32, #tpu.memory_space<vmem>>, vector<1x128xf32>
    %334 = vector.broadcast %333 : vector<1x128xf32> to vector<8x128xf32>
    %335 = arith.addf %332, %334 : vector<8x128xf32>
    %336 = arith.negf %335 : vector<8x128xf32>
    %337 = math.exp %336 : vector<8x128xf32>
    %cst_120 = arith.constant 1.000000e+00 : f32
    %338 = vector.broadcast %cst_120 : f32 to vector<8x128xf32>
    %339 = arith.addf %338, %337 : vector<8x128xf32>
    %340 = arith.divf %338, %339 : vector<8x128xf32>
    %341 = tpu.iota {dimensions = array<i32: 0>} : vector<8x128xi32>
    %342 = vector.broadcast %1 : i32 to vector<8x128xi32>
    %343 = arith.addi %342, %341 : vector<8x128xi32>
    %344 = tpu.iota {dimensions = array<i32: 1>} : vector<8x128xi32>
    %c128_i32 = arith.constant 128 : i32
    %345 = vector.broadcast %c128_i32 : i32 to vector<8x128xi32>
    %346 = arith.muli %343, %345 : vector<8x128xi32>
    %347 = arith.addi %346, %344 : vector<8x128xi32>
    %c6_i32 = arith.constant 6 : i32
    %348 = arith.addi %0, %c6_i32 : i32
    %c1640531527_i32_121 = arith.constant 1640531527 : i32
    %349 = arith.muli %348, %c1640531527_i32_121 : i32
    %350 = vector.broadcast %349 : i32 to vector<8x128xi32>
    %351 = arith.addi %347, %350 : vector<8x128xi32>
    %c668265263_i32_122 = arith.constant 668265263 : i32
    %352 = vector.broadcast %c668265263_i32_122 : i32 to vector<8x128xi32>
    %353 = arith.muli %351, %352 : vector<8x128xi32>
    %c15_i32_123 = arith.constant 15 : i32
    %354 = vector.broadcast %c15_i32_123 : i32 to vector<8x128xi32>
    %355 = arith.shrsi %353, %354 : vector<8x128xi32>
    %c131071_i32_124 = arith.constant 131071 : i32
    %356 = vector.broadcast %c131071_i32_124 : i32 to vector<8x128xi32>
    %357 = arith.andi %355, %356 : vector<8x128xi32>
    %358 = arith.xori %353, %357 : vector<8x128xi32>
    %c625341585_i32_125 = arith.constant 625341585 : i32
    %359 = vector.broadcast %c625341585_i32_125 : i32 to vector<8x128xi32>
    %360 = arith.muli %358, %359 : vector<8x128xi32>
    %c13_i32_126 = arith.constant 13 : i32
    %361 = vector.broadcast %c13_i32_126 : i32 to vector<8x128xi32>
    %362 = arith.shrsi %360, %361 : vector<8x128xi32>
    %c524287_i32_127 = arith.constant 524287 : i32
    %363 = vector.broadcast %c524287_i32_127 : i32 to vector<8x128xi32>
    %364 = arith.andi %362, %363 : vector<8x128xi32>
    %365 = arith.xori %360, %364 : vector<8x128xi32>
    %c1640531527_i32_128 = arith.constant 1640531527 : i32
    %366 = vector.broadcast %c1640531527_i32_128 : i32 to vector<8x128xi32>
    %367 = arith.muli %365, %366 : vector<8x128xi32>
    %c16_i32_129 = arith.constant 16 : i32
    %368 = vector.broadcast %c16_i32_129 : i32 to vector<8x128xi32>
    %369 = arith.shrsi %367, %368 : vector<8x128xi32>
    %c65535_i32_130 = arith.constant 65535 : i32
    %370 = vector.broadcast %c65535_i32_130 : i32 to vector<8x128xi32>
    %371 = arith.andi %369, %370 : vector<8x128xi32>
    %372 = arith.xori %367, %371 : vector<8x128xi32>
    %c8388607_i32_131 = arith.constant 8388607 : i32
    %373 = vector.broadcast %c8388607_i32_131 : i32 to vector<8x128xi32>
    %374 = arith.andi %372, %373 : vector<8x128xi32>
    %375 = arith.sitofp %374 : vector<8x128xi32> to vector<8x128xf32>
    %cst_132 = arith.constant 1.1920929E-7 : f32
    %376 = vector.broadcast %cst_132 : f32 to vector<8x128xf32>
    %377 = arith.mulf %375, %376 : vector<8x128xf32>
    %cst_133 = arith.constant 1.000000e-07 : f32
    %378 = vector.broadcast %cst_133 : f32 to vector<8x128xf32>
    %379 = arith.addf %377, %378 : vector<8x128xf32>
    %cst_134 = arith.constant 1.000000e+00 : f32
    %380 = vector.broadcast %cst_134 : f32 to vector<8x128xf32>
    %381 = arith.subf %380, %377 : vector<8x128xf32>
    %cst_135 = arith.constant 1.000000e-07 : f32
    %382 = vector.broadcast %cst_135 : f32 to vector<8x128xf32>
    %383 = arith.addf %381, %382 : vector<8x128xf32>
    %384 = arith.divf %379, %383 : vector<8x128xf32>
    %385 = math.log %384 : vector<8x128xf32>
    %cst_136 = arith.constant -2.19722366 : f32
    %386 = vector.broadcast %cst_136 : f32 to vector<8x128xf32>
    %387 = arith.addf %386, %385 : vector<8x128xf32>
    %cst_137 = arith.constant 1.000000e+01 : f32
    %388 = vector.broadcast %cst_137 : f32 to vector<8x128xf32>
    %389 = arith.mulf %387, %388 : vector<8x128xf32>
    %390 = arith.negf %389 : vector<8x128xf32>
    %391 = math.exp %390 : vector<8x128xf32>
    %cst_138 = arith.constant 1.000000e+00 : f32
    %392 = vector.broadcast %cst_138 : f32 to vector<8x128xf32>
    %393 = arith.addf %392, %391 : vector<8x128xf32>
    %394 = arith.divf %392, %393 : vector<8x128xf32>
    %cst_139 = arith.constant 1.000000e+00 : f32
    %395 = vector.broadcast %cst_139 : f32 to vector<8x128xf32>
    %396 = arith.subf %395, %394 : vector<8x128xf32>
    %397 = arith.mulf %340, %396 : vector<8x128xf32>
    %cst_140 = arith.constant 1.11111116 : f32
    %398 = vector.broadcast %cst_140 : f32 to vector<8x128xf32>
    %399 = arith.mulf %397, %398 : vector<8x128xf32>
    %400 = arith.truncf %399 : vector<8x128xf32> to vector<8x128xbf16>
    %c0_141 = arith.constant 0 : index
    %c0_142 = arith.constant 0 : index
    %401 = vector.load %arg13[%c0_141, %c0_142] : memref<128x256xbf16, #tpu.memory_space<vmem>>, vector<128x256xbf16>
    %cst_143 = arith.constant dense<0.000000e+00> : vector<8x256xf32>
    %402 = tpu.matmul %400, %401, %cst_143 {dimension_numbers = #tpu.dot_dimension_numbers<[1], [0], [0], [1], [0, 0, 1, 1], [], []>} : vector<8x128xbf16>, vector<128x256xbf16>, vector<8x256xf32> -> vector<8x256xf32>
    %c0_144 = arith.constant 0 : index
    %c0_145 = arith.constant 0 : index
    %403 = vector.load %arg14[%c0_144, %c0_145] : memref<1x256xf32, #tpu.memory_space<vmem>>, vector<1x256xf32>
    %404 = vector.broadcast %403 : vector<1x256xf32> to vector<8x256xf32>
    %405 = arith.addf %402, %404 : vector<8x256xf32>
    %cst_146 = arith.constant 0.000000e+00 : f32
    %406 = vector.broadcast %cst_146 : f32 to vector<8x256xf32>
    %407 = arith.maximumf %405, %406 : vector<8x256xf32>
    %408 = tpu.iota {dimensions = array<i32: 0>} : vector<8x256xi32>
    %409 = vector.broadcast %1 : i32 to vector<8x256xi32>
    %410 = arith.addi %409, %408 : vector<8x256xi32>
    %411 = tpu.iota {dimensions = array<i32: 1>} : vector<8x256xi32>
    %c256_i32_147 = arith.constant 256 : i32
    %412 = vector.broadcast %c256_i32_147 : i32 to vector<8x256xi32>
    %413 = arith.muli %410, %412 : vector<8x256xi32>
    %414 = arith.addi %413, %411 : vector<8x256xi32>
    %c7_i32 = arith.constant 7 : i32
    %415 = arith.addi %0, %c7_i32 : i32
    %c1640531527_i32_148 = arith.constant 1640531527 : i32
    %416 = arith.muli %415, %c1640531527_i32_148 : i32
    %417 = vector.broadcast %416 : i32 to vector<8x256xi32>
    %418 = arith.addi %414, %417 : vector<8x256xi32>
    %c668265263_i32_149 = arith.constant 668265263 : i32
    %419 = vector.broadcast %c668265263_i32_149 : i32 to vector<8x256xi32>
    %420 = arith.muli %418, %419 : vector<8x256xi32>
    %c15_i32_150 = arith.constant 15 : i32
    %421 = vector.broadcast %c15_i32_150 : i32 to vector<8x256xi32>
    %422 = arith.shrsi %420, %421 : vector<8x256xi32>
    %c131071_i32_151 = arith.constant 131071 : i32
    %423 = vector.broadcast %c131071_i32_151 : i32 to vector<8x256xi32>
    %424 = arith.andi %422, %423 : vector<8x256xi32>
    %425 = arith.xori %420, %424 : vector<8x256xi32>
    %c625341585_i32_152 = arith.constant 625341585 : i32
    %426 = vector.broadcast %c625341585_i32_152 : i32 to vector<8x256xi32>
    %427 = arith.muli %425, %426 : vector<8x256xi32>
    %c13_i32_153 = arith.constant 13 : i32
    %428 = vector.broadcast %c13_i32_153 : i32 to vector<8x256xi32>
    %429 = arith.shrsi %427, %428 : vector<8x256xi32>
    %c524287_i32_154 = arith.constant 524287 : i32
    %430 = vector.broadcast %c524287_i32_154 : i32 to vector<8x256xi32>
    %431 = arith.andi %429, %430 : vector<8x256xi32>
    %432 = arith.xori %427, %431 : vector<8x256xi32>
    %c1640531527_i32_155 = arith.constant 1640531527 : i32
    %433 = vector.broadcast %c1640531527_i32_155 : i32 to vector<8x256xi32>
    %434 = arith.muli %432, %433 : vector<8x256xi32>
    %c16_i32_156 = arith.constant 16 : i32
    %435 = vector.broadcast %c16_i32_156 : i32 to vector<8x256xi32>
    %436 = arith.shrsi %434, %435 : vector<8x256xi32>
    %c65535_i32_157 = arith.constant 65535 : i32
    %437 = vector.broadcast %c65535_i32_157 : i32 to vector<8x256xi32>
    %438 = arith.andi %436, %437 : vector<8x256xi32>
    %439 = arith.xori %434, %438 : vector<8x256xi32>
    %c8388607_i32_158 = arith.constant 8388607 : i32
    %440 = vector.broadcast %c8388607_i32_158 : i32 to vector<8x256xi32>
    %441 = arith.andi %439, %440 : vector<8x256xi32>
    %442 = arith.sitofp %441 : vector<8x256xi32> to vector<8x256xf32>
    %cst_159 = arith.constant 1.1920929E-7 : f32
    %443 = vector.broadcast %cst_159 : f32 to vector<8x256xf32>
    %444 = arith.mulf %442, %443 : vector<8x256xf32>
    %cst_160 = arith.constant 1.000000e-07 : f32
    %445 = vector.broadcast %cst_160 : f32 to vector<8x256xf32>
    %446 = arith.addf %444, %445 : vector<8x256xf32>
    %cst_161 = arith.constant 1.000000e+00 : f32
    %447 = vector.broadcast %cst_161 : f32 to vector<8x256xf32>
    %448 = arith.subf %447, %444 : vector<8x256xf32>
    %cst_162 = arith.constant 1.000000e-07 : f32
    %449 = vector.broadcast %cst_162 : f32 to vector<8x256xf32>
    %450 = arith.addf %448, %449 : vector<8x256xf32>
    %451 = arith.divf %446, %450 : vector<8x256xf32>
    %452 = math.log %451 : vector<8x256xf32>
    %cst_163 = arith.constant -2.19722366 : f32
    %453 = vector.broadcast %cst_163 : f32 to vector<8x256xf32>
    %454 = arith.addf %453, %452 : vector<8x256xf32>
    %cst_164 = arith.constant 1.000000e+01 : f32
    %455 = vector.broadcast %cst_164 : f32 to vector<8x256xf32>
    %456 = arith.mulf %454, %455 : vector<8x256xf32>
    %457 = arith.negf %456 : vector<8x256xf32>
    %458 = math.exp %457 : vector<8x256xf32>
    %cst_165 = arith.constant 1.000000e+00 : f32
    %459 = vector.broadcast %cst_165 : f32 to vector<8x256xf32>
    %460 = arith.addf %459, %458 : vector<8x256xf32>
    %461 = arith.divf %459, %460 : vector<8x256xf32>
    %cst_166 = arith.constant 1.000000e+00 : f32
    %462 = vector.broadcast %cst_166 : f32 to vector<8x256xf32>
    %463 = arith.subf %462, %461 : vector<8x256xf32>
    %464 = arith.mulf %407, %463 : vector<8x256xf32>
    %cst_167 = arith.constant 1.11111116 : f32
    %465 = vector.broadcast %cst_167 : f32 to vector<8x256xf32>
    %466 = arith.mulf %464, %465 : vector<8x256xf32>
    %467 = arith.truncf %466 : vector<8x256xf32> to vector<8x256xbf16>
    %c0_168 = arith.constant 0 : index
    %c0_169 = arith.constant 0 : index
    %468 = vector.load %arg15[%c0_168, %c0_169] : memref<256x384xbf16, #tpu.memory_space<vmem>>, vector<256x384xbf16>
    %cst_170 = arith.constant dense<0.000000e+00> : vector<8x384xf32>
    %469 = tpu.matmul %467, %468, %cst_170 {dimension_numbers = #tpu.dot_dimension_numbers<[1], [0], [0], [1], [0, 0, 1, 1], [], []>} : vector<8x256xbf16>, vector<256x384xbf16>, vector<8x384xf32> -> vector<8x384xf32>
    %c0_171 = arith.constant 0 : index
    %c0_172 = arith.constant 0 : index
    %470 = vector.load %arg16[%c0_171, %c0_172] : memref<1x384xf32, #tpu.memory_space<vmem>>, vector<1x384xf32>
    %471 = vector.broadcast %470 : vector<1x384xf32> to vector<8x384xf32>
    %472 = arith.addf %469, %471 : vector<8x384xf32>
    %cst_173 = arith.constant 0.000000e+00 : f32
    %473 = vector.broadcast %cst_173 : f32 to vector<8x384xf32>
    %474 = arith.maximumf %472, %473 : vector<8x384xf32>
    %475 = tpu.iota {dimensions = array<i32: 0>} : vector<8x384xi32>
    %476 = vector.broadcast %1 : i32 to vector<8x384xi32>
    %477 = arith.addi %476, %475 : vector<8x384xi32>
    %478 = tpu.iota {dimensions = array<i32: 1>} : vector<8x384xi32>
    %c384_i32_174 = arith.constant 384 : i32
    %479 = vector.broadcast %c384_i32_174 : i32 to vector<8x384xi32>
    %480 = arith.muli %477, %479 : vector<8x384xi32>
    %481 = arith.addi %480, %478 : vector<8x384xi32>
    %c8_i32_175 = arith.constant 8 : i32
    %482 = arith.addi %0, %c8_i32_175 : i32
    %c1640531527_i32_176 = arith.constant 1640531527 : i32
    %483 = arith.muli %482, %c1640531527_i32_176 : i32
    %484 = vector.broadcast %483 : i32 to vector<8x384xi32>
    %485 = arith.addi %481, %484 : vector<8x384xi32>
    %c668265263_i32_177 = arith.constant 668265263 : i32
    %486 = vector.broadcast %c668265263_i32_177 : i32 to vector<8x384xi32>
    %487 = arith.muli %485, %486 : vector<8x384xi32>
    %c15_i32_178 = arith.constant 15 : i32
    %488 = vector.broadcast %c15_i32_178 : i32 to vector<8x384xi32>
    %489 = arith.shrsi %487, %488 : vector<8x384xi32>
    %c131071_i32_179 = arith.constant 131071 : i32
    %490 = vector.broadcast %c131071_i32_179 : i32 to vector<8x384xi32>
    %491 = arith.andi %489, %490 : vector<8x384xi32>
    %492 = arith.xori %487, %491 : vector<8x384xi32>
    %c625341585_i32_180 = arith.constant 625341585 : i32
    %493 = vector.broadcast %c625341585_i32_180 : i32 to vector<8x384xi32>
    %494 = arith.muli %492, %493 : vector<8x384xi32>
    %c13_i32_181 = arith.constant 13 : i32
    %495 = vector.broadcast %c13_i32_181 : i32 to vector<8x384xi32>
    %496 = arith.shrsi %494, %495 : vector<8x384xi32>
    %c524287_i32_182 = arith.constant 524287 : i32
    %497 = vector.broadcast %c524287_i32_182 : i32 to vector<8x384xi32>
    %498 = arith.andi %496, %497 : vector<8x384xi32>
    %499 = arith.xori %494, %498 : vector<8x384xi32>
    %c1640531527_i32_183 = arith.constant 1640531527 : i32
    %500 = vector.broadcast %c1640531527_i32_183 : i32 to vector<8x384xi32>
    %501 = arith.muli %499, %500 : vector<8x384xi32>
    %c16_i32_184 = arith.constant 16 : i32
    %502 = vector.broadcast %c16_i32_184 : i32 to vector<8x384xi32>
    %503 = arith.shrsi %501, %502 : vector<8x384xi32>
    %c65535_i32_185 = arith.constant 65535 : i32
    %504 = vector.broadcast %c65535_i32_185 : i32 to vector<8x384xi32>
    %505 = arith.andi %503, %504 : vector<8x384xi32>
    %506 = arith.xori %501, %505 : vector<8x384xi32>
    %c8388607_i32_186 = arith.constant 8388607 : i32
    %507 = vector.broadcast %c8388607_i32_186 : i32 to vector<8x384xi32>
    %508 = arith.andi %506, %507 : vector<8x384xi32>
    %509 = arith.sitofp %508 : vector<8x384xi32> to vector<8x384xf32>
    %cst_187 = arith.constant 1.1920929E-7 : f32
    %510 = vector.broadcast %cst_187 : f32 to vector<8x384xf32>
    %511 = arith.mulf %509, %510 : vector<8x384xf32>
    %cst_188 = arith.constant 1.000000e-07 : f32
    %512 = vector.broadcast %cst_188 : f32 to vector<8x384xf32>
    %513 = arith.addf %511, %512 : vector<8x384xf32>
    %cst_189 = arith.constant 1.000000e+00 : f32
    %514 = vector.broadcast %cst_189 : f32 to vector<8x384xf32>
    %515 = arith.subf %514, %511 : vector<8x384xf32>
    %cst_190 = arith.constant 1.000000e-07 : f32
    %516 = vector.broadcast %cst_190 : f32 to vector<8x384xf32>
    %517 = arith.addf %515, %516 : vector<8x384xf32>
    %518 = arith.divf %513, %517 : vector<8x384xf32>
    %519 = math.log %518 : vector<8x384xf32>
    %cst_191 = arith.constant -2.19722366 : f32
    %520 = vector.broadcast %cst_191 : f32 to vector<8x384xf32>
    %521 = arith.addf %520, %519 : vector<8x384xf32>
    %cst_192 = arith.constant 1.000000e+01 : f32
    %522 = vector.broadcast %cst_192 : f32 to vector<8x384xf32>
    %523 = arith.mulf %521, %522 : vector<8x384xf32>
    %524 = arith.negf %523 : vector<8x384xf32>
    %525 = math.exp %524 : vector<8x384xf32>
    %cst_193 = arith.constant 1.000000e+00 : f32
    %526 = vector.broadcast %cst_193 : f32 to vector<8x384xf32>
    %527 = arith.addf %526, %525 : vector<8x384xf32>
    %528 = arith.divf %526, %527 : vector<8x384xf32>
    %cst_194 = arith.constant 1.000000e+00 : f32
    %529 = vector.broadcast %cst_194 : f32 to vector<8x384xf32>
    %530 = arith.subf %529, %528 : vector<8x384xf32>
    %531 = arith.mulf %474, %530 : vector<8x384xf32>
    %cst_195 = arith.constant 1.11111116 : f32
    %532 = vector.broadcast %cst_195 : f32 to vector<8x384xf32>
    %533 = arith.mulf %531, %532 : vector<8x384xf32>
    %534 = arith.truncf %533 : vector<8x384xf32> to vector<8x384xbf16>
    %c0_196 = arith.constant 0 : index
    %c0_197 = arith.constant 0 : index
    %535 = vector.load %arg17[%c0_196, %c0_197] : memref<384x512xbf16, #tpu.memory_space<vmem>>, vector<384x512xbf16>
    %cst_198 = arith.constant dense<0.000000e+00> : vector<8x512xf32>
    %536 = tpu.matmul %534, %535, %cst_198 {dimension_numbers = #tpu.dot_dimension_numbers<[1], [0], [0], [1], [0, 0, 1, 1], [], []>} : vector<8x384xbf16>, vector<384x512xbf16>, vector<8x512xf32> -> vector<8x512xf32>
    %c0_199 = arith.constant 0 : index
    %c0_200 = arith.constant 0 : index
    %537 = vector.load %arg18[%c0_199, %c0_200] : memref<1x512xf32, #tpu.memory_space<vmem>>, vector<1x512xf32>
    %538 = vector.broadcast %537 : vector<1x512xf32> to vector<8x512xf32>
    %539 = arith.addf %536, %538 : vector<8x512xf32>
    %cst_201 = arith.constant 0.000000e+00 : f32
    %540 = vector.broadcast %cst_201 : f32 to vector<8x512xf32>
    %541 = arith.maximumf %539, %540 : vector<8x512xf32>
    %542 = tpu.iota {dimensions = array<i32: 0>} : vector<8x512xi32>
    %543 = vector.broadcast %1 : i32 to vector<8x512xi32>
    %544 = arith.addi %543, %542 : vector<8x512xi32>
    %545 = tpu.iota {dimensions = array<i32: 1>} : vector<8x512xi32>
    %c512_i32_202 = arith.constant 512 : i32
    %546 = vector.broadcast %c512_i32_202 : i32 to vector<8x512xi32>
    %547 = arith.muli %544, %546 : vector<8x512xi32>
    %548 = arith.addi %547, %545 : vector<8x512xi32>
    %c9_i32 = arith.constant 9 : i32
    %549 = arith.addi %0, %c9_i32 : i32
    %c1640531527_i32_203 = arith.constant 1640531527 : i32
    %550 = arith.muli %549, %c1640531527_i32_203 : i32
    %551 = vector.broadcast %550 : i32 to vector<8x512xi32>
    %552 = arith.addi %548, %551 : vector<8x512xi32>
    %c668265263_i32_204 = arith.constant 668265263 : i32
    %553 = vector.broadcast %c668265263_i32_204 : i32 to vector<8x512xi32>
    %554 = arith.muli %552, %553 : vector<8x512xi32>
    %c15_i32_205 = arith.constant 15 : i32
    %555 = vector.broadcast %c15_i32_205 : i32 to vector<8x512xi32>
    %556 = arith.shrsi %554, %555 : vector<8x512xi32>
    %c131071_i32_206 = arith.constant 131071 : i32
    %557 = vector.broadcast %c131071_i32_206 : i32 to vector<8x512xi32>
    %558 = arith.andi %556, %557 : vector<8x512xi32>
    %559 = arith.xori %554, %558 : vector<8x512xi32>
    %c625341585_i32_207 = arith.constant 625341585 : i32
    %560 = vector.broadcast %c625341585_i32_207 : i32 to vector<8x512xi32>
    %561 = arith.muli %559, %560 : vector<8x512xi32>
    %c13_i32_208 = arith.constant 13 : i32
    %562 = vector.broadcast %c13_i32_208 : i32 to vector<8x512xi32>
    %563 = arith.shrsi %561, %562 : vector<8x512xi32>
    %c524287_i32_209 = arith.constant 524287 : i32
    %564 = vector.broadcast %c524287_i32_209 : i32 to vector<8x512xi32>
    %565 = arith.andi %563, %564 : vector<8x512xi32>
    %566 = arith.xori %561, %565 : vector<8x512xi32>
    %c1640531527_i32_210 = arith.constant 1640531527 : i32
    %567 = vector.broadcast %c1640531527_i32_210 : i32 to vector<8x512xi32>
    %568 = arith.muli %566, %567 : vector<8x512xi32>
    %c16_i32_211 = arith.constant 16 : i32
    %569 = vector.broadcast %c16_i32_211 : i32 to vector<8x512xi32>
    %570 = arith.shrsi %568, %569 : vector<8x512xi32>
    %c65535_i32_212 = arith.constant 65535 : i32
    %571 = vector.broadcast %c65535_i32_212 : i32 to vector<8x512xi32>
    %572 = arith.andi %570, %571 : vector<8x512xi32>
    %573 = arith.xori %568, %572 : vector<8x512xi32>
    %c8388607_i32_213 = arith.constant 8388607 : i32
    %574 = vector.broadcast %c8388607_i32_213 : i32 to vector<8x512xi32>
    %575 = arith.andi %573, %574 : vector<8x512xi32>
    %576 = arith.sitofp %575 : vector<8x512xi32> to vector<8x512xf32>
    %cst_214 = arith.constant 1.1920929E-7 : f32
    %577 = vector.broadcast %cst_214 : f32 to vector<8x512xf32>
    %578 = arith.mulf %576, %577 : vector<8x512xf32>
    %cst_215 = arith.constant 1.000000e-07 : f32
    %579 = vector.broadcast %cst_215 : f32 to vector<8x512xf32>
    %580 = arith.addf %578, %579 : vector<8x512xf32>
    %cst_216 = arith.constant 1.000000e+00 : f32
    %581 = vector.broadcast %cst_216 : f32 to vector<8x512xf32>
    %582 = arith.subf %581, %578 : vector<8x512xf32>
    %cst_217 = arith.constant 1.000000e-07 : f32
    %583 = vector.broadcast %cst_217 : f32 to vector<8x512xf32>
    %584 = arith.addf %582, %583 : vector<8x512xf32>
    %585 = arith.divf %580, %584 : vector<8x512xf32>
    %586 = math.log %585 : vector<8x512xf32>
    %cst_218 = arith.constant -2.19722366 : f32
    %587 = vector.broadcast %cst_218 : f32 to vector<8x512xf32>
    %588 = arith.addf %587, %586 : vector<8x512xf32>
    %cst_219 = arith.constant 1.000000e+01 : f32
    %589 = vector.broadcast %cst_219 : f32 to vector<8x512xf32>
    %590 = arith.mulf %588, %589 : vector<8x512xf32>
    %591 = arith.negf %590 : vector<8x512xf32>
    %592 = math.exp %591 : vector<8x512xf32>
    %cst_220 = arith.constant 1.000000e+00 : f32
    %593 = vector.broadcast %cst_220 : f32 to vector<8x512xf32>
    %594 = arith.addf %593, %592 : vector<8x512xf32>
    %595 = arith.divf %593, %594 : vector<8x512xf32>
    %cst_221 = arith.constant 1.000000e+00 : f32
    %596 = vector.broadcast %cst_221 : f32 to vector<8x512xf32>
    %597 = arith.subf %596, %595 : vector<8x512xf32>
    %598 = arith.mulf %541, %597 : vector<8x512xf32>
    %cst_222 = arith.constant 1.11111116 : f32
    %599 = vector.broadcast %cst_222 : f32 to vector<8x512xf32>
    %600 = arith.mulf %598, %599 : vector<8x512xf32>
    %601 = arith.truncf %600 : vector<8x512xf32> to vector<8x512xbf16>
    %c0_223 = arith.constant 0 : index
    %c0_224 = arith.constant 0 : index
    %602 = vector.load %arg19[%c0_223, %c0_224] : memref<512x640xbf16, #tpu.memory_space<vmem>>, vector<512x640xbf16>
    %cst_225 = arith.constant dense<0.000000e+00> : vector<8x640xf32>
    %603 = tpu.matmul %601, %602, %cst_225 {dimension_numbers = #tpu.dot_dimension_numbers<[1], [0], [0], [1], [0, 0, 1, 1], [], []>} : vector<8x512xbf16>, vector<512x640xbf16>, vector<8x640xf32> -> vector<8x640xf32>
    %c0_226 = arith.constant 0 : index
    %c0_227 = arith.constant 0 : index
    %604 = vector.load %arg20[%c0_226, %c0_227] : memref<1x640xf32, #tpu.memory_space<vmem>>, vector<1x640xf32>
    %605 = vector.broadcast %604 : vector<1x640xf32> to vector<8x640xf32>
    %606 = arith.addf %603, %605 : vector<8x640xf32>
    %cst_228 = arith.constant 0.000000e+00 : f32
    %607 = vector.broadcast %cst_228 : f32 to vector<8x640xf32>
    %608 = arith.maximumf %606, %607 : vector<8x640xf32>
    %609 = tpu.iota {dimensions = array<i32: 0>} : vector<8x640xi32>
    %610 = vector.broadcast %1 : i32 to vector<8x640xi32>
    %611 = arith.addi %610, %609 : vector<8x640xi32>
    %612 = tpu.iota {dimensions = array<i32: 1>} : vector<8x640xi32>
    %c640_i32_229 = arith.constant 640 : i32
    %613 = vector.broadcast %c640_i32_229 : i32 to vector<8x640xi32>
    %614 = arith.muli %611, %613 : vector<8x640xi32>
    %615 = arith.addi %614, %612 : vector<8x640xi32>
    %c10_i32 = arith.constant 10 : i32
    %616 = arith.addi %0, %c10_i32 : i32
    %c1640531527_i32_230 = arith.constant 1640531527 : i32
    %617 = arith.muli %616, %c1640531527_i32_230 : i32
    %618 = vector.broadcast %617 : i32 to vector<8x640xi32>
    %619 = arith.addi %615, %618 : vector<8x640xi32>
    %c668265263_i32_231 = arith.constant 668265263 : i32
    %620 = vector.broadcast %c668265263_i32_231 : i32 to vector<8x640xi32>
    %621 = arith.muli %619, %620 : vector<8x640xi32>
    %c15_i32_232 = arith.constant 15 : i32
    %622 = vector.broadcast %c15_i32_232 : i32 to vector<8x640xi32>
    %623 = arith.shrsi %621, %622 : vector<8x640xi32>
    %c131071_i32_233 = arith.constant 131071 : i32
    %624 = vector.broadcast %c131071_i32_233 : i32 to vector<8x640xi32>
    %625 = arith.andi %623, %624 : vector<8x640xi32>
    %626 = arith.xori %621, %625 : vector<8x640xi32>
    %c625341585_i32_234 = arith.constant 625341585 : i32
    %627 = vector.broadcast %c625341585_i32_234 : i32 to vector<8x640xi32>
    %628 = arith.muli %626, %627 : vector<8x640xi32>
    %c13_i32_235 = arith.constant 13 : i32
    %629 = vector.broadcast %c13_i32_235 : i32 to vector<8x640xi32>
    %630 = arith.shrsi %628, %629 : vector<8x640xi32>
    %c524287_i32_236 = arith.constant 524287 : i32
    %631 = vector.broadcast %c524287_i32_236 : i32 to vector<8x640xi32>
    %632 = arith.andi %630, %631 : vector<8x640xi32>
    %633 = arith.xori %628, %632 : vector<8x640xi32>
    %c1640531527_i32_237 = arith.constant 1640531527 : i32
    %634 = vector.broadcast %c1640531527_i32_237 : i32 to vector<8x640xi32>
    %635 = arith.muli %633, %634 : vector<8x640xi32>
    %c16_i32_238 = arith.constant 16 : i32
    %636 = vector.broadcast %c16_i32_238 : i32 to vector<8x640xi32>
    %637 = arith.shrsi %635, %636 : vector<8x640xi32>
    %c65535_i32_239 = arith.constant 65535 : i32
    %638 = vector.broadcast %c65535_i32_239 : i32 to vector<8x640xi32>
    %639 = arith.andi %637, %638 : vector<8x640xi32>
    %640 = arith.xori %635, %639 : vector<8x640xi32>
    %c8388607_i32_240 = arith.constant 8388607 : i32
    %641 = vector.broadcast %c8388607_i32_240 : i32 to vector<8x640xi32>
    %642 = arith.andi %640, %641 : vector<8x640xi32>
    %643 = arith.sitofp %642 : vector<8x640xi32> to vector<8x640xf32>
    %cst_241 = arith.constant 1.1920929E-7 : f32
    %644 = vector.broadcast %cst_241 : f32 to vector<8x640xf32>
    %645 = arith.mulf %643, %644 : vector<8x640xf32>
    %cst_242 = arith.constant 1.000000e-07 : f32
    %646 = vector.broadcast %cst_242 : f32 to vector<8x640xf32>
    %647 = arith.addf %645, %646 : vector<8x640xf32>
    %cst_243 = arith.constant 1.000000e+00 : f32
    %648 = vector.broadcast %cst_243 : f32 to vector<8x640xf32>
    %649 = arith.subf %648, %645 : vector<8x640xf32>
    %cst_244 = arith.constant 1.000000e-07 : f32
    %650 = vector.broadcast %cst_244 : f32 to vector<8x640xf32>
    %651 = arith.addf %649, %650 : vector<8x640xf32>
    %652 = arith.divf %647, %651 : vector<8x640xf32>
    %653 = math.log %652 : vector<8x640xf32>
    %cst_245 = arith.constant -2.19722366 : f32
    %654 = vector.broadcast %cst_245 : f32 to vector<8x640xf32>
    %655 = arith.addf %654, %653 : vector<8x640xf32>
    %cst_246 = arith.constant 1.000000e+01 : f32
    %656 = vector.broadcast %cst_246 : f32 to vector<8x640xf32>
    %657 = arith.mulf %655, %656 : vector<8x640xf32>
    %658 = arith.negf %657 : vector<8x640xf32>
    %659 = math.exp %658 : vector<8x640xf32>
    %cst_247 = arith.constant 1.000000e+00 : f32
    %660 = vector.broadcast %cst_247 : f32 to vector<8x640xf32>
    %661 = arith.addf %660, %659 : vector<8x640xf32>
    %662 = arith.divf %660, %661 : vector<8x640xf32>
    %cst_248 = arith.constant 1.000000e+00 : f32
    %663 = vector.broadcast %cst_248 : f32 to vector<8x640xf32>
    %664 = arith.subf %663, %662 : vector<8x640xf32>
    %665 = arith.mulf %608, %664 : vector<8x640xf32>
    %cst_249 = arith.constant 1.11111116 : f32
    %666 = vector.broadcast %cst_249 : f32 to vector<8x640xf32>
    %667 = arith.mulf %665, %666 : vector<8x640xf32>
    %668 = arith.truncf %667 : vector<8x640xf32> to vector<8x640xbf16>
    %c0_250 = arith.constant 0 : index
    %c0_251 = arith.constant 0 : index
    %669 = vector.load %arg21[%c0_250, %c0_251] : memref<640x896xbf16, #tpu.memory_space<vmem>>, vector<640x896xbf16>
    %cst_252 = arith.constant dense<0.000000e+00> : vector<8x896xf32>
    %670 = tpu.matmul %668, %669, %cst_252 {dimension_numbers = #tpu.dot_dimension_numbers<[1], [0], [0], [1], [0, 0, 1, 1], [], []>} : vector<8x640xbf16>, vector<640x896xbf16>, vector<8x896xf32> -> vector<8x896xf32>
    %c0_253 = arith.constant 0 : index
    %c0_254 = arith.constant 0 : index
    %671 = vector.load %arg22[%c0_253, %c0_254] : memref<1x896xf32, #tpu.memory_space<vmem>>, vector<1x896xf32>
    %672 = vector.broadcast %671 : vector<1x896xf32> to vector<8x896xf32>
    %673 = arith.addf %670, %672 : vector<8x896xf32>
    %674 = arith.negf %673 : vector<8x896xf32>
    %675 = math.exp %674 : vector<8x896xf32>
    %cst_255 = arith.constant 1.000000e+00 : f32
    %676 = vector.broadcast %cst_255 : f32 to vector<8x896xf32>
    %677 = arith.addf %676, %675 : vector<8x896xf32>
    %678 = arith.divf %676, %677 : vector<8x896xf32>
    %c0_256 = arith.constant 0 : index
    %c0_257 = arith.constant 0 : index
    %679 = vector.load %arg23[%c0_256, %c0_257] : memref<8x896xf32, #tpu.memory_space<vmem>>, vector<8x896xf32>
    tpu.vector_store %arg23[%c0_256, %c0_257], %678 {strides = array<i32>} : memref<8x896xf32, #tpu.memory_space<vmem>>, vector<8x896xf32>,
    return
  }
  func.func @transform_0(%arg0: i32) -> i32 {
    %c0_i32 = arith.constant 0 : i32
    %c0_i32_0 = arith.constant 0 : i32
    return %c0_i32 : i32
  }
  func.func @transform_1(%arg0: i32) -> (i32, i32) {
    %c0_i32 = arith.constant 0 : i32
    %c0_i32_0 = arith.constant 0 : i32
    return %arg0, %c0_i32 : i32, i32
  }
  func.func @transform_2(%arg0: i32) -> (i32, i32) {
    %c0_i32 = arith.constant 0 : i32
    %c0_i32_0 = arith.constant 0 : i32
    %c0_i32_1 = arith.constant 0 : i32
    return %c0_i32, %c0_i32_0 : i32, i32
  }
  func.func @transform_3(%arg0: i32) -> (i32, i32) {
    %c0_i32 = arith.constant 0 : i32
    %c0_i32_0 = arith.constant 0 : i32
    %c0_i32_1 = arith.constant 0 : i32
    return %c0_i32, %c0_i32_0 : i32, i32
  }
  func.func @transform_4(%arg0: i32) -> (i32, i32) {
    %c0_i32 = arith.constant 0 : i32
    %c0_i32_0 = arith.constant 0 : i32
    %c0_i32_1 = arith.constant 0 : i32
    return %c0_i32, %c0_i32_0 : i32, i32
  }
  func.func @transform_5(%arg0: i32) -> (i32, i32) {
    %c0_i32 = arith.constant 0 : i32
    %c0_i32_0 = arith.constant 0 : i32
    %c0_i32_1 = arith.constant 0 : i32
    return %c0_i32, %c0_i32_0 : i32, i32
  }
  func.func @transform_6(%arg0: i32) -> (i32, i32) {
    %c0_i32 = arith.constant 0 : i32
    %c0_i32_0 = arith.constant 0 : i32
    %c0_i32_1 = arith.constant 0 : i32
    return %c0_i32, %c0_i32_0 : i32, i32
  }
  func.func @transform_7(%arg0: i32) -> (i32, i32) {
    %c0_i32 = arith.constant 0 : i32
    %c0_i32_0 = arith.constant 0 : i32
    %c0_i32_1 = arith.constant 0 : i32
    return %c0_i32, %c0_i32_0 : i32, i32
  }
  func.func @transform_8(%arg0: i32) -> (i32, i32) {
    %c0_i32 = arith.constant 0 : i32
    %c0_i32_0 = arith.constant 0 : i32
    %c0_i32_1 = arith.constant 0 : i32
    return %c0_i32, %c0_i32_0 : i32, i32
  }
  func.func @transform_9(%arg0: i32) -> (i32, i32) {
    %c0_i32 = arith.constant 0 : i32
    %c0_i32_0 = arith.constant 0 : i32
    %c0_i32_1 = arith.constant 0 : i32
    return %c0_i32, %c0_i32_0 : i32, i32
  }
  func.func @transform_10(%arg0: i32) -> (i32, i32) {
    %c0_i32 = arith.constant 0 : i32
    %c0_i32_0 = arith.constant 0 : i32
    %c0_i32_1 = arith.constant 0 : i32
    return %c0_i32, %c0_i32_0 : i32, i32
  }
  func.func @transform_11(%arg0: i32) -> (i32, i32) {
    %c0_i32 = arith.constant 0 : i32
    %c0_i32_0 = arith.constant 0 : i32
    %c0_i32_1 = arith.constant 0 : i32
    return %c0_i32, %c0_i32_0 : i32, i32
  }
  func.func @transform_12(%arg0: i32) -> (i32, i32) {
    %c0_i32 = arith.constant 0 : i32
    %c0_i32_0 = arith.constant 0 : i32
    %c0_i32_1 = arith.constant 0 : i32
    return %c0_i32, %c0_i32_0 : i32, i32
  }
  func.func @transform_13(%arg0: i32) -> (i32, i32) {
    %c0_i32 = arith.constant 0 : i32
    %c0_i32_0 = arith.constant 0 : i32
    %c0_i32_1 = arith.constant 0 : i32
    return %c0_i32, %c0_i32_0 : i32, i32
  }
  func.func @transform_14(%arg0: i32) -> (i32, i32) {
    %c0_i32 = arith.constant 0 : i32
    %c0_i32_0 = arith.constant 0 : i32
    %c0_i32_1 = arith.constant 0 : i32
    return %c0_i32, %c0_i32_0 : i32, i32
  }
  func.func @transform_15(%arg0: i32) -> (i32, i32) {
    %c0_i32 = arith.constant 0 : i32
    %c0_i32_0 = arith.constant 0 : i32
    %c0_i32_1 = arith.constant 0 : i32
    return %c0_i32, %c0_i32_0 : i32, i32
  }
  func.func @transform_16(%arg0: i32) -> (i32, i32) {
    %c0_i32 = arith.constant 0 : i32
    %c0_i32_0 = arith.constant 0 : i32
    %c0_i32_1 = arith.constant 0 : i32
    return %c0_i32, %c0_i32_0 : i32, i32
  }
  func.func @transform_17(%arg0: i32) -> (i32, i32) {
    %c0_i32 = arith.constant 0 : i32
    %c0_i32_0 = arith.constant 0 : i32
    %c0_i32_1 = arith.constant 0 : i32
    return %c0_i32, %c0_i32_0 : i32, i32
  }
  func.func @transform_18(%arg0: i32) -> (i32, i32) {
    %c0_i32 = arith.constant 0 : i32
    %c0_i32_0 = arith.constant 0 : i32
    %c0_i32_1 = arith.constant 0 : i32
    return %c0_i32, %c0_i32_0 : i32, i32
  }
  func.func @transform_19(%arg0: i32) -> (i32, i32) {
    %c0_i32 = arith.constant 0 : i32
    %c0_i32_0 = arith.constant 0 : i32
    %c0_i32_1 = arith.constant 0 : i32
    return %c0_i32, %c0_i32_0 : i32, i32
  }
  func.func @transform_20(%arg0: i32) -> (i32, i32) {
    %c0_i32 = arith.constant 0 : i32
    %c0_i32_0 = arith.constant 0 : i32
    %c0_i32_1 = arith.constant 0 : i32
    return %c0_i32, %c0_i32_0 : i32, i32
  }
  func.func @transform_21(%arg0: i32) -> (i32, i32) {
    %c0_i32 = arith.constant 0 : i32
    %c0_i32_0 = arith.constant 0 : i32
    %c0_i32_1 = arith.constant 0 : i32
    return %c0_i32, %c0_i32_0 : i32, i32
  }
  func.func @transform_22(%arg0: i32) -> (i32, i32) {
    %c0_i32 = arith.constant 0 : i32
    %c0_i32_0 = arith.constant 0 : i32
    return %arg0, %c0_i32 : i32, i32
  }
}

</mosaic_0001>

<llo_original>
// kernel: dropout_autoencoder_forward.1
$region0: #{dropout_autoencoder_forward.1}
  #allocation0 [shape = 'u32[]', space=smem, size = 0x4, offset = 0x4, fixed_abs, tag = 'smem constant byte address 0x4 - core index']
  #allocation1 [shape = 'u32[144,128]{1,0:T(1,128)}', space=vmem, size = 0x12000, scoped, tag = 'internal scratch']
  #allocation2 [shape = 's32[1]{0:T(128)S(6)}', space=smem, size = 0x200, scoped, tag = 'scoped memory for dropout_autoencoder_forward.1']
  %s0 = inlined_call_operand.<no memory space> [shape: s32[1], index: 0, kind: input, shape index: {}]
  %s1 = inlined_call_operand.vmem [shape: f32[8,896], index: 1, kind: input, shape index: {}]
  %s2 = inlined_call_operand.hbm [shape: bf16[896,640], index: 2, kind: input, shape index: {}]
  %s3 = inlined_call_operand.hbm [shape: f32[1,640], index: 3, kind: input, shape index: {}]
  %s4 = inlined_call_operand.hbm [shape: bf16[640,512], index: 4, kind: input, shape index: {}]
  %s5 = inlined_call_operand.hbm [shape: f32[1,512], index: 5, kind: input, shape index: {}]
  %s6 = inlined_call_operand.hbm [shape: bf16[512,384], index: 6, kind: input, shape index: {}]
  %s7 = inlined_call_operand.hbm [shape: f32[1,384], index: 7, kind: input, shape index: {}]
  %s8 = inlined_call_operand.hbm [shape: bf16[384,256], index: 8, kind: input, shape index: {}]
  %s9 = inlined_call_operand.hbm [shape: f32[1,256], index: 9, kind: input, shape index: {}]
  %s10 = inlined_call_operand.hbm [shape: bf16[256,128], index: 10, kind: input, shape index: {}]
  %s11 = inlined_call_operand.hbm [shape: f32[1,128], index: 11, kind: input, shape index: {}]
  %s12 = inlined_call_operand.hbm [shape: bf16[128,256], index: 12, kind: input, shape index: {}]
  %s13 = inlined_call_operand.hbm [shape: f32[1,256], index: 13, kind: input, shape index: {}]
  %s14 = inlined_call_operand.hbm [shape: bf16[256,384], index: 14, kind: input, shape index: {}]
  %s15 = inlined_call_operand.hbm [shape: f32[1,384], index: 15, kind: input, shape index: {}]
  %s16 = inlined_call_operand.hbm [shape: bf16[384,512], index: 16, kind: input, shape index: {}]
  %s17 = inlined_call_operand.hbm [shape: f32[1,512], index: 17, kind: input, shape index: {}]
  %s18 = inlined_call_operand.hbm [shape: bf16[512,640], index: 18, kind: input, shape index: {}]
  %s19 = inlined_call_operand.hbm [shape: f32[1,640], index: 19, kind: input, shape index: {}]
  %s20 = inlined_call_operand.hbm [shape: bf16[640,896], index: 20, kind: input, shape index: {}]
  %s21 = inlined_call_operand.hbm [shape: f32[1,896], index: 21, kind: input, shape index: {}]
  %s22 = inlined_call_operand.hbm [shape: f32[8,896], index: 22, kind: output, shape index: {}]
  %s23 = sld [smem:[#allocation0]]
  $region178: #{dropout_autoencoder_forward.1} parent=0
    _
  %s25 = ssub.s32 1, %s23
  %s26 = scalar_select 0, %s25, %s23
  %27 = sst [smem:[#allocation2]] %s0
  $region1: #{dropout_autoencoder_forward.1} parent=0
    #allocation3 [shape = 'u8[1146880]{0}', space=vmem, size = 0x118000, scoped, tag = 'input window, operand 2, single buffered']
    #allocation4 [shape = 's32[1]{0}', space=sflag, size = 0x4, scoped, tag = 'scoped memory for dropout_autoencoder_forward.1']
    #allocation5 [shape = 's32[1]{0}', space=sflag, size = 0x4, scoped, tag = 'scoped memory for dropout_autoencoder_forward.1']
    #allocation6 [shape = 'u8[2560]{0}', space=vmem, size = 0xc00, scoped, tag = 'input window, operand 3, single buffered']
    #allocation7 [shape = 's32[1]{0}', space=sflag, size = 0x4, scoped, tag = 'scoped memory for dropout_autoencoder_forward.1']
    #allocation8 [shape = 'u8[655360]{0}', space=vmem, size = 0xa0000, scoped, tag = 'input window, operand 4, single buffered']
    #allocation9 [shape = 'u8[2048]{0}', space=vmem, size = 0x800, scoped, tag = 'input window, operand 5, single buffered']
    #allocation10 [shape = 's32[1]{0}', space=sflag, size = 0x4, scoped, tag = 'scoped memory for dropout_autoencoder_forward.1']
    #allocation11 [shape = 'u8[393216]{0}', space=vmem, size = 0x60000, scoped, tag = 'input window, operand 6, single buffered']
    #allocation12 [shape = 'u8[1536]{0}', space=vmem, size = 0x800, scoped, tag = 'input window, operand 7, single buffered']
    #allocation13 [shape = 's32[1]{0}', space=sflag, size = 0x4, scoped, tag = 'scoped memory for dropout_autoencoder_forward.1']
    #allocation14 [shape = 'u8[196608]{0}', space=vmem, size = 0x30000, scoped, tag = 'input window, operand 8, single buffered']
    #allocation15 [shape = 'u8[1024]{0}', space=vmem, size = 0x400, scoped, tag = 'input window, operand 9, single buffered']
    #allocation16 [shape = 's32[1]{0}', space=sflag, size = 0x4, scoped, tag = 'scoped memory for dropout_autoencoder_forward.1']
    #allocation17 [shape = 'u8[65536]{0}', space=vmem, size = 0x10000, scoped, tag = 'input window, operand 10, single buffered']
    #allocation18 [shape = 'u8[512]{0}', space=vmem, size = 0x400, scoped, tag = 'input window, operand 11, single buffered']
    #allocation19 [shape = 's32[1]{0}', space=sflag, size = 0x4, scoped, tag = 'scoped memory for dropout_autoencoder_forward.1']
    #allocation20 [shape = 'u8[65536]{0}', space=vmem, size = 0x10000, scoped, tag = 'input window, operand 12, single buffered']
    #allocation21 [shape = 'u8[1024]{0}', space=vmem, size = 0x400, scoped, tag = 'input window, operand 13, single buffered']
    #allocation22 [shape = 's32[1]{0}', space=sflag, size = 0x4, scoped, tag = 'scoped memory for dropout_autoencoder_forward.1']
    #allocation23 [shape = 'u8[196608]{0}', space=vmem, size = 0x30000, scoped, tag = 'input window, operand 14, single buffered']
    #allocation24 [shape = 'u8[1536]{0}', space=vmem, size = 0x800, scoped, tag = 'input window, operand 15, single buffered']
    #allocation25 [shape = 's32[1]{0}', space=sflag, size = 0x4, scoped, tag = 'scoped memory for dropout_autoencoder_forward.1']
    #allocation26 [shape = 'u8[393216]{0}', space=vmem, size = 0x60000, scoped, tag = 'input window, operand 16, single buffered']
    #allocation27 [shape = 'u8[2048]{0}', space=vmem, size = 0x800, scoped, tag = 'input window, operand 17, single buffered']
    #allocation28 [shape = 's32[1]{0}', space=sflag, size = 0x4, scoped, tag = 'scoped memory for dropout_autoencoder_forward.1']
    #allocation29 [shape = 'u8[655360]{0}', space=vmem, size = 0xa0000, scoped, tag = 'input window, operand 18, single buffered']
    #allocation30 [shape = 'u8[2560]{0}', space=vmem, size = 0xc00, scoped, tag = 'input window, operand 19, single buffered']
    #allocation31 [shape = 's32[1]{0}', space=sflag, size = 0x4, scoped, tag = 'scoped memory for dropout_autoencoder_forward.1']
    #allocation32 [shape = 'u8[1146880]{0}', space=vmem, size = 0x118000, scoped, tag = 'input window, operand 20, single buffered']
    #allocation33 [shape = 'u8[3584]{0}', space=vmem, size = 0x1000, scoped, tag = 'input window, operand 21, single buffered']
    #allocation34 [shape = 's32[1]{0}', space=sflag, size = 0x4, scoped, tag = 'scoped memory for dropout_autoencoder_forward.1']
    #allocation35 [shape = 'u8[28672]{0}', space=vmem, size = 0x7000, scoped, tag = 'output window, operand 0, single buffered']
    %28 = vsyncpa [#allocation4], 0
    %29 = vsyncpa [#allocation7], 0
    %30 = vsyncpa [#allocation10], 0
    %31 = vsyncpa [#allocation13], 0
    %32 = vsyncpa [#allocation16], 0
    %33 = vsyncpa [#allocation19], 0
    %34 = vsyncpa [#allocation22], 0
    %35 = vsyncpa [#allocation25], 0
    %36 = vsyncpa [#allocation28], 0
    %37 = vsyncpa [#allocation31], 0
    %38 = vsyncpa [#allocation34], 0
    %39 = vsyncpa [#allocation5], 0
    // Predicated region
    $region2: #{dropout_autoencoder_forward.1} parent=1 // pred_check
      _
    $region3: #{dropout_autoencoder_forward.1} parent=1 // pred_check_branch
      %41 = sbr.rel (0) target = $region5
    $region4: #{dropout_autoencoder_forward.1} parent=1 // pred_region
      _
    $region5: #{dropout_autoencoder_forward.1} parent=1 // pred_fallthru
      _
    // Predicated region
    $region6: #{dropout_autoencoder_forward.1} parent=1 // pred_check
      _
    $region7: #{dropout_autoencoder_forward.1} parent=1 // pred_check_branch
      %43 = sbr.rel (0) target = $region9
    $region8: #{dropout_autoencoder_forward.1} parent=1 // pred_region
      _
    $region9: #{dropout_autoencoder_forward.1} parent=1 // pred_fallthru
      _
    // Predicated region
    $region10: #{dropout_autoencoder_forward.1} parent=1 // pred_check
      _
    $region11: #{dropout_autoencoder_forward.1} parent=1 // pred_check_branch
      %45 = sbr.rel (0) target = $region13
    $region12: #{dropout_autoencoder_forward.1} parent=1 // pred_region
      %s47 = ssub.s32 35840, 35840
      %48 = vsyncadd [#allocation4], %s47
      %s49 = sshll.u32 [#allocation3], 4
      %s50 = int_to_ptr.vmem [resolvable:$true] %s49
      %55 = dma.hbm_to_vmem [thread:$0]  %s2, 35840, %s50, [#allocation4], 320, 320, 20
    $region13: #{dropout_autoencoder_forward.1} parent=1 // pred_fallthru
      _
    // Predicated region
    $region14: #{dropout_autoencoder_forward.1} parent=1 // pred_check
      _
    $region15: #{dropout_autoencoder_forward.1} parent=1 // pred_check_branch
      %57 = sbr.rel (0) target = $region17
    $region16: #{dropout_autoencoder_forward.1} parent=1 // pred_region
      %s59 = ssub.s32 80, 80
      %60 = vsyncadd [#allocation7], %s59
      %s62 = sshll.u32 [#allocation6], 4
      %s63 = int_to_ptr.vmem [resolvable:$true] %s62
      %65 = dma.hbm_to_vmem [thread:$0]  %s3, 80, %s63, [#allocation7]
    $region17: #{dropout_autoencoder_forward.1} parent=1 // pred_fallthru
      _
    // Predicated region
    $region18: #{dropout_autoencoder_forward.1} parent=1 // pred_check
      _
    $region19: #{dropout_autoencoder_forward.1} parent=1 // pred_check_branch
      %67 = sbr.rel (0) target = $region21
    $region20: #{dropout_autoencoder_forward.1} parent=1 // pred_region
      %s69 = ssub.s32 20480, 20480
      %70 = vsyncadd [#allocation7], %s69
      %s71 = sshll.u32 [#allocation8], 4
      %s72 = int_to_ptr.vmem [resolvable:$true] %s71
      %77 = dma.hbm_to_vmem [thread:$0]  %s4, 20480, %s72, [#allocation7], 256, 256, 16
    $region21: #{dropout_autoencoder_forward.1} parent=1 // pred_fallthru
      _
    // Predicated region
    $region22: #{dropout_autoencoder_forward.1} parent=1 // pred_check
      _
    $region23: #{dropout_autoencoder_forward.1} parent=1 // pred_check_branch
      %79 = sbr.rel (0) target = $region25
    $region24: #{dropout_autoencoder_forward.1} parent=1 // pred_region
      %s81 = ssub.s32 64, 64
      %82 = vsyncadd [#allocation10], %s81
      %s84 = sshll.u32 [#allocation9], 4
      %s85 = int_to_ptr.vmem [resolvable:$true] %s84
      %87 = dma.hbm_to_vmem [thread:$0]  %s5, 64, %s85, [#allocation10]
    $region25: #{dropout_autoencoder_forward.1} parent=1 // pred_fallthru
      _
    // Predicated region
    $region26: #{dropout_autoencoder_forward.1} parent=1 // pred_check
      _
    $region27: #{dropout_autoencoder_forward.1} parent=1 // pred_check_branch
      %89 = sbr.rel (0) target = $region29
    $region28: #{dropout_autoencoder_forward.1} parent=1 // pred_region
      %s91 = ssub.s32 12288, 12288
      %92 = vsyncadd [#allocation10], %s91
      %s93 = sshll.u32 [#allocation11], 4
      %s94 = int_to_ptr.vmem [resolvable:$true] %s93
      %99 = dma.hbm_to_vmem [thread:$0]  %s6, 12288, %s94, [#allocation10], 192, 192, 12
    $region29: #{dropout_autoencoder_forward.1} parent=1 // pred_fallthru
      _
    // Predicated region
    $region30: #{dropout_autoencoder_forward.1} parent=1 // pred_check
      _
    $region31: #{dropout_autoencoder_forward.1} parent=1 // pred_check_branch
      %101 = sbr.rel (0) target = $region33
    $region32: #{dropout_autoencoder_forward.1} parent=1 // pred_region
      %s103 = ssub.s32 48, 48
      %104 = vsyncadd [#allocation13], %s103
      %s106 = sshll.u32 [#allocation12], 4
      %s107 = int_to_ptr.vmem [resolvable:$true] %s106
      %109 = dma.hbm_to_vmem [thread:$0]  %s7, 48, %s107, [#allocation13]
    $region33: #{dropout_autoencoder_forward.1} parent=1 // pred_fallthru
      _
    // Predicated region
    $region34: #{dropout_autoencoder_forward.1} parent=1 // pred_check
      _
    $region35: #{dropout_autoencoder_forward.1} parent=1 // pred_check_branch
      %111 = sbr.rel (0) target = $region37
    $region36: #{dropout_autoencoder_forward.1} parent=1 // pred_region
      %s113 = ssub.s32 6144, 6144
      %114 = vsyncadd [#allocation13], %s113
      %s115 = sshll.u32 [#allocation14], 4
      %s116 = int_to_ptr.vmem [resolvable:$true] %s115
      %121 = dma.hbm_to_vmem [thread:$0]  %s8, 6144, %s116, [#allocation13], 128, 128, 8
    $region37: #{dropout_autoencoder_forward.1} parent=1 // pred_fallthru
      _
    // Predicated region
    $region38: #{dropout_autoencoder_forward.1} parent=1 // pred_check
      _
    $region39: #{dropout_autoencoder_forward.1} parent=1 // pred_check_branch
      %123 = sbr.rel (0) target = $region41
    $region40: #{dropout_autoencoder_forward.1} parent=1 // pred_region
      %s125 = ssub.s32 32, 32
      %126 = vsyncadd [#allocation16], %s125
      %s128 = sshll.u32 [#allocation15], 4
      %s129 = int_to_ptr.vmem [resolvable:$true] %s128
      %131 = dma.hbm_to_vmem [thread:$0]  %s9, 32, %s129, [#allocation16]
    $region41: #{dropout_autoencoder_forward.1} parent=1 // pred_fallthru
      _
    // Predicated region
    $region42: #{dropout_autoencoder_forward.1} parent=1 // pred_check
      _
    $region43: #{dropout_autoencoder_forward.1} parent=1 // pred_check_branch
      %133 = sbr.rel (0) target = $region45
    $region44: #{dropout_autoencoder_forward.1} parent=1 // pred_region
      %s135 = ssub.s32 2048, 2048
      %136 = vsyncadd [#allocation16], %s135
      %s137 = sshll.u32 [#allocation17], 4
      %s138 = int_to_ptr.vmem [resolvable:$true] %s137
      %143 = dma.hbm_to_vmem [thread:$0]  %s10, 2048, %s138, [#allocation16], 64, 64, 4
    $region45: #{dropout_autoencoder_forward.1} parent=1 // pred_fallthru
      _
    // Predicated region
    $region46: #{dropout_autoencoder_forward.1} parent=1 // pred_check
      _
    $region47: #{dropout_autoencoder_forward.1} parent=1 // pred_check_branch
      %145 = sbr.rel (0) target = $region49
    $region48: #{dropout_autoencoder_forward.1} parent=1 // pred_region
      %s147 = ssub.s32 16, 16
      %148 = vsyncadd [#allocation19], %s147
      %s150 = sshll.u32 [#allocation18], 4
      %s151 = int_to_ptr.vmem [resolvable:$true] %s150
      %153 = dma.hbm_to_vmem [thread:$0]  %s11, 16, %s151, [#allocation19]
    $region49: #{dropout_autoencoder_forward.1} parent=1 // pred_fallthru
      _
    // Predicated region
    $region50: #{dropout_autoencoder_forward.1} parent=1 // pred_check
      _
    $region51: #{dropout_autoencoder_forward.1} parent=1 // pred_check_branch
      %155 = sbr.rel (0) target = $region53
    $region52: #{dropout_autoencoder_forward.1} parent=1 // pred_region
      %s157 = ssub.s32 2048, 2048
      %158 = vsyncadd [#allocation19], %s157
      %s159 = sshll.u32 [#allocation20], 4
      %s160 = int_to_ptr.vmem [resolvable:$true] %s159
      %165 = dma.hbm_to_vmem [thread:$0]  %s12, 2048, %s160, [#allocation19], 128, 128, 8
    $region53: #{dropout_autoencoder_forward.1} parent=1 // pred_fallthru
      _
    // Predicated region
    $region54: #{dropout_autoencoder_forward.1} parent=1 // pred_check
      _
    $region55: #{dropout_autoencoder_forward.1} parent=1 // pred_check_branch
      %167 = sbr.rel (0) target = $region57
    $region56: #{dropout_autoencoder_forward.1} parent=1 // pred_region
      %s169 = ssub.s32 32, 32
      %170 = vsyncadd [#allocation22], %s169
      %s172 = sshll.u32 [#allocation21], 4
      %s173 = int_to_ptr.vmem [resolvable:$true] %s172
      %175 = dma.hbm_to_vmem [thread:$0]  %s13, 32, %s173, [#allocation22]
    $region57: #{dropout_autoencoder_forward.1} parent=1 // pred_fallthru
      _
    // Predicated region
    $region58: #{dropout_autoencoder_forward.1} parent=1 // pred_check
      _
    $region59: #{dropout_autoencoder_forward.1} parent=1 // pred_check_branch
      %177 = sbr.rel (0) target = $region61
    $region60: #{dropout_autoencoder_forward.1} parent=1 // pred_region
      %s179 = ssub.s32 6144, 6144
      %180 = vsyncadd [#allocation22], %s179
      %s181 = sshll.u32 [#allocation23], 4
      %s182 = int_to_ptr.vmem [resolvable:$true] %s181
      %187 = dma.hbm_to_vmem [thread:$0]  %s14, 6144, %s182, [#allocation22], 192, 192, 12
    $region61: #{dropout_autoencoder_forward.1} parent=1 // pred_fallthru
      _
    // Predicated region
    $region62: #{dropout_autoencoder_forward.1} parent=1 // pred_check
      _
    $region63: #{dropout_autoencoder_forward.1} parent=1 // pred_check_branch
      %189 = sbr.rel (0) target = $region65
    $region64: #{dropout_autoencoder_forward.1} parent=1 // pred_region
      %s191 = ssub.s32 48, 48
      %192 = vsyncadd [#allocation25], %s191
      %s194 = sshll.u32 [#allocation24], 4
      %s195 = int_to_ptr.vmem [resolvable:$true] %s194
      %197 = dma.hbm_to_vmem [thread:$0]  %s15, 48, %s195, [#allocation25]
    $region65: #{dropout_autoencoder_forward.1} parent=1 // pred_fallthru
      _
    // Predicated region
    $region66: #{dropout_autoencoder_forward.1} parent=1 // pred_check
      _
    $region67: #{dropout_autoencoder_forward.1} parent=1 // pred_check_branch
      %199 = sbr.rel (0) target = $region69
    $region68: #{dropout_autoencoder_forward.1} parent=1 // pred_region
      %s201 = ssub.s32 12288, 12288
      %202 = vsyncadd [#allocation25], %s201
      %s203 = sshll.u32 [#allocation26], 4
      %s204 = int_to_ptr.vmem [resolvable:$true] %s203
      %209 = dma.hbm_to_vmem [thread:$0]  %s16, 12288, %s204, [#allocation25], 256, 256, 16
    $region69: #{dropout_autoencoder_forward.1} parent=1 // pred_fallthru
      _
    // Predicated region
    $region70: #{dropout_autoencoder_forward.1} parent=1 // pred_check
      _
    $region71: #{dropout_autoencoder_forward.1} parent=1 // pred_check_branch
      %211 = sbr.rel (0) target = $region73
    $region72: #{dropout_autoencoder_forward.1} parent=1 // pred_region
      %s213 = ssub.s32 64, 64
      %214 = vsyncadd [#allocation28], %s213
      %s216 = sshll.u32 [#allocation27], 4
      %s217 = int_to_ptr.vmem [resolvable:$true] %s216
      %219 = dma.hbm_to_vmem [thread:$0]  %s17, 64, %s217, [#allocation28]
    $region73: #{dropout_autoencoder_forward.1} parent=1 // pred_fallthru
      _
    // Predicated region
    $region74: #{dropout_autoencoder_forward.1} parent=1 // pred_check
      _
    $region75: #{dropout_autoencoder_forward.1} parent=1 // pred_check_branch
      %221 = sbr.rel (0) target = $region77
    $region76: #{dropout_autoencoder_forward.1} parent=1 // pred_region
      %s223 = ssub.s32 20480, 20480
      %224 = vsyncadd [#allocation28], %s223
      %s225 = sshll.u32 [#allocation29], 4
      %s226 = int_to_ptr.vmem [resolvable:$true] %s225
      %231 = dma.hbm_to_vmem [thread:$0]  %s18, 20480, %s226, [#allocation28], 320, 320, 20
    $region77: #{dropout_autoencoder_forward.1} parent=1 // pred_fallthru
      _
    // Predicated region
    $region78: #{dropout_autoencoder_forward.1} parent=1 // pred_check
      _
    $region79: #{dropout_autoencoder_forward.1} parent=1 // pred_check_branch
      %233 = sbr.rel (0) target = $region81
    $region80: #{dropout_autoencoder_forward.1} parent=1 // pred_region
      %s235 = ssub.s32 80, 80
      %236 = vsyncadd [#allocation31], %s235
      %s238 = sshll.u32 [#allocation30], 4
      %s239 = int_to_ptr.vmem [resolvable:$true] %s238
      %241 = dma.hbm_to_vmem [thread:$0]  %s19, 80, %s239, [#allocation31]
    $region81: #{dropout_autoencoder_forward.1} parent=1 // pred_fallthru
      _
    // Predicated region
    $region82: #{dropout_autoencoder_forward.1} parent=1 // pred_check
      _
    $region83: #{dropout_autoencoder_forward.1} parent=1 // pred_check_branch
      %243 = sbr.rel (0) target = $region85
    $region84: #{dropout_autoencoder_forward.1} parent=1 // pred_region
      %s245 = ssub.s32 35840, 35840
      %246 = vsyncadd [#allocation31], %s245
      %s247 = sshll.u32 [#allocation32], 4
      %s248 = int_to_ptr.vmem [resolvable:$true] %s247
      %253 = dma.hbm_to_vmem [thread:$0]  %s20, 35840, %s248, [#allocation31], 448, 448, 28
    $region85: #{dropout_autoencoder_forward.1} parent=1 // pred_fallthru
      _
    // Predicated region
    $region86: #{dropout_autoencoder_forward.1} parent=1 // pred_check
      _
    $region87: #{dropout_autoencoder_forward.1} parent=1 // pred_check_branch
      %255 = sbr.rel (0) target = $region89
    $region88: #{dropout_autoencoder_forward.1} parent=1 // pred_region
      %s257 = ssub.s32 112, 112
      %258 = vsyncadd [#allocation34], %s257
      %s260 = sshll.u32 [#allocation33], 4
      %s261 = int_to_ptr.vmem [resolvable:$true] %s260
      %263 = dma.hbm_to_vmem [thread:$0]  %s21, 112, %s261, [#allocation34]
    $region89: #{dropout_autoencoder_forward.1} parent=1 // pred_fallthru
      _
    // Predicated region
    $region90: #{dropout_autoencoder_forward.1} parent=1 // pred_check
      _
    $region91: #{dropout_autoencoder_forward.1} parent=1 // pred_check_branch
      %265 = sbr.rel (0) target = $region93
    $region92: #{dropout_autoencoder_forward.1} parent=1 // pred_region
      %266 = dma.done [#allocation4], 35840
    $region93: #{dropout_autoencoder_forward.1} parent=1 // pred_fallthru
      _
    // Predicated region
    $region94: #{dropout_autoencoder_forward.1} parent=1 // pred_check
      _
    $region95: #{dropout_autoencoder_forward.1} parent=1 // pred_check_branch
      %268 = sbr.rel (0) target = $region97
    $region96: #{dropout_autoencoder_forward.1} parent=1 // pred_region
      %269 = dma.done [#allocation7], 80
    $region97: #{dropout_autoencoder_forward.1} parent=1 // pred_fallthru
      _
    // Predicated region
    $region98: #{dropout_autoencoder_forward.1} parent=1 // pred_check
      _
    $region99: #{dropout_autoencoder_forward.1} parent=1 // pred_check_branch
      %271 = sbr.rel (0) target = $region101
    $region100: #{dropout_autoencoder_forward.1} parent=1 // pred_region
      %272 = dma.done [#allocation7], 20480
    $region101: #{dropout_autoencoder_forward.1} parent=1 // pred_fallthru
      _
    // Predicated region
    $region102: #{dropout_autoencoder_forward.1} parent=1 // pred_check
      _
    $region103: #{dropout_autoencoder_forward.1} parent=1 // pred_check_branch
      %274 = sbr.rel (0) target = $region105
    $region104: #{dropout_autoencoder_forward.1} parent=1 // pred_region
      %275 = dma.done [#allocation10], 64
    $region105: #{dropout_autoencoder_forward.1} parent=1 // pred_fallthru
      _
    // Predicated region
    $region106: #{dropout_autoencoder_forward.1} parent=1 // pred_check
      _
    $region107: #{dropout_autoencoder_forward.1} parent=1 // pred_check_branch
      %277 = sbr.rel (0) target = $region109
    $region108: #{dropout_autoencoder_forward.1} parent=1 // pred_region
      %278 = dma.done [#allocation10], 12288
    $region109: #{dropout_autoencoder_forward.1} parent=1 // pred_fallthru
      _
    // Predicated region
    $region110: #{dropout_autoencoder_forward.1} parent=1 // pred_check
      _
    $region111: #{dropout_autoencoder_forward.1} parent=1 // pred_check_branch
      %280 = sbr.rel (0) target = $region113
    $region112: #{dropout_autoencoder_forward.1} parent=1 // pred_region
      %281 = dma.done [#allocation13], 48
    $region113: #{dropout_autoencoder_forward.1} parent=1 // pred_fallthru
      _
    // Predicated region
    $region114: #{dropout_autoencoder_forward.1} parent=1 // pred_check
      _
    $region115: #{dropout_autoencoder_forward.1} parent=1 // pred_check_branch
      %283 = sbr.rel (0) target = $region117
    $region116: #{dropout_autoencoder_forward.1} parent=1 // pred_region
      %284 = dma.done [#allocation13], 6144
    $region117: #{dropout_autoencoder_forward.1} parent=1 // pred_fallthru
      _
    // Predicated region
    $region118: #{dropout_autoencoder_forward.1} parent=1 // pred_check
      _
    $region119: #{dropout_autoencoder_forward.1} parent=1 // pred_check_branch
      %286 = sbr.rel (0) target = $region121
    $region120: #{dropout_autoencoder_forward.1} parent=1 // pred_region
      %287 = dma.done [#allocation16], 32
    $region121: #{dropout_autoencoder_forward.1} parent=1 // pred_fallthru
      _
    // Predicated region
    $region122: #{dropout_autoencoder_forward.1} parent=1 // pred_check
      _
    $region123: #{dropout_autoencoder_forward.1} parent=1 // pred_check_branch
      %289 = sbr.rel (0) target = $region125
    $region124: #{dropout_autoencoder_forward.1} parent=1 // pred_region
      %290 = dma.done [#allocation16], 2048
    $region125: #{dropout_autoencoder_forward.1} parent=1 // pred_fallthru
      _
    // Predicated region
    $region126: #{dropout_autoencoder_forward.1} parent=1 // pred_check
      _
    $region127: #{dropout_autoencoder_forward.1} parent=1 // pred_check_branch
      %292 = sbr.rel (0) target = $region129
    $region128: #{dropout_autoencoder_forward.1} parent=1 // pred_region
      %293 = dma.done [#allocation19], 16
    $region129: #{dropout_autoencoder_forward.1} parent=1 // pred_fallthru
      _
    // Predicated region
    $region130: #{dropout_autoencoder_forward.1} parent=1 // pred_check
      _
    $region131: #{dropout_autoencoder_forward.1} parent=1 // pred_check_branch
      %295 = sbr.rel (0) target = $region133
    $region132: #{dropout_autoencoder_forward.1} parent=1 // pred_region
      %296 = dma.done [#allocation19], 2048
    $region133: #{dropout_autoencoder_forward.1} parent=1 // pred_fallthru
      _
    // Predicated region
    $region134: #{dropout_autoencoder_forward.1} parent=1 // pred_check
      _
    $region135: #{dropout_autoencoder_forward.1} parent=1 // pred_check_branch
      %298 = sbr.rel (0) target = $region137
    $region136: #{dropout_autoencoder_forward.1} parent=1 // pred_region
      %299 = dma.done [#allocation22], 32
    $region137: #{dropout_autoencoder_forward.1} parent=1 // pred_fallthru
      _
    // Predicated region
    $region138: #{dropout_autoencoder_forward.1} parent=1 // pred_check
      _
    $region139: #{dropout_autoencoder_forward.1} parent=1 // pred_check_branch
      %301 = sbr.rel (0) target = $region141
    $region140: #{dropout_autoencoder_forward.1} parent=1 // pred_region
      %302 = dma.done [#allocation22], 6144
    $region141: #{dropout_autoencoder_forward.1} parent=1 // pred_fallthru
      _
    // Predicated region
    $region142: #{dropout_autoencoder_forward.1} parent=1 // pred_check
      _
    $region143: #{dropout_autoencoder_forward.1} parent=1 // pred_check_branch
      %304 = sbr.rel (0) target = $region145
    $region144: #{dropout_autoencoder_forward.1} parent=1 // pred_region
      %305 = dma.done [#allocation25], 48
    $region145: #{dropout_autoencoder_forward.1} parent=1 // pred_fallthru
      _
    // Predicated region
    $region146: #{dropout_autoencoder_forward.1} parent=1 // pred_check
      _
    $region147: #{dropout_autoencoder_forward.1} parent=1 // pred_check_branch
      %307 = sbr.rel (0) target = $region149
    $region148: #{dropout_autoencoder_forward.1} parent=1 // pred_region
      %308 = dma.done [#allocation25], 12288
    $region149: #{dropout_autoencoder_forward.1} parent=1 // pred_fallthru
      _
    // Predicated region
    $region150: #{dropout_autoencoder_forward.1} parent=1 // pred_check
      _
    $region151: #{dropout_autoencoder_forward.1} parent=1 // pred_check_branch
      %310 = sbr.rel (0) target = $region153
    $region152: #{dropout_autoencoder_forward.1} parent=1 // pred_region
      %311 = dma.done [#allocation28], 64
    $region153: #{dropout_autoencoder_forward.1} parent=1 // pred_fallthru
      _
    // Predicated region
    $region154: #{dropout_autoencoder_forward.1} parent=1 // pred_check
      _
    $region155: #{dropout_autoencoder_forward.1} parent=1 // pred_check_branch
      %313 = sbr.rel (0) target = $region157
    $region156: #{dropout_autoencoder_forward.1} parent=1 // pred_region
      %314 = dma.done [#allocation28], 20480
    $region157: #{dropout_autoencoder_forward.1} parent=1 // pred_fallthru
      _
    // Predicated region
    $region158: #{dropout_autoencoder_forward.1} parent=1 // pred_check
      _
    $region159: #{dropout_autoencoder_forward.1} parent=1 // pred_check_branch
      %316 = sbr.rel (0) target = $region161
    $region160: #{dropout_autoencoder_forward.1} parent=1 // pred_region
      %317 = dma.done [#allocation31], 80
    $region161: #{dropout_autoencoder_forward.1} parent=1 // pred_fallthru
      _
    // Predicated region
    $region162: #{dropout_autoencoder_forward.1} parent=1 // pred_check
      _
    $region163: #{dropout_autoencoder_forward.1} parent=1 // pred_check_branch
      %319 = sbr.rel (0) target = $region165
    $region164: #{dropout_autoencoder_forward.1} parent=1 // pred_region
      %320 = dma.done [#allocation31], 35840
    $region165: #{dropout_autoencoder_forward.1} parent=1 // pred_fallthru
      _
    // Predicated region
    $region166: #{dropout_autoencoder_forward.1} parent=1 // pred_check
      _
    $region167: #{dropout_autoencoder_forward.1} parent=1 // pred_check_branch
      %322 = sbr.rel (0) target = $region169
    $region168: #{dropout_autoencoder_forward.1} parent=1 // pred_region
      %323 = dma.done [#allocation34], 112
    $region169: #{dropout_autoencoder_forward.1} parent=1 // pred_fallthru
      _
    %s325 = sld [smem:[#allocation2]]
    %s326 = smul.u32 0, 8
    %v327 = vld [vmem:[%s1] sm:$0xff]
    %v328 = vld [vmem:[%s1 + $0x8] sm:$0xff]
    %v329 = vld [vmem:[%s1 + $0x10] sm:$0xff]
    %v330 = vld [vmem:[%s1 + $0x18] sm:$0xff]
    %v331 = vld [vmem:[%s1 + $0x20] sm:$0xff]
    %v332 = vld [vmem:[%s1 + $0x28] sm:$0xff]
    %v333 = vld [vmem:[%s1 + $0x30] sm:$0xff]
    %v334 = vlaneseq
    %v335 = vshrl.u32 %v334, 7
    %v336 = vstv %s326
    %v337 = vadd.s32 %v336, %v335
    %v338 = vlaneseq
    %v339 = vand.u32 %v338, 127
    %v340 = vadd.s32 %v339, 128
    %v341 = vadd.s32 %v339, 256
    %v342 = vadd.s32 %v339, 384
    %v343 = vadd.s32 %v339, 512
    %v344 = vadd.s32 %v339, 640
    %v345 = vadd.s32 %v339, 768
    %v346 = vmul.u32 %v337, 896
    %v347 = vadd.s32 %v346, %v339
    %v348 = vadd.s32 %v346, %v340
    %v349 = vadd.s32 %v346, %v341
    %v350 = vadd.s32 %v346, %v342
    %v351 = vadd.s32 %v346, %v343
    %v352 = vadd.s32 %v346, %v344
    %v353 = vadd.s32 %v346, %v345
    %s354 = sadd.s32 %s325, 1
    %s355 = smul.u32 %s354, 1640531527
    %v356 = vstv %s355
    %v357 = vadd.s32 %v347, %v356
    %v358 = vadd.s32 %v348, %v356
    %v359 = vadd.s32 %v349, %v356
    %v360 = vadd.s32 %v350, %v356
    %v361 = vadd.s32 %v351, %v356
    %v362 = vadd.s32 %v352, %v356
    %v363 = vadd.s32 %v353, %v356
    %v364 = vmul.u32 %v357, 668265263
    %v365 = vmul.u32 %v358, 668265263
    %v366 = vmul.u32 %v359, 668265263
    %v367 = vmul.u32 %v360, 668265263
    %v368 = vmul.u32 %v361, 668265263
    %v369 = vmul.u32 %v362, 668265263
    %v370 = vmul.u32 %v363, 668265263
    %v371 = vshra.s32 %v364, 15
    %v372 = vshra.s32 %v365, 15
    %v373 = vshra.s32 %v366, 15
    %v374 = vshra.s32 %v367, 15
    %v375 = vshra.s32 %v368, 15
    %v376 = vshra.s32 %v369, 15
    %v377 = vshra.s32 %v370, 15
    %v378 = vand.u32 %v371, 131071
    %v379 = vand.u32 %v372, 131071
    %v380 = vand.u32 %v373, 131071
    %v381 = vand.u32 %v374, 131071
    %v382 = vand.u32 %v375, 131071
    %v383 = vand.u32 %v376, 131071
    %v384 = vand.u32 %v377, 131071
    %v385 = vxor.u32 %v364, %v378
    %v386 = vxor.u32 %v365, %v379
    %v387 = vxor.u32 %v366, %v380
    %v388 = vxor.u32 %v367, %v381
    %v389 = vxor.u32 %v368, %v382
    %v390 = vxor.u32 %v369, %v383
    %v391 = vxor.u32 %v370, %v384
    %v392 = vmul.u32 %v385, 625341585
    %v393 = vmul.u32 %v386, 625341585
    %v394 = vmul.u32 %v387, 625341585
    %v395 = vmul.u32 %v388, 625341585
    %v396 = vmul.u32 %v389, 625341585
    %v397 = vmul.u32 %v390, 625341585
    %v398 = vmul.u32 %v391, 625341585
    %v399 = vshra.s32 %v392, 13
    %v400 = vshra.s32 %v393, 13
    %v401 = vshra.s32 %v394, 13
    %v402 = vshra.s32 %v395, 13
    %v403 = vshra.s32 %v396, 13
    %v404 = vshra.s32 %v397, 13
    %v405 = vshra.s32 %v398, 13
    %v406 = vand.u32 %v399, 524287
    %v407 = vand.u32 %v400, 524287
    %v408 = vand.u32 %v401, 524287
    %v409 = vand.u32 %v402, 524287
    %v410 = vand.u32 %v403, 524287
    %v411 = vand.u32 %v404, 524287
    %v412 = vand.u32 %v405, 524287
    %v413 = vxor.u32 %v392, %v406
    %v414 = vxor.u32 %v393, %v407
    %v415 = vxor.u32 %v394, %v408
    %v416 = vxor.u32 %v395, %v409
    %v417 = vxor.u32 %v396, %v410
    %v418 = vxor.u32 %v397, %v411
    %v419 = vxor.u32 %v398, %v412
    %v420 = vmul.u32 %v413, 1640531527
    %v421 = vmul.u32 %v414, 1640531527
    %v422 = vmul.u32 %v415, 1640531527
    %v423 = vmul.u32 %v416, 1640531527
    %v424 = vmul.u32 %v417, 1640531527
    %v425 = vmul.u32 %v418, 1640531527
    %v426 = vmul.u32 %v419, 1640531527
    %v427 = vshra.s32 %v420, 16
    %v428 = vshra.s32 %v421, 16
    %v429 = vshra.s32 %v422, 16
    %v430 = vshra.s32 %v423, 16
    %v431 = vshra.s32 %v424, 16
    %v432 = vshra.s32 %v425, 16
    %v433 = vshra.s32 %v426, 16
    %v434 = vand.u32 %v427, 65535
    %v435 = vand.u32 %v428, 65535
    %v436 = vand.u32 %v429, 65535
    %v437 = vand.u32 %v430, 65535
    %v438 = vand.u32 %v431, 65535
    %v439 = vand.u32 %v432, 65535
    %v440 = vand.u32 %v433, 65535
    %v441 = vxor.u32 %v420, %v434
    %v442 = vxor.u32 %v421, %v435
    %v443 = vxor.u32 %v422, %v436
    %v444 = vxor.u32 %v423, %v437
    %v445 = vxor.u32 %v424, %v438
    %v446 = vxor.u32 %v425, %v439
    %v447 = vxor.u32 %v426, %v440
    %v448 = vand.u32 %v441, 8388607
    %v449 = vand.u32 %v442, 8388607
    %v450 = vand.u32 %v443, 8388607
    %v451 = vand.u32 %v444, 8388607
    %v452 = vand.u32 %v445, 8388607
    %v453 = vand.u32 %v446, 8388607
    %v454 = vand.u32 %v447, 8388607
    %v455 = vcvt.s32.f32 %v448
    %v456 = vcvt.s32.f32 %v449
    %v457 = vcvt.s32.f32 %v450
    %v458 = vcvt.s32.f32 %v451
    %v459 = vcvt.s32.f32 %v452
    %v460 = vcvt.s32.f32 %v453
    %v461 = vcvt.s32.f32 %v454
    %v462 = vmul.f32 %v455, 1.1920929e-07
    %v463 = vmul.f32 %v456, 1.1920929e-07
    %v464 = vmul.f32 %v457, 1.1920929e-07
    %v465 = vmul.f32 %v458, 1.1920929e-07
    %v466 = vmul.f32 %v459, 1.1920929e-07
    %v467 = vmul.f32 %v460, 1.1920929e-07
    %v468 = vmul.f32 %v461, 1.1920929e-07
    %v469 = vadd.f32 %v462, 1e-07
    %v470 = vadd.f32 %v463, 1e-07
    %v471 = vadd.f32 %v464, 1e-07
    %v472 = vadd.f32 %v465, 1e-07
    %v473 = vadd.f32 %v466, 1e-07
    %v474 = vadd.f32 %v467, 1e-07
    %v475 = vadd.f32 %v468, 1e-07
    %v476 = vsub.f32 1.0, %v462
    %v477 = vsub.f32 1.0, %v463
    %v478 = vsub.f32 1.0, %v464
    %v479 = vsub.f32 1.0, %v465
    %v480 = vsub.f32 1.0, %v466
    %v481 = vsub.f32 1.0, %v467
    %v482 = vsub.f32 1.0, %v468
    %v483 = vadd.f32 %v476, 1e-07
    %v484 = vadd.f32 %v477, 1e-07
    %v485 = vadd.f32 %v478, 1e-07
    %v486 = vadd.f32 %v479, 1e-07
    %v487 = vadd.f32 %v480, 1e-07
    %v488 = vadd.f32 %v481, 1e-07
    %v489 = vadd.f32 %v482, 1e-07
    %v490 = vrcp.pop %v483
    %v491 = vmul.f32 %v469, %v490
    %v492 = vrcp.pop %v484
    %v493 = vmul.f32 %v470, %v492
    %v494 = vrcp.pop %v485
    %v495 = vmul.f32 %v471, %v494
    %v496 = vrcp.pop %v486
    %v497 = vmul.f32 %v472, %v496
    %v498 = vrcp.pop %v487
    %v499 = vmul.f32 %v473, %v498
    %v500 = vrcp.pop %v488
    %v501 = vmul.f32 %v474, %v500
    %v502 = vrcp.pop %v489
    %v503 = vmul.f32 %v475, %v502
    %v504 = vlog2.pop %v491
    %v505 = vmul.f32 %v504, 0.6931472
    %v506 = vlog2.pop %v493
    %v507 = vmul.f32 %v506, 0.6931472
    %v508 = vlog2.pop %v495
    %v509 = vmul.f32 %v508, 0.6931472
    %v510 = vlog2.pop %v497
    %v511 = vmul.f32 %v510, 0.6931472
    %v512 = vlog2.pop %v499
    %v513 = vmul.f32 %v512, 0.6931472
    %v514 = vlog2.pop %v501
    %v515 = vmul.f32 %v514, 0.6931472
    %v516 = vlog2.pop %v503
    %v517 = vmul.f32 %v516, 0.6931472
    %v518 = vadd.f32 %v505, -2.1972237
    %v519 = vadd.f32 %v507, -2.1972237
    %v520 = vadd.f32 %v509, -2.1972237
    %v521 = vadd.f32 %v511, -2.1972237
    %v522 = vadd.f32 %v513, -2.1972237
    %v523 = vadd.f32 %v515, -2.1972237
    %v524 = vadd.f32 %v517, -2.1972237
    %v525 = vmul.f32 %v518, 10.0
    %v526 = vmul.f32 %v519, 10.0
    %v527 = vmul.f32 %v520, 10.0
    %v528 = vmul.f32 %v521, 10.0
    %v529 = vmul.f32 %v522, 10.0
    %v530 = vmul.f32 %v523, 10.0
    %v531 = vmul.f32 %v524, 10.0
    %v532 = vxor.u32 %v525, 2147483648
    %v533 = vxor.u32 %v526, 2147483648
    %v534 = vxor.u32 %v527, 2147483648
    %v535 = vxor.u32 %v528, 2147483648
    %v536 = vxor.u32 %v529, 2147483648
    %v537 = vxor.u32 %v530, 2147483648
    %v538 = vxor.u32 %v531, 2147483648
    %v539 = vmul.f32 %v532, 1.442695
    %v540 = vpow.pop %v539
    %v541 = vmul.f32 %v533, 1.442695
    %v542 = vpow.pop %v541
    %v543 = vmul.f32 %v534, 1.442695
    %v544 = vpow.pop %v543
    %v545 = vmul.f32 %v535, 1.442695
    %v546 = vpow.pop %v545
    %v547 = vmul.f32 %v536, 1.442695
    %v548 = vpow.pop %v547
    %v549 = vmul.f32 %v537, 1.442695
    %v550 = vpow.pop %v549
    %v551 = vmul.f32 %v538, 1.442695
    %v552 = vpow.pop %v551
    %v553 = vadd.f32 %v540, 1.0
    %v554 = vadd.f32 %v542, 1.0
    %v555 = vadd.f32 %v544, 1.0
    %v556 = vadd.f32 %v546, 1.0
    %v557 = vadd.f32 %v548, 1.0
    %v558 = vadd.f32 %v550, 1.0
    %v559 = vadd.f32 %v552, 1.0
    %v560 = vrcp.pop %v553
    %v561 = vmul.f32 1.0, %v560
    %v562 = vrcp.pop %v554
    %v563 = vmul.f32 1.0, %v562
    %v564 = vrcp.pop %v555
    %v565 = vmul.f32 1.0, %v564
    %v566 = vrcp.pop %v556
    %v567 = vmul.f32 1.0, %v566
    %v568 = vrcp.pop %v557
    %v569 = vmul.f32 1.0, %v568
    %v570 = vrcp.pop %v558
    %v571 = vmul.f32 1.0, %v570
    %v572 = vrcp.pop %v559
    %v573 = vmul.f32 1.0, %v572
    %v574 = vsub.f32 1.0, %v561
    %v575 = vsub.f32 1.0, %v563
    %v576 = vsub.f32 1.0, %v565
    %v577 = vsub.f32 1.0, %v567
    %v578 = vsub.f32 1.0, %v569
    %v579 = vsub.f32 1.0, %v571
    %v580 = vsub.f32 1.0, %v573
    %v581 = vmul.f32 %v327, %v574
    %v582 = vmul.f32 %v328, %v575
    %v583 = vmul.f32 %v329, %v576
    %v584 = vmul.f32 %v330, %v577
    %v585 = vmul.f32 %v331, %v578
    %v586 = vmul.f32 %v332, %v579
    %v587 = vmul.f32 %v333, %v580
    %v588 = vmul.f32 %v581, 1.1111112
    %v589 = vmul.f32 %v582, 1.1111112
    %v590 = vmul.f32 %v583, 1.1111112
    %v591 = vmul.f32 %v584, 1.1111112
    %v592 = vmul.f32 %v585, 1.1111112
    %v593 = vmul.f32 %v586, 1.1111112
    %v594 = vmul.f32 %v587, 1.1111112
    %v595 = vpack.c.bf16 %v588, %v588
    %v596 = vpack.c.bf16 %v589, %v589
    %v597 = vpack.c.bf16 %v590, %v590
    %v598 = vpack.c.bf16 %v591, %v591
    %v599 = vpack.c.bf16 %v592, %v592
    %v600 = vpack.c.bf16 %v593, %v593
    %v601 = vpack.c.bf16 %v594, %v594
    %v602 = vld [vmem:[#allocation3] sm:$0xff]
    %v603 = vld [vmem:[#allocation3 + $0x8] sm:$0xff]
    %v604 = vld [vmem:[#allocation3 + $0x10] sm:$0xf]
    %v605 = vld [vmem:[#allocation3 + $0x14] sm:$0xff]
    %v606 = vld [vmem:[#allocation3 + $0x1c] sm:$0xff]
    %v607 = vld [vmem:[#allocation3 + $0x24] sm:$0xf]
    %v608 = vld [vmem:[#allocation3 + $0x28] sm:$0xff]
    %v609 = vld [vmem:[#allocation3 + $0x30] sm:$0xff]
    %v610 = vld [vmem:[#allocation3 + $0x38] sm:$0xf]
    %v611 = vld [vmem:[#allocation3 + $0x3c] sm:$0xff]
    %v612 = vld [vmem:[#allocation3 + $0x44] sm:$0xff]
    %v613 = vld [vmem:[#allocation3 + $0x4c] sm:$0xf]
    %v614 = vld [vmem:[#allocation3 + $0x50] sm:$0xff]
    %v615 = vld [vmem:[#allocation3 + $0x58] sm:$0xff]
    %v616 = vld [vmem:[#allocation3 + $0x60] sm:$0xf]
    %v617 = vld [vmem:[#allocation3 + $0x64] sm:$0xff]
    %v618 = vld [vmem:[#allocation3 + $0x6c] sm:$0xff]
    %v619 = vld [vmem:[#allocation3 + $0x74] sm:$0xf]
    %v620 = vld [vmem:[#allocation3 + $0x78] sm:$0xff]
    %v621 = vld [vmem:[#allocation3 + $0x80] sm:$0xff]
    %v622 = vld [vmem:[#allocation3 + $0x88] sm:$0xf]
    %v623 = vld [vmem:[#allocation3 + $0x8c] sm:$0xff]
    %v624 = vld [vmem:[#allocation3 + $0x94] sm:$0xff]
    %v625 = vld [vmem:[#allocation3 + $0x9c] sm:$0xf]
    %v626 = vld [vmem:[#allocation3 + $0xa0] sm:$0xff]
    %v627 = vld [vmem:[#allocation3 + $0xa8] sm:$0xff]
    %v628 = vld [vmem:[#allocation3 + $0xb0] sm:$0xf]
    %v629 = vld [vmem:[#allocation3 + $0xb4] sm:$0xff]
    %v630 = vld [vmem:[#allocation3 + $0xbc] sm:$0xff]
    %v631 = vld [vmem:[#allocation3 + $0xc4] sm:$0xf]
    %v632 = vld [vmem:[#allocation3 + $0xc8] sm:$0xff]
    %v633 = vld [vmem:[#allocation3 + $0xd0] sm:$0xff]
    %v634 = vld [vmem:[#allocation3 + $0xd8] sm:$0xf]
    %v635 = vld [vmem:[#allocation3 + $0xdc] sm:$0xff]
    %v636 = vld [vmem:[#allocation3 + $0xe4] sm:$0xff]
    %v637 = vld [vmem:[#allocation3 + $0xec] sm:$0xf]
    %v638 = vld [vmem:[#allocation3 + $0xf0] sm:$0xff]
    %v639 = vld [vmem:[#allocation3 + $0xf8] sm:$0xff]
    %v640 = vld [vmem:[#allocation3 + $0x100] sm:$0xf]
    %v641 = vld [vmem:[#allocation3 + $0x104] sm:$0xff]
    %v642 = vld [vmem:[#allocation3 + $0x10c] sm:$0xff]
    %v643 = vld [vmem:[#allocation3 + $0x114] sm:$0xf]
    %v644 = vld [vmem:[#allocation3 + $0x118] sm:$0xff]
    %v645 = vld [vmem:[#allocation3 + $0x120] sm:$0xff]
    %v646 = vld [vmem:[#allocation3 + $0x128] sm:$0xf]
    %v647 = vld [vmem:[#allocation3 + $0x12c] sm:$0xff]
    %v648 = vld [vmem:[#allocation3 + $0x134] sm:$0xff]
    %v649 = vld [vmem:[#allocation3 + $0x13c] sm:$0xf]
    %v650 = vld [vmem:[#allocation3 + $0x140] sm:$0xff]
    %v651 = vld [vmem:[#allocation3 + $0x148] sm:$0xff]
    %v652 = vld [vmem:[#allocation3 + $0x150] sm:$0xf]
    %v653 = vld [vmem:[#allocation3 + $0x154] sm:$0xff]
    %v654 = vld [vmem:[#allocation3 + $0x15c] sm:$0xff]
    %v655 = vld [vmem:[#allocation3 + $0x164] sm:$0xf]
    %v656 = vld [vmem:[#allocation3 + $0x168] sm:$0xff]
    %v657 = vld [vmem:[#allocation3 + $0x170] sm:$0xff]
    %v658 = vld [vmem:[#allocation3 + $0x178] sm:$0xf]
    %v659 = vld [vmem:[#allocation3 + $0x17c] sm:$0xff]
    %v660 = vld [vmem:[#allocation3 + $0x184] sm:$0xff]
    %v661 = vld [vmem:[#allocation3 + $0x18c] sm:$0xf]
    %v662 = vld [vmem:[#allocation3 + $0x190] sm:$0xff]
    %v663 = vld [vmem:[#allocation3 + $0x198] sm:$0xff]
    %v664 = vld [vmem:[#allocation3 + $0x1a0] sm:$0xf]
    %v665 = vld [vmem:[#allocation3 + $0x1a4] sm:$0xff]
    %v666 = vld [vmem:[#allocation3 + $0x1ac] sm:$0xff]
    %v667 = vld [vmem:[#allocation3 + $0x1b4] sm:$0xf]
    %v668 = vld [vmem:[#allocation3 + $0x1b8] sm:$0xff]
    %v669 = vld [vmem:[#allocation3 + $0x1c0] sm:$0xff]
    %v670 = vld [vmem:[#allocation3 + $0x1c8] sm:$0xf]
    %v671 = vld [vmem:[#allocation3 + $0x1cc] sm:$0xff]
    %v672 = vld [vmem:[#allocation3 + $0x1d4] sm:$0xff]
    %v673 = vld [vmem:[#allocation3 + $0x1dc] sm:$0xf]
    %v674 = vld [vmem:[#allocation3 + $0x1e0] sm:$0xff]
    %v675 = vld [vmem:[#allocation3 + $0x1e8] sm:$0xff]
    %v676 = vld [vmem:[#allocation3 + $0x1f0] sm:$0xf]
    %v677 = vld [vmem:[#allocation3 + $0x1f4] sm:$0xff]
    %v678 = vld [vmem:[#allocation3 + $0x1fc] sm:$0xff]
    %v679 = vld [vmem:[#allocation3 + $0x204] sm:$0xf]
    %v680 = vld [vmem:[#allocation3 + $0x208] sm:$0xff]
    %v681 = vld [vmem:[#allocation3 + $0x210] sm:$0xff]
    %v682 = vld [vmem:[#allocation3 + $0x218] sm:$0xf]
    %v683 = vld [vmem:[#allocation3 + $0x21c] sm:$0xff]
    %v684 = vld [vmem:[#allocation3 + $0x224] sm:$0xff]
    %v685 = vld [vmem:[#allocation3 + $0x22c] sm:$0xf]
    %v686 = vld [vmem:[#allocation3 + $0x230] sm:$0xff]
    %v687 = vld [vmem:[#allocation3 + $0x238] sm:$0xff]
    %v688 = vld [vmem:[#allocation3 + $0x240] sm:$0xf]
    %v689 = vld [vmem:[#allocation3 + $0x244] sm:$0xff]
    %v690 = vld [vmem:[#allocation3 + $0x24c] sm:$0xff]
    %v691 = vld [vmem:[#allocation3 + $0x254] sm:$0xf]
    %v692 = vld [vmem:[#allocation3 + $0x258] sm:$0xff]
    %v693 = vld [vmem:[#allocation3 + $0x260] sm:$0xff]
    %v694 = vld [vmem:[#allocation3 + $0x268] sm:$0xf]
    %v695 = vld [vmem:[#allocation3 + $0x26c] sm:$0xff]
    %v696 = vld [vmem:[#allocation3 + $0x274] sm:$0xff]
    %v697 = vld [vmem:[#allocation3 + $0x27c] sm:$0xf]
    %v698 = vld [vmem:[#allocation3 + $0x280] sm:$0xff]
    %v699 = vld [vmem:[#allocation3 + $0x288] sm:$0xff]
    %v700 = vld [vmem:[#allocation3 + $0x290] sm:$0xf]
    %v701 = vld [vmem:[#allocation3 + $0x294] sm:$0xff]
    %v702 = vld [vmem:[#allocation3 + $0x29c] sm:$0xff]
    %v703 = vld [vmem:[#allocation3 + $0x2a4] sm:$0xf]
    %v704 = vld [vmem:[#allocation3 + $0x2a8] sm:$0xff]
    %v705 = vld [vmem:[#allocation3 + $0x2b0] sm:$0xff]
    %v706 = vld [vmem:[#allocation3 + $0x2b8] sm:$0xf]
    %v707 = vld [vmem:[#allocation3 + $0x2bc] sm:$0xff]
    %v708 = vld [vmem:[#allocation3 + $0x2c4] sm:$0xff]
    %v709 = vld [vmem:[#allocation3 + $0x2cc] sm:$0xf]
    %v710 = vld [vmem:[#allocation3 + $0x2d0] sm:$0xff]
    %v711 = vld [vmem:[#allocation3 + $0x2d8] sm:$0xff]
    %v712 = vld [vmem:[#allocation3 + $0x2e0] sm:$0xf]
    %v713 = vld [vmem:[#allocation3 + $0x2e4] sm:$0xff]
    %v714 = vld [vmem:[#allocation3 + $0x2ec] sm:$0xff]
    %v715 = vld [vmem:[#allocation3 + $0x2f4] sm:$0xf]
    %v716 = vld [vmem:[#allocation3 + $0x2f8] sm:$0xff]
    %v717 = vld [vmem:[#allocation3 + $0x300] sm:$0xff]
    %v718 = vld [vmem:[#allocation3 + $0x308] sm:$0xf]
    %v719 = vld [vmem:[#allocation3 + $0x30c] sm:$0xff]
    %v720 = vld [vmem:[#allocation3 + $0x314] sm:$0xff]
    %v721 = vld [vmem:[#allocation3 + $0x31c] sm:$0xf]
    %v722 = vld [vmem:[#allocation3 + $0x320] sm:$0xff]
    %v723 = vld [vmem:[#allocation3 + $0x328] sm:$0xff]
    %v724 = vld [vmem:[#allocation3 + $0x330] sm:$0xf]
    %v725 = vld [vmem:[#allocation3 + $0x334] sm:$0xff]
    %v726 = vld [vmem:[#allocation3 + $0x33c] sm:$0xff]
    %v727 = vld [vmem:[#allocation3 + $0x344] sm:$0xf]
    %v728 = vld [vmem:[#allocation3 + $0x348] sm:$0xff]
    %v729 = vld [vmem:[#allocation3 + $0x350] sm:$0xff]
    %v730 = vld [vmem:[#allocation3 + $0x358] sm:$0xf]
    %v731 = vld [vmem:[#allocation3 + $0x35c] sm:$0xff]
    %v732 = vld [vmem:[#allocation3 + $0x364] sm:$0xff]
    %v733 = vld [vmem:[#allocation3 + $0x36c] sm:$0xf]
    %v734 = vld [vmem:[#allocation3 + $0x370] sm:$0xff]
    %v735 = vld [vmem:[#allocation3 + $0x378] sm:$0xff]
    %v736 = vld [vmem:[#allocation3 + $0x380] sm:$0xf]
    %v737 = vld [vmem:[#allocation3 + $0x384] sm:$0xff]
    %v738 = vld [vmem:[#allocation3 + $0x38c] sm:$0xff]
    %v739 = vld [vmem:[#allocation3 + $0x394] sm:$0xf]
    %v740 = vld [vmem:[#allocation3 + $0x398] sm:$0xff]
    %v741 = vld [vmem:[#allocation3 + $0x3a0] sm:$0xff]
    %v742 = vld [vmem:[#allocation3 + $0x3a8] sm:$0xf]
    %v743 = vld [vmem:[#allocation3 + $0x3ac] sm:$0xff]
    %v744 = vld [vmem:[#allocation3 + $0x3b4] sm:$0xff]
    %v745 = vld [vmem:[#allocation3 + $0x3bc] sm:$0xf]
    %v746 = vld [vmem:[#allocation3 + $0x3c0] sm:$0xff]
    %v747 = vld [vmem:[#allocation3 + $0x3c8] sm:$0xff]
    %v748 = vld [vmem:[#allocation3 + $0x3d0] sm:$0xf]
    %v749 = vld [vmem:[#allocation3 + $0x3d4] sm:$0xff]
    %v750 = vld [vmem:[#allocation3 + $0x3dc] sm:$0xff]
    %v751 = vld [vmem:[#allocation3 + $0x3e4] sm:$0xf]
    %v752 = vld [vmem:[#allocation3 + $0x3e8] sm:$0xff]
    %v753 = vld [vmem:[#allocation3 + $0x3f0] sm:$0xff]
    %v754 = vld [vmem:[#allocation3 + $0x3f8] sm:$0xf]
    %v755 = vld [vmem:[#allocation3 + $0x3fc] sm:$0xff]
    %v756 = vld [vmem:[#allocation3 + $0x404] sm:$0xff]
    %v757 = vld [vmem:[#allocation3 + $0x40c] sm:$0xf]
    %v758 = vld [vmem:[#allocation3 + $0x410] sm:$0xff]
    %v759 = vld [vmem:[#allocation3 + $0x418] sm:$0xff]
    %v760 = vld [vmem:[#allocation3 + $0x420] sm:$0xf]
    %v761 = vld [vmem:[#allocation3 + $0x424] sm:$0xff]
    %v762 = vld [vmem:[#allocation3 + $0x42c] sm:$0xff]
    %v763 = vld [vmem:[#allocation3 + $0x434] sm:$0xf]
    %v764 = vld [vmem:[#allocation3 + $0x438] sm:$0xff]
    %v765 = vld [vmem:[#allocation3 + $0x440] sm:$0xff]
    %v766 = vld [vmem:[#allocation3 + $0x448] sm:$0xf]
    %v767 = vld [vmem:[#allocation3 + $0x44c] sm:$0xff]
    %v768 = vld [vmem:[#allocation3 + $0x454] sm:$0xff]
    %v769 = vld [vmem:[#allocation3 + $0x45c] sm:$0xf]
    %v770 = vld [vmem:[#allocation3 + $0x460] sm:$0xff]
    %v771 = vld [vmem:[#allocation3 + $0x468] sm:$0xff]
    %v772 = vld [vmem:[#allocation3 + $0x470] sm:$0xf]
    %v773 = vld [vmem:[#allocation3 + $0x474] sm:$0xff]
    %v774 = vld [vmem:[#allocation3 + $0x47c] sm:$0xff]
    %v775 = vld [vmem:[#allocation3 + $0x484] sm:$0xf]
    %v776 = vld [vmem:[#allocation3 + $0x488] sm:$0xff]
    %v777 = vld [vmem:[#allocation3 + $0x490] sm:$0xff]
    %v778 = vld [vmem:[#allocation3 + $0x498] sm:$0xf]
    %v779 = vld [vmem:[#allocation3 + $0x49c] sm:$0xff]
    %v780 = vld [vmem:[#allocation3 + $0x4a4] sm:$0xff]
    %v781 = vld [vmem:[#allocation3 + $0x4ac] sm:$0xf]
    %v782 = vld [vmem:[#allocation3 + $0x4b0] sm:$0xff]
    %v783 = vld [vmem:[#allocation3 + $0x4b8] sm:$0xff]
    %v784 = vld [vmem:[#allocation3 + $0x4c0] sm:$0xf]
    %v785 = vld [vmem:[#allocation3 + $0x4c4] sm:$0xff]
    %v786 = vld [vmem:[#allocation3 + $0x4cc] sm:$0xff]
    %v787 = vld [vmem:[#allocation3 + $0x4d4] sm:$0xf]
    %v788 = vld [vmem:[#allocation3 + $0x4d8] sm:$0xff]
    %v789 = vld [vmem:[#allocation3 + $0x4e0] sm:$0xff]
    %v790 = vld [vmem:[#allocation3 + $0x4e8] sm:$0xf]
    %v791 = vld [vmem:[#allocation3 + $0x4ec] sm:$0xff]
    %v792 = vld [vmem:[#allocation3 + $0x4f4] sm:$0xff]
    %v793 = vld [vmem:[#allocation3 + $0x4fc] sm:$0xf]
    %v794 = vld [vmem:[#allocation3 + $0x500] sm:$0xff]
    %v795 = vld [vmem:[#allocation3 + $0x508] sm:$0xff]
    %v796 = vld [vmem:[#allocation3 + $0x510] sm:$0xf]
    %v797 = vld [vmem:[#allocation3 + $0x514] sm:$0xff]
    %v798 = vld [vmem:[#allocation3 + $0x51c] sm:$0xff]
    %v799 = vld [vmem:[#allocation3 + $0x524] sm:$0xf]
    %v800 = vld [vmem:[#allocation3 + $0x528] sm:$0xff]
    %v801 = vld [vmem:[#allocation3 + $0x530] sm:$0xff]
    %v802 = vld [vmem:[#allocation3 + $0x538] sm:$0xf]
    %v803 = vld [vmem:[#allocation3 + $0x53c] sm:$0xff]
    %v804 = vld [vmem:[#allocation3 + $0x544] sm:$0xff]
    %v805 = vld [vmem:[#allocation3 + $0x54c] sm:$0xf]
    %v806 = vld [vmem:[#allocation3 + $0x550] sm:$0xff]
    %v807 = vld [vmem:[#allocation3 + $0x558] sm:$0xff]
    %v808 = vld [vmem:[#allocation3 + $0x560] sm:$0xf]
    %v809 = vld [vmem:[#allocation3 + $0x564] sm:$0xff]
    %v810 = vld [vmem:[#allocation3 + $0x56c] sm:$0xff]
    %v811 = vld [vmem:[#allocation3 + $0x574] sm:$0xf]
    %v812 = vld [vmem:[#allocation3 + $0x578] sm:$0xff]
    %v813 = vld [vmem:[#allocation3 + $0x580] sm:$0xff]
    %v814 = vld [vmem:[#allocation3 + $0x588] sm:$0xf]
    %v815 = vld [vmem:[#allocation3 + $0x58c] sm:$0xff]
    %v816 = vld [vmem:[#allocation3 + $0x594] sm:$0xff]
    %v817 = vld [vmem:[#allocation3 + $0x59c] sm:$0xf]
    %v818 = vld [vmem:[#allocation3 + $0x5a0] sm:$0xff]
    %v819 = vld [vmem:[#allocation3 + $0x5a8] sm:$0xff]
    %v820 = vld [vmem:[#allocation3 + $0x5b0] sm:$0xf]
    %v821 = vld [vmem:[#allocation3 + $0x5b4] sm:$0xff]
    %v822 = vld [vmem:[#allocation3 + $0x5bc] sm:$0xff]
    %v823 = vld [vmem:[#allocation3 + $0x5c4] sm:$0xf]
    %v824 = vld [vmem:[#allocation3 + $0x5c8] sm:$0xff]
    %v825 = vld [vmem:[#allocation3 + $0x5d0] sm:$0xff]
    %v826 = vld [vmem:[#allocation3 + $0x5d8] sm:$0xf]
    %v827 = vld [vmem:[#allocation3 + $0x5dc] sm:$0xff]
    %v828 = vld [vmem:[#allocation3 + $0x5e4] sm:$0xff]
    %v829 = vld [vmem:[#allocation3 + $0x5ec] sm:$0xf]
    %v830 = vld [vmem:[#allocation3 + $0x5f0] sm:$0xff]
    %v831 = vld [vmem:[#allocation3 + $0x5f8] sm:$0xff]
    %v832 = vld [vmem:[#allocation3 + $0x600] sm:$0xf]
    %v833 = vld [vmem:[#allocation3 + $0x604] sm:$0xff]
    %v834 = vld [vmem:[#allocation3 + $0x60c] sm:$0xff]
    %v835 = vld [vmem:[#allocation3 + $0x614] sm:$0xf]
    %v836 = vld [vmem:[#allocation3 + $0x618] sm:$0xff]
    %v837 = vld [vmem:[#allocation3 + $0x620] sm:$0xff]
    %v838 = vld [vmem:[#allocation3 + $0x628] sm:$0xf]
    %v839 = vld [vmem:[#allocation3 + $0x62c] sm:$0xff]
    %v840 = vld [vmem:[#allocation3 + $0x634] sm:$0xff]
    %v841 = vld [vmem:[#allocation3 + $0x63c] sm:$0xf]
    %v842 = vld [vmem:[#allocation3 + $0x640] sm:$0xff]
    %v843 = vld [vmem:[#allocation3 + $0x648] sm:$0xff]
    %v844 = vld [vmem:[#allocation3 + $0x650] sm:$0xf]
    %v845 = vld [vmem:[#allocation3 + $0x654] sm:$0xff]
    %v846 = vld [vmem:[#allocation3 + $0x65c] sm:$0xff]
    %v847 = vld [vmem:[#allocation3 + $0x664] sm:$0xf]
    %v848 = vld [vmem:[#allocation3 + $0x668] sm:$0xff]
    %v849 = vld [vmem:[#allocation3 + $0x670] sm:$0xff]
    %v850 = vld [vmem:[#allocation3 + $0x678] sm:$0xf]
    %v851 = vld [vmem:[#allocation3 + $0x67c] sm:$0xff]
    %v852 = vld [vmem:[#allocation3 + $0x684] sm:$0xff]
    %v853 = vld [vmem:[#allocation3 + $0x68c] sm:$0xf]
    %v854 = vld [vmem:[#allocation3 + $0x690] sm:$0xff]
    %v855 = vld [vmem:[#allocation3 + $0x698] sm:$0xff]
    %v856 = vld [vmem:[#allocation3 + $0x6a0] sm:$0xf]
    %v857 = vld [vmem:[#allocation3 + $0x6a4] sm:$0xff]
    %v858 = vld [vmem:[#allocation3 + $0x6ac] sm:$0xff]
    %v859 = vld [vmem:[#allocation3 + $0x6b4] sm:$0xf]
    %v860 = vld [vmem:[#allocation3 + $0x6b8] sm:$0xff]
    %v861 = vld [vmem:[#allocation3 + $0x6c0] sm:$0xff]
    %v862 = vld [vmem:[#allocation3 + $0x6c8] sm:$0xf]
    %v863 = vld [vmem:[#allocation3 + $0x6cc] sm:$0xff]
    %v864 = vld [vmem:[#allocation3 + $0x6d4] sm:$0xff]
    %v865 = vld [vmem:[#allocation3 + $0x6dc] sm:$0xf]
    %v866 = vld [vmem:[#allocation3 + $0x6e0] sm:$0xff]
    %v867 = vld [vmem:[#allocation3 + $0x6e8] sm:$0xff]
    %v868 = vld [vmem:[#allocation3 + $0x6f0] sm:$0xf]
    %v869 = vld [vmem:[#allocation3 + $0x6f4] sm:$0xff]
    %v870 = vld [vmem:[#allocation3 + $0x6fc] sm:$0xff]
    %v871 = vld [vmem:[#allocation3 + $0x704] sm:$0xf]
    %v872 = vld [vmem:[#allocation3 + $0x708] sm:$0xff]
    %v873 = vld [vmem:[#allocation3 + $0x710] sm:$0xff]
    %v874 = vld [vmem:[#allocation3 + $0x718] sm:$0xf]
    %v875 = vld [vmem:[#allocation3 + $0x71c] sm:$0xff]
    %v876 = vld [vmem:[#allocation3 + $0x724] sm:$0xff]
    %v877 = vld [vmem:[#allocation3 + $0x72c] sm:$0xf]
    %v878 = vld [vmem:[#allocation3 + $0x730] sm:$0xff]
    %v879 = vld [vmem:[#allocation3 + $0x738] sm:$0xff]
    %v880 = vld [vmem:[#allocation3 + $0x740] sm:$0xf]
    %v881 = vld [vmem:[#allocation3 + $0x744] sm:$0xff]
    %v882 = vld [vmem:[#allocation3 + $0x74c] sm:$0xff]
    %v883 = vld [vmem:[#allocation3 + $0x754] sm:$0xf]
    %v884 = vld [vmem:[#allocation3 + $0x758] sm:$0xff]
    %v885 = vld [vmem:[#allocation3 + $0x760] sm:$0xff]
    %v886 = vld [vmem:[#allocation3 + $0x768] sm:$0xf]
    %v887 = vld [vmem:[#allocation3 + $0x76c] sm:$0xff]
    %v888 = vld [vmem:[#allocation3 + $0x774] sm:$0xff]
    %v889 = vld [vmem:[#allocation3 + $0x77c] sm:$0xf]
    %v890 = vld [vmem:[#allocation3 + $0x780] sm:$0xff]
    %v891 = vld [vmem:[#allocation3 + $0x788] sm:$0xff]
    %v892 = vld [vmem:[#allocation3 + $0x790] sm:$0xf]
    %v893 = vld [vmem:[#allocation3 + $0x794] sm:$0xff]
    %v894 = vld [vmem:[#allocation3 + $0x79c] sm:$0xff]
    %v895 = vld [vmem:[#allocation3 + $0x7a4] sm:$0xf]
    %v896 = vld [vmem:[#allocation3 + $0x7a8] sm:$0xff]
    %v897 = vld [vmem:[#allocation3 + $0x7b0] sm:$0xff]
    %v898 = vld [vmem:[#allocation3 + $0x7b8] sm:$0xf]
    %v899 = vld [vmem:[#allocation3 + $0x7bc] sm:$0xff]
    %v900 = vld [vmem:[#allocation3 + $0x7c4] sm:$0xff]
    %v901 = vld [vmem:[#allocation3 + $0x7cc] sm:$0xf]
    %v902 = vld [vmem:[#allocation3 + $0x7d0] sm:$0xff]
    %v903 = vld [vmem:[#allocation3 + $0x7d8] sm:$0xff]
    %v904 = vld [vmem:[#allocation3 + $0x7e0] sm:$0xf]
    %v905 = vld [vmem:[#allocation3 + $0x7e4] sm:$0xff]
    %v906 = vld [vmem:[#allocation3 + $0x7ec] sm:$0xff]
    %v907 = vld [vmem:[#allocation3 + $0x7f4] sm:$0xf]
    %v908 = vld [vmem:[#allocation3 + $0x7f8] sm:$0xff]
    %v909 = vld [vmem:[#allocation3 + $0x800] sm:$0xff]
    %v910 = vld [vmem:[#allocation3 + $0x808] sm:$0xf]
    %v911 = vld [vmem:[#allocation3 + $0x80c] sm:$0xff]
    %v912 = vld [vmem:[#allocation3 + $0x814] sm:$0xff]
    %v913 = vld [vmem:[#allocation3 + $0x81c] sm:$0xf]
    %v914 = vld [vmem:[#allocation3 + $0x820] sm:$0xff]
    %v915 = vld [vmem:[#allocation3 + $0x828] sm:$0xff]
    %v916 = vld [vmem:[#allocation3 + $0x830] sm:$0xf]
    %v917 = vld [vmem:[#allocation3 + $0x834] sm:$0xff]
    %v918 = vld [vmem:[#allocation3 + $0x83c] sm:$0xff]
    %v919 = vld [vmem:[#allocation3 + $0x844] sm:$0xf]
    %v920 = vld [vmem:[#allocation3 + $0x848] sm:$0xff]
    %v921 = vld [vmem:[#allocation3 + $0x850] sm:$0xff]
    %v922 = vld [vmem:[#allocation3 + $0x858] sm:$0xf]
    %v923 = vld [vmem:[#allocation3 + $0x85c] sm:$0xff]
    %v924 = vld [vmem:[#allocation3 + $0x864] sm:$0xff]
    %v925 = vld [vmem:[#allocation3 + $0x86c] sm:$0xf]
    %v926 = vld [vmem:[#allocation3 + $0x870] sm:$0xff]
    %v927 = vld [vmem:[#allocation3 + $0x878] sm:$0xff]
    %v928 = vld [vmem:[#allocation3 + $0x880] sm:$0xf]
    %v929 = vld [vmem:[#allocation3 + $0x884] sm:$0xff]
    %v930 = vld [vmem:[#allocation3 + $0x88c] sm:$0xff]
    %v931 = vld [vmem:[#allocation3 + $0x894] sm:$0xf]
    %v932 = vld [vmem:[#allocation3 + $0x898] sm:$0xff]
    %v933 = vld [vmem:[#allocation3 + $0x8a0] sm:$0xff]
    %v934 = vld [vmem:[#allocation3 + $0x8a8] sm:$0xf]
    %v935 = vld [vmem:[#allocation3 + $0x8ac] sm:$0xff]
    %v936 = vld [vmem:[#allocation3 + $0x8b4] sm:$0xff]
    %v937 = vld [vmem:[#allocation3 + $0x8bc] sm:$0xf]
    %v938 = vld [vmem:[#allocation6] sm:$0x1f]
    %v940 = vlaneseq
    %v941 = vshrl.u32 %v940, 7
    %v942 = vsub.s32 0, %v941
    %v943 = vrot.slane %v938, %v942
    %v944 = vlaneseq
    %v945 = vshrl.u32 %v944, 7
    %v946 = vsub.s32 1, %v945
    %v947 = vrot.slane %v938, %v946
    %v948 = vlaneseq
    %v949 = vshrl.u32 %v948, 7
    %v950 = vsub.s32 2, %v949
    %v951 = vrot.slane %v938, %v950
    %v952 = vlaneseq
    %v953 = vshrl.u32 %v952, 7
    %v954 = vsub.s32 3, %v953
    %v955 = vrot.slane %v938, %v954
    %v956 = vlaneseq
    %v957 = vshrl.u32 %v956, 7
    %v958 = vsub.s32 4, %v957
    %v959 = vrot.slane %v938, %v958
    %v1301 = vunpack.c.l.b16 %v602
    %v1302 = vunpack.c.h.b16 %v602
    %v1303 = vunpack.c.l.b16 %v603
    %v1304 = vunpack.c.h.b16 %v603
    %v1305 = vunpack.c.l.b16 %v604
    %v1306 = vunpack.c.l.b16 %v605
    %v1307 = vunpack.c.h.b16 %v605
    %v1308 = vunpack.c.l.b16 %v606
    %v1309 = vunpack.c.h.b16 %v606
    %v1310 = vunpack.c.l.b16 %v607
    %v1311 = vunpack.c.l.b16 %v608
    %v1312 = vunpack.c.h.b16 %v608
    %v1313 = vunpack.c.l.b16 %v609
    %v1314 = vunpack.c.h.b16 %v609
    %v1315 = vunpack.c.l.b16 %v610
    %v1316 = vunpack.c.l.b16 %v611
    %v1317 = vunpack.c.h.b16 %v611
    %v1318 = vunpack.c.l.b16 %v612
    %v1319 = vunpack.c.h.b16 %v612
    %v1320 = vunpack.c.l.b16 %v613
    %v1321 = vunpack.c.l.b16 %v614
    %v1322 = vunpack.c.h.b16 %v614
    %v1323 = vunpack.c.l.b16 %v615
    %v1324 = vunpack.c.h.b16 %v615
    %v1325 = vunpack.c.l.b16 %v616
    %v1326 = vunpack.c.l.b16 %v617
    %v1327 = vunpack.c.h.b16 %v617
    %v1328 = vunpack.c.l.b16 %v618
    %v1329 = vunpack.c.h.b16 %v618
    %v1330 = vunpack.c.l.b16 %v619
    %v1331 = vunpack.c.l.b16 %v620
    %v1332 = vunpack.c.h.b16 %v620
    %v1333 = vunpack.c.l.b16 %v621
    %v1334 = vunpack.c.h.b16 %v621
    %v1335 = vunpack.c.l.b16 %v622
    %v1336 = vunpack.c.l.b16 %v623
    %v1337 = vunpack.c.h.b16 %v623
    %v1338 = vunpack.c.l.b16 %v624
    %v1339 = vunpack.c.h.b16 %v624
    %v1340 = vunpack.c.l.b16 %v625
    %v1341 = vunpack.c.l.b16 %v626
    %v1342 = vunpack.c.h.b16 %v626
    %v1343 = vunpack.c.l.b16 %v627
    %v1344 = vunpack.c.h.b16 %v627
    %v1345 = vunpack.c.l.b16 %v628
    %v1346 = vunpack.c.l.b16 %v629
    %v1347 = vunpack.c.h.b16 %v629
    %v1348 = vunpack.c.l.b16 %v630
    %v1349 = vunpack.c.h.b16 %v630
    %v1350 = vunpack.c.l.b16 %v631
    %v1351 = vunpack.c.l.b16 %v632
    %v1352 = vunpack.c.h.b16 %v632
    %v1353 = vunpack.c.l.b16 %v633
    %v1354 = vunpack.c.h.b16 %v633
    %v1355 = vunpack.c.l.b16 %v634
    %v1356 = vunpack.c.l.b16 %v635
    %v1357 = vunpack.c.h.b16 %v635
    %v1358 = vunpack.c.l.b16 %v636
    %v1359 = vunpack.c.h.b16 %v636
    %v1360 = vunpack.c.l.b16 %v637
    %v1361 = vunpack.c.l.b16 %v638
    %v1362 = vunpack.c.h.b16 %v638
    %v1363 = vunpack.c.l.b16 %v639
    %v1364 = vunpack.c.h.b16 %v639
    %v1365 = vunpack.c.l.b16 %v640
    %v1366 = vunpack.c.l.b16 %v641
    %v1367 = vunpack.c.h.b16 %v641
    %v1368 = vunpack.c.l.b16 %v642
    %v1369 = vunpack.c.h.b16 %v642
    %v1370 = vunpack.c.l.b16 %v643
    %v1371 = vunpack.c.l.b16 %v644
    %v1372 = vunpack.c.h.b16 %v644
    %v1373 = vunpack.c.l.b16 %v645
    %v1374 = vunpack.c.h.b16 %v645
    %v1375 = vunpack.c.l.b16 %v646
    %v1376 = vunpack.c.l.b16 %v647
    %v1377 = vunpack.c.h.b16 %v647
    %v1378 = vunpack.c.l.b16 %v648
    %v1379 = vunpack.c.h.b16 %v648
    %v1380 = vunpack.c.l.b16 %v649
    %v1381 = vunpack.c.l.b16 %v650
    %v1382 = vunpack.c.h.b16 %v650
    %v1383 = vunpack.c.l.b16 %v651
    %v1384 = vunpack.c.h.b16 %v651
    %v1385 = vunpack.c.l.b16 %v652
    %v1386 = vunpack.c.l.b16 %v653
    %v1387 = vunpack.c.h.b16 %v653
    %v1388 = vunpack.c.l.b16 %v654
    %v1389 = vunpack.c.h.b16 %v654
    %v1390 = vunpack.c.l.b16 %v655
    %v1391 = vunpack.c.l.b16 %v656
    %v1392 = vunpack.c.h.b16 %v656
    %v1393 = vunpack.c.l.b16 %v657
    %v1394 = vunpack.c.h.b16 %v657
    %v1395 = vunpack.c.l.b16 %v658
    %v1396 = vunpack.c.l.b16 %v659
    %v1397 = vunpack.c.h.b16 %v659
    %v1398 = vunpack.c.l.b16 %v660
    %v1399 = vunpack.c.h.b16 %v660
    %v1400 = vunpack.c.l.b16 %v661
    %v1401 = vunpack.c.l.b16 %v662
    %v1402 = vunpack.c.h.b16 %v662
    %v1403 = vunpack.c.l.b16 %v663
    %v1404 = vunpack.c.h.b16 %v663
    %v1405 = vunpack.c.l.b16 %v664
    %v1406 = vunpack.c.l.b16 %v665
    %v1407 = vunpack.c.h.b16 %v665
    %v1408 = vunpack.c.l.b16 %v666
    %v1409 = vunpack.c.h.b16 %v666
    %v1410 = vunpack.c.l.b16 %v667
    %v1411 = vunpack.c.l.b16 %v668
    %v1412 = vunpack.c.h.b16 %v668
    %v1413 = vunpack.c.l.b16 %v669
    %v1414 = vunpack.c.h.b16 %v669
    %v1415 = vunpack.c.l.b16 %v670
    %v1416 = vunpack.c.l.b16 %v671
    %v1417 = vunpack.c.h.b16 %v671
    %v1418 = vunpack.c.l.b16 %v672
    %v1419 = vunpack.c.h.b16 %v672
    %v1420 = vunpack.c.l.b16 %v673
    %v1421 = vunpack.c.l.b16 %v674
    %v1422 = vunpack.c.h.b16 %v674
    %v1423 = vunpack.c.l.b16 %v675
    %v1424 = vunpack.c.h.b16 %v675
    %v1425 = vunpack.c.l.b16 %v676
    %v1426 = vunpack.c.l.b16 %v677
    %v1427 = vunpack.c.h.b16 %v677
    %v1428 = vunpack.c.l.b16 %v678
    %v1429 = vunpack.c.h.b16 %v678
    %v1430 = vunpack.c.l.b16 %v679
    %v1431 = vunpack.c.l.b16 %v680
    %v1432 = vunpack.c.h.b16 %v680
    %v1433 = vunpack.c.l.b16 %v681
    %v1434 = vunpack.c.h.b16 %v681
    %v1435 = vunpack.c.l.b16 %v682
    %v1436 = vunpack.c.l.b16 %v683
    %v1437 = vunpack.c.h.b16 %v683
    %v1438 = vunpack.c.l.b16 %v684
    %v1439 = vunpack.c.h.b16 %v684
    %v1440 = vunpack.c.l.b16 %v685
    %v1441 = vunpack.c.l.b16 %v686
    %v1442 = vunpack.c.h.b16 %v686
    %v1443 = vunpack.c.l.b16 %v687
    %v1444 = vunpack.c.h.b16 %v687
    %v1445 = vunpack.c.l.b16 %v688
    %v1446 = vunpack.c.l.b16 %v689
    %v1447 = vunpack.c.h.b16 %v689
    %v1448 = vunpack.c.l.b16 %v690
    %v1449 = vunpack.c.h.b16 %v690
    %v1450 = vunpack.c.l.b16 %v691
    %v1451 = vunpack.c.l.b16 %v692
    %v1452 = vunpack.c.h.b16 %v692
    %v1453 = vunpack.c.l.b16 %v693
    %v1454 = vunpack.c.h.b16 %v693
    %v1455 = vunpack.c.l.b16 %v694
    %v1456 = vunpack.c.l.b16 %v695
    %v1457 = vunpack.c.h.b16 %v695
    %v1458 = vunpack.c.l.b16 %v696
    %v1459 = vunpack.c.h.b16 %v696
    %v1460 = vunpack.c.l.b16 %v697
    %v1461 = vunpack.c.l.b16 %v698
    %v1462 = vunpack.c.h.b16 %v698
    %v1463 = vunpack.c.l.b16 %v699
    %v1464 = vunpack.c.h.b16 %v699
    %v1465 = vunpack.c.l.b16 %v700
    %v1466 = vunpack.c.l.b16 %v701
    %v1467 = vunpack.c.h.b16 %v701
    %v1468 = vunpack.c.l.b16 %v702
    %v1469 = vunpack.c.h.b16 %v702
    %v1470 = vunpack.c.l.b16 %v703
    %v1471 = vunpack.c.l.b16 %v704
    %v1472 = vunpack.c.h.b16 %v704
    %v1473 = vunpack.c.l.b16 %v705
    %v1474 = vunpack.c.h.b16 %v705
    %v1475 = vunpack.c.l.b16 %v706
    %v1476 = vunpack.c.l.b16 %v707
    %v1477 = vunpack.c.h.b16 %v707
    %v1478 = vunpack.c.l.b16 %v708
    %v1479 = vunpack.c.h.b16 %v708
    %v1480 = vunpack.c.l.b16 %v709
    %v1481 = vunpack.c.l.b16 %v710
    %v1482 = vunpack.c.h.b16 %v710
    %v1483 = vunpack.c.l.b16 %v711
    %v1484 = vunpack.c.h.b16 %v711
    %v1485 = vunpack.c.l.b16 %v712
    %v1486 = vunpack.c.l.b16 %v713
    %v1487 = vunpack.c.h.b16 %v713
    %v1488 = vunpack.c.l.b16 %v714
    %v1489 = vunpack.c.h.b16 %v714
    %v1490 = vunpack.c.l.b16 %v715
    %v1491 = vunpack.c.l.b16 %v716
    %v1492 = vunpack.c.h.b16 %v716
    %v1493 = vunpack.c.l.b16 %v717
    %v1494 = vunpack.c.h.b16 %v717
    %v1495 = vunpack.c.l.b16 %v718
    %v1496 = vunpack.c.l.b16 %v719
    %v1497 = vunpack.c.h.b16 %v719
    %v1498 = vunpack.c.l.b16 %v720
    %v1499 = vunpack.c.h.b16 %v720
    %v1500 = vunpack.c.l.b16 %v721
    %v1501 = vunpack.c.l.b16 %v722
    %v1502 = vunpack.c.h.b16 %v722
    %v1503 = vunpack.c.l.b16 %v723
    %v1504 = vunpack.c.h.b16 %v723
    %v1505 = vunpack.c.l.b16 %v724
    %v1506 = vunpack.c.l.b16 %v725
    %v1507 = vunpack.c.h.b16 %v725
    %v1508 = vunpack.c.l.b16 %v726
    %v1509 = vunpack.c.h.b16 %v726
    %v1510 = vunpack.c.l.b16 %v727
    %v1511 = vunpack.c.l.b16 %v728
    %v1512 = vunpack.c.h.b16 %v728
    %v1513 = vunpack.c.l.b16 %v729
    %v1514 = vunpack.c.h.b16 %v729
    %v1515 = vunpack.c.l.b16 %v730
    %v1516 = vunpack.c.l.b16 %v731
    %v1517 = vunpack.c.h.b16 %v731
    %v1518 = vunpack.c.l.b16 %v732
    %v1519 = vunpack.c.h.b16 %v732
    %v1520 = vunpack.c.l.b16 %v733
    %v1521 = vunpack.c.l.b16 %v734
    %v1522 = vunpack.c.h.b16 %v734
    %v1523 = vunpack.c.l.b16 %v735
    %v1524 = vunpack.c.h.b16 %v735
    %v1525 = vunpack.c.l.b16 %v736
    %v1526 = vunpack.c.l.b16 %v737
    %v1527 = vunpack.c.h.b16 %v737
    %v1528 = vunpack.c.l.b16 %v738
    %v1529 = vunpack.c.h.b16 %v738
    %v1530 = vunpack.c.l.b16 %v739
    %v1531 = vunpack.c.l.b16 %v740
    %v1532 = vunpack.c.h.b16 %v740
    %v1533 = vunpack.c.l.b16 %v741
    %v1534 = vunpack.c.h.b16 %v741
    %v1535 = vunpack.c.l.b16 %v742
    %v1536 = vunpack.c.l.b16 %v743
    %v1537 = vunpack.c.h.b16 %v743
    %v1538 = vunpack.c.l.b16 %v744
    %v1539 = vunpack.c.h.b16 %v744
    %v1540 = vunpack.c.l.b16 %v745
    %v1541 = vunpack.c.l.b16 %v746
    %v1542 = vunpack.c.h.b16 %v746
    %v1543 = vunpack.c.l.b16 %v747
    %v1544 = vunpack.c.h.b16 %v747
    %v1545 = vunpack.c.l.b16 %v748
    %v1546 = vunpack.c.l.b16 %v749
    %v1547 = vunpack.c.h.b16 %v749
    %v1548 = vunpack.c.l.b16 %v750
    %v1549 = vunpack.c.h.b16 %v750
    %v1550 = vunpack.c.l.b16 %v751
    %v1551 = vunpack.c.l.b16 %v752
    %v1552 = vunpack.c.h.b16 %v752
    %v1553 = vunpack.c.l.b16 %v753
    %v1554 = vunpack.c.h.b16 %v753
    %v1555 = vunpack.c.l.b16 %v754
    %v1556 = vunpack.c.l.b16 %v755
    %v1557 = vunpack.c.h.b16 %v755
    %v1558 = vunpack.c.l.b16 %v756
    %v1559 = vunpack.c.h.b16 %v756
    %v1560 = vunpack.c.l.b16 %v757
    %v1561 = vunpack.c.l.b16 %v758
    %v1562 = vunpack.c.h.b16 %v758
    %v1563 = vunpack.c.l.b16 %v759
    %v1564 = vunpack.c.h.b16 %v759
    %v1565 = vunpack.c.l.b16 %v760
    %v1566 = vunpack.c.l.b16 %v761
    %v1567 = vunpack.c.h.b16 %v761
    %v1568 = vunpack.c.l.b16 %v762
    %v1569 = vunpack.c.h.b16 %v762
    %v1570 = vunpack.c.l.b16 %v763
    %v1571 = vunpack.c.l.b16 %v764
    %v1572 = vunpack.c.h.b16 %v764
    %v1573 = vunpack.c.l.b16 %v765
    %v1574 = vunpack.c.h.b16 %v765
    %v1575 = vunpack.c.l.b16 %v766
    %v1576 = vunpack.c.l.b16 %v767
    %v1577 = vunpack.c.h.b16 %v767
    %v1578 = vunpack.c.l.b16 %v768
    %v1579 = vunpack.c.h.b16 %v768
    %v1580 = vunpack.c.l.b16 %v769
    %v1581 = vunpack.c.l.b16 %v770
    %v1582 = vunpack.c.h.b16 %v770
    %v1583 = vunpack.c.l.b16 %v771
    %v1584 = vunpack.c.h.b16 %v771
    %v1585 = vunpack.c.l.b16 %v772
    %v1586 = vunpack.c.l.b16 %v773
    %v1587 = vunpack.c.h.b16 %v773
    %v1588 = vunpack.c.l.b16 %v774
    %v1589 = vunpack.c.h.b16 %v774
    %v1590 = vunpack.c.l.b16 %v775
    %v1591 = vunpack.c.l.b16 %v776
    %v1592 = vunpack.c.h.b16 %v776
    %v1593 = vunpack.c.l.b16 %v777
    %v1594 = vunpack.c.h.b16 %v777
    %v1595 = vunpack.c.l.b16 %v778
    %v1596 = vunpack.c.l.b16 %v779
    %v1597 = vunpack.c.h.b16 %v779
    %v1598 = vunpack.c.l.b16 %v780
    %v1599 = vunpack.c.h.b16 %v780
    %v1600 = vunpack.c.l.b16 %v781
    %v1601 = vunpack.c.l.b16 %v782
    %v1602 = vunpack.c.h.b16 %v782
    %v1603 = vunpack.c.l.b16 %v783
    %v1604 = vunpack.c.h.b16 %v783
    %v1605 = vunpack.c.l.b16 %v784
    %v1606 = vunpack.c.l.b16 %v785
    %v1607 = vunpack.c.h.b16 %v785
    %v1608 = vunpack.c.l.b16 %v786
    %v1609 = vunpack.c.h.b16 %v786
    %v1610 = vunpack.c.l.b16 %v787
    %v1611 = vunpack.c.l.b16 %v788
    %v1612 = vunpack.c.h.b16 %v788
    %v1613 = vunpack.c.l.b16 %v789
    %v1614 = vunpack.c.h.b16 %v789
    %v1615 = vunpack.c.l.b16 %v790
    %v1616 = vunpack.c.l.b16 %v791
    %v1617 = vunpack.c.h.b16 %v791
    %v1618 = vunpack.c.l.b16 %v792
    %v1619 = vunpack.c.h.b16 %v792
    %v1620 = vunpack.c.l.b16 %v793
    %v1621 = vunpack.c.l.b16 %v794
    %v1622 = vunpack.c.h.b16 %v794
    %v1623 = vunpack.c.l.b16 %v795
    %v1624 = vunpack.c.h.b16 %v795
    %v1625 = vunpack.c.l.b16 %v796
    %v1626 = vunpack.c.l.b16 %v797
    %v1627 = vunpack.c.h.b16 %v797
    %v1628 = vunpack.c.l.b16 %v798
    %v1629 = vunpack.c.h.b16 %v798
    %v1630 = vunpack.c.l.b16 %v799
    %v1631 = vunpack.c.l.b16 %v800
    %v1632 = vunpack.c.h.b16 %v800
    %v1633 = vunpack.c.l.b16 %v801
    %v1634 = vunpack.c.h.b16 %v801
    %v1635 = vunpack.c.l.b16 %v802
    %v1636 = vunpack.c.l.b16 %v803
    %v1637 = vunpack.c.h.b16 %v803
    %v1638 = vunpack.c.l.b16 %v804
    %v1639 = vunpack.c.h.b16 %v804
    %v1640 = vunpack.c.l.b16 %v805
    %v1641 = vunpack.c.l.b16 %v806
    %v1642 = vunpack.c.h.b16 %v806
    %v1643 = vunpack.c.l.b16 %v807
    %v1644 = vunpack.c.h.b16 %v807
    %v1645 = vunpack.c.l.b16 %v808
    %v1646 = vunpack.c.l.b16 %v809
    %v1647 = vunpack.c.h.b16 %v809
    %v1648 = vunpack.c.l.b16 %v810
    %v1649 = vunpack.c.h.b16 %v810
    %v1650 = vunpack.c.l.b16 %v811
    %v1651 = vunpack.c.l.b16 %v812
    %v1652 = vunpack.c.h.b16 %v812
    %v1653 = vunpack.c.l.b16 %v813
    %v1654 = vunpack.c.h.b16 %v813
    %v1655 = vunpack.c.l.b16 %v814
    %v1656 = vunpack.c.l.b16 %v815
    %v1657 = vunpack.c.h.b16 %v815
    %v1658 = vunpack.c.l.b16 %v816
    %v1659 = vunpack.c.h.b16 %v816
    %v1660 = vunpack.c.l.b16 %v817
    %v1661 = vunpack.c.l.b16 %v818
    %v1662 = vunpack.c.h.b16 %v818
    %v1663 = vunpack.c.l.b16 %v819
    %v1664 = vunpack.c.h.b16 %v819
    %v1665 = vunpack.c.l.b16 %v820
    %v1666 = vunpack.c.l.b16 %v821
    %v1667 = vunpack.c.h.b16 %v821
    %v1668 = vunpack.c.l.b16 %v822
    %v1669 = vunpack.c.h.b16 %v822
    %v1670 = vunpack.c.l.b16 %v823
    %v1671 = vunpack.c.l.b16 %v824
    %v1672 = vunpack.c.h.b16 %v824
    %v1673 = vunpack.c.l.b16 %v825
    %v1674 = vunpack.c.h.b16 %v825
    %v1675 = vunpack.c.l.b16 %v826
    %v1676 = vunpack.c.l.b16 %v827
    %v1677 = vunpack.c.h.b16 %v827
    %v1678 = vunpack.c.l.b16 %v828
    %v1679 = vunpack.c.h.b16 %v828
    %v1680 = vunpack.c.l.b16 %v829
    %v1681 = vunpack.c.l.b16 %v830
    %v1682 = vunpack.c.h.b16 %v830
    %v1683 = vunpack.c.l.b16 %v831
    %v1684 = vunpack.c.h.b16 %v831
    %v1685 = vunpack.c.l.b16 %v832
    %v1686 = vunpack.c.l.b16 %v833
    %v1687 = vunpack.c.h.b16 %v833
    %v1688 = vunpack.c.l.b16 %v834
    %v1689 = vunpack.c.h.b16 %v834
    %v1690 = vunpack.c.l.b16 %v835
    %v1691 = vunpack.c.l.b16 %v836
    %v1692 = vunpack.c.h.b16 %v836
    %v1693 = vunpack.c.l.b16 %v837
    %v1694 = vunpack.c.h.b16 %v837
    %v1695 = vunpack.c.l.b16 %v838
    %v1696 = vunpack.c.l.b16 %v839
    %v1697 = vunpack.c.h.b16 %v839
    %v1698 = vunpack.c.l.b16 %v840
    %v1699 = vunpack.c.h.b16 %v840
    %v1700 = vunpack.c.l.b16 %v841
    %v1701 = vunpack.c.l.b16 %v842
    %v1702 = vunpack.c.h.b16 %v842
    %v1703 = vunpack.c.l.b16 %v843
    %v1704 = vunpack.c.h.b16 %v843
    %v1705 = vunpack.c.l.b16 %v844
    %v1706 = vunpack.c.l.b16 %v845
    %v1707 = vunpack.c.h.b16 %v845
    %v1708 = vunpack.c.l.b16 %v846
    %v1709 = vunpack.c.h.b16 %v846
    %v1710 = vunpack.c.l.b16 %v847
    %v1711 = vunpack.c.l.b16 %v848
    %v1712 = vunpack.c.h.b16 %v848
    %v1713 = vunpack.c.l.b16 %v849
    %v1714 = vunpack.c.h.b16 %v849
    %v1715 = vunpack.c.l.b16 %v850
    %v1716 = vunpack.c.l.b16 %v851
    %v1717 = vunpack.c.h.b16 %v851
    %v1718 = vunpack.c.l.b16 %v852
    %v1719 = vunpack.c.h.b16 %v852
    %v1720 = vunpack.c.l.b16 %v853
    %v1721 = vunpack.c.l.b16 %v854
    %v1722 = vunpack.c.h.b16 %v854
    %v1723 = vunpack.c.l.b16 %v855
    %v1724 = vunpack.c.h.b16 %v855
    %v1725 = vunpack.c.l.b16 %v856
    %v1726 = vunpack.c.l.b16 %v857
    %v1727 = vunpack.c.h.b16 %v857
    %v1728 = vunpack.c.l.b16 %v858
    %v1729 = vunpack.c.h.b16 %v858
    %v1730 = vunpack.c.l.b16 %v859
    %v1731 = vunpack.c.l.b16 %v860
    %v1732 = vunpack.c.h.b16 %v860
    %v1733 = vunpack.c.l.b16 %v861
    %v1734 = vunpack.c.h.b16 %v861
    %v1735 = vunpack.c.l.b16 %v862
    %v1736 = vunpack.c.l.b16 %v863
    %v1737 = vunpack.c.h.b16 %v863
    %v1738 = vunpack.c.l.b16 %v864
    %v1739 = vunpack.c.h.b16 %v864
    %v1740 = vunpack.c.l.b16 %v865
    %v1741 = vunpack.c.l.b16 %v866
    %v1742 = vunpack.c.h.b16 %v866
    %v1743 = vunpack.c.l.b16 %v867
    %v1744 = vunpack.c.h.b16 %v867
    %v1745 = vunpack.c.l.b16 %v868
    %v1746 = vunpack.c.l.b16 %v869
    %v1747 = vunpack.c.h.b16 %v869
    %v1748 = vunpack.c.l.b16 %v870
    %v1749 = vunpack.c.h.b16 %v870
    %v1750 = vunpack.c.l.b16 %v871
    %v1751 = vunpack.c.l.b16 %v872
    %v1752 = vunpack.c.h.b16 %v872
    %v1753 = vunpack.c.l.b16 %v873
    %v1754 = vunpack.c.h.b16 %v873
    %v1755 = vunpack.c.l.b16 %v874
    %v1756 = vunpack.c.l.b16 %v875
    %v1757 = vunpack.c.h.b16 %v875
    %v1758 = vunpack.c.l.b16 %v876
    %v1759 = vunpack.c.h.b16 %v876
    %v1760 = vunpack.c.l.b16 %v877
    %v1761 = vunpack.c.l.b16 %v878
    %v1762 = vunpack.c.h.b16 %v878
    %v1763 = vunpack.c.l.b16 %v879
    %v1764 = vunpack.c.h.b16 %v879
    %v1765 = vunpack.c.l.b16 %v880
    %v1766 = vunpack.c.l.b16 %v881
    %v1767 = vunpack.c.h.b16 %v881
    %v1768 = vunpack.c.l.b16 %v882
    %v1769 = vunpack.c.h.b16 %v882
    %v1770 = vunpack.c.l.b16 %v883
    %v1771 = vunpack.c.l.b16 %v884
    %v1772 = vunpack.c.h.b16 %v884
    %v1773 = vunpack.c.l.b16 %v885
    %v1774 = vunpack.c.h.b16 %v885
    %v1775 = vunpack.c.l.b16 %v886
    %v1776 = vunpack.c.l.b16 %v887
    %v1777 = vunpack.c.h.b16 %v887
    %v1778 = vunpack.c.l.b16 %v888
    %v1779 = vunpack.c.h.b16 %v888
    %v1780 = vunpack.c.l.b16 %v889
    %v1781 = vunpack.c.l.b16 %v890
    %v1782 = vunpack.c.h.b16 %v890
    %v1783 = vunpack.c.l.b16 %v891
    %v1784 = vunpack.c.h.b16 %v891
    %v1785 = vunpack.c.l.b16 %v892
    %v1786 = vunpack.c.l.b16 %v893
    %v1787 = vunpack.c.h.b16 %v893
    %v1788 = vunpack.c.l.b16 %v894
    %v1789 = vunpack.c.h.b16 %v894
    %v1790 = vunpack.c.l.b16 %v895
    %v1791 = vunpack.c.l.b16 %v896
    %v1792 = vunpack.c.h.b16 %v896
    %v1793 = vunpack.c.l.b16 %v897
    %v1794 = vunpack.c.h.b16 %v897
    %v1795 = vunpack.c.l.b16 %v898
    %v1796 = vunpack.c.l.b16 %v899
    %v1797 = vunpack.c.h.b16 %v899
    %v1798 = vunpack.c.l.b16 %v900
    %v1799 = vunpack.c.h.b16 %v900
    %v1800 = vunpack.c.l.b16 %v901
    %v1801 = vunpack.c.l.b16 %v902
    %v1802 = vunpack.c.h.b16 %v902
    %v1803 = vunpack.c.l.b16 %v903
    %v1804 = vunpack.c.h.b16 %v903
    %v1805 = vunpack.c.l.b16 %v904
    %v1806 = vunpack.c.l.b16 %v905
    %v1807 = vunpack.c.h.b16 %v905
    %v1808 = vunpack.c.l.b16 %v906
    %v1809 = vunpack.c.h.b16 %v906
    %v1810 = vunpack.c.l.b16 %v907
    %v1811 = vunpack.c.l.b16 %v908
    %v1812 = vunpack.c.h.b16 %v908
    %v1813 = vunpack.c.l.b16 %v909
    %v1814 = vunpack.c.h.b16 %v909
    %v1815 = vunpack.c.l.b16 %v910
    %v1816 = vunpack.c.l.b16 %v911
    %v1817 = vunpack.c.h.b16 %v911
    %v1818 = vunpack.c.l.b16 %v912
    %v1819 = vunpack.c.h.b16 %v912
    %v1820 = vunpack.c.l.b16 %v913
    %v1821 = vunpack.c.l.b16 %v914
    %v1822 = vunpack.c.h.b16 %v914
    %v1823 = vunpack.c.l.b16 %v915
    %v1824 = vunpack.c.h.b16 %v915
    %v1825 = vunpack.c.l.b16 %v916
    %v1826 = vunpack.c.l.b16 %v917
    %v1827 = vunpack.c.h.b16 %v917
    %v1828 = vunpack.c.l.b16 %v918
    %v1829 = vunpack.c.h.b16 %v918
    %v1830 = vunpack.c.l.b16 %v919
    %v1831 = vunpack.c.l.b16 %v920
    %v1832 = vunpack.c.h.b16 %v920
    %v1833 = vunpack.c.l.b16 %v921
    %v1834 = vunpack.c.h.b16 %v921
    %v1835 = vunpack.c.l.b16 %v922
    %v1836 = vunpack.c.l.b16 %v923
    %v1837 = vunpack.c.h.b16 %v923
    %v1838 = vunpack.c.l.b16 %v924
    %v1839 = vunpack.c.h.b16 %v924
    %v1840 = vunpack.c.l.b16 %v925
    %v1841 = vunpack.c.l.b16 %v926
    %v1842 = vunpack.c.h.b16 %v926
    %v1843 = vunpack.c.l.b16 %v927
    %v1844 = vunpack.c.h.b16 %v927
    %v1845 = vunpack.c.l.b16 %v928
    %v1846 = vunpack.c.l.b16 %v929
    %v1847 = vunpack.c.h.b16 %v929
    %v1848 = vunpack.c.l.b16 %v930
    %v1849 = vunpack.c.h.b16 %v930
    %v1850 = vunpack.c.l.b16 %v931
    %v1851 = vunpack.c.l.b16 %v932
    %v1852 = vunpack.c.h.b16 %v932
    %v1853 = vunpack.c.l.b16 %v933
    %v1854 = vunpack.c.h.b16 %v933
    %v1855 = vunpack.c.l.b16 %v934
    %v1856 = vunpack.c.l.b16 %v935
    %v1857 = vunpack.c.h.b16 %v935
    %v1858 = vunpack.c.l.b16 %v936
    %v1859 = vunpack.c.h.b16 %v936
    %v1860 = vunpack.c.l.b16 %v937
    %v1861 = vpack.c.b16 %v1306, %v1301
    %v1862 = vpack.c.b16 %v1307, %v1302
    %v1863 = vpack.c.b16 %v1308, %v1303
    %v1864 = vpack.c.b16 %v1309, %v1304
    %v1865 = vpack.c.b16 %v1310, %v1305
    %v1866 = vpack.c.b16 %v1316, %v1311
    %v1867 = vpack.c.b16 %v1317, %v1312
    %v1868 = vpack.c.b16 %v1318, %v1313
    %v1869 = vpack.c.b16 %v1319, %v1314
    %v1870 = vpack.c.b16 %v1320, %v1315
    %v1871 = vpack.c.b16 %v1326, %v1321
    %v1872 = vpack.c.b16 %v1327, %v1322
    %v1873 = vpack.c.b16 %v1328, %v1323
    %v1874 = vpack.c.b16 %v1329, %v1324
    %v1875 = vpack.c.b16 %v1330, %v1325
    %v1876 = vpack.c.b16 %v1336, %v1331
    %v1877 = vpack.c.b16 %v1337, %v1332
    %v1878 = vpack.c.b16 %v1338, %v1333
    %v1879 = vpack.c.b16 %v1339, %v1334
    %v1880 = vpack.c.b16 %v1340, %v1335
    %v1881 = vpack.c.b16 %v1346, %v1341
    %v1882 = vpack.c.b16 %v1347, %v1342
    %v1883 = vpack.c.b16 %v1348, %v1343
    %v1884 = vpack.c.b16 %v1349, %v1344
    %v1885 = vpack.c.b16 %v1350, %v1345
    %v1886 = vpack.c.b16 %v1356, %v1351
    %v1887 = vpack.c.b16 %v1357, %v1352
    %v1888 = vpack.c.b16 %v1358, %v1353
    %v1889 = vpack.c.b16 %v1359, %v1354
    %v1890 = vpack.c.b16 %v1360, %v1355
    %v1891 = vpack.c.b16 %v1366, %v1361
    %v1892 = vpack.c.b16 %v1367, %v1362
    %v1893 = vpack.c.b16 %v1368, %v1363
    %v1894 = vpack.c.b16 %v1369, %v1364
    %v1895 = vpack.c.b16 %v1370, %v1365
    %v1896 = vpack.c.b16 %v1376, %v1371
    %v1897 = vpack.c.b16 %v1377, %v1372
    %v1898 = vpack.c.b16 %v1378, %v1373
    %v1899 = vpack.c.b16 %v1379, %v1374
    %v1900 = vpack.c.b16 %v1380, %v1375
    %v1901 = vpack.c.b16 %v1386, %v1381
    %v1902 = vpack.c.b16 %v1387, %v1382
    %v1903 = vpack.c.b16 %v1388, %v1383
    %v1904 = vpack.c.b16 %v1389, %v1384
    %v1905 = vpack.c.b16 %v1390, %v1385
    %v1906 = vpack.c.b16 %v1396, %v1391
    %v1907 = vpack.c.b16 %v1397, %v1392
    %v1908 = vpack.c.b16 %v1398, %v1393
    %v1909 = vpack.c.b16 %v1399, %v1394
    %v1910 = vpack.c.b16 %v1400, %v1395
    %v1911 = vpack.c.b16 %v1406, %v1401
    %v1912 = vpack.c.b16 %v1407, %v1402
    %v1913 = vpack.c.b16 %v1408, %v1403
    %v1914 = vpack.c.b16 %v1409, %v1404
    %v1915 = vpack.c.b16 %v1410, %v1405
    %v1916 = vpack.c.b16 %v1416, %v1411
    %v1917 = vpack.c.b16 %v1417, %v1412
    %v1918 = vpack.c.b16 %v1418, %v1413
    %v1919 = vpack.c.b16 %v1419, %v1414
    %v1920 = vpack.c.b16 %v1420, %v1415
    %v1921 = vpack.c.b16 %v1426, %v1421
    %v1922 = vpack.c.b16 %v1427, %v1422
    %v1923 = vpack.c.b16 %v1428, %v1423
    %v1924 = vpack.c.b16 %v1429, %v1424
    %v1925 = vpack.c.b16 %v1430, %v1425
    %v1926 = vpack.c.b16 %v1436, %v1431
    %v1927 = vpack.c.b16 %v1437, %v1432
    %v1928 = vpack.c.b16 %v1438, %v1433
    %v1929 = vpack.c.b16 %v1439, %v1434
    %v1930 = vpack.c.b16 %v1440, %v1435
    %v1931 = vpack.c.b16 %v1446, %v1441
    %v1932 = vpack.c.b16 %v1447, %v1442
    %v1933 = vpack.c.b16 %v1448, %v1443
    %v1934 = vpack.c.b16 %v1449, %v1444
    %v1935 = vpack.c.b16 %v1450, %v1445
    %v1936 = vpack.c.b16 %v1456, %v1451
    %v1937 = vpack.c.b16 %v1457, %v1452
    %v1938 = vpack.c.b16 %v1458, %v1453
    %v1939 = vpack.c.b16 %v1459, %v1454
    %v1940 = vpack.c.b16 %v1460, %v1455
    %v1941 = vpack.c.b16 %v1466, %v1461
    %v1942 = vpack.c.b16 %v1467, %v1462
    %v1943 = vpack.c.b16 %v1468, %v1463
    %v1944 = vpack.c.b16 %v1469, %v1464
    %v1945 = vpack.c.b16 %v1470, %v1465
    %v1946 = vpack.c.b16 %v1476, %v1471
    %v1947 = vpack.c.b16 %v1477, %v1472
    %v1948 = vpack.c.b16 %v1478, %v1473
    %v1949 = vpack.c.b16 %v1479, %v1474
    %v1950 = vpack.c.b16 %v1480, %v1475
    %v1951 = vpack.c.b16 %v1486, %v1481
    %v1952 = vpack.c.b16 %v1487, %v1482
    %v1953 = vpack.c.b16 %v1488, %v1483
    %v1954 = vpack.c.b16 %v1489, %v1484
    %v1955 = vpack.c.b16 %v1490, %v1485
    %v1956 = vpack.c.b16 %v1496, %v1491
    %v1957 = vpack.c.b16 %v1497, %v1492
    %v1958 = vpack.c.b16 %v1498, %v1493
    %v1959 = vpack.c.b16 %v1499, %v1494
    %v1960 = vpack.c.b16 %v1500, %v1495
    %v1961 = vpack.c.b16 %v1506, %v1501
    %v1962 = vpack.c.b16 %v1507, %v1502
    %v1963 = vpack.c.b16 %v1508, %v1503
    %v1964 = vpack.c.b16 %v1509, %v1504
    %v1965 = vpack.c.b16 %v1510, %v1505
    %v1966 = vpack.c.b16 %v1516, %v1511
    %v1967 = vpack.c.b16 %v1517, %v1512
    %v1968 = vpack.c.b16 %v1518, %v1513
    %v1969 = vpack.c.b16 %v1519, %v1514
    %v1970 = vpack.c.b16 %v1520, %v1515
    %v1971 = vpack.c.b16 %v1526, %v1521
    %v1972 = vpack.c.b16 %v1527, %v1522
    %v1973 = vpack.c.b16 %v1528, %v1523
    %v1974 = vpack.c.b16 %v1529, %v1524
    %v1975 = vpack.c.b16 %v1530, %v1525
    %v1976 = vpack.c.b16 %v1536, %v1531
    %v1977 = vpack.c.b16 %v1537, %v1532
    %v1978 = vpack.c.b16 %v1538, %v1533
    %v1979 = vpack.c.b16 %v1539, %v1534
    %v1980 = vpack.c.b16 %v1540, %v1535
    %v1981 = vpack.c.b16 %v1546, %v1541
    %v1982 = vpack.c.b16 %v1547, %v1542
    %v1983 = vpack.c.b16 %v1548, %v1543
    %v1984 = vpack.c.b16 %v1549, %v1544
    %v1985 = vpack.c.b16 %v1550, %v1545
    %v1986 = vpack.c.b16 %v1556, %v1551
    %v1987 = vpack.c.b16 %v1557, %v1552
    %v1988 = vpack.c.b16 %v1558, %v1553
    %v1989 = vpack.c.b16 %v1559, %v1554
    %v1990 = vpack.c.b16 %v1560, %v1555
    %v1991 = vpack.c.b16 %v1566, %v1561
    %v1992 = vpack.c.b16 %v1567, %v1562
    %v1993 = vpack.c.b16 %v1568, %v1563
    %v1994 = vpack.c.b16 %v1569, %v1564
    %v1995 = vpack.c.b16 %v1570, %v1565
    %v1996 = vpack.c.b16 %v1576, %v1571
    %v1997 = vpack.c.b16 %v1577, %v1572
    %v1998 = vpack.c.b16 %v1578, %v1573
    %v1999 = vpack.c.b16 %v1579, %v1574
    %v2000 = vpack.c.b16 %v1580, %v1575
    %v2001 = vpack.c.b16 %v1586, %v1581
    %v2002 = vpack.c.b16 %v1587, %v1582
    %v2003 = vpack.c.b16 %v1588, %v1583
    %v2004 = vpack.c.b16 %v1589, %v1584
    %v2005 = vpack.c.b16 %v1590, %v1585
    %v2006 = vpack.c.b16 %v1596, %v1591
    %v2007 = vpack.c.b16 %v1597, %v1592
    %v2008 = vpack.c.b16 %v1598, %v1593
    %v2009 = vpack.c.b16 %v1599, %v1594
    %v2010 = vpack.c.b16 %v1600, %v1595
    %v2011 = vpack.c.b16 %v1606, %v1601
    %v2012 = vpack.c.b16 %v1607, %v1602
    %v2013 = vpack.c.b16 %v1608, %v1603
    %v2014 = vpack.c.b16 %v1609, %v1604
    %v2015 = vpack.c.b16 %v1610, %v1605
    %v2016 = vpack.c.b16 %v1616, %v1611
    %v2017 = vpack.c.b16 %v1617, %v1612
    %v2018 = vpack.c.b16 %v1618, %v1613
    %v2019 = vpack.c.b16 %v1619, %v1614
    %v2020 = vpack.c.b16 %v1620, %v1615
    %v2021 = vpack.c.b16 %v1626, %v1621
    %v2022 = vpack.c.b16 %v1627, %v1622
    %v2023 = vpack.c.b16 %v1628, %v1623
    %v2024 = vpack.c.b16 %v1629, %v1624
    %v2025 = vpack.c.b16 %v1630, %v1625
    %v2026 = vpack.c.b16 %v1636, %v1631
    %v2027 = vpack.c.b16 %v1637, %v1632
    %v2028 = vpack.c.b16 %v1638, %v1633
    %v2029 = vpack.c.b16 %v1639, %v1634
    %v2030 = vpack.c.b16 %v1640, %v1635
    %v2031 = vpack.c.b16 %v1646, %v1641
    %v2032 = vpack.c.b16 %v1647, %v1642
    %v2033 = vpack.c.b16 %v1648, %v1643
    %v2034 = vpack.c.b16 %v1649, %v1644
    %v2035 = vpack.c.b16 %v1650, %v1645
    %v2036 = vpack.c.b16 %v1656, %v1651
    %v2037 = vpack.c.b16 %v1657, %v1652
    %v2038 = vpack.c.b16 %v1658, %v1653
    %v2039 = vpack.c.b16 %v1659, %v1654
    %v2040 = vpack.c.b16 %v1660, %v1655
    %v2041 = vpack.c.b16 %v1666, %v1661
    %v2042 = vpack.c.b16 %v1667, %v1662
    %v2043 = vpack.c.b16 %v1668, %v1663
    %v2044 = vpack.c.b16 %v1669, %v1664
    %v2045 = vpack.c.b16 %v1670, %v1665
    %v2046 = vpack.c.b16 %v1676, %v1671
    %v2047 = vpack.c.b16 %v1677, %v1672
    %v2048 = vpack.c.b16 %v1678, %v1673
    %v2049 = vpack.c.b16 %v1679, %v1674
    %v2050 = vpack.c.b16 %v1680, %v1675
    %v2051 = vpack.c.b16 %v1686, %v1681
    %v2052 = vpack.c.b16 %v1687, %v1682
    %v2053 = vpack.c.b16 %v1688, %v1683
    %v2054 = vpack.c.b16 %v1689, %v1684
    %v2055 = vpack.c.b16 %v1690, %v1685
    %v2056 = vpack.c.b16 %v1696, %v1691
    %v2057 = vpack.c.b16 %v1697, %v1692
    %v2058 = vpack.c.b16 %v1698, %v1693
    %v2059 = vpack.c.b16 %v1699, %v1694
    %v2060 = vpack.c.b16 %v1700, %v1695
    %v2061 = vpack.c.b16 %v1706, %v1701
    %v2062 = vpack.c.b16 %v1707, %v1702
    %v2063 = vpack.c.b16 %v1708, %v1703
    %v2064 = vpack.c.b16 %v1709, %v1704
    %v2065 = vpack.c.b16 %v1710, %v1705
    %v2066 = vpack.c.b16 %v1716, %v1711
    %v2067 = vpack.c.b16 %v1717, %v1712
    %v2068 = vpack.c.b16 %v1718, %v1713
    %v2069 = vpack.c.b16 %v1719, %v1714
    %v2070 = vpack.c.b16 %v1720, %v1715
    %v2071 = vpack.c.b16 %v1726, %v1721
    %v2072 = vpack.c.b16 %v1727, %v1722
    %v2073 = vpack.c.b16 %v1728, %v1723
    %v2074 = vpack.c.b16 %v1729, %v1724
    %v2075 = vpack.c.b16 %v1730, %v1725
    %v2076 = vpack.c.b16 %v1736, %v1731
    %v2077 = vpack.c.b16 %v1737, %v1732
    %v2078 = vpack.c.b16 %v1738, %v1733
    %v2079 = vpack.c.b16 %v1739, %v1734
    %v2080 = vpack.c.b16 %v1740, %v1735
    %v2081 = vpack.c.b16 %v1746, %v1741
    %v2082 = vpack.c.b16 %v1747, %v1742
    %v2083 = vpack.c.b16 %v1748, %v1743
    %v2084 = vpack.c.b16 %v1749, %v1744
    %v2085 = vpack.c.b16 %v1750, %v1745
    %v2086 = vpack.c.b16 %v1756, %v1751
    %v2087 = vpack.c.b16 %v1757, %v1752
    %v2088 = vpack.c.b16 %v1758, %v1753
    %v2089 = vpack.c.b16 %v1759, %v1754
    %v2090 = vpack.c.b16 %v1760, %v1755
    %v2091 = vpack.c.b16 %v1766, %v1761
    %v2092 = vpack.c.b16 %v1767, %v1762
    %v2093 = vpack.c.b16 %v1768, %v1763
    %v2094 = vpack.c.b16 %v1769, %v1764
    %v2095 = vpack.c.b16 %v1770, %v1765
    %v2096 = vpack.c.b16 %v1776, %v1771
    %v2097 = vpack.c.b16 %v1777, %v1772
    %v2098 = vpack.c.b16 %v1778, %v1773
    %v2099 = vpack.c.b16 %v1779, %v1774
    %v2100 = vpack.c.b16 %v1780, %v1775
    %v2101 = vpack.c.b16 %v1786, %v1781
    %v2102 = vpack.c.b16 %v1787, %v1782
    %v2103 = vpack.c.b16 %v1788, %v1783
    %v2104 = vpack.c.b16 %v1789, %v1784
    %v2105 = vpack.c.b16 %v1790, %v1785
    %v2106 = vpack.c.b16 %v1796, %v1791
    %v2107 = vpack.c.b16 %v1797, %v1792
    %v2108 = vpack.c.b16 %v1798, %v1793
    %v2109 = vpack.c.b16 %v1799, %v1794
    %v2110 = vpack.c.b16 %v1800, %v1795
    %v2111 = vpack.c.b16 %v1806, %v1801
    %v2112 = vpack.c.b16 %v1807, %v1802
    %v2113 = vpack.c.b16 %v1808, %v1803
    %v2114 = vpack.c.b16 %v1809, %v1804
    %v2115 = vpack.c.b16 %v1810, %v1805
    %v2116 = vpack.c.b16 %v1816, %v1811
    %v2117 = vpack.c.b16 %v1817, %v1812
    %v2118 = vpack.c.b16 %v1818, %v1813
    %v2119 = vpack.c.b16 %v1819, %v1814
    %v2120 = vpack.c.b16 %v1820, %v1815
    %v2121 = vpack.c.b16 %v1826, %v1821
    %v2122 = vpack.c.b16 %v1827, %v1822
    %v2123 = vpack.c.b16 %v1828, %v1823
    %v2124 = vpack.c.b16 %v1829, %v1824
    %v2125 = vpack.c.b16 %v1830, %v1825
    %v2126 = vpack.c.b16 %v1836, %v1831
    %v2127 = vpack.c.b16 %v1837, %v1832
    %v2128 = vpack.c.b16 %v1838, %v1833
    %v2129 = vpack.c.b16 %v1839, %v1834
    %v2130 = vpack.c.b16 %v1840, %v1835
    %v2131 = vpack.c.b16 %v1846, %v1841
    %v2132 = vpack.c.b16 %v1847, %v1842
    %v2133 = vpack.c.b16 %v1848, %v1843
    %v2134 = vpack.c.b16 %v1849, %v1844
    %v2135 = vpack.c.b16 %v1850, %v1845
    %v2136 = vpack.c.b16 %v1856, %v1851
    %v2137 = vpack.c.b16 %v1857, %v1852
    %v2138 = vpack.c.b16 %v1858, %v1853
    %v2139 = vpack.c.b16 %v1859, %v1854
    %v2140 = vpack.c.b16 %v1860, %v1855
    %2421 = vmatprep.subr.bf16.mxu0 %v1862
    %2422 = vmatpush1.bf16.msra.mxu0 %v1861
    %2423 = vmatprep.subr.bf16.mxu0 %v1867
    %2424 = vmatpush1.bf16.msra.mxu0 %v1866
    %2425 = vmatprep.subr.bf16.mxu0 %v1872
    %2426 = vmatpush1.bf16.msra.mxu0 %v1871
    %2427 = vmatprep.subr.bf16.mxu0 %v1877
    %2428 = vmatpush1.bf16.msra.mxu0 %v1876
    %2429 = vmatprep.subr.bf16.mxu0 %v1882
    %2430 = vmatpush1.bf16.msra.mxu0 %v1881
    %2431 = vmatprep.subr.bf16.mxu0 %v1887
    %2432 = vmatpush1.bf16.msra.mxu0 %v1886
    %2433 = vmatprep.subr.bf16.mxu0 %v1892
    %2434 = vmatpush1.bf16.msra.mxu0 %v1891
    %2435 = vmatprep.subr.bf16.mxu0 %v1897
    %2436 = vmatpush1.bf16.msra.mxu0 %v1896
    %2437 = vmatprep.subr.bf16.mxu0 %v1902
    %2438 = vmatpush1.bf16.msra.mxu0 %v1901
    %2439 = vmatprep.subr.bf16.mxu0 %v1907
    %2440 = vmatpush1.bf16.msra.mxu0 %v1906
    %2441 = vmatprep.subr.bf16.mxu0 %v1912
    %2442 = vmatpush1.bf16.msra.mxu0 %v1911
    %2443 = vmatprep.subr.bf16.mxu0 %v1917
    %2444 = vmatpush1.bf16.msra.mxu0 %v1916
    %2445 = vmatprep.subr.bf16.mxu0 %v1922
    %2446 = vmatpush1.bf16.msra.mxu0 %v1921
    %2447 = vmatprep.subr.bf16.mxu0 %v1927
    %2448 = vmatpush1.bf16.msra.mxu0 %v1926
    %2449 = vmatprep.subr.bf16.mxu0 %v1932
    %2450 = vmatpush1.bf16.msra.mxu0 %v1931
    %2451 = vmatprep.subr.bf16.mxu0 %v1937
    %2452 = vmatpush1.bf16.msra.mxu0 %v1936
    %2453 = vmatprep.mubr.bf16.mxu0 %v596
    %2454 = vmatmul.mubr.bf16.gmra.mrb[0].mxu0 %v595
    %v2455 = vpop.f32.mrb[0].mxu0
    %v2456 = vadd.f32 %v943, %v2455
    %v2457 = vpop.f32.mrb[0].mxu0
    %v2458 = vadd.f32 %v947, %v2457
    %v2459 = vpop.f32.mrb[0].mxu0
    %v2460 = vpop.f32.mrb[0].mxu0
    %2461 = vdwg.mxu0
    %2462 = vmatprep.subr.bf16.mxu0 %v1942
    %2463 = vmatpush1.bf16.msra.mxu0 %v1941
    %2464 = vmatprep.subr.bf16.mxu0 %v1947
    %2465 = vmatpush1.bf16.msra.mxu0 %v1946
    %2466 = vmatprep.subr.bf16.mxu0 %v1952
    %2467 = vmatpush1.bf16.msra.mxu0 %v1951
    %2468 = vmatprep.subr.bf16.mxu0 %v1957
    %2469 = vmatpush1.bf16.msra.mxu0 %v1956
    %2470 = vmatprep.subr.bf16.mxu0 %v1962
    %2471 = vmatpush1.bf16.msra.mxu0 %v1961
    %2472 = vmatprep.subr.bf16.mxu0 %v1967
    %2473 = vmatpush1.bf16.msra.mxu0 %v1966
    %2474 = vmatprep.subr.bf16.mxu0 %v1972
    %2475 = vmatpush1.bf16.msra.mxu0 %v1971
    %2476 = vmatprep.subr.bf16.mxu0 %v1977
    %2477 = vmatpush1.bf16.msra.mxu0 %v1976
    %2478 = vmatprep.subr.bf16.mxu0 %v1982
    %2479 = vmatpush1.bf16.msra.mxu0 %v1981
    %2480 = vmatprep.subr.bf16.mxu0 %v1987
    %2481 = vmatpush1.bf16.msra.mxu0 %v1986
    %2482 = vmatprep.subr.bf16.mxu0 %v1992
    %2483 = vmatpush1.bf16.msra.mxu0 %v1991
    %2484 = vmatprep.subr.bf16.mxu0 %v1997
    %2485 = vmatpush1.bf16.msra.mxu0 %v1996
    %2486 = vmatprep.subr.bf16.mxu0 %v2002
    %2487 = vmatpush1.bf16.msra.mxu0 %v2001
    %2488 = vmatprep.subr.bf16.mxu0 %v2007
    %2489 = vmatpush1.bf16.msra.mxu0 %v2006
    %2490 = vmatprep.subr.bf16.mxu0 %v2012
    %2491 = vmatpush1.bf16.msra.mxu0 %v2011
    %2492 = vmatprep.subr.bf16.mxu0 %v2017
    %2493 = vmatpush1.bf16.msra.mxu0 %v2016
    %2494 = vmatprep.mubr.bf16.mxu0 %v598
    %2495 = vmatmul.mubr.bf16.gmra.mrb[0].mxu0 %v597
    %v2496 = vpop.f32.mrb[0].mxu0
    %v2497 = vadd.f32 %v2456, %v2496
    %v2498 = vpop.f32.mrb[0].mxu0
    %v2499 = vadd.f32 %v2458, %v2498
    %v2500 = vpop.f32.mrb[0].mxu0
    %v2501 = vpop.f32.mrb[0].mxu0
    %2502 = vdwg.mxu0
    %2503 = vmatprep.subr.bf16.mxu0 %v2022
    %2504 = vmatpush1.bf16.msra.mxu0 %v2021
    %2505 = vmatprep.subr.bf16.mxu0 %v2027
    %2506 = vmatpush1.bf16.msra.mxu0 %v2026
    %2507 = vmatprep.subr.bf16.mxu0 %v2032
    %2508 = vmatpush1.bf16.msra.mxu0 %v2031
    %2509 = vmatprep.subr.bf16.mxu0 %v2037
    %2510 = vmatpush1.bf16.msra.mxu0 %v2036
    %2511 = vmatprep.subr.bf16.mxu0 %v2042
    %2512 = vmatpush1.bf16.msra.mxu0 %v2041
    %2513 = vmatprep.subr.bf16.mxu0 %v2047
    %2514 = vmatpush1.bf16.msra.mxu0 %v2046
    %2515 = vmatprep.subr.bf16.mxu0 %v2052
    %2516 = vmatpush1.bf16.msra.mxu0 %v2051
    %2517 = vmatprep.subr.bf16.mxu0 %v2057
    %2518 = vmatpush1.bf16.msra.mxu0 %v2056
    %2519 = vmatprep.subr.bf16.mxu0 %v2062
    %2520 = vmatpush1.bf16.msra.mxu0 %v2061
    %2521 = vmatprep.subr.bf16.mxu0 %v2067
    %2522 = vmatpush1.bf16.msra.mxu0 %v2066
    %2523 = vmatprep.subr.bf16.mxu0 %v2072
    %2524 = vmatpush1.bf16.msra.mxu0 %v2071
    %2525 = vmatprep.subr.bf16.mxu0 %v2077
    %2526 = vmatpush1.bf16.msra.mxu0 %v2076
    %2527 = vmatprep.subr.bf16.mxu0 %v2082
    %2528 = vmatpush1.bf16.msra.mxu0 %v2081
    %2529 = vmatprep.subr.bf16.mxu0 %v2087
    %2530 = vmatpush1.bf16.msra.mxu0 %v2086
    %2531 = vmatprep.subr.bf16.mxu0 %v2092
    %2532 = vmatpush1.bf16.msra.mxu0 %v2091
    %2533 = vmatprep.subr.bf16.mxu0 %v2097
    %2534 = vmatpush1.bf16.msra.mxu0 %v2096
    %2535 = vmatprep.mubr.bf16.mxu0 %v600
    %2536 = vmatmul.mubr.bf16.gmra.mrb[0].mxu0 %v599
    %v2537 = vpop.f32.mrb[0].mxu0
    %v2538 = vadd.f32 %v2497, %v2537
    %v2539 = vpop.f32.mrb[0].mxu0
    %v2540 = vadd.f32 %v2499, %v2539
    %v2541 = vpop.f32.mrb[0].mxu0
    %v2542 = vpop.f32.mrb[0].mxu0
    %2543 = vdwg.mxu0
    %2544 = vmatprep.subr.bf16.mxu0 %v2102
    %2545 = vmatpush1.bf16.msra.mxu0 %v2101
    %2546 = vmatprep.subr.bf16.mxu0 %v2107
    %2547 = vmatpush1.bf16.msra.mxu0 %v2106
    %2548 = vmatprep.subr.bf16.mxu0 %v2112
    %2549 = vmatpush1.bf16.msra.mxu0 %v2111
    %2550 = vmatprep.subr.bf16.mxu0 %v2117
    %2551 = vmatpush1.bf16.msra.mxu0 %v2116
    %2552 = vmatprep.subr.bf16.mxu0 %v2122
    %2553 = vmatpush1.bf16.msra.mxu0 %v2121
    %2554 = vmatprep.subr.bf16.mxu0 %v2127
    %2555 = vmatpush1.bf16.msra.mxu0 %v2126
    %2556 = vmatprep.subr.bf16.mxu0 %v2132
    %2557 = vmatpush1.bf16.msra.mxu0 %v2131
    %2558 = vmatprep.subr.bf16.mxu0 %v2137
    %2559 = vmatpush1.bf16.msra.mxu0 %v2136
    %2560 = vmatprep.subr.bf16.mxu0 0
    %2561 = vmatpush1.bf16.msra.mxu0 0
    %2562 = vmatprep.subr.bf16.mxu0 0
    %2563 = vmatpush1.bf16.msra.mxu0 0
    %2564 = vmatprep.subr.bf16.mxu0 0
    %2565 = vmatpush1.bf16.msra.mxu0 0
    %2566 = vmatprep.subr.bf16.mxu0 0
    %2567 = vmatpush1.bf16.msra.mxu0 0
    %2568 = vmatprep.subr.bf16.mxu0 0
    %2569 = vmatpush1.bf16.msra.mxu0 0
    %2570 = vmatprep.subr.bf16.mxu0 0
    %2571 = vmatpush1.bf16.msra.mxu0 0
    %2572 = vmatprep.subr.bf16.mxu0 0
    %2573 = vmatpush1.bf16.msra.mxu0 0
    %2574 = vmatprep.subr.bf16.mxu0 0
    %2575 = vmatpush1.bf16.msra.mxu0 0
    %2576 = vmatprep.mubr.bf16.mxu0 0
    %2577 = vmatmul.mubr.bf16.gmra.mrb[0].mxu0 %v601
    %v2578 = vpop.f32.mrb[0].mxu0
    %v2579 = vadd.f32 %v2538, %v2578
    %v2580 = vpop.f32.mrb[0].mxu0
    %v2581 = vadd.f32 %v2540, %v2580
    %v2582 = vpop.f32.mrb[0].mxu0
    %v2583 = vpop.f32.mrb[0].mxu0
    %2584 = vdwg.mxu0
    %2585 = vmatprep.subr.bf16.mxu0 %v1864
    %2586 = vmatpush1.bf16.msra.mxu0 %v1863
    %2587 = vmatprep.subr.bf16.mxu0 %v1869
    %2588 = vmatpush1.bf16.msra.mxu0 %v1868
    %2589 = vmatprep.subr.bf16.mxu0 %v1874
    %2590 = vmatpush1.bf16.msra.mxu0 %v1873
    %2591 = vmatprep.subr.bf16.mxu0 %v1879
    %2592 = vmatpush1.bf16.msra.mxu0 %v1878
    %2593 = vmatprep.subr.bf16.mxu0 %v1884
    %2594 = vmatpush1.bf16.msra.mxu0 %v1883
    %2595 = vmatprep.subr.bf16.mxu0 %v1889
    %2596 = vmatpush1.bf16.msra.mxu0 %v1888
    %2597 = vmatprep.subr.bf16.mxu0 %v1894
    %2598 = vmatpush1.bf16.msra.mxu0 %v1893
    %2599 = vmatprep.subr.bf16.mxu0 %v1899
    %2600 = vmatpush1.bf16.msra.mxu0 %v1898
    %2601 = vmatprep.subr.bf16.mxu0 %v1904
    %2602 = vmatpush1.bf16.msra.mxu0 %v1903
    %2603 = vmatprep.subr.bf16.mxu0 %v1909
    %2604 = vmatpush1.bf16.msra.mxu0 %v1908
    %2605 = vmatprep.subr.bf16.mxu0 %v1914
    %2606 = vmatpush1.bf16.msra.mxu0 %v1913
    %2607 = vmatprep.subr.bf16.mxu0 %v1919
    %2608 = vmatpush1.bf16.msra.mxu0 %v1918
    %2609 = vmatprep.subr.bf16.mxu0 %v1924
    %2610 = vmatpush1.bf16.msra.mxu0 %v1923
    %2611 = vmatprep.subr.bf16.mxu0 %v1929
    %2612 = vmatpush1.bf16.msra.mxu0 %v1928
    %2613 = vmatprep.subr.bf16.mxu0 %v1934
    %2614 = vmatpush1.bf16.msra.mxu0 %v1933
    %2615 = vmatprep.subr.bf16.mxu0 %v1939
    %2616 = vmatpush1.bf16.msra.mxu0 %v1938
    %2617 = vmatprep.mubr.bf16.mxu0 %v596
    %2618 = vmatmul.mubr.bf16.gmra.mrb[0].mxu0 %v595
    %v2619 = vpop.f32.mrb[0].mxu0
    %v2620 = vadd.f32 %v951, %v2619
    %v2621 = vpop.f32.mrb[0].mxu0
    %v2622 = vadd.f32 %v955, %v2621
    %v2623 = vpop.f32.mrb[0].mxu0
    %v2624 = vpop.f32.mrb[0].mxu0
    %2625 = vdwg.mxu0
    %2626 = vmatprep.subr.bf16.mxu0 %v1944
    %2627 = vmatpush1.bf16.msra.mxu0 %v1943
    %2628 = vmatprep.subr.bf16.mxu0 %v1949
    %2629 = vmatpush1.bf16.msra.mxu0 %v1948
    %2630 = vmatprep.subr.bf16.mxu0 %v1954
    %2631 = vmatpush1.bf16.msra.mxu0 %v1953
    %2632 = vmatprep.subr.bf16.mxu0 %v1959
    %2633 = vmatpush1.bf16.msra.mxu0 %v1958
    %2634 = vmatprep.subr.bf16.mxu0 %v1964
    %2635 = vmatpush1.bf16.msra.mxu0 %v1963
    %2636 = vmatprep.subr.bf16.mxu0 %v1969
    %2637 = vmatpush1.bf16.msra.mxu0 %v1968
    %2638 = vmatprep.subr.bf16.mxu0 %v1974
    %2639 = vmatpush1.bf16.msra.mxu0 %v1973
    %2640 = vmatprep.subr.bf16.mxu0 %v1979
    %2641 = vmatpush1.bf16.msra.mxu0 %v1978
    %2642 = vmatprep.subr.bf16.mxu0 %v1984
    %2643 = vmatpush1.bf16.msra.mxu0 %v1983
    %2644 = vmatprep.subr.bf16.mxu0 %v1989
    %2645 = vmatpush1.bf16.msra.mxu0 %v1988
    %2646 = vmatprep.subr.bf16.mxu0 %v1994
    %2647 = vmatpush1.bf16.msra.mxu0 %v1993
    %2648 = vmatprep.subr.bf16.mxu0 %v1999
    %2649 = vmatpush1.bf16.msra.mxu0 %v1998
    %2650 = vmatprep.subr.bf16.mxu0 %v2004
    %2651 = vmatpush1.bf16.msra.mxu0 %v2003
    %2652 = vmatprep.subr.bf16.mxu0 %v2009
    %2653 = vmatpush1.bf16.msra.mxu0 %v2008
    %2654 = vmatprep.subr.bf16.mxu0 %v2014
    %2655 = vmatpush1.bf16.msra.mxu0 %v2013
    %2656 = vmatprep.subr.bf16.mxu0 %v2019
    %2657 = vmatpush1.bf16.msra.mxu0 %v2018
    %2658 = vmatprep.mubr.bf16.mxu0 %v598
    %2659 = vmatmul.mubr.bf16.gmra.mrb[0].mxu0 %v597
    %v2660 = vpop.f32.mrb[0].mxu0
    %v2661 = vadd.f32 %v2620, %v2660
    %v2662 = vpop.f32.mrb[0].mxu0
    %v2663 = vadd.f32 %v2622, %v2662
    %v2664 = vpop.f32.mrb[0].mxu0
    %v2665 = vpop.f32.mrb[0].mxu0
    %2666 = vdwg.mxu0
    %2667 = vmatprep.subr.bf16.mxu0 %v2024
    %2668 = vmatpush1.bf16.msra.mxu0 %v2023
    %2669 = vmatprep.subr.bf16.mxu0 %v2029
    %2670 = vmatpush1.bf16.msra.mxu0 %v2028
    %2671 = vmatprep.subr.bf16.mxu0 %v2034
    %2672 = vmatpush1.bf16.msra.mxu0 %v2033
    %2673 = vmatprep.subr.bf16.mxu0 %v2039
    %2674 = vmatpush1.bf16.msra.mxu0 %v2038
    %2675 = vmatprep.subr.bf16.mxu0 %v2044
    %2676 = vmatpush1.bf16.msra.mxu0 %v2043
    %2677 = vmatprep.subr.bf16.mxu0 %v2049
    %2678 = vmatpush1.bf16.msra.mxu0 %v2048
    %2679 = vmatprep.subr.bf16.mxu0 %v2054
    %2680 = vmatpush1.bf16.msra.mxu0 %v2053
    %2681 = vmatprep.subr.bf16.mxu0 %v2059
    %2682 = vmatpush1.bf16.msra.mxu0 %v2058
    %2683 = vmatprep.subr.bf16.mxu0 %v2064
    %2684 = vmatpush1.bf16.msra.mxu0 %v2063
    %2685 = vmatprep.subr.bf16.mxu0 %v2069
    %2686 = vmatpush1.bf16.msra.mxu0 %v2068
    %2687 = vmatprep.subr.bf16.mxu0 %v2074
    %2688 = vmatpush1.bf16.msra.mxu0 %v2073
    %2689 = vmatprep.subr.bf16.mxu0 %v2079
    %2690 = vmatpush1.bf16.msra.mxu0 %v2078
    %2691 = vmatprep.subr.bf16.mxu0 %v2084
    %2692 = vmatpush1.bf16.msra.mxu0 %v2083
    %2693 = vmatprep.subr.bf16.mxu0 %v2089
    %2694 = vmatpush1.bf16.msra.mxu0 %v2088
    %2695 = vmatprep.subr.bf16.mxu0 %v2094
    %2696 = vmatpush1.bf16.msra.mxu0 %v2093
    %2697 = vmatprep.subr.bf16.mxu0 %v2099
    %2698 = vmatpush1.bf16.msra.mxu0 %v2098
    %2699 = vmatprep.mubr.bf16.mxu0 %v600
    %2700 = vmatmul.mubr.bf16.gmra.mrb[0].mxu0 %v599
    %v2701 = vpop.f32.mrb[0].mxu0
    %v2702 = vadd.f32 %v2661, %v2701
    %v2703 = vpop.f32.mrb[0].mxu0
    %v2704 = vadd.f32 %v2663, %v2703
    %v2705 = vpop.f32.mrb[0].mxu0
    %v2706 = vpop.f32.mrb[0].mxu0
    %2707 = vdwg.mxu0
    %2708 = vmatprep.subr.bf16.mxu0 %v2104
    %2709 = vmatpush1.bf16.msra.mxu0 %v2103
    %2710 = vmatprep.subr.bf16.mxu0 %v2109
    %2711 = vmatpush1.bf16.msra.mxu0 %v2108
    %2712 = vmatprep.subr.bf16.mxu0 %v2114
    %2713 = vmatpush1.bf16.msra.mxu0 %v2113
    %2714 = vmatprep.subr.bf16.mxu0 %v2119
    %2715 = vmatpush1.bf16.msra.mxu0 %v2118
    %2716 = vmatprep.subr.bf16.mxu0 %v2124
    %2717 = vmatpush1.bf16.msra.mxu0 %v2123
    %2718 = vmatprep.subr.bf16.mxu0 %v2129
    %2719 = vmatpush1.bf16.msra.mxu0 %v2128
    %2720 = vmatprep.subr.bf16.mxu0 %v2134
    %2721 = vmatpush1.bf16.msra.mxu0 %v2133
    %2722 = vmatprep.subr.bf16.mxu0 %v2139
    %2723 = vmatpush1.bf16.msra.mxu0 %v2138
    %2724 = vmatprep.subr.bf16.mxu0 0
    %2725 = vmatpush1.bf16.msra.mxu0 0
    %2726 = vmatprep.subr.bf16.mxu0 0
    %2727 = vmatpush1.bf16.msra.mxu0 0
    %2728 = vmatprep.subr.bf16.mxu0 0
    %2729 = vmatpush1.bf16.msra.mxu0 0
    %2730 = vmatprep.subr.bf16.mxu0 0
    %2731 = vmatpush1.bf16.msra.mxu0 0
    %2732 = vmatprep.subr.bf16.mxu0 0
    %2733 = vmatpush1.bf16.msra.mxu0 0
    %2734 = vmatprep.subr.bf16.mxu0 0
    %2735 = vmatpush1.bf16.msra.mxu0 0
    %2736 = vmatprep.subr.bf16.mxu0 0
    %2737 = vmatpush1.bf16.msra.mxu0 0
    %2738 = vmatprep.subr.bf16.mxu0 0
    %2739 = vmatpush1.bf16.msra.mxu0 0
    %2740 = vmatprep.mubr.bf16.mxu0 0
    %2741 = vmatmul.mubr.bf16.gmra.mrb[0].mxu0 %v601
    %v2742 = vpop.f32.mrb[0].mxu0
    %v2743 = vadd.f32 %v2702, %v2742
    %v2744 = vpop.f32.mrb[0].mxu0
    %v2745 = vadd.f32 %v2704, %v2744
    %v2746 = vpop.f32.mrb[0].mxu0
    %v2747 = vpop.f32.mrb[0].mxu0
    %2748 = vdwg.mxu0
    %2749 = vmatprep.subr.bf16.mxu0 0
    %2750 = vmatpush1.bf16.msra.mxu0 %v1865
    %2751 = vmatprep.subr.bf16.mxu0 0
    %2752 = vmatpush1.bf16.msra.mxu0 %v1870
    %2753 = vmatprep.subr.bf16.mxu0 0
    %2754 = vmatpush1.bf16.msra.mxu0 %v1875
    %2755 = vmatprep.subr.bf16.mxu0 0
    %2756 = vmatpush1.bf16.msra.mxu0 %v1880
    %2757 = vmatprep.subr.bf16.mxu0 0
    %2758 = vmatpush1.bf16.msra.mxu0 %v1885
    %2759 = vmatprep.subr.bf16.mxu0 0
    %2760 = vmatpush1.bf16.msra.mxu0 %v1890
    %2761 = vmatprep.subr.bf16.mxu0 0
    %2762 = vmatpush1.bf16.msra.mxu0 %v1895
    %2763 = vmatprep.subr.bf16.mxu0 0
    %2764 = vmatpush1.bf16.msra.mxu0 %v1900
    %2765 = vmatprep.subr.bf16.mxu0 0
    %2766 = vmatpush1.bf16.msra.mxu0 %v1905
    %2767 = vmatprep.subr.bf16.mxu0 0
    %2768 = vmatpush1.bf16.msra.mxu0 %v1910
    %2769 = vmatprep.subr.bf16.mxu0 0
    %2770 = vmatpush1.bf16.msra.mxu0 %v1915
    %2771 = vmatprep.subr.bf16.mxu0 0
    %2772 = vmatpush1.bf16.msra.mxu0 %v1920
    %2773 = vmatprep.subr.bf16.mxu0 0
    %2774 = vmatpush1.bf16.msra.mxu0 %v1925
    %2775 = vmatprep.subr.bf16.mxu0 0
    %2776 = vmatpush1.bf16.msra.mxu0 %v1930
    %2777 = vmatprep.subr.bf16.mxu0 0
    %2778 = vmatpush1.bf16.msra.mxu0 %v1935
    %2779 = vmatprep.subr.bf16.mxu0 0
    %2780 = vmatpush1.bf16.msra.mxu0 %v1940
    %2781 = vmatprep.mubr.bf16.mxu0 %v596
    %2782 = vmatmul.mubr.bf16.gmra.mrb[0].mxu0 %v595
    %v2783 = vpop.f32.mrb[0].mxu0
    %v2784 = vadd.f32 %v959, %v2783
    %v2785 = vpop.f32.mrb[0].mxu0
    %v2786 = vpop.f32.mrb[0].mxu0
    %v2787 = vpop.f32.mrb[0].mxu0
    %2788 = vdwg.mxu0
    %2789 = vmatprep.subr.bf16.mxu0 0
    %2790 = vmatpush1.bf16.msra.mxu0 %v1945
    %2791 = vmatprep.subr.bf16.mxu0 0
    %2792 = vmatpush1.bf16.msra.mxu0 %v1950
    %2793 = vmatprep.subr.bf16.mxu0 0
    %2794 = vmatpush1.bf16.msra.mxu0 %v1955
    %2795 = vmatprep.subr.bf16.mxu0 0
    %2796 = vmatpush1.bf16.msra.mxu0 %v1960
    %2797 = vmatprep.subr.bf16.mxu0 0
    %2798 = vmatpush1.bf16.msra.mxu0 %v1965
    %2799 = vmatprep.subr.bf16.mxu0 0
    %2800 = vmatpush1.bf16.msra.mxu0 %v1970
    %2801 = vmatprep.subr.bf16.mxu0 0
    %2802 = vmatpush1.bf16.msra.mxu0 %v1975
    %2803 = vmatprep.subr.bf16.mxu0 0
    %2804 = vmatpush1.bf16.msra.mxu0 %v1980
    %2805 = vmatprep.subr.bf16.mxu0 0
    %2806 = vmatpush1.bf16.msra.mxu0 %v1985
    %2807 = vmatprep.subr.bf16.mxu0 0
    %2808 = vmatpush1.bf16.msra.mxu0 %v1990
    %2809 = vmatprep.subr.bf16.mxu0 0
    %2810 = vmatpush1.bf16.msra.mxu0 %v1995
    %2811 = vmatprep.subr.bf16.mxu0 0
    %2812 = vmatpush1.bf16.msra.mxu0 %v2000
    %2813 = vmatprep.subr.bf16.mxu0 0
    %2814 = vmatpush1.bf16.msra.mxu0 %v2005
    %2815 = vmatprep.subr.bf16.mxu0 0
    %2816 = vmatpush1.bf16.msra.mxu0 %v2010
    %2817 = vmatprep.subr.bf16.mxu0 0
    %2818 = vmatpush1.bf16.msra.mxu0 %v2015
    %2819 = vmatprep.subr.bf16.mxu0 0
    %2820 = vmatpush1.bf16.msra.mxu0 %v2020
    %2821 = vmatprep.mubr.bf16.mxu0 %v598
    %2822 = vmatmul.mubr.bf16.gmra.mrb[0].mxu0 %v597
    %v2823 = vpop.f32.mrb[0].mxu0
    %v2824 = vadd.f32 %v2784, %v2823
    %v2825 = vpop.f32.mrb[0].mxu0
    %v2826 = vpop.f32.mrb[0].mxu0
    %v2827 = vpop.f32.mrb[0].mxu0
    %2828 = vdwg.mxu0
    %2829 = vmatprep.subr.bf16.mxu0 0
    %2830 = vmatpush1.bf16.msra.mxu0 %v2025
    %2831 = vmatprep.subr.bf16.mxu0 0
    %2832 = vmatpush1.bf16.msra.mxu0 %v2030
    %2833 = vmatprep.subr.bf16.mxu0 0
    %2834 = vmatpush1.bf16.msra.mxu0 %v2035
    %2835 = vmatprep.subr.bf16.mxu0 0
    %2836 = vmatpush1.bf16.msra.mxu0 %v2040
    %2837 = vmatprep.subr.bf16.mxu0 0
    %2838 = vmatpush1.bf16.msra.mxu0 %v2045
    %2839 = vmatprep.subr.bf16.mxu0 0
    %2840 = vmatpush1.bf16.msra.mxu0 %v2050
    %2841 = vmatprep.subr.bf16.mxu0 0
    %2842 = vmatpush1.bf16.msra.mxu0 %v2055
    %2843 = vmatprep.subr.bf16.mxu0 0
    %2844 = vmatpush1.bf16.msra.mxu0 %v2060
    %2845 = vmatprep.subr.bf16.mxu0 0
    %2846 = vmatpush1.bf16.msra.mxu0 %v2065
    %2847 = vmatprep.subr.bf16.mxu0 0
    %2848 = vmatpush1.bf16.msra.mxu0 %v2070
    %2849 = vmatprep.subr.bf16.mxu0 0
    %2850 = vmatpush1.bf16.msra.mxu0 %v2075
    %2851 = vmatprep.subr.bf16.mxu0 0
    %2852 = vmatpush1.bf16.msra.mxu0 %v2080
    %2853 = vmatprep.subr.bf16.mxu0 0
    %2854 = vmatpush1.bf16.msra.mxu0 %v2085
    %2855 = vmatprep.subr.bf16.mxu0 0
    %2856 = vmatpush1.bf16.msra.mxu0 %v2090
    %2857 = vmatprep.subr.bf16.mxu0 0
    %2858 = vmatpush1.bf16.msra.mxu0 %v2095
    %2859 = vmatprep.subr.bf16.mxu0 0
    %2860 = vmatpush1.bf16.msra.mxu0 %v2100
    %2861 = vmatprep.mubr.bf16.mxu0 %v600
    %2862 = vmatmul.mubr.bf16.gmra.mrb[0].mxu0 %v599
    %v2863 = vpop.f32.mrb[0].mxu0
    %v2864 = vadd.f32 %v2824, %v2863
    %v2865 = vpop.f32.mrb[0].mxu0
    %v2866 = vpop.f32.mrb[0].mxu0
    %v2867 = vpop.f32.mrb[0].mxu0
    %2868 = vdwg.mxu0
    %2869 = vmatprep.subr.bf16.mxu0 0
    %2870 = vmatpush1.bf16.msra.mxu0 %v2105
    %2871 = vmatprep.subr.bf16.mxu0 0
    %2872 = vmatpush1.bf16.msra.mxu0 %v2110
    %2873 = vmatprep.subr.bf16.mxu0 0
    %2874 = vmatpush1.bf16.msra.mxu0 %v2115
    %2875 = vmatprep.subr.bf16.mxu0 0
    %2876 = vmatpush1.bf16.msra.mxu0 %v2120
    %2877 = vmatprep.subr.bf16.mxu0 0
    %2878 = vmatpush1.bf16.msra.mxu0 %v2125
    %2879 = vmatprep.subr.bf16.mxu0 0
    %2880 = vmatpush1.bf16.msra.mxu0 %v2130
    %2881 = vmatprep.subr.bf16.mxu0 0
    %2882 = vmatpush1.bf16.msra.mxu0 %v2135
    %2883 = vmatprep.subr.bf16.mxu0 0
    %2884 = vmatpush1.bf16.msra.mxu0 %v2140
    %2885 = vmatprep.subr.bf16.mxu0 0
    %2886 = vmatpush1.bf16.msra.mxu0 0
    %2887 = vmatprep.subr.bf16.mxu0 0
    %2888 = vmatpush1.bf16.msra.mxu0 0
    %2889 = vmatprep.subr.bf16.mxu0 0
    %2890 = vmatpush1.bf16.msra.mxu0 0
    %2891 = vmatprep.subr.bf16.mxu0 0
    %2892 = vmatpush1.bf16.msra.mxu0 0
    %2893 = vmatprep.subr.bf16.mxu0 0
    %2894 = vmatpush1.bf16.msra.mxu0 0
    %2895 = vmatprep.subr.bf16.mxu0 0
    %2896 = vmatpush1.bf16.msra.mxu0 0
    %2897 = vmatprep.subr.bf16.mxu0 0
    %2898 = vmatpush1.bf16.msra.mxu0 0
    %2899 = vmatprep.subr.bf16.mxu0 0
    %2900 = vmatpush1.bf16.msra.mxu0 0
    %2901 = vmatprep.mubr.bf16.mxu0 0
    %2902 = vmatmul.mubr.bf16.gmra.mrb[0].mxu0 %v601
    %v2903 = vpop.f32.mrb[0].mxu0
    %v2904 = vadd.f32 %v2864, %v2903
    %v2905 = vpop.f32.mrb[0].mxu0
    %v2906 = vpop.f32.mrb[0].mxu0
    %v2907 = vpop.f32.mrb[0].mxu0
    %2908 = vdwg.mxu0
    %v2909 = vmax.f32 %v2579, 0.0
    %v2910 = vmax.f32 %v2581, 0.0
    %v2911 = vmax.f32 %v2743, 0.0
    %v2912 = vmax.f32 %v2745, 0.0
    %v2913 = vmax.f32 %v2904, 0.0
    %v2914 = vmul.u32 %v337, 640
    %v2915 = vadd.s32 %v2914, %v339
    %v2916 = vadd.s32 %v2914, %v340
    %v2917 = vadd.s32 %v2914, %v341
    %v2918 = vadd.s32 %v2914, %v342
    %v2919 = vadd.s32 %v2914, %v343
    %s2920 = sadd.s32 %s325, 2
    %s2921 = smul.u32 %s2920, 1640531527
    %v2922 = vstv %s2921
    %v2923 = vadd.s32 %v2915, %v2922
    %v2924 = vadd.s32 %v2916, %v2922
    %v2925 = vadd.s32 %v2917, %v2922
    %v2926 = vadd.s32 %v2918, %v2922
    %v2927 = vadd.s32 %v2919, %v2922
    %v2928 = vmul.u32 %v2923, 668265263
    %v2929 = vmul.u32 %v2924, 668265263
    %v2930 = vmul.u32 %v2925, 668265263
    %v2931 = vmul.u32 %v2926, 668265263
    %v2932 = vmul.u32 %v2927, 668265263
    %v2933 = vshra.s32 %v2928, 15
    %v2934 = vshra.s32 %v2929, 15
    %v2935 = vshra.s32 %v2930, 15
    %v2936 = vshra.s32 %v2931, 15
    %v2937 = vshra.s32 %v2932, 15
    %v2938 = vand.u32 %v2933, 131071
    %v2939 = vand.u32 %v2934, 131071
    %v2940 = vand.u32 %v2935, 131071
    %v2941 = vand.u32 %v2936, 131071
    %v2942 = vand.u32 %v2937, 131071
    %v2943 = vxor.u32 %v2928, %v2938
    %v2944 = vxor.u32 %v2929, %v2939
    %v2945 = vxor.u32 %v2930, %v2940
    %v2946 = vxor.u32 %v2931, %v2941
    %v2947 = vxor.u32 %v2932, %v2942
    %v2948 = vmul.u32 %v2943, 625341585
    %v2949 = vmul.u32 %v2944, 625341585
    %v2950 = vmul.u32 %v2945, 625341585
    %v2951 = vmul.u32 %v2946, 625341585
    %v2952 = vmul.u32 %v2947, 625341585
    %v2953 = vshra.s32 %v2948, 13
    %v2954 = vshra.s32 %v2949, 13
    %v2955 = vshra.s32 %v2950, 13
    %v2956 = vshra.s32 %v2951, 13
    %v2957 = vshra.s32 %v2952, 13
    %v2958 = vand.u32 %v2953, 524287
    %v2959 = vand.u32 %v2954, 524287
    %v2960 = vand.u32 %v2955, 524287
    %v2961 = vand.u32 %v2956, 524287
    %v2962 = vand.u32 %v2957, 524287
    %v2963 = vxor.u32 %v2948, %v2958
    %v2964 = vxor.u32 %v2949, %v2959
    %v2965 = vxor.u32 %v2950, %v2960
    %v2966 = vxor.u32 %v2951, %v2961
    %v2967 = vxor.u32 %v2952, %v2962
    %v2968 = vmul.u32 %v2963, 1640531527
    %v2969 = vmul.u32 %v2964, 1640531527
    %v2970 = vmul.u32 %v2965, 1640531527
    %v2971 = vmul.u32 %v2966, 1640531527
    %v2972 = vmul.u32 %v2967, 1640531527
    %v2973 = vshra.s32 %v2968, 16
    %v2974 = vshra.s32 %v2969, 16
    %v2975 = vshra.s32 %v2970, 16
    %v2976 = vshra.s32 %v2971, 16
    %v2977 = vshra.s32 %v2972, 16
    %v2978 = vand.u32 %v2973, 65535
    %v2979 = vand.u32 %v2974, 65535
    %v2980 = vand.u32 %v2975, 65535
    %v2981 = vand.u32 %v2976, 65535
    %v2982 = vand.u32 %v2977, 65535
    %v2983 = vxor.u32 %v2968, %v2978
    %v2984 = vxor.u32 %v2969, %v2979
    %v2985 = vxor.u32 %v2970, %v2980
    %v2986 = vxor.u32 %v2971, %v2981
    %v2987 = vxor.u32 %v2972, %v2982
    %v2988 = vand.u32 %v2983, 8388607
    %v2989 = vand.u32 %v2984, 8388607
    %v2990 = vand.u32 %v2985, 8388607
    %v2991 = vand.u32 %v2986, 8388607
    %v2992 = vand.u32 %v2987, 8388607
    %v2993 = vcvt.s32.f32 %v2988
    %v2994 = vcvt.s32.f32 %v2989
    %v2995 = vcvt.s32.f32 %v2990
    %v2996 = vcvt.s32.f32 %v2991
    %v2997 = vcvt.s32.f32 %v2992
    %v2998 = vmul.f32 %v2993, 1.1920929e-07
    %v2999 = vmul.f32 %v2994, 1.1920929e-07
    %v3000 = vmul.f32 %v2995, 1.1920929e-07
    %v3001 = vmul.f32 %v2996, 1.1920929e-07
    %v3002 = vmul.f32 %v2997, 1.1920929e-07
    %v3003 = vadd.f32 %v2998, 1e-07
    %v3004 = vadd.f32 %v2999, 1e-07
    %v3005 = vadd.f32 %v3000, 1e-07
    %v3006 = vadd.f32 %v3001, 1e-07
    %v3007 = vadd.f32 %v3002, 1e-07
    %v3008 = vsub.f32 1.0, %v2998
    %v3009 = vsub.f32 1.0, %v2999
    %v3010 = vsub.f32 1.0, %v3000
    %v3011 = vsub.f32 1.0, %v3001
    %v3012 = vsub.f32 1.0, %v3002
    %v3013 = vadd.f32 %v3008, 1e-07
    %v3014 = vadd.f32 %v3009, 1e-07
    %v3015 = vadd.f32 %v3010, 1e-07
    %v3016 = vadd.f32 %v3011, 1e-07
    %v3017 = vadd.f32 %v3012, 1e-07
    %v3018 = vrcp.pop %v3013
    %v3019 = vmul.f32 %v3003, %v3018
    %v3020 = vrcp.pop %v3014
    %v3021 = vmul.f32 %v3004, %v3020
    %v3022 = vrcp.pop %v3015
    %v3023 = vmul.f32 %v3005, %v3022
    %v3024 = vrcp.pop %v3016
    %v3025 = vmul.f32 %v3006, %v3024
    %v3026 = vrcp.pop %v3017
    %v3027 = vmul.f32 %v3007, %v3026
    %v3028 = vlog2.pop %v3019
    %v3029 = vmul.f32 %v3028, 0.6931472
    %v3030 = vlog2.pop %v3021
    %v3031 = vmul.f32 %v3030, 0.6931472
    %v3032 = vlog2.pop %v3023
    %v3033 = vmul.f32 %v3032, 0.6931472
    %v3034 = vlog2.pop %v3025
    %v3035 = vmul.f32 %v3034, 0.6931472
    %v3036 = vlog2.pop %v3027
    %v3037 = vmul.f32 %v3036, 0.6931472
    %v3038 = vadd.f32 %v3029, -2.1972237
    %v3039 = vadd.f32 %v3031, -2.1972237
    %v3040 = vadd.f32 %v3033, -2.1972237
    %v3041 = vadd.f32 %v3035, -2.1972237
    %v3042 = vadd.f32 %v3037, -2.1972237
    %v3043 = vmul.f32 %v3038, 10.0
    %v3044 = vmul.f32 %v3039, 10.0
    %v3045 = vmul.f32 %v3040, 10.0
    %v3046 = vmul.f32 %v3041, 10.0
    %v3047 = vmul.f32 %v3042, 10.0
    %v3048 = vxor.u32 %v3043, 2147483648
    %v3049 = vxor.u32 %v3044, 2147483648
    %v3050 = vxor.u32 %v3045, 2147483648
    %v3051 = vxor.u32 %v3046, 2147483648
    %v3052 = vxor.u32 %v3047, 2147483648
    %v3053 = vmul.f32 %v3048, 1.442695
    %v3054 = vpow.pop %v3053
    %v3055 = vmul.f32 %v3049, 1.442695
    %v3056 = vpow.pop %v3055
    %v3057 = vmul.f32 %v3050, 1.442695
    %v3058 = vpow.pop %v3057
    %v3059 = vmul.f32 %v3051, 1.442695
    %v3060 = vpow.pop %v3059
    %v3061 = vmul.f32 %v3052, 1.442695
    %v3062 = vpow.pop %v3061
    %v3063 = vadd.f32 %v3054, 1.0
    %v3064 = vadd.f32 %v3056, 1.0
    %v3065 = vadd.f32 %v3058, 1.0
    %v3066 = vadd.f32 %v3060, 1.0
    %v3067 = vadd.f32 %v3062, 1.0
    %v3068 = vrcp.pop %v3063
    %v3069 = vmul.f32 1.0, %v3068
    %v3070 = vrcp.pop %v3064
    %v3071 = vmul.f32 1.0, %v3070
    %v3072 = vrcp.pop %v3065
    %v3073 = vmul.f32 1.0, %v3072
    %v3074 = vrcp.pop %v3066
    %v3075 = vmul.f32 1.0, %v3074
    %v3076 = vrcp.pop %v3067
    %v3077 = vmul.f32 1.0, %v3076
    %v3078 = vsub.f32 1.0, %v3069
    %v3079 = vsub.f32 1.0, %v3071
    %v3080 = vsub.f32 1.0, %v3073
    %v3081 = vsub.f32 1.0, %v3075
    %v3082 = vsub.f32 1.0, %v3077
    %v3083 = vmul.f32 %v2909, %v3078
    %v3084 = vmul.f32 %v2910, %v3079
    %v3085 = vmul.f32 %v2911, %v3080
    %v3086 = vmul.f32 %v2912, %v3081
    %v3087 = vmul.f32 %v2913, %v3082
    %v3088 = vmul.f32 %v3083, 1.1111112
    %v3089 = vmul.f32 %v3084, 1.1111112
    %v3090 = vmul.f32 %v3085, 1.1111112
    %v3091 = vmul.f32 %v3086, 1.1111112
    %v3092 = vmul.f32 %v3087, 1.1111112
    %v3093 = vpack.c.bf16 %v3088, %v3088
    %v3094 = vpack.c.bf16 %v3089, %v3089
    %v3095 = vpack.c.bf16 %v3090, %v3090
    %v3096 = vpack.c.bf16 %v3091, %v3091
    %v3097 = vpack.c.bf16 %v3092, %v3092
    %v3098 = vld [vmem:[#allocation8] sm:$0xff]
    %v3099 = vld [vmem:[#allocation8 + $0x8] sm:$0xff]
    %v3100 = vld [vmem:[#allocation8 + $0x10] sm:$0xff]
    %v3101 = vld [vmem:[#allocation8 + $0x18] sm:$0xff]
    %v3102 = vld [vmem:[#allocation8 + $0x20] sm:$0xff]
    %v3103 = vld [vmem:[#allocation8 + $0x28] sm:$0xff]
    %v3104 = vld [vmem:[#allocation8 + $0x30] sm:$0xff]
    %v3105 = vld [vmem:[#allocation8 + $0x38] sm:$0xff]
    %v3106 = vld [vmem:[#allocation8 + $0x40] sm:$0xff]
    %v3107 = vld [vmem:[#allocation8 + $0x48] sm:$0xff]
    %v3108 = vld [vmem:[#allocation8 + $0x50] sm:$0xff]
    %v3109 = vld [vmem:[#allocation8 + $0x58] sm:$0xff]
    %v3110 = vld [vmem:[#allocation8 + $0x60] sm:$0xff]
    %v3111 = vld [vmem:[#allocation8 + $0x68] sm:$0xff]
    %v3112 = vld [vmem:[#allocation8 + $0x70] sm:$0xff]
    %v3113 = vld [vmem:[#allocation8 + $0x78] sm:$0xff]
    %v3114 = vld [vmem:[#allocation8 + $0x80] sm:$0xff]
    %v3115 = vld [vmem:[#allocation8 + $0x88] sm:$0xff]
    %v3116 = vld [vmem:[#allocation8 + $0x90] sm:$0xff]
    %v3117 = vld [vmem:[#allocation8 + $0x98] sm:$0xff]
    %v3118 = vld [vmem:[#allocation8 + $0xa0] sm:$0xff]
    %v3119 = vld [vmem:[#allocation8 + $0xa8] sm:$0xff]
    %v3120 = vld [vmem:[#allocation8 + $0xb0] sm:$0xff]
    %v3121 = vld [vmem:[#allocation8 + $0xb8] sm:$0xff]
    %v3122 = vld [vmem:[#allocation8 + $0xc0] sm:$0xff]
    %v3123 = vld [vmem:[#allocation8 + $0xc8] sm:$0xff]
    %v3124 = vld [vmem:[#allocation8 + $0xd0] sm:$0xff]
    %v3125 = vld [vmem:[#allocation8 + $0xd8] sm:$0xff]
    %v3126 = vld [vmem:[#allocation8 + $0xe0] sm:$0xff]
    %v3127 = vld [vmem:[#allocation8 + $0xe8] sm:$0xff]
    %v3128 = vld [vmem:[#allocation8 + $0xf0] sm:$0xff]
    %v3129 = vld [vmem:[#allocation8 + $0xf8] sm:$0xff]
    %v3130 = vld [vmem:[#allocation8 + $0x100] sm:$0xff]
    %v3131 = vld [vmem:[#allocation8 + $0x108] sm:$0xff]
    %v3132 = vld [vmem:[#allocation8 + $0x110] sm:$0xff]
    %v3133 = vld [vmem:[#allocation8 + $0x118] sm:$0xff]
    %v3134 = vld [vmem:[#allocation8 + $0x120] sm:$0xff]
    %v3135 = vld [vmem:[#allocation8 + $0x128] sm:$0xff]
    %v3136 = vld [vmem:[#allocation8 + $0x130] sm:$0xff]
    %v3137 = vld [vmem:[#allocation8 + $0x138] sm:$0xff]
    %v3138 = vld [vmem:[#allocation8 + $0x140] sm:$0xff]
    %v3139 = vld [vmem:[#allocation8 + $0x148] sm:$0xff]
    %v3140 = vld [vmem:[#allocation8 + $0x150] sm:$0xff]
    %v3141 = vld [vmem:[#allocation8 + $0x158] sm:$0xff]
    %v3142 = vld [vmem:[#allocation8 + $0x160] sm:$0xff]
    %v3143 = vld [vmem:[#allocation8 + $0x168] sm:$0xff]
    %v3144 = vld [vmem:[#allocation8 + $0x170] sm:$0xff]
    %v3145 = vld [vmem:[#allocation8 + $0x178] sm:$0xff]
    %v3146 = vld [vmem:[#allocation8 + $0x180] sm:$0xff]
    %v3147 = vld [vmem:[#allocation8 + $0x188] sm:$0xff]
    %v3148 = vld [vmem:[#allocation8 + $0x190] sm:$0xff]
    %v3149 = vld [vmem:[#allocation8 + $0x198] sm:$0xff]
    %v3150 = vld [vmem:[#allocation8 + $0x1a0] sm:$0xff]
    %v3151 = vld [vmem:[#allocation8 + $0x1a8] sm:$0xff]
    %v3152 = vld [vmem:[#allocation8 + $0x1b0] sm:$0xff]
    %v3153 = vld [vmem:[#allocation8 + $0x1b8] sm:$0xff]
    %v3154 = vld [vmem:[#allocation8 + $0x1c0] sm:$0xff]
    %v3155 = vld [vmem:[#allocation8 + $0x1c8] sm:$0xff]
    %v3156 = vld [vmem:[#allocation8 + $0x1d0] sm:$0xff]
    %v3157 = vld [vmem:[#allocation8 + $0x1d8] sm:$0xff]
    %v3158 = vld [vmem:[#allocation8 + $0x1e0] sm:$0xff]
    %v3159 = vld [vmem:[#allocation8 + $0x1e8] sm:$0xff]
    %v3160 = vld [vmem:[#allocation8 + $0x1f0] sm:$0xff]
    %v3161 = vld [vmem:[#allocation8 + $0x1f8] sm:$0xff]
    %v3162 = vld [vmem:[#allocation8 + $0x200] sm:$0xff]
    %v3163 = vld [vmem:[#allocation8 + $0x208] sm:$0xff]
    %v3164 = vld [vmem:[#allocation8 + $0x210] sm:$0xff]
    %v3165 = vld [vmem:[#allocation8 + $0x218] sm:$0xff]
    %v3166 = vld [vmem:[#allocation8 + $0x220] sm:$0xff]
    %v3167 = vld [vmem:[#allocation8 + $0x228] sm:$0xff]
    %v3168 = vld [vmem:[#allocation8 + $0x230] sm:$0xff]
    %v3169 = vld [vmem:[#allocation8 + $0x238] sm:$0xff]
    %v3170 = vld [vmem:[#allocation8 + $0x240] sm:$0xff]
    %v3171 = vld [vmem:[#allocation8 + $0x248] sm:$0xff]
    %v3172 = vld [vmem:[#allocation8 + $0x250] sm:$0xff]
    %v3173 = vld [vmem:[#allocation8 + $0x258] sm:$0xff]
    %v3174 = vld [vmem:[#allocation8 + $0x260] sm:$0xff]
    %v3175 = vld [vmem:[#allocation8 + $0x268] sm:$0xff]
    %v3176 = vld [vmem:[#allocation8 + $0x270] sm:$0xff]
    %v3177 = vld [vmem:[#allocation8 + $0x278] sm:$0xff]
    %v3178 = vld [vmem:[#allocation8 + $0x280] sm:$0xff]
    %v3179 = vld [vmem:[#allocation8 + $0x288] sm:$0xff]
    %v3180 = vld [vmem:[#allocation8 + $0x290] sm:$0xff]
    %v3181 = vld [vmem:[#allocation8 + $0x298] sm:$0xff]
    %v3182 = vld [vmem:[#allocation8 + $0x2a0] sm:$0xff]
    %v3183 = vld [vmem:[#allocation8 + $0x2a8] sm:$0xff]
    %v3184 = vld [vmem:[#allocation8 + $0x2b0] sm:$0xff]
    %v3185 = vld [vmem:[#allocation8 + $0x2b8] sm:$0xff]
    %v3186 = vld [vmem:[#allocation8 + $0x2c0] sm:$0xff]
    %v3187 = vld [vmem:[#allocation8 + $0x2c8] sm:$0xff]
    %v3188 = vld [vmem:[#allocation8 + $0x2d0] sm:$0xff]
    %v3189 = vld [vmem:[#allocation8 + $0x2d8] sm:$0xff]
    %v3190 = vld [vmem:[#allocation8 + $0x2e0] sm:$0xff]
    %v3191 = vld [vmem:[#allocation8 + $0x2e8] sm:$0xff]
    %v3192 = vld [vmem:[#allocation8 + $0x2f0] sm:$0xff]
    %v3193 = vld [vmem:[#allocation8 + $0x2f8] sm:$0xff]
    %v3194 = vld [vmem:[#allocation8 + $0x300] sm:$0xff]
    %v3195 = vld [vmem:[#allocation8 + $0x308] sm:$0xff]
    %v3196 = vld [vmem:[#allocation8 + $0x310] sm:$0xff]
    %v3197 = vld [vmem:[#allocation8 + $0x318] sm:$0xff]
    %v3198 = vld [vmem:[#allocation8 + $0x320] sm:$0xff]
    %v3199 = vld [vmem:[#allocation8 + $0x328] sm:$0xff]
    %v3200 = vld [vmem:[#allocation8 + $0x330] sm:$0xff]
    %v3201 = vld [vmem:[#allocation8 + $0x338] sm:$0xff]
    %v3202 = vld [vmem:[#allocation8 + $0x340] sm:$0xff]
    %v3203 = vld [vmem:[#allocation8 + $0x348] sm:$0xff]
    %v3204 = vld [vmem:[#allocation8 + $0x350] sm:$0xff]
    %v3205 = vld [vmem:[#allocation8 + $0x358] sm:$0xff]
    %v3206 = vld [vmem:[#allocation8 + $0x360] sm:$0xff]
    %v3207 = vld [vmem:[#allocation8 + $0x368] sm:$0xff]
    %v3208 = vld [vmem:[#allocation8 + $0x370] sm:$0xff]
    %v3209 = vld [vmem:[#allocation8 + $0x378] sm:$0xff]
    %v3210 = vld [vmem:[#allocation8 + $0x380] sm:$0xff]
    %v3211 = vld [vmem:[#allocation8 + $0x388] sm:$0xff]
    %v3212 = vld [vmem:[#allocation8 + $0x390] sm:$0xff]
    %v3213 = vld [vmem:[#allocation8 + $0x398] sm:$0xff]
    %v3214 = vld [vmem:[#allocation8 + $0x3a0] sm:$0xff]
    %v3215 = vld [vmem:[#allocation8 + $0x3a8] sm:$0xff]
    %v3216 = vld [vmem:[#allocation8 + $0x3b0] sm:$0xff]
    %v3217 = vld [vmem:[#allocation8 + $0x3b8] sm:$0xff]
    %v3218 = vld [vmem:[#allocation8 + $0x3c0] sm:$0xff]
    %v3219 = vld [vmem:[#allocation8 + $0x3c8] sm:$0xff]
    %v3220 = vld [vmem:[#allocation8 + $0x3d0] sm:$0xff]
    %v3221 = vld [vmem:[#allocation8 + $0x3d8] sm:$0xff]
    %v3222 = vld [vmem:[#allocation8 + $0x3e0] sm:$0xff]
    %v3223 = vld [vmem:[#allocation8 + $0x3e8] sm:$0xff]
    %v3224 = vld [vmem:[#allocation8 + $0x3f0] sm:$0xff]
    %v3225 = vld [vmem:[#allocation8 + $0x3f8] sm:$0xff]
    %v3226 = vld [vmem:[#allocation8 + $0x400] sm:$0xff]
    %v3227 = vld [vmem:[#allocation8 + $0x408] sm:$0xff]
    %v3228 = vld [vmem:[#allocation8 + $0x410] sm:$0xff]
    %v3229 = vld [vmem:[#allocation8 + $0x418] sm:$0xff]
    %v3230 = vld [vmem:[#allocation8 + $0x420] sm:$0xff]
    %v3231 = vld [vmem:[#allocation8 + $0x428] sm:$0xff]
    %v3232 = vld [vmem:[#allocation8 + $0x430] sm:$0xff]
    %v3233 = vld [vmem:[#allocation8 + $0x438] sm:$0xff]
    %v3234 = vld [vmem:[#allocation8 + $0x440] sm:$0xff]
    %v3235 = vld [vmem:[#allocation8 + $0x448] sm:$0xff]
    %v3236 = vld [vmem:[#allocation8 + $0x450] sm:$0xff]
    %v3237 = vld [vmem:[#allocation8 + $0x458] sm:$0xff]
    %v3238 = vld [vmem:[#allocation8 + $0x460] sm:$0xff]
    %v3239 = vld [vmem:[#allocation8 + $0x468] sm:$0xff]
    %v3240 = vld [vmem:[#allocation8 + $0x470] sm:$0xff]
    %v3241 = vld [vmem:[#allocation8 + $0x478] sm:$0xff]
    %v3242 = vld [vmem:[#allocation8 + $0x480] sm:$0xff]
    %v3243 = vld [vmem:[#allocation8 + $0x488] sm:$0xff]
    %v3244 = vld [vmem:[#allocation8 + $0x490] sm:$0xff]
    %v3245 = vld [vmem:[#allocation8 + $0x498] sm:$0xff]
    %v3246 = vld [vmem:[#allocation8 + $0x4a0] sm:$0xff]
    %v3247 = vld [vmem:[#allocation8 + $0x4a8] sm:$0xff]
    %v3248 = vld [vmem:[#allocation8 + $0x4b0] sm:$0xff]
    %v3249 = vld [vmem:[#allocation8 + $0x4b8] sm:$0xff]
    %v3250 = vld [vmem:[#allocation8 + $0x4c0] sm:$0xff]
    %v3251 = vld [vmem:[#allocation8 + $0x4c8] sm:$0xff]
    %v3252 = vld [vmem:[#allocation8 + $0x4d0] sm:$0xff]
    %v3253 = vld [vmem:[#allocation8 + $0x4d8] sm:$0xff]
    %v3254 = vld [vmem:[#allocation8 + $0x4e0] sm:$0xff]
    %v3255 = vld [vmem:[#allocation8 + $0x4e8] sm:$0xff]
    %v3256 = vld [vmem:[#allocation8 + $0x4f0] sm:$0xff]
    %v3257 = vld [vmem:[#allocation8 + $0x4f8] sm:$0xff]
    %v3258 = vld [vmem:[#allocation9] sm:$0xf]
    %v3260 = vlaneseq
    %v3261 = vshrl.u32 %v3260, 7
    %v3262 = vsub.s32 0, %v3261
    %v3263 = vrot.slane %v3258, %v3262
    %v3264 = vlaneseq
    %v3265 = vshrl.u32 %v3264, 7
    %v3266 = vsub.s32 1, %v3265
    %v3267 = vrot.slane %v3258, %v3266
    %v3268 = vlaneseq
    %v3269 = vshrl.u32 %v3268, 7
    %v3270 = vsub.s32 2, %v3269
    %v3271 = vrot.slane %v3258, %v3270
    %v3272 = vlaneseq
    %v3273 = vshrl.u32 %v3272, 7
    %v3274 = vsub.s32 3, %v3273
    %v3275 = vrot.slane %v3258, %v3274
    %v3440 = vunpack.c.l.b16 %v3098
    %v3441 = vunpack.c.h.b16 %v3098
    %v3442 = vunpack.c.l.b16 %v3099
    %v3443 = vunpack.c.h.b16 %v3099
    %v3444 = vunpack.c.l.b16 %v3100
    %v3445 = vunpack.c.h.b16 %v3100
    %v3446 = vunpack.c.l.b16 %v3101
    %v3447 = vunpack.c.h.b16 %v3101
    %v3448 = vunpack.c.l.b16 %v3102
    %v3449 = vunpack.c.h.b16 %v3102
    %v3450 = vunpack.c.l.b16 %v3103
    %v3451 = vunpack.c.h.b16 %v3103
    %v3452 = vunpack.c.l.b16 %v3104
    %v3453 = vunpack.c.h.b16 %v3104
    %v3454 = vunpack.c.l.b16 %v3105
    %v3455 = vunpack.c.h.b16 %v3105
    %v3456 = vunpack.c.l.b16 %v3106
    %v3457 = vunpack.c.h.b16 %v3106
    %v3458 = vunpack.c.l.b16 %v3107
    %v3459 = vunpack.c.h.b16 %v3107
    %v3460 = vunpack.c.l.b16 %v3108
    %v3461 = vunpack.c.h.b16 %v3108
    %v3462 = vunpack.c.l.b16 %v3109
    %v3463 = vunpack.c.h.b16 %v3109
    %v3464 = vunpack.c.l.b16 %v3110
    %v3465 = vunpack.c.h.b16 %v3110
    %v3466 = vunpack.c.l.b16 %v3111
    %v3467 = vunpack.c.h.b16 %v3111
    %v3468 = vunpack.c.l.b16 %v3112
    %v3469 = vunpack.c.h.b16 %v3112
    %v3470 = vunpack.c.l.b16 %v3113
    %v3471 = vunpack.c.h.b16 %v3113
    %v3472 = vunpack.c.l.b16 %v3114
    %v3473 = vunpack.c.h.b16 %v3114
    %v3474 = vunpack.c.l.b16 %v3115
    %v3475 = vunpack.c.h.b16 %v3115
    %v3476 = vunpack.c.l.b16 %v3116
    %v3477 = vunpack.c.h.b16 %v3116
    %v3478 = vunpack.c.l.b16 %v3117
    %v3479 = vunpack.c.h.b16 %v3117
    %v3480 = vunpack.c.l.b16 %v3118
    %v3481 = vunpack.c.h.b16 %v3118
    %v3482 = vunpack.c.l.b16 %v3119
    %v3483 = vunpack.c.h.b16 %v3119
    %v3484 = vunpack.c.l.b16 %v3120
    %v3485 = vunpack.c.h.b16 %v3120
    %v3486 = vunpack.c.l.b16 %v3121
    %v3487 = vunpack.c.h.b16 %v3121
    %v3488 = vunpack.c.l.b16 %v3122
    %v3489 = vunpack.c.h.b16 %v3122
    %v3490 = vunpack.c.l.b16 %v3123
    %v3491 = vunpack.c.h.b16 %v3123
    %v3492 = vunpack.c.l.b16 %v3124
    %v3493 = vunpack.c.h.b16 %v3124
    %v3494 = vunpack.c.l.b16 %v3125
    %v3495 = vunpack.c.h.b16 %v3125
    %v3496 = vunpack.c.l.b16 %v3126
    %v3497 = vunpack.c.h.b16 %v3126
    %v3498 = vunpack.c.l.b16 %v3127
    %v3499 = vunpack.c.h.b16 %v3127
    %v3500 = vunpack.c.l.b16 %v3128
    %v3501 = vunpack.c.h.b16 %v3128
    %v3502 = vunpack.c.l.b16 %v3129
    %v3503 = vunpack.c.h.b16 %v3129
    %v3504 = vunpack.c.l.b16 %v3130
    %v3505 = vunpack.c.h.b16 %v3130
    %v3506 = vunpack.c.l.b16 %v3131
    %v3507 = vunpack.c.h.b16 %v3131
    %v3508 = vunpack.c.l.b16 %v3132
    %v3509 = vunpack.c.h.b16 %v3132
    %v3510 = vunpack.c.l.b16 %v3133
    %v3511 = vunpack.c.h.b16 %v3133
    %v3512 = vunpack.c.l.b16 %v3134
    %v3513 = vunpack.c.h.b16 %v3134
    %v3514 = vunpack.c.l.b16 %v3135
    %v3515 = vunpack.c.h.b16 %v3135
    %v3516 = vunpack.c.l.b16 %v3136
    %v3517 = vunpack.c.h.b16 %v3136
    %v3518 = vunpack.c.l.b16 %v3137
    %v3519 = vunpack.c.h.b16 %v3137
    %v3520 = vunpack.c.l.b16 %v3138
    %v3521 = vunpack.c.h.b16 %v3138
    %v3522 = vunpack.c.l.b16 %v3139
    %v3523 = vunpack.c.h.b16 %v3139
    %v3524 = vunpack.c.l.b16 %v3140
    %v3525 = vunpack.c.h.b16 %v3140
    %v3526 = vunpack.c.l.b16 %v3141
    %v3527 = vunpack.c.h.b16 %v3141
    %v3528 = vunpack.c.l.b16 %v3142
    %v3529 = vunpack.c.h.b16 %v3142
    %v3530 = vunpack.c.l.b16 %v3143
    %v3531 = vunpack.c.h.b16 %v3143
    %v3532 = vunpack.c.l.b16 %v3144
    %v3533 = vunpack.c.h.b16 %v3144
    %v3534 = vunpack.c.l.b16 %v3145
    %v3535 = vunpack.c.h.b16 %v3145
    %v3536 = vunpack.c.l.b16 %v3146
    %v3537 = vunpack.c.h.b16 %v3146
    %v3538 = vunpack.c.l.b16 %v3147
    %v3539 = vunpack.c.h.b16 %v3147
    %v3540 = vunpack.c.l.b16 %v3148
    %v3541 = vunpack.c.h.b16 %v3148
    %v3542 = vunpack.c.l.b16 %v3149
    %v3543 = vunpack.c.h.b16 %v3149
    %v3544 = vunpack.c.l.b16 %v3150
    %v3545 = vunpack.c.h.b16 %v3150
    %v3546 = vunpack.c.l.b16 %v3151
    %v3547 = vunpack.c.h.b16 %v3151
    %v3548 = vunpack.c.l.b16 %v3152
    %v3549 = vunpack.c.h.b16 %v3152
    %v3550 = vunpack.c.l.b16 %v3153
    %v3551 = vunpack.c.h.b16 %v3153
    %v3552 = vunpack.c.l.b16 %v3154
    %v3553 = vunpack.c.h.b16 %v3154
    %v3554 = vunpack.c.l.b16 %v3155
    %v3555 = vunpack.c.h.b16 %v3155
    %v3556 = vunpack.c.l.b16 %v3156
    %v3557 = vunpack.c.h.b16 %v3156
    %v3558 = vunpack.c.l.b16 %v3157
    %v3559 = vunpack.c.h.b16 %v3157
    %v3560 = vunpack.c.l.b16 %v3158
    %v3561 = vunpack.c.h.b16 %v3158
    %v3562 = vunpack.c.l.b16 %v3159
    %v3563 = vunpack.c.h.b16 %v3159
    %v3564 = vunpack.c.l.b16 %v3160
    %v3565 = vunpack.c.h.b16 %v3160
    %v3566 = vunpack.c.l.b16 %v3161
    %v3567 = vunpack.c.h.b16 %v3161
    %v3568 = vunpack.c.l.b16 %v3162
    %v3569 = vunpack.c.h.b16 %v3162
    %v3570 = vunpack.c.l.b16 %v3163
    %v3571 = vunpack.c.h.b16 %v3163
    %v3572 = vunpack.c.l.b16 %v3164
    %v3573 = vunpack.c.h.b16 %v3164
    %v3574 = vunpack.c.l.b16 %v3165
    %v3575 = vunpack.c.h.b16 %v3165
    %v3576 = vunpack.c.l.b16 %v3166
    %v3577 = vunpack.c.h.b16 %v3166
    %v3578 = vunpack.c.l.b16 %v3167
    %v3579 = vunpack.c.h.b16 %v3167
    %v3580 = vunpack.c.l.b16 %v3168
    %v3581 = vunpack.c.h.b16 %v3168
    %v3582 = vunpack.c.l.b16 %v3169
    %v3583 = vunpack.c.h.b16 %v3169
    %v3584 = vunpack.c.l.b16 %v3170
    %v3585 = vunpack.c.h.b16 %v3170
    %v3586 = vunpack.c.l.b16 %v3171
    %v3587 = vunpack.c.h.b16 %v3171
    %v3588 = vunpack.c.l.b16 %v3172
    %v3589 = vunpack.c.h.b16 %v3172
    %v3590 = vunpack.c.l.b16 %v3173
    %v3591 = vunpack.c.h.b16 %v3173
    %v3592 = vunpack.c.l.b16 %v3174
    %v3593 = vunpack.c.h.b16 %v3174
    %v3594 = vunpack.c.l.b16 %v3175
    %v3595 = vunpack.c.h.b16 %v3175
    %v3596 = vunpack.c.l.b16 %v3176
    %v3597 = vunpack.c.h.b16 %v3176
    %v3598 = vunpack.c.l.b16 %v3177
    %v3599 = vunpack.c.h.b16 %v3177
    %v3600 = vunpack.c.l.b16 %v3178
    %v3601 = vunpack.c.h.b16 %v3178
    %v3602 = vunpack.c.l.b16 %v3179
    %v3603 = vunpack.c.h.b16 %v3179
    %v3604 = vunpack.c.l.b16 %v3180
    %v3605 = vunpack.c.h.b16 %v3180
    %v3606 = vunpack.c.l.b16 %v3181
    %v3607 = vunpack.c.h.b16 %v3181
    %v3608 = vunpack.c.l.b16 %v3182
    %v3609 = vunpack.c.h.b16 %v3182
    %v3610 = vunpack.c.l.b16 %v3183
    %v3611 = vunpack.c.h.b16 %v3183
    %v3612 = vunpack.c.l.b16 %v3184
    %v3613 = vunpack.c.h.b16 %v3184
    %v3614 = vunpack.c.l.b16 %v3185
    %v3615 = vunpack.c.h.b16 %v3185
    %v3616 = vunpack.c.l.b16 %v3186
    %v3617 = vunpack.c.h.b16 %v3186
    %v3618 = vunpack.c.l.b16 %v3187
    %v3619 = vunpack.c.h.b16 %v3187
    %v3620 = vunpack.c.l.b16 %v3188
    %v3621 = vunpack.c.h.b16 %v3188
    %v3622 = vunpack.c.l.b16 %v3189
    %v3623 = vunpack.c.h.b16 %v3189
    %v3624 = vunpack.c.l.b16 %v3190
    %v3625 = vunpack.c.h.b16 %v3190
    %v3626 = vunpack.c.l.b16 %v3191
    %v3627 = vunpack.c.h.b16 %v3191
    %v3628 = vunpack.c.l.b16 %v3192
    %v3629 = vunpack.c.h.b16 %v3192
    %v3630 = vunpack.c.l.b16 %v3193
    %v3631 = vunpack.c.h.b16 %v3193
    %v3632 = vunpack.c.l.b16 %v3194
    %v3633 = vunpack.c.h.b16 %v3194
    %v3634 = vunpack.c.l.b16 %v3195
    %v3635 = vunpack.c.h.b16 %v3195
    %v3636 = vunpack.c.l.b16 %v3196
    %v3637 = vunpack.c.h.b16 %v3196
    %v3638 = vunpack.c.l.b16 %v3197
    %v3639 = vunpack.c.h.b16 %v3197
    %v3640 = vunpack.c.l.b16 %v3198
    %v3641 = vunpack.c.h.b16 %v3198
    %v3642 = vunpack.c.l.b16 %v3199
    %v3643 = vunpack.c.h.b16 %v3199
    %v3644 = vunpack.c.l.b16 %v3200
    %v3645 = vunpack.c.h.b16 %v3200
    %v3646 = vunpack.c.l.b16 %v3201
    %v3647 = vunpack.c.h.b16 %v3201
    %v3648 = vunpack.c.l.b16 %v3202
    %v3649 = vunpack.c.h.b16 %v3202
    %v3650 = vunpack.c.l.b16 %v3203
    %v3651 = vunpack.c.h.b16 %v3203
    %v3652 = vunpack.c.l.b16 %v3204
    %v3653 = vunpack.c.h.b16 %v3204
    %v3654 = vunpack.c.l.b16 %v3205
    %v3655 = vunpack.c.h.b16 %v3205
    %v3656 = vunpack.c.l.b16 %v3206
    %v3657 = vunpack.c.h.b16 %v3206
    %v3658 = vunpack.c.l.b16 %v3207
    %v3659 = vunpack.c.h.b16 %v3207
    %v3660 = vunpack.c.l.b16 %v3208
    %v3661 = vunpack.c.h.b16 %v3208
    %v3662 = vunpack.c.l.b16 %v3209
    %v3663 = vunpack.c.h.b16 %v3209
    %v3664 = vunpack.c.l.b16 %v3210
    %v3665 = vunpack.c.h.b16 %v3210
    %v3666 = vunpack.c.l.b16 %v3211
    %v3667 = vunpack.c.h.b16 %v3211
    %v3668 = vunpack.c.l.b16 %v3212
    %v3669 = vunpack.c.h.b16 %v3212
    %v3670 = vunpack.c.l.b16 %v3213
    %v3671 = vunpack.c.h.b16 %v3213
    %v3672 = vunpack.c.l.b16 %v3214
    %v3673 = vunpack.c.h.b16 %v3214
    %v3674 = vunpack.c.l.b16 %v3215
    %v3675 = vunpack.c.h.b16 %v3215
    %v3676 = vunpack.c.l.b16 %v3216
    %v3677 = vunpack.c.h.b16 %v3216
    %v3678 = vunpack.c.l.b16 %v3217
    %v3679 = vunpack.c.h.b16 %v3217
    %v3680 = vunpack.c.l.b16 %v3218
    %v3681 = vunpack.c.h.b16 %v3218
    %v3682 = vunpack.c.l.b16 %v3219
    %v3683 = vunpack.c.h.b16 %v3219
    %v3684 = vunpack.c.l.b16 %v3220
    %v3685 = vunpack.c.h.b16 %v3220
    %v3686 = vunpack.c.l.b16 %v3221
    %v3687 = vunpack.c.h.b16 %v3221
    %v3688 = vunpack.c.l.b16 %v3222
    %v3689 = vunpack.c.h.b16 %v3222
    %v3690 = vunpack.c.l.b16 %v3223
    %v3691 = vunpack.c.h.b16 %v3223
    %v3692 = vunpack.c.l.b16 %v3224
    %v3693 = vunpack.c.h.b16 %v3224
    %v3694 = vunpack.c.l.b16 %v3225
    %v3695 = vunpack.c.h.b16 %v3225
    %v3696 = vunpack.c.l.b16 %v3226
    %v3697 = vunpack.c.h.b16 %v3226
    %v3698 = vunpack.c.l.b16 %v3227
    %v3699 = vunpack.c.h.b16 %v3227
    %v3700 = vunpack.c.l.b16 %v3228
    %v3701 = vunpack.c.h.b16 %v3228
    %v3702 = vunpack.c.l.b16 %v3229
    %v3703 = vunpack.c.h.b16 %v3229
    %v3704 = vunpack.c.l.b16 %v3230
    %v3705 = vunpack.c.h.b16 %v3230
    %v3706 = vunpack.c.l.b16 %v3231
    %v3707 = vunpack.c.h.b16 %v3231
    %v3708 = vunpack.c.l.b16 %v3232
    %v3709 = vunpack.c.h.b16 %v3232
    %v3710 = vunpack.c.l.b16 %v3233
    %v3711 = vunpack.c.h.b16 %v3233
    %v3712 = vunpack.c.l.b16 %v3234
    %v3713 = vunpack.c.h.b16 %v3234
    %v3714 = vunpack.c.l.b16 %v3235
    %v3715 = vunpack.c.h.b16 %v3235
    %v3716 = vunpack.c.l.b16 %v3236
    %v3717 = vunpack.c.h.b16 %v3236
    %v3718 = vunpack.c.l.b16 %v3237
    %v3719 = vunpack.c.h.b16 %v3237
    %v3720 = vunpack.c.l.b16 %v3238
    %v3721 = vunpack.c.h.b16 %v3238
    %v3722 = vunpack.c.l.b16 %v3239
    %v3723 = vunpack.c.h.b16 %v3239
    %v3724 = vunpack.c.l.b16 %v3240
    %v3725 = vunpack.c.h.b16 %v3240
    %v3726 = vunpack.c.l.b16 %v3241
    %v3727 = vunpack.c.h.b16 %v3241
    %v3728 = vunpack.c.l.b16 %v3242
    %v3729 = vunpack.c.h.b16 %v3242
    %v3730 = vunpack.c.l.b16 %v3243
    %v3731 = vunpack.c.h.b16 %v3243
    %v3732 = vunpack.c.l.b16 %v3244
    %v3733 = vunpack.c.h.b16 %v3244
    %v3734 = vunpack.c.l.b16 %v3245
    %v3735 = vunpack.c.h.b16 %v3245
    %v3736 = vunpack.c.l.b16 %v3246
    %v3737 = vunpack.c.h.b16 %v3246
    %v3738 = vunpack.c.l.b16 %v3247
    %v3739 = vunpack.c.h.b16 %v3247
    %v3740 = vunpack.c.l.b16 %v3248
    %v3741 = vunpack.c.h.b16 %v3248
    %v3742 = vunpack.c.l.b16 %v3249
    %v3743 = vunpack.c.h.b16 %v3249
    %v3744 = vunpack.c.l.b16 %v3250
    %v3745 = vunpack.c.h.b16 %v3250
    %v3746 = vunpack.c.l.b16 %v3251
    %v3747 = vunpack.c.h.b16 %v3251
    %v3748 = vunpack.c.l.b16 %v3252
    %v3749 = vunpack.c.h.b16 %v3252
    %v3750 = vunpack.c.l.b16 %v3253
    %v3751 = vunpack.c.h.b16 %v3253
    %v3752 = vunpack.c.l.b16 %v3254
    %v3753 = vunpack.c.h.b16 %v3254
    %v3754 = vunpack.c.l.b16 %v3255
    %v3755 = vunpack.c.h.b16 %v3255
    %v3756 = vunpack.c.l.b16 %v3256
    %v3757 = vunpack.c.h.b16 %v3256
    %v3758 = vunpack.c.l.b16 %v3257
    %v3759 = vunpack.c.h.b16 %v3257
    %v3760 = vpack.c.b16 %v3444, %v3440
    %v3761 = vpack.c.b16 %v3445, %v3441
    %v3762 = vpack.c.b16 %v3446, %v3442
    %v3763 = vpack.c.b16 %v3447, %v3443
    %v3764 = vpack.c.b16 %v3452, %v3448
    %v3765 = vpack.c.b16 %v3453, %v3449
    %v3766 = vpack.c.b16 %v3454, %v3450
    %v3767 = vpack.c.b16 %v3455, %v3451
    %v3768 = vpack.c.b16 %v3460, %v3456
    %v3769 = vpack.c.b16 %v3461, %v3457
    %v3770 = vpack.c.b16 %v3462, %v3458
    %v3771 = vpack.c.b16 %v3463, %v3459
    %v3772 = vpack.c.b16 %v3468, %v3464
    %v3773 = vpack.c.b16 %v3469, %v3465
    %v3774 = vpack.c.b16 %v3470, %v3466
    %v3775 = vpack.c.b16 %v3471, %v3467
    %v3776 = vpack.c.b16 %v3476, %v3472
    %v3777 = vpack.c.b16 %v3477, %v3473
    %v3778 = vpack.c.b16 %v3478, %v3474
    %v3779 = vpack.c.b16 %v3479, %v3475
    %v3780 = vpack.c.b16 %v3484, %v3480
    %v3781 = vpack.c.b16 %v3485, %v3481
    %v3782 = vpack.c.b16 %v3486, %v3482
    %v3783 = vpack.c.b16 %v3487, %v3483
    %v3784 = vpack.c.b16 %v3492, %v3488
    %v3785 = vpack.c.b16 %v3493, %v3489
    %v3786 = vpack.c.b16 %v3494, %v3490
    %v3787 = vpack.c.b16 %v3495, %v3491
    %v3788 = vpack.c.b16 %v3500, %v3496
    %v3789 = vpack.c.b16 %v3501, %v3497
    %v3790 = vpack.c.b16 %v3502, %v3498
    %v3791 = vpack.c.b16 %v3503, %v3499
    %v3792 = vpack.c.b16 %v3508, %v3504
    %v3793 = vpack.c.b16 %v3509, %v3505
    %v3794 = vpack.c.b16 %v3510, %v3506
    %v3795 = vpack.c.b16 %v3511, %v3507
    %v3796 = vpack.c.b16 %v3516, %v3512
    %v3797 = vpack.c.b16 %v3517, %v3513
    %v3798 = vpack.c.b16 %v3518, %v3514
    %v3799 = vpack.c.b16 %v3519, %v3515
    %v3800 = vpack.c.b16 %v3524, %v3520
    %v3801 = vpack.c.b16 %v3525, %v3521
    %v3802 = vpack.c.b16 %v3526, %v3522
    %v3803 = vpack.c.b16 %v3527, %v3523
    %v3804 = vpack.c.b16 %v3532, %v3528
    %v3805 = vpack.c.b16 %v3533, %v3529
    %v3806 = vpack.c.b16 %v3534, %v3530
    %v3807 = vpack.c.b16 %v3535, %v3531
    %v3808 = vpack.c.b16 %v3540, %v3536
    %v3809 = vpack.c.b16 %v3541, %v3537
    %v3810 = vpack.c.b16 %v3542, %v3538
    %v3811 = vpack.c.b16 %v3543, %v3539
    %v3812 = vpack.c.b16 %v3548, %v3544
    %v3813 = vpack.c.b16 %v3549, %v3545
    %v3814 = vpack.c.b16 %v3550, %v3546
    %v3815 = vpack.c.b16 %v3551, %v3547
    %v3816 = vpack.c.b16 %v3556, %v3552
    %v3817 = vpack.c.b16 %v3557, %v3553
    %v3818 = vpack.c.b16 %v3558, %v3554
    %v3819 = vpack.c.b16 %v3559, %v3555
    %v3820 = vpack.c.b16 %v3564, %v3560
    %v3821 = vpack.c.b16 %v3565, %v3561
    %v3822 = vpack.c.b16 %v3566, %v3562
    %v3823 = vpack.c.b16 %v3567, %v3563
    %v3824 = vpack.c.b16 %v3572, %v3568
    %v3825 = vpack.c.b16 %v3573, %v3569
    %v3826 = vpack.c.b16 %v3574, %v3570
    %v3827 = vpack.c.b16 %v3575, %v3571
    %v3828 = vpack.c.b16 %v3580, %v3576
    %v3829 = vpack.c.b16 %v3581, %v3577
    %v3830 = vpack.c.b16 %v3582, %v3578
    %v3831 = vpack.c.b16 %v3583, %v3579
    %v3832 = vpack.c.b16 %v3588, %v3584
    %v3833 = vpack.c.b16 %v3589, %v3585
    %v3834 = vpack.c.b16 %v3590, %v3586
    %v3835 = vpack.c.b16 %v3591, %v3587
    %v3836 = vpack.c.b16 %v3596, %v3592
    %v3837 = vpack.c.b16 %v3597, %v3593
    %v3838 = vpack.c.b16 %v3598, %v3594
    %v3839 = vpack.c.b16 %v3599, %v3595
    %v3840 = vpack.c.b16 %v3604, %v3600
    %v3841 = vpack.c.b16 %v3605, %v3601
    %v3842 = vpack.c.b16 %v3606, %v3602
    %v3843 = vpack.c.b16 %v3607, %v3603
    %v3844 = vpack.c.b16 %v3612, %v3608
    %v3845 = vpack.c.b16 %v3613, %v3609
    %v3846 = vpack.c.b16 %v3614, %v3610
    %v3847 = vpack.c.b16 %v3615, %v3611
    %v3848 = vpack.c.b16 %v3620, %v3616
    %v3849 = vpack.c.b16 %v3621, %v3617
    %v3850 = vpack.c.b16 %v3622, %v3618
    %v3851 = vpack.c.b16 %v3623, %v3619
    %v3852 = vpack.c.b16 %v3628, %v3624
    %v3853 = vpack.c.b16 %v3629, %v3625
    %v3854 = vpack.c.b16 %v3630, %v3626
    %v3855 = vpack.c.b16 %v3631, %v3627
    %v3856 = vpack.c.b16 %v3636, %v3632
    %v3857 = vpack.c.b16 %v3637, %v3633
    %v3858 = vpack.c.b16 %v3638, %v3634
    %v3859 = vpack.c.b16 %v3639, %v3635
    %v3860 = vpack.c.b16 %v3644, %v3640
    %v3861 = vpack.c.b16 %v3645, %v3641
    %v3862 = vpack.c.b16 %v3646, %v3642
    %v3863 = vpack.c.b16 %v3647, %v3643
    %v3864 = vpack.c.b16 %v3652, %v3648
    %v3865 = vpack.c.b16 %v3653, %v3649
    %v3866 = vpack.c.b16 %v3654, %v3650
    %v3867 = vpack.c.b16 %v3655, %v3651
    %v3868 = vpack.c.b16 %v3660, %v3656
    %v3869 = vpack.c.b16 %v3661, %v3657
    %v3870 = vpack.c.b16 %v3662, %v3658
    %v3871 = vpack.c.b16 %v3663, %v3659
    %v3872 = vpack.c.b16 %v3668, %v3664
    %v3873 = vpack.c.b16 %v3669, %v3665
    %v3874 = vpack.c.b16 %v3670, %v3666
    %v3875 = vpack.c.b16 %v3671, %v3667
    %v3876 = vpack.c.b16 %v3676, %v3672
    %v3877 = vpack.c.b16 %v3677, %v3673
    %v3878 = vpack.c.b16 %v3678, %v3674
    %v3879 = vpack.c.b16 %v3679, %v3675
    %v3880 = vpack.c.b16 %v3684, %v3680
    %v3881 = vpack.c.b16 %v3685, %v3681
    %v3882 = vpack.c.b16 %v3686, %v3682
    %v3883 = vpack.c.b16 %v3687, %v3683
    %v3884 = vpack.c.b16 %v3692, %v3688
    %v3885 = vpack.c.b16 %v3693, %v3689
    %v3886 = vpack.c.b16 %v3694, %v3690
    %v3887 = vpack.c.b16 %v3695, %v3691
    %v3888 = vpack.c.b16 %v3700, %v3696
    %v3889 = vpack.c.b16 %v3701, %v3697
    %v3890 = vpack.c.b16 %v3702, %v3698
    %v3891 = vpack.c.b16 %v3703, %v3699
    %v3892 = vpack.c.b16 %v3708, %v3704
    %v3893 = vpack.c.b16 %v3709, %v3705
    %v3894 = vpack.c.b16 %v3710, %v3706
    %v3895 = vpack.c.b16 %v3711, %v3707
    %v3896 = vpack.c.b16 %v3716, %v3712
    %v3897 = vpack.c.b16 %v3717, %v3713
    %v3898 = vpack.c.b16 %v3718, %v3714
    %v3899 = vpack.c.b16 %v3719, %v3715
    %v3900 = vpack.c.b16 %v3724, %v3720
    %v3901 = vpack.c.b16 %v3725, %v3721
    %v3902 = vpack.c.b16 %v3726, %v3722
    %v3903 = vpack.c.b16 %v3727, %v3723
    %v3904 = vpack.c.b16 %v3732, %v3728
    %v3905 = vpack.c.b16 %v3733, %v3729
    %v3906 = vpack.c.b16 %v3734, %v3730
    %v3907 = vpack.c.b16 %v3735, %v3731
    %v3908 = vpack.c.b16 %v3740, %v3736
    %v3909 = vpack.c.b16 %v3741, %v3737
    %v3910 = vpack.c.b16 %v3742, %v3738
    %v3911 = vpack.c.b16 %v3743, %v3739
    %v3912 = vpack.c.b16 %v3748, %v3744
    %v3913 = vpack.c.b16 %v3749, %v3745
    %v3914 = vpack.c.b16 %v3750, %v3746
    %v3915 = vpack.c.b16 %v3751, %v3747
    %v3916 = vpack.c.b16 %v3756, %v3752
    %v3917 = vpack.c.b16 %v3757, %v3753
    %v3918 = vpack.c.b16 %v3758, %v3754
    %v3919 = vpack.c.b16 %v3759, %v3755
    %4080 = vmatprep.subr.bf16.mxu0 %v3761
    %4081 = vmatpush1.bf16.msra.mxu0 %v3760
    %4082 = vmatprep.subr.bf16.mxu0 %v3765
    %4083 = vmatpush1.bf16.msra.mxu0 %v3764
    %4084 = vmatprep.subr.bf16.mxu0 %v3769
    %4085 = vmatpush1.bf16.msra.mxu0 %v3768
    %4086 = vmatprep.subr.bf16.mxu0 %v3773
    %4087 = vmatpush1.bf16.msra.mxu0 %v3772
    %4088 = vmatprep.subr.bf16.mxu0 %v3777
    %4089 = vmatpush1.bf16.msra.mxu0 %v3776
    %4090 = vmatprep.subr.bf16.mxu0 %v3781
    %4091 = vmatpush1.bf16.msra.mxu0 %v3780
    %4092 = vmatprep.subr.bf16.mxu0 %v3785
    %4093 = vmatpush1.bf16.msra.mxu0 %v3784
    %4094 = vmatprep.subr.bf16.mxu0 %v3789
    %4095 = vmatpush1.bf16.msra.mxu0 %v3788
    %4096 = vmatprep.subr.bf16.mxu0 %v3793
    %4097 = vmatpush1.bf16.msra.mxu0 %v3792
    %4098 = vmatprep.subr.bf16.mxu0 %v3797
    %4099 = vmatpush1.bf16.msra.mxu0 %v3796
    %4100 = vmatprep.subr.bf16.mxu0 %v3801
    %4101 = vmatpush1.bf16.msra.mxu0 %v3800
    %4102 = vmatprep.subr.bf16.mxu0 %v3805
    %4103 = vmatpush1.bf16.msra.mxu0 %v3804
    %4104 = vmatprep.subr.bf16.mxu0 %v3809
    %4105 = vmatpush1.bf16.msra.mxu0 %v3808
    %4106 = vmatprep.subr.bf16.mxu0 %v3813
    %4107 = vmatpush1.bf16.msra.mxu0 %v3812
    %4108 = vmatprep.subr.bf16.mxu0 %v3817
    %4109 = vmatpush1.bf16.msra.mxu0 %v3816
    %4110 = vmatprep.subr.bf16.mxu0 %v3821
    %4111 = vmatpush1.bf16.msra.mxu0 %v3820
    %4112 = vmatprep.mubr.bf16.mxu0 %v3094
    %4113 = vmatmul.mubr.bf16.gmra.mrb[0].mxu0 %v3093
    %v4114 = vpop.f32.mrb[0].mxu0
    %v4115 = vadd.f32 %v3263, %v4114
    %v4116 = vpop.f32.mrb[0].mxu0
    %v4117 = vadd.f32 %v3267, %v4116
    %v4118 = vpop.f32.mrb[0].mxu0
    %v4119 = vpop.f32.mrb[0].mxu0
    %4120 = vdwg.mxu0
    %4121 = vmatprep.subr.bf16.mxu0 %v3825
    %4122 = vmatpush1.bf16.msra.mxu0 %v3824
    %4123 = vmatprep.subr.bf16.mxu0 %v3829
    %4124 = vmatpush1.bf16.msra.mxu0 %v3828
    %4125 = vmatprep.subr.bf16.mxu0 %v3833
    %4126 = vmatpush1.bf16.msra.mxu0 %v3832
    %4127 = vmatprep.subr.bf16.mxu0 %v3837
    %4128 = vmatpush1.bf16.msra.mxu0 %v3836
    %4129 = vmatprep.subr.bf16.mxu0 %v3841
    %4130 = vmatpush1.bf16.msra.mxu0 %v3840
    %4131 = vmatprep.subr.bf16.mxu0 %v3845
    %4132 = vmatpush1.bf16.msra.mxu0 %v3844
    %4133 = vmatprep.subr.bf16.mxu0 %v3849
    %4134 = vmatpush1.bf16.msra.mxu0 %v3848
    %4135 = vmatprep.subr.bf16.mxu0 %v3853
    %4136 = vmatpush1.bf16.msra.mxu0 %v3852
    %4137 = vmatprep.subr.bf16.mxu0 %v3857
    %4138 = vmatpush1.bf16.msra.mxu0 %v3856
    %4139 = vmatprep.subr.bf16.mxu0 %v3861
    %4140 = vmatpush1.bf16.msra.mxu0 %v3860
    %4141 = vmatprep.subr.bf16.mxu0 %v3865
    %4142 = vmatpush1.bf16.msra.mxu0 %v3864
    %4143 = vmatprep.subr.bf16.mxu0 %v3869
    %4144 = vmatpush1.bf16.msra.mxu0 %v3868
    %4145 = vmatprep.subr.bf16.mxu0 %v3873
    %4146 = vmatpush1.bf16.msra.mxu0 %v3872
    %4147 = vmatprep.subr.bf16.mxu0 %v3877
    %4148 = vmatpush1.bf16.msra.mxu0 %v3876
    %4149 = vmatprep.subr.bf16.mxu0 %v3881
    %4150 = vmatpush1.bf16.msra.mxu0 %v3880
    %4151 = vmatprep.subr.bf16.mxu0 %v3885
    %4152 = vmatpush1.bf16.msra.mxu0 %v3884
    %4153 = vmatprep.mubr.bf16.mxu0 %v3096
    %4154 = vmatmul.mubr.bf16.gmra.mrb[0].mxu0 %v3095
    %v4155 = vpop.f32.mrb[0].mxu0
    %v4156 = vadd.f32 %v4115, %v4155
    %v4157 = vpop.f32.mrb[0].mxu0
    %v4158 = vadd.f32 %v4117, %v4157
    %v4159 = vpop.f32.mrb[0].mxu0
    %v4160 = vpop.f32.mrb[0].mxu0
    %4161 = vdwg.mxu0
    %4162 = vmatprep.subr.bf16.mxu0 %v3889
    %4163 = vmatpush1.bf16.msra.mxu0 %v3888
    %4164 = vmatprep.subr.bf16.mxu0 %v3893
    %4165 = vmatpush1.bf16.msra.mxu0 %v3892
    %4166 = vmatprep.subr.bf16.mxu0 %v3897
    %4167 = vmatpush1.bf16.msra.mxu0 %v3896
    %4168 = vmatprep.subr.bf16.mxu0 %v3901
    %4169 = vmatpush1.bf16.msra.mxu0 %v3900
    %4170 = vmatprep.subr.bf16.mxu0 %v3905
    %4171 = vmatpush1.bf16.msra.mxu0 %v3904
    %4172 = vmatprep.subr.bf16.mxu0 %v3909
    %4173 = vmatpush1.bf16.msra.mxu0 %v3908
    %4174 = vmatprep.subr.bf16.mxu0 %v3913
    %4175 = vmatpush1.bf16.msra.mxu0 %v3912
    %4176 = vmatprep.subr.bf16.mxu0 %v3917
    %4177 = vmatpush1.bf16.msra.mxu0 %v3916
    %4178 = vmatprep.subr.bf16.mxu0 0
    %4179 = vmatpush1.bf16.msra.mxu0 0
    %4180 = vmatprep.subr.bf16.mxu0 0
    %4181 = vmatpush1.bf16.msra.mxu0 0
    %4182 = vmatprep.subr.bf16.mxu0 0
    %4183 = vmatpush1.bf16.msra.mxu0 0
    %4184 = vmatprep.subr.bf16.mxu0 0
    %4185 = vmatpush1.bf16.msra.mxu0 0
    %4186 = vmatprep.subr.bf16.mxu0 0
    %4187 = vmatpush1.bf16.msra.mxu0 0
    %4188 = vmatprep.subr.bf16.mxu0 0
    %4189 = vmatpush1.bf16.msra.mxu0 0
    %4190 = vmatprep.subr.bf16.mxu0 0
    %4191 = vmatpush1.bf16.msra.mxu0 0
    %4192 = vmatprep.subr.bf16.mxu0 0
    %4193 = vmatpush1.bf16.msra.mxu0 0
    %4194 = vmatprep.mubr.bf16.mxu0 0
    %4195 = vmatmul.mubr.bf16.gmra.mrb[0].mxu0 %v3097
    %v4196 = vpop.f32.mrb[0].mxu0
    %v4197 = vadd.f32 %v4156, %v4196
    %v4198 = vpop.f32.mrb[0].mxu0
    %v4199 = vadd.f32 %v4158, %v4198
    %v4200 = vpop.f32.mrb[0].mxu0
    %v4201 = vpop.f32.mrb[0].mxu0
    %4202 = vdwg.mxu0
    %4203 = vmatprep.subr.bf16.mxu0 %v3763
    %4204 = vmatpush1.bf16.msra.mxu0 %v3762
    %4205 = vmatprep.subr.bf16.mxu0 %v3767
    %4206 = vmatpush1.bf16.msra.mxu0 %v3766
    %4207 = vmatprep.subr.bf16.mxu0 %v3771
    %4208 = vmatpush1.bf16.msra.mxu0 %v3770
    %4209 = vmatprep.subr.bf16.mxu0 %v3775
    %4210 = vmatpush1.bf16.msra.mxu0 %v3774
    %4211 = vmatprep.subr.bf16.mxu0 %v3779
    %4212 = vmatpush1.bf16.msra.mxu0 %v3778
    %4213 = vmatprep.subr.bf16.mxu0 %v3783
    %4214 = vmatpush1.bf16.msra.mxu0 %v3782
    %4215 = vmatprep.subr.bf16.mxu0 %v3787
    %4216 = vmatpush1.bf16.msra.mxu0 %v3786
    %4217 = vmatprep.subr.bf16.mxu0 %v3791
    %4218 = vmatpush1.bf16.msra.mxu0 %v3790
    %4219 = vmatprep.subr.bf16.mxu0 %v3795
    %4220 = vmatpush1.bf16.msra.mxu0 %v3794
    %4221 = vmatprep.subr.bf16.mxu0 %v3799
    %4222 = vmatpush1.bf16.msra.mxu0 %v3798
    %4223 = vmatprep.subr.bf16.mxu0 %v3803
    %4224 = vmatpush1.bf16.msra.mxu0 %v3802
    %4225 = vmatprep.subr.bf16.mxu0 %v3807
    %4226 = vmatpush1.bf16.msra.mxu0 %v3806
    %4227 = vmatprep.subr.bf16.mxu0 %v3811
    %4228 = vmatpush1.bf16.msra.mxu0 %v3810
    %4229 = vmatprep.subr.bf16.mxu0 %v3815
    %4230 = vmatpush1.bf16.msra.mxu0 %v3814
    %4231 = vmatprep.subr.bf16.mxu0 %v3819
    %4232 = vmatpush1.bf16.msra.mxu0 %v3818
    %4233 = vmatprep.subr.bf16.mxu0 %v3823
    %4234 = vmatpush1.bf16.msra.mxu0 %v3822
    %4235 = vmatprep.mubr.bf16.mxu0 %v3094
    %4236 = vmatmul.mubr.bf16.gmra.mrb[0].mxu0 %v3093
    %v4237 = vpop.f32.mrb[0].mxu0
    %v4238 = vadd.f32 %v3271, %v4237
    %v4239 = vpop.f32.mrb[0].mxu0
    %v4240 = vadd.f32 %v3275, %v4239
    %v4241 = vpop.f32.mrb[0].mxu0
    %v4242 = vpop.f32.mrb[0].mxu0
    %4243 = vdwg.mxu0
    %4244 = vmatprep.subr.bf16.mxu0 %v3827
    %4245 = vmatpush1.bf16.msra.mxu0 %v3826
    %4246 = vmatprep.subr.bf16.mxu0 %v3831
    %4247 = vmatpush1.bf16.msra.mxu0 %v3830
    %4248 = vmatprep.subr.bf16.mxu0 %v3835
    %4249 = vmatpush1.bf16.msra.mxu0 %v3834
    %4250 = vmatprep.subr.bf16.mxu0 %v3839
    %4251 = vmatpush1.bf16.msra.mxu0 %v3838
    %4252 = vmatprep.subr.bf16.mxu0 %v3843
    %4253 = vmatpush1.bf16.msra.mxu0 %v3842
    %4254 = vmatprep.subr.bf16.mxu0 %v3847
    %4255 = vmatpush1.bf16.msra.mxu0 %v3846
    %4256 = vmatprep.subr.bf16.mxu0 %v3851
    %4257 = vmatpush1.bf16.msra.mxu0 %v3850
    %4258 = vmatprep.subr.bf16.mxu0 %v3855
    %4259 = vmatpush1.bf16.msra.mxu0 %v3854
    %4260 = vmatprep.subr.bf16.mxu0 %v3859
    %4261 = vmatpush1.bf16.msra.mxu0 %v3858
    %4262 = vmatprep.subr.bf16.mxu0 %v3863
    %4263 = vmatpush1.bf16.msra.mxu0 %v3862
    %4264 = vmatprep.subr.bf16.mxu0 %v3867
    %4265 = vmatpush1.bf16.msra.mxu0 %v3866
    %4266 = vmatprep.subr.bf16.mxu0 %v3871
    %4267 = vmatpush1.bf16.msra.mxu0 %v3870
    %4268 = vmatprep.subr.bf16.mxu0 %v3875
    %4269 = vmatpush1.bf16.msra.mxu0 %v3874
    %4270 = vmatprep.subr.bf16.mxu0 %v3879
    %4271 = vmatpush1.bf16.msra.mxu0 %v3878
    %4272 = vmatprep.subr.bf16.mxu0 %v3883
    %4273 = vmatpush1.bf16.msra.mxu0 %v3882
    %4274 = vmatprep.subr.bf16.mxu0 %v3887
    %4275 = vmatpush1.bf16.msra.mxu0 %v3886
    %4276 = vmatprep.mubr.bf16.mxu0 %v3096
    %4277 = vmatmul.mubr.bf16.gmra.mrb[0].mxu0 %v3095
    %v4278 = vpop.f32.mrb[0].mxu0
    %v4279 = vadd.f32 %v4238, %v4278
    %v4280 = vpop.f32.mrb[0].mxu0
    %v4281 = vadd.f32 %v4240, %v4280
    %v4282 = vpop.f32.mrb[0].mxu0
    %v4283 = vpop.f32.mrb[0].mxu0
    %4284 = vdwg.mxu0
    %4285 = vmatprep.subr.bf16.mxu0 %v3891
    %4286 = vmatpush1.bf16.msra.mxu0 %v3890
    %4287 = vmatprep.subr.bf16.mxu0 %v3895
    %4288 = vmatpush1.bf16.msra.mxu0 %v3894
    %4289 = vmatprep.subr.bf16.mxu0 %v3899
    %4290 = vmatpush1.bf16.msra.mxu0 %v3898
    %4291 = vmatprep.subr.bf16.mxu0 %v3903
    %4292 = vmatpush1.bf16.msra.mxu0 %v3902
    %4293 = vmatprep.subr.bf16.mxu0 %v3907
    %4294 = vmatpush1.bf16.msra.mxu0 %v3906
    %4295 = vmatprep.subr.bf16.mxu0 %v3911
    %4296 = vmatpush1.bf16.msra.mxu0 %v3910
    %4297 = vmatprep.subr.bf16.mxu0 %v3915
    %4298 = vmatpush1.bf16.msra.mxu0 %v3914
    %4299 = vmatprep.subr.bf16.mxu0 %v3919
    %4300 = vmatpush1.bf16.msra.mxu0 %v3918
    %4301 = vmatprep.subr.bf16.mxu0 0
    %4302 = vmatpush1.bf16.msra.mxu0 0
    %4303 = vmatprep.subr.bf16.mxu0 0
    %4304 = vmatpush1.bf16.msra.mxu0 0
    %4305 = vmatprep.subr.bf16.mxu0 0
    %4306 = vmatpush1.bf16.msra.mxu0 0
    %4307 = vmatprep.subr.bf16.mxu0 0
    %4308 = vmatpush1.bf16.msra.mxu0 0
    %4309 = vmatprep.subr.bf16.mxu0 0
    %4310 = vmatpush1.bf16.msra.mxu0 0
    %4311 = vmatprep.subr.bf16.mxu0 0
    %4312 = vmatpush1.bf16.msra.mxu0 0
    %4313 = vmatprep.subr.bf16.mxu0 0
    %4314 = vmatpush1.bf16.msra.mxu0 0
    %4315 = vmatprep.subr.bf16.mxu0 0
    %4316 = vmatpush1.bf16.msra.mxu0 0
    %4317 = vmatprep.mubr.bf16.mxu0 0
    %4318 = vmatmul.mubr.bf16.gmra.mrb[0].mxu0 %v3097
    %v4319 = vpop.f32.mrb[0].mxu0
    %v4320 = vadd.f32 %v4279, %v4319
    %v4321 = vpop.f32.mrb[0].mxu0
    %v4322 = vadd.f32 %v4281, %v4321
    %v4323 = vpop.f32.mrb[0].mxu0
    %v4324 = vpop.f32.mrb[0].mxu0
    %4325 = vdwg.mxu0
    %v4326 = vmax.f32 %v4197, 0.0
    %v4327 = vmax.f32 %v4199, 0.0
    %v4328 = vmax.f32 %v4320, 0.0
    %v4329 = vmax.f32 %v4322, 0.0
    %v4330 = vmul.u32 %v337, 512
    %v4331 = vadd.s32 %v4330, %v339
    %v4332 = vadd.s32 %v4330, %v340
    %v4333 = vadd.s32 %v4330, %v341
    %v4334 = vadd.s32 %v4330, %v342
    %s4335 = sadd.s32 %s325, 3
    %s4336 = smul.u32 %s4335, 1640531527
    %v4337 = vstv %s4336
    %v4338 = vadd.s32 %v4331, %v4337
    %v4339 = vadd.s32 %v4332, %v4337
    %v4340 = vadd.s32 %v4333, %v4337
    %v4341 = vadd.s32 %v4334, %v4337
    %v4342 = vmul.u32 %v4338, 668265263
    %v4343 = vmul.u32 %v4339, 668265263
    %v4344 = vmul.u32 %v4340, 668265263
    %v4345 = vmul.u32 %v4341, 668265263
    %v4346 = vshra.s32 %v4342, 15
    %v4347 = vshra.s32 %v4343, 15
    %v4348 = vshra.s32 %v4344, 15
    %v4349 = vshra.s32 %v4345, 15
    %v4350 = vand.u32 %v4346, 131071
    %v4351 = vand.u32 %v4347, 131071
    %v4352 = vand.u32 %v4348, 131071
    %v4353 = vand.u32 %v4349, 131071
    %v4354 = vxor.u32 %v4342, %v4350
    %v4355 = vxor.u32 %v4343, %v4351
    %v4356 = vxor.u32 %v4344, %v4352
    %v4357 = vxor.u32 %v4345, %v4353
    %v4358 = vmul.u32 %v4354, 625341585
    %v4359 = vmul.u32 %v4355, 625341585
    %v4360 = vmul.u32 %v4356, 625341585
    %v4361 = vmul.u32 %v4357, 625341585
    %v4362 = vshra.s32 %v4358, 13
    %v4363 = vshra.s32 %v4359, 13
    %v4364 = vshra.s32 %v4360, 13
    %v4365 = vshra.s32 %v4361, 13
    %v4366 = vand.u32 %v4362, 524287
    %v4367 = vand.u32 %v4363, 524287
    %v4368 = vand.u32 %v4364, 524287
    %v4369 = vand.u32 %v4365, 524287
    %v4370 = vxor.u32 %v4358, %v4366
    %v4371 = vxor.u32 %v4359, %v4367
    %v4372 = vxor.u32 %v4360, %v4368
    %v4373 = vxor.u32 %v4361, %v4369
    %v4374 = vmul.u32 %v4370, 1640531527
    %v4375 = vmul.u32 %v4371, 1640531527
    %v4376 = vmul.u32 %v4372, 1640531527
    %v4377 = vmul.u32 %v4373, 1640531527
    %v4378 = vshra.s32 %v4374, 16
    %v4379 = vshra.s32 %v4375, 16
    %v4380 = vshra.s32 %v4376, 16
    %v4381 = vshra.s32 %v4377, 16
    %v4382 = vand.u32 %v4378, 65535
    %v4383 = vand.u32 %v4379, 65535
    %v4384 = vand.u32 %v4380, 65535
    %v4385 = vand.u32 %v4381, 65535
    %v4386 = vxor.u32 %v4374, %v4382
    %v4387 = vxor.u32 %v4375, %v4383
    %v4388 = vxor.u32 %v4376, %v4384
    %v4389 = vxor.u32 %v4377, %v4385
    %v4390 = vand.u32 %v4386, 8388607
    %v4391 = vand.u32 %v4387, 8388607
    %v4392 = vand.u32 %v4388, 8388607
    %v4393 = vand.u32 %v4389, 8388607
    %v4394 = vcvt.s32.f32 %v4390
    %v4395 = vcvt.s32.f32 %v4391
    %v4396 = vcvt.s32.f32 %v4392
    %v4397 = vcvt.s32.f32 %v4393
    %v4398 = vmul.f32 %v4394, 1.1920929e-07
    %v4399 = vmul.f32 %v4395, 1.1920929e-07
    %v4400 = vmul.f32 %v4396, 1.1920929e-07
    %v4401 = vmul.f32 %v4397, 1.1920929e-07
    %v4402 = vadd.f32 %v4398, 1e-07
    %v4403 = vadd.f32 %v4399, 1e-07
    %v4404 = vadd.f32 %v4400, 1e-07
    %v4405 = vadd.f32 %v4401, 1e-07
    %v4406 = vsub.f32 1.0, %v4398
    %v4407 = vsub.f32 1.0, %v4399
    %v4408 = vsub.f32 1.0, %v4400
    %v4409 = vsub.f32 1.0, %v4401
    %v4410 = vadd.f32 %v4406, 1e-07
    %v4411 = vadd.f32 %v4407, 1e-07
    %v4412 = vadd.f32 %v4408, 1e-07
    %v4413 = vadd.f32 %v4409, 1e-07
    %v4414 = vrcp.pop %v4410
    %v4415 = vmul.f32 %v4402, %v4414
    %v4416 = vrcp.pop %v4411
    %v4417 = vmul.f32 %v4403, %v4416
    %v4418 = vrcp.pop %v4412
    %v4419 = vmul.f32 %v4404, %v4418
    %v4420 = vrcp.pop %v4413
    %v4421 = vmul.f32 %v4405, %v4420
    %v4422 = vlog2.pop %v4415
    %v4423 = vmul.f32 %v4422, 0.6931472
    %v4424 = vlog2.pop %v4417
    %v4425 = vmul.f32 %v4424, 0.6931472
    %v4426 = vlog2.pop %v4419
    %v4427 = vmul.f32 %v4426, 0.6931472
    %v4428 = vlog2.pop %v4421
    %v4429 = vmul.f32 %v4428, 0.6931472
    %v4430 = vadd.f32 %v4423, -2.1972237
    %v4431 = vadd.f32 %v4425, -2.1972237
    %v4432 = vadd.f32 %v4427, -2.1972237
    %v4433 = vadd.f32 %v4429, -2.1972237
    %v4434 = vmul.f32 %v4430, 10.0
    %v4435 = vmul.f32 %v4431, 10.0
    %v4436 = vmul.f32 %v4432, 10.0
    %v4437 = vmul.f32 %v4433, 10.0
    %v4438 = vxor.u32 %v4434, 2147483648
    %v4439 = vxor.u32 %v4435, 2147483648
    %v4440 = vxor.u32 %v4436, 2147483648
    %v4441 = vxor.u32 %v4437, 2147483648
    %v4442 = vmul.f32 %v4438, 1.442695
    %v4443 = vpow.pop %v4442
    %v4444 = vmul.f32 %v4439, 1.442695
    %v4445 = vpow.pop %v4444
    %v4446 = vmul.f32 %v4440, 1.442695
    %v4447 = vpow.pop %v4446
    %v4448 = vmul.f32 %v4441, 1.442695
    %v4449 = vpow.pop %v4448
    %v4450 = vadd.f32 %v4443, 1.0
    %v4451 = vadd.f32 %v4445, 1.0
    %v4452 = vadd.f32 %v4447, 1.0
    %v4453 = vadd.f32 %v4449, 1.0
    %v4454 = vrcp.pop %v4450
    %v4455 = vmul.f32 1.0, %v4454
    %v4456 = vrcp.pop %v4451
    %v4457 = vmul.f32 1.0, %v4456
    %v4458 = vrcp.pop %v4452
    %v4459 = vmul.f32 1.0, %v4458
    %v4460 = vrcp.pop %v4453
    %v4461 = vmul.f32 1.0, %v4460
    %v4462 = vsub.f32 1.0, %v4455
    %v4463 = vsub.f32 1.0, %v4457
    %v4464 = vsub.f32 1.0, %v4459
    %v4465 = vsub.f32 1.0, %v4461
    %v4466 = vmul.f32 %v4326, %v4462
    %v4467 = vmul.f32 %v4327, %v4463
    %v4468 = vmul.f32 %v4328, %v4464
    %v4469 = vmul.f32 %v4329, %v4465
    %v4470 = vmul.f32 %v4466, 1.1111112
    %v4471 = vmul.f32 %v4467, 1.1111112
    %v4472 = vmul.f32 %v4468, 1.1111112
    %v4473 = vmul.f32 %v4469, 1.1111112
    %v4474 = vpack.c.bf16 %v4470, %v4470
    %v4475 = vpack.c.bf16 %v4471, %v4471
    %v4476 = vpack.c.bf16 %v4472, %v4472
    %v4477 = vpack.c.bf16 %v4473, %v4473
    %v4478 = vld [vmem:[#allocation11] sm:$0xff]
    %v4479 = vld [vmem:[#allocation11 + $0x8] sm:$0xf]
    %v4480 = vld [vmem:[#allocation11 + $0xc] sm:$0xff]
    %v4481 = vld [vmem:[#allocation11 + $0x14] sm:$0xf]
    %v4482 = vld [vmem:[#allocation11 + $0x18] sm:$0xff]
    %v4483 = vld [vmem:[#allocation11 + $0x20] sm:$0xf]
    %v4484 = vld [vmem:[#allocation11 + $0x24] sm:$0xff]
    %v4485 = vld [vmem:[#allocation11 + $0x2c] sm:$0xf]
    %v4486 = vld [vmem:[#allocation11 + $0x30] sm:$0xff]
    %v4487 = vld [vmem:[#allocation11 + $0x38] sm:$0xf]
    %v4488 = vld [vmem:[#allocation11 + $0x3c] sm:$0xff]
    %v4489 = vld [vmem:[#allocation11 + $0x44] sm:$0xf]
    %v4490 = vld [vmem:[#allocation11 + $0x48] sm:$0xff]
    %v4491 = vld [vmem:[#allocation11 + $0x50] sm:$0xf]
    %v4492 = vld [vmem:[#allocation11 + $0x54] sm:$0xff]
    %v4493 = vld [vmem:[#allocation11 + $0x5c] sm:$0xf]
    %v4494 = vld [vmem:[#allocation11 + $0x60] sm:$0xff]
    %v4495 = vld [vmem:[#allocation11 + $0x68] sm:$0xf]
    %v4496 = vld [vmem:[#allocation11 + $0x6c] sm:$0xff]
    %v4497 = vld [vmem:[#allocation11 + $0x74] sm:$0xf]
    %v4498 = vld [vmem:[#allocation11 + $0x78] sm:$0xff]
    %v4499 = vld [vmem:[#allocation11 + $0x80] sm:$0xf]
    %v4500 = vld [vmem:[#allocation11 + $0x84] sm:$0xff]
    %v4501 = vld [vmem:[#allocation11 + $0x8c] sm:$0xf]
    %v4502 = vld [vmem:[#allocation11 + $0x90] sm:$0xff]
    %v4503 = vld [vmem:[#allocation11 + $0x98] sm:$0xf]
    %v4504 = vld [vmem:[#allocation11 + $0x9c] sm:$0xff]
    %v4505 = vld [vmem:[#allocation11 + $0xa4] sm:$0xf]
    %v4506 = vld [vmem:[#allocation11 + $0xa8] sm:$0xff]
    %v4507 = vld [vmem:[#allocation11 + $0xb0] sm:$0xf]
    %v4508 = vld [vmem:[#allocation11 + $0xb4] sm:$0xff]
    %v4509 = vld [vmem:[#allocation11 + $0xbc] sm:$0xf]
    %v4510 = vld [vmem:[#allocation11 + $0xc0] sm:$0xff]
    %v4511 = vld [vmem:[#allocation11 + $0xc8] sm:$0xf]
    %v4512 = vld [vmem:[#allocation11 + $0xcc] sm:$0xff]
    %v4513 = vld [vmem:[#allocation11 + $0xd4] sm:$0xf]
    %v4514 = vld [vmem:[#allocation11 + $0xd8] sm:$0xff]
    %v4515 = vld [vmem:[#allocation11 + $0xe0] sm:$0xf]
    %v4516 = vld [vmem:[#allocation11 + $0xe4] sm:$0xff]
    %v4517 = vld [vmem:[#allocation11 + $0xec] sm:$0xf]
    %v4518 = vld [vmem:[#allocation11 + $0xf0] sm:$0xff]
    %v4519 = vld [vmem:[#allocation11 + $0xf8] sm:$0xf]
    %v4520 = vld [vmem:[#allocation11 + $0xfc] sm:$0xff]
    %v4521 = vld [vmem:[#allocation11 + $0x104] sm:$0xf]
    %v4522 = vld [vmem:[#allocation11 + $0x108] sm:$0xff]
    %v4523 = vld [vmem:[#allocation11 + $0x110] sm:$0xf]
    %v4524 = vld [vmem:[#allocation11 + $0x114] sm:$0xff]
    %v4525 = vld [vmem:[#allocation11 + $0x11c] sm:$0xf]
    %v4526 = vld [vmem:[#allocation11 + $0x120] sm:$0xff]
    %v4527 = vld [vmem:[#allocation11 + $0x128] sm:$0xf]
    %v4528 = vld [vmem:[#allocation11 + $0x12c] sm:$0xff]
    %v4529 = vld [vmem:[#allocation11 + $0x134] sm:$0xf]
    %v4530 = vld [vmem:[#allocation11 + $0x138] sm:$0xff]
    %v4531 = vld [vmem:[#allocation11 + $0x140] sm:$0xf]
    %v4532 = vld [vmem:[#allocation11 + $0x144] sm:$0xff]
    %v4533 = vld [vmem:[#allocation11 + $0x14c] sm:$0xf]
    %v4534 = vld [vmem:[#allocation11 + $0x150] sm:$0xff]
    %v4535 = vld [vmem:[#allocation11 + $0x158] sm:$0xf]
    %v4536 = vld [vmem:[#allocation11 + $0x15c] sm:$0xff]
    %v4537 = vld [vmem:[#allocation11 + $0x164] sm:$0xf]
    %v4538 = vld [vmem:[#allocation11 + $0x168] sm:$0xff]
    %v4539 = vld [vmem:[#allocation11 + $0x170] sm:$0xf]
    %v4540 = vld [vmem:[#allocation11 + $0x174] sm:$0xff]
    %v4541 = vld [vmem:[#allocation11 + $0x17c] sm:$0xf]
    %v4542 = vld [vmem:[#allocation11 + $0x180] sm:$0xff]
    %v4543 = vld [vmem:[#allocation11 + $0x188] sm:$0xf]
    %v4544 = vld [vmem:[#allocation11 + $0x18c] sm:$0xff]
    %v4545 = vld [vmem:[#allocation11 + $0x194] sm:$0xf]
    %v4546 = vld [vmem:[#allocation11 + $0x198] sm:$0xff]
    %v4547 = vld [vmem:[#allocation11 + $0x1a0] sm:$0xf]
    %v4548 = vld [vmem:[#allocation11 + $0x1a4] sm:$0xff]
    %v4549 = vld [vmem:[#allocation11 + $0x1ac] sm:$0xf]
    %v4550 = vld [vmem:[#allocation11 + $0x1b0] sm:$0xff]
    %v4551 = vld [vmem:[#allocation11 + $0x1b8] sm:$0xf]
    %v4552 = vld [vmem:[#allocation11 + $0x1bc] sm:$0xff]
    %v4553 = vld [vmem:[#allocation11 + $0x1c4] sm:$0xf]
    %v4554 = vld [vmem:[#allocation11 + $0x1c8] sm:$0xff]
    %v4555 = vld [vmem:[#allocation11 + $0x1d0] sm:$0xf]
    %v4556 = vld [vmem:[#allocation11 + $0x1d4] sm:$0xff]
    %v4557 = vld [vmem:[#allocation11 + $0x1dc] sm:$0xf]
    %v4558 = vld [vmem:[#allocation11 + $0x1e0] sm:$0xff]
    %v4559 = vld [vmem:[#allocation11 + $0x1e8] sm:$0xf]
    %v4560 = vld [vmem:[#allocation11 + $0x1ec] sm:$0xff]
    %v4561 = vld [vmem:[#allocation11 + $0x1f4] sm:$0xf]
    %v4562 = vld [vmem:[#allocation11 + $0x1f8] sm:$0xff]
    %v4563 = vld [vmem:[#allocation11 + $0x200] sm:$0xf]
    %v4564 = vld [vmem:[#allocation11 + $0x204] sm:$0xff]
    %v4565 = vld [vmem:[#allocation11 + $0x20c] sm:$0xf]
    %v4566 = vld [vmem:[#allocation11 + $0x210] sm:$0xff]
    %v4567 = vld [vmem:[#allocation11 + $0x218] sm:$0xf]
    %v4568 = vld [vmem:[#allocation11 + $0x21c] sm:$0xff]
    %v4569 = vld [vmem:[#allocation11 + $0x224] sm:$0xf]
    %v4570 = vld [vmem:[#allocation11 + $0x228] sm:$0xff]
    %v4571 = vld [vmem:[#allocation11 + $0x230] sm:$0xf]
    %v4572 = vld [vmem:[#allocation11 + $0x234] sm:$0xff]
    %v4573 = vld [vmem:[#allocation11 + $0x23c] sm:$0xf]
    %v4574 = vld [vmem:[#allocation11 + $0x240] sm:$0xff]
    %v4575 = vld [vmem:[#allocation11 + $0x248] sm:$0xf]
    %v4576 = vld [vmem:[#allocation11 + $0x24c] sm:$0xff]
    %v4577 = vld [vmem:[#allocation11 + $0x254] sm:$0xf]
    %v4578 = vld [vmem:[#allocation11 + $0x258] sm:$0xff]
    %v4579 = vld [vmem:[#allocation11 + $0x260] sm:$0xf]
    %v4580 = vld [vmem:[#allocation11 + $0x264] sm:$0xff]
    %v4581 = vld [vmem:[#allocation11 + $0x26c] sm:$0xf]
    %v4582 = vld [vmem:[#allocation11 + $0x270] sm:$0xff]
    %v4583 = vld [vmem:[#allocation11 + $0x278] sm:$0xf]
    %v4584 = vld [vmem:[#allocation11 + $0x27c] sm:$0xff]
    %v4585 = vld [vmem:[#allocation11 + $0x284] sm:$0xf]
    %v4586 = vld [vmem:[#allocation11 + $0x288] sm:$0xff]
    %v4587 = vld [vmem:[#allocation11 + $0x290] sm:$0xf]
    %v4588 = vld [vmem:[#allocation11 + $0x294] sm:$0xff]
    %v4589 = vld [vmem:[#allocation11 + $0x29c] sm:$0xf]
    %v4590 = vld [vmem:[#allocation11 + $0x2a0] sm:$0xff]
    %v4591 = vld [vmem:[#allocation11 + $0x2a8] sm:$0xf]
    %v4592 = vld [vmem:[#allocation11 + $0x2ac] sm:$0xff]
    %v4593 = vld [vmem:[#allocation11 + $0x2b4] sm:$0xf]
    %v4594 = vld [vmem:[#allocation11 + $0x2b8] sm:$0xff]
    %v4595 = vld [vmem:[#allocation11 + $0x2c0] sm:$0xf]
    %v4596 = vld [vmem:[#allocation11 + $0x2c4] sm:$0xff]
    %v4597 = vld [vmem:[#allocation11 + $0x2cc] sm:$0xf]
    %v4598 = vld [vmem:[#allocation11 + $0x2d0] sm:$0xff]
    %v4599 = vld [vmem:[#allocation11 + $0x2d8] sm:$0xf]
    %v4600 = vld [vmem:[#allocation11 + $0x2dc] sm:$0xff]
    %v4601 = vld [vmem:[#allocation11 + $0x2e4] sm:$0xf]
    %v4602 = vld [vmem:[#allocation11 + $0x2e8] sm:$0xff]
    %v4603 = vld [vmem:[#allocation11 + $0x2f0] sm:$0xf]
    %v4604 = vld [vmem:[#allocation11 + $0x2f4] sm:$0xff]
    %v4605 = vld [vmem:[#allocation11 + $0x2fc] sm:$0xf]
    %v4606 = vld [vmem:[#allocation12] sm:$0x7]
    %v4608 = vlaneseq
    %v4609 = vshrl.u32 %v4608, 7
    %v4610 = vsub.s32 0, %v4609
    %v4611 = vrot.slane %v4606, %v4610
    %v4612 = vlaneseq
    %v4613 = vshrl.u32 %v4612, 7
    %v4614 = vsub.s32 1, %v4613
    %v4615 = vrot.slane %v4606, %v4614
    %v4616 = vlaneseq
    %v4617 = vshrl.u32 %v4616, 7
    %v4618 = vsub.s32 2, %v4617
    %v4619 = vrot.slane %v4606, %v4618
    %v4751 = vunpack.c.l.b16 %v4478
    %v4752 = vunpack.c.h.b16 %v4478
    %v4753 = vunpack.c.l.b16 %v4479
    %v4754 = vunpack.c.l.b16 %v4480
    %v4755 = vunpack.c.h.b16 %v4480
    %v4756 = vunpack.c.l.b16 %v4481
    %v4757 = vunpack.c.l.b16 %v4482
    %v4758 = vunpack.c.h.b16 %v4482
    %v4759 = vunpack.c.l.b16 %v4483
    %v4760 = vunpack.c.l.b16 %v4484
    %v4761 = vunpack.c.h.b16 %v4484
    %v4762 = vunpack.c.l.b16 %v4485
    %v4763 = vunpack.c.l.b16 %v4486
    %v4764 = vunpack.c.h.b16 %v4486
    %v4765 = vunpack.c.l.b16 %v4487
    %v4766 = vunpack.c.l.b16 %v4488
    %v4767 = vunpack.c.h.b16 %v4488
    %v4768 = vunpack.c.l.b16 %v4489
    %v4769 = vunpack.c.l.b16 %v4490
    %v4770 = vunpack.c.h.b16 %v4490
    %v4771 = vunpack.c.l.b16 %v4491
    %v4772 = vunpack.c.l.b16 %v4492
    %v4773 = vunpack.c.h.b16 %v4492
    %v4774 = vunpack.c.l.b16 %v4493
    %v4775 = vunpack.c.l.b16 %v4494
    %v4776 = vunpack.c.h.b16 %v4494
    %v4777 = vunpack.c.l.b16 %v4495
    %v4778 = vunpack.c.l.b16 %v4496
    %v4779 = vunpack.c.h.b16 %v4496
    %v4780 = vunpack.c.l.b16 %v4497
    %v4781 = vunpack.c.l.b16 %v4498
    %v4782 = vunpack.c.h.b16 %v4498
    %v4783 = vunpack.c.l.b16 %v4499
    %v4784 = vunpack.c.l.b16 %v4500
    %v4785 = vunpack.c.h.b16 %v4500
    %v4786 = vunpack.c.l.b16 %v4501
    %v4787 = vunpack.c.l.b16 %v4502
    %v4788 = vunpack.c.h.b16 %v4502
    %v4789 = vunpack.c.l.b16 %v4503
    %v4790 = vunpack.c.l.b16 %v4504
    %v4791 = vunpack.c.h.b16 %v4504
    %v4792 = vunpack.c.l.b16 %v4505
    %v4793 = vunpack.c.l.b16 %v4506
    %v4794 = vunpack.c.h.b16 %v4506
    %v4795 = vunpack.c.l.b16 %v4507
    %v4796 = vunpack.c.l.b16 %v4508
    %v4797 = vunpack.c.h.b16 %v4508
    %v4798 = vunpack.c.l.b16 %v4509
    %v4799 = vunpack.c.l.b16 %v4510
    %v4800 = vunpack.c.h.b16 %v4510
    %v4801 = vunpack.c.l.b16 %v4511
    %v4802 = vunpack.c.l.b16 %v4512
    %v4803 = vunpack.c.h.b16 %v4512
    %v4804 = vunpack.c.l.b16 %v4513
    %v4805 = vunpack.c.l.b16 %v4514
    %v4806 = vunpack.c.h.b16 %v4514
    %v4807 = vunpack.c.l.b16 %v4515
    %v4808 = vunpack.c.l.b16 %v4516
    %v4809 = vunpack.c.h.b16 %v4516
    %v4810 = vunpack.c.l.b16 %v4517
    %v4811 = vunpack.c.l.b16 %v4518
    %v4812 = vunpack.c.h.b16 %v4518
    %v4813 = vunpack.c.l.b16 %v4519
    %v4814 = vunpack.c.l.b16 %v4520
    %v4815 = vunpack.c.h.b16 %v4520
    %v4816 = vunpack.c.l.b16 %v4521
    %v4817 = vunpack.c.l.b16 %v4522
    %v4818 = vunpack.c.h.b16 %v4522
    %v4819 = vunpack.c.l.b16 %v4523
    %v4820 = vunpack.c.l.b16 %v4524
    %v4821 = vunpack.c.h.b16 %v4524
    %v4822 = vunpack.c.l.b16 %v4525
    %v4823 = vunpack.c.l.b16 %v4526
    %v4824 = vunpack.c.h.b16 %v4526
    %v4825 = vunpack.c.l.b16 %v4527
    %v4826 = vunpack.c.l.b16 %v4528
    %v4827 = vunpack.c.h.b16 %v4528
    %v4828 = vunpack.c.l.b16 %v4529
    %v4829 = vunpack.c.l.b16 %v4530
    %v4830 = vunpack.c.h.b16 %v4530
    %v4831 = vunpack.c.l.b16 %v4531
    %v4832 = vunpack.c.l.b16 %v4532
    %v4833 = vunpack.c.h.b16 %v4532
    %v4834 = vunpack.c.l.b16 %v4533
    %v4835 = vunpack.c.l.b16 %v4534
    %v4836 = vunpack.c.h.b16 %v4534
    %v4837 = vunpack.c.l.b16 %v4535
    %v4838 = vunpack.c.l.b16 %v4536
    %v4839 = vunpack.c.h.b16 %v4536
    %v4840 = vunpack.c.l.b16 %v4537
    %v4841 = vunpack.c.l.b16 %v4538
    %v4842 = vunpack.c.h.b16 %v4538
    %v4843 = vunpack.c.l.b16 %v4539
    %v4844 = vunpack.c.l.b16 %v4540
    %v4845 = vunpack.c.h.b16 %v4540
    %v4846 = vunpack.c.l.b16 %v4541
    %v4847 = vunpack.c.l.b16 %v4542
    %v4848 = vunpack.c.h.b16 %v4542
    %v4849 = vunpack.c.l.b16 %v4543
    %v4850 = vunpack.c.l.b16 %v4544
    %v4851 = vunpack.c.h.b16 %v4544
    %v4852 = vunpack.c.l.b16 %v4545
    %v4853 = vunpack.c.l.b16 %v4546
    %v4854 = vunpack.c.h.b16 %v4546
    %v4855 = vunpack.c.l.b16 %v4547
    %v4856 = vunpack.c.l.b16 %v4548
    %v4857 = vunpack.c.h.b16 %v4548
    %v4858 = vunpack.c.l.b16 %v4549
    %v4859 = vunpack.c.l.b16 %v4550
    %v4860 = vunpack.c.h.b16 %v4550
    %v4861 = vunpack.c.l.b16 %v4551
    %v4862 = vunpack.c.l.b16 %v4552
    %v4863 = vunpack.c.h.b16 %v4552
    %v4864 = vunpack.c.l.b16 %v4553
    %v4865 = vunpack.c.l.b16 %v4554
    %v4866 = vunpack.c.h.b16 %v4554
    %v4867 = vunpack.c.l.b16 %v4555
    %v4868 = vunpack.c.l.b16 %v4556
    %v4869 = vunpack.c.h.b16 %v4556
    %v4870 = vunpack.c.l.b16 %v4557
    %v4871 = vunpack.c.l.b16 %v4558
    %v4872 = vunpack.c.h.b16 %v4558
    %v4873 = vunpack.c.l.b16 %v4559
    %v4874 = vunpack.c.l.b16 %v4560
    %v4875 = vunpack.c.h.b16 %v4560
    %v4876 = vunpack.c.l.b16 %v4561
    %v4877 = vunpack.c.l.b16 %v4562
    %v4878 = vunpack.c.h.b16 %v4562
    %v4879 = vunpack.c.l.b16 %v4563
    %v4880 = vunpack.c.l.b16 %v4564
    %v4881 = vunpack.c.h.b16 %v4564
    %v4882 = vunpack.c.l.b16 %v4565
    %v4883 = vunpack.c.l.b16 %v4566
    %v4884 = vunpack.c.h.b16 %v4566
    %v4885 = vunpack.c.l.b16 %v4567
    %v4886 = vunpack.c.l.b16 %v4568
    %v4887 = vunpack.c.h.b16 %v4568
    %v4888 = vunpack.c.l.b16 %v4569
    %v4889 = vunpack.c.l.b16 %v4570
    %v4890 = vunpack.c.h.b16 %v4570
    %v4891 = vunpack.c.l.b16 %v4571
    %v4892 = vunpack.c.l.b16 %v4572
    %v4893 = vunpack.c.h.b16 %v4572
    %v4894 = vunpack.c.l.b16 %v4573
    %v4895 = vunpack.c.l.b16 %v4574
    %v4896 = vunpack.c.h.b16 %v4574
    %v4897 = vunpack.c.l.b16 %v4575
    %v4898 = vunpack.c.l.b16 %v4576
    %v4899 = vunpack.c.h.b16 %v4576
    %v4900 = vunpack.c.l.b16 %v4577
    %v4901 = vunpack.c.l.b16 %v4578
    %v4902 = vunpack.c.h.b16 %v4578
    %v4903 = vunpack.c.l.b16 %v4579
    %v4904 = vunpack.c.l.b16 %v4580
    %v4905 = vunpack.c.h.b16 %v4580
    %v4906 = vunpack.c.l.b16 %v4581
    %v4907 = vunpack.c.l.b16 %v4582
    %v4908 = vunpack.c.h.b16 %v4582
    %v4909 = vunpack.c.l.b16 %v4583
    %v4910 = vunpack.c.l.b16 %v4584
    %v4911 = vunpack.c.h.b16 %v4584
    %v4912 = vunpack.c.l.b16 %v4585
    %v4913 = vunpack.c.l.b16 %v4586
    %v4914 = vunpack.c.h.b16 %v4586
    %v4915 = vunpack.c.l.b16 %v4587
    %v4916 = vunpack.c.l.b16 %v4588
    %v4917 = vunpack.c.h.b16 %v4588
    %v4918 = vunpack.c.l.b16 %v4589
    %v4919 = vunpack.c.l.b16 %v4590
    %v4920 = vunpack.c.h.b16 %v4590
    %v4921 = vunpack.c.l.b16 %v4591
    %v4922 = vunpack.c.l.b16 %v4592
    %v4923 = vunpack.c.h.b16 %v4592
    %v4924 = vunpack.c.l.b16 %v4593
    %v4925 = vunpack.c.l.b16 %v4594
    %v4926 = vunpack.c.h.b16 %v4594
    %v4927 = vunpack.c.l.b16 %v4595
    %v4928 = vunpack.c.l.b16 %v4596
    %v4929 = vunpack.c.h.b16 %v4596
    %v4930 = vunpack.c.l.b16 %v4597
    %v4931 = vunpack.c.l.b16 %v4598
    %v4932 = vunpack.c.h.b16 %v4598
    %v4933 = vunpack.c.l.b16 %v4599
    %v4934 = vunpack.c.l.b16 %v4600
    %v4935 = vunpack.c.h.b16 %v4600
    %v4936 = vunpack.c.l.b16 %v4601
    %v4937 = vunpack.c.l.b16 %v4602
    %v4938 = vunpack.c.h.b16 %v4602
    %v4939 = vunpack.c.l.b16 %v4603
    %v4940 = vunpack.c.l.b16 %v4604
    %v4941 = vunpack.c.h.b16 %v4604
    %v4942 = vunpack.c.l.b16 %v4605
    %v4943 = vpack.c.b16 %v4754, %v4751
    %v4944 = vpack.c.b16 %v4755, %v4752
    %v4945 = vpack.c.b16 %v4756, %v4753
    %v4946 = vpack.c.b16 %v4760, %v4757
    %v4947 = vpack.c.b16 %v4761, %v4758
    %v4948 = vpack.c.b16 %v4762, %v4759
    %v4949 = vpack.c.b16 %v4766, %v4763
    %v4950 = vpack.c.b16 %v4767, %v4764
    %v4951 = vpack.c.b16 %v4768, %v4765
    %v4952 = vpack.c.b16 %v4772, %v4769
    %v4953 = vpack.c.b16 %v4773, %v4770
    %v4954 = vpack.c.b16 %v4774, %v4771
    %v4955 = vpack.c.b16 %v4778, %v4775
    %v4956 = vpack.c.b16 %v4779, %v4776
    %v4957 = vpack.c.b16 %v4780, %v4777
    %v4958 = vpack.c.b16 %v4784, %v4781
    %v4959 = vpack.c.b16 %v4785, %v4782
    %v4960 = vpack.c.b16 %v4786, %v4783
    %v4961 = vpack.c.b16 %v4790, %v4787
    %v4962 = vpack.c.b16 %v4791, %v4788
    %v4963 = vpack.c.b16 %v4792, %v4789
    %v4964 = vpack.c.b16 %v4796, %v4793
    %v4965 = vpack.c.b16 %v4797, %v4794
    %v4966 = vpack.c.b16 %v4798, %v4795
    %v4967 = vpack.c.b16 %v4802, %v4799
    %v4968 = vpack.c.b16 %v4803, %v4800
    %v4969 = vpack.c.b16 %v4804, %v4801
    %v4970 = vpack.c.b16 %v4808, %v4805
    %v4971 = vpack.c.b16 %v4809, %v4806
    %v4972 = vpack.c.b16 %v4810, %v4807
    %v4973 = vpack.c.b16 %v4814, %v4811
    %v4974 = vpack.c.b16 %v4815, %v4812
    %v4975 = vpack.c.b16 %v4816, %v4813
    %v4976 = vpack.c.b16 %v4820, %v4817
    %v4977 = vpack.c.b16 %v4821, %v4818
    %v4978 = vpack.c.b16 %v4822, %v4819
    %v4979 = vpack.c.b16 %v4826, %v4823
    %v4980 = vpack.c.b16 %v4827, %v4824
    %v4981 = vpack.c.b16 %v4828, %v4825
    %v4982 = vpack.c.b16 %v4832, %v4829
    %v4983 = vpack.c.b16 %v4833, %v4830
    %v4984 = vpack.c.b16 %v4834, %v4831
    %v4985 = vpack.c.b16 %v4838, %v4835
    %v4986 = vpack.c.b16 %v4839, %v4836
    %v4987 = vpack.c.b16 %v4840, %v4837
    %v4988 = vpack.c.b16 %v4844, %v4841
    %v4989 = vpack.c.b16 %v4845, %v4842
    %v4990 = vpack.c.b16 %v4846, %v4843
    %v4991 = vpack.c.b16 %v4850, %v4847
    %v4992 = vpack.c.b16 %v4851, %v4848
    %v4993 = vpack.c.b16 %v4852, %v4849
    %v4994 = vpack.c.b16 %v4856, %v4853
    %v4995 = vpack.c.b16 %v4857, %v4854
    %v4996 = vpack.c.b16 %v4858, %v4855
    %v4997 = vpack.c.b16 %v4862, %v4859
    %v4998 = vpack.c.b16 %v4863, %v4860
    %v4999 = vpack.c.b16 %v4864, %v4861
    %v5000 = vpack.c.b16 %v4868, %v4865
    %v5001 = vpack.c.b16 %v4869, %v4866
    %v5002 = vpack.c.b16 %v4870, %v4867
    %v5003 = vpack.c.b16 %v4874, %v4871
    %v5004 = vpack.c.b16 %v4875, %v4872
    %v5005 = vpack.c.b16 %v4876, %v4873
    %v5006 = vpack.c.b16 %v4880, %v4877
    %v5007 = vpack.c.b16 %v4881, %v4878
    %v5008 = vpack.c.b16 %v4882, %v4879
    %v5009 = vpack.c.b16 %v4886, %v4883
    %v5010 = vpack.c.b16 %v4887, %v4884
    %v5011 = vpack.c.b16 %v4888, %v4885
    %v5012 = vpack.c.b16 %v4892, %v4889
    %v5013 = vpack.c.b16 %v4893, %v4890
    %v5014 = vpack.c.b16 %v4894, %v4891
    %v5015 = vpack.c.b16 %v4898, %v4895
    %v5016 = vpack.c.b16 %v4899, %v4896
    %v5017 = vpack.c.b16 %v4900, %v4897
    %v5018 = vpack.c.b16 %v4904, %v4901
    %v5019 = vpack.c.b16 %v4905, %v4902
    %v5020 = vpack.c.b16 %v4906, %v4903
    %v5021 = vpack.c.b16 %v4910, %v4907
    %v5022 = vpack.c.b16 %v4911, %v4908
    %v5023 = vpack.c.b16 %v4912, %v4909
    %v5024 = vpack.c.b16 %v4916, %v4913
    %v5025 = vpack.c.b16 %v4917, %v4914
    %v5026 = vpack.c.b16 %v4918, %v4915
    %v5027 = vpack.c.b16 %v4922, %v4919
    %v5028 = vpack.c.b16 %v4923, %v4920
    %v5029 = vpack.c.b16 %v4924, %v4921
    %v5030 = vpack.c.b16 %v4928, %v4925
    %v5031 = vpack.c.b16 %v4929, %v4926
    %v5032 = vpack.c.b16 %v4930, %v4927
    %v5033 = vpack.c.b16 %v4934, %v4931
    %v5034 = vpack.c.b16 %v4935, %v4932
    %v5035 = vpack.c.b16 %v4936, %v4933
    %v5036 = vpack.c.b16 %v4940, %v4937
    %v5037 = vpack.c.b16 %v4941, %v4938
    %v5038 = vpack.c.b16 %v4942, %v4939
    %5135 = vmatprep.subr.bf16.mxu0 %v4944
    %5136 = vmatpush1.bf16.msra.mxu0 %v4943
    %5137 = vmatprep.subr.bf16.mxu0 %v4947
    %5138 = vmatpush1.bf16.msra.mxu0 %v4946
    %5139 = vmatprep.subr.bf16.mxu0 %v4950
    %5140 = vmatpush1.bf16.msra.mxu0 %v4949
    %5141 = vmatprep.subr.bf16.mxu0 %v4953
    %5142 = vmatpush1.bf16.msra.mxu0 %v4952
    %5143 = vmatprep.subr.bf16.mxu0 %v4956
    %5144 = vmatpush1.bf16.msra.mxu0 %v4955
    %5145 = vmatprep.subr.bf16.mxu0 %v4959
    %5146 = vmatpush1.bf16.msra.mxu0 %v4958
    %5147 = vmatprep.subr.bf16.mxu0 %v4962
    %5148 = vmatpush1.bf16.msra.mxu0 %v4961
    %5149 = vmatprep.subr.bf16.mxu0 %v4965
    %5150 = vmatpush1.bf16.msra.mxu0 %v4964
    %5151 = vmatprep.subr.bf16.mxu0 %v4968
    %5152 = vmatpush1.bf16.msra.mxu0 %v4967
    %5153 = vmatprep.subr.bf16.mxu0 %v4971
    %5154 = vmatpush1.bf16.msra.mxu0 %v4970
    %5155 = vmatprep.subr.bf16.mxu0 %v4974
    %5156 = vmatpush1.bf16.msra.mxu0 %v4973
    %5157 = vmatprep.subr.bf16.mxu0 %v4977
    %5158 = vmatpush1.bf16.msra.mxu0 %v4976
    %5159 = vmatprep.subr.bf16.mxu0 %v4980
    %5160 = vmatpush1.bf16.msra.mxu0 %v4979
    %5161 = vmatprep.subr.bf16.mxu0 %v4983
    %5162 = vmatpush1.bf16.msra.mxu0 %v4982
    %5163 = vmatprep.subr.bf16.mxu0 %v4986
    %5164 = vmatpush1.bf16.msra.mxu0 %v4985
    %5165 = vmatprep.subr.bf16.mxu0 %v4989
    %5166 = vmatpush1.bf16.msra.mxu0 %v4988
    %5167 = vmatprep.mubr.bf16.mxu0 %v4475
    %5168 = vmatmul.mubr.bf16.gmra.mrb[0].mxu0 %v4474
    %v5169 = vpop.f32.mrb[0].mxu0
    %v5170 = vadd.f32 %v4611, %v5169
    %v5171 = vpop.f32.mrb[0].mxu0
    %v5172 = vadd.f32 %v4615, %v5171
    %v5173 = vpop.f32.mrb[0].mxu0
    %v5174 = vpop.f32.mrb[0].mxu0
    %5175 = vdwg.mxu0
    %5176 = vmatprep.subr.bf16.mxu0 %v4992
    %5177 = vmatpush1.bf16.msra.mxu0 %v4991
    %5178 = vmatprep.subr.bf16.mxu0 %v4995
    %5179 = vmatpush1.bf16.msra.mxu0 %v4994
    %5180 = vmatprep.subr.bf16.mxu0 %v4998
    %5181 = vmatpush1.bf16.msra.mxu0 %v4997
    %5182 = vmatprep.subr.bf16.mxu0 %v5001
    %5183 = vmatpush1.bf16.msra.mxu0 %v5000
    %5184 = vmatprep.subr.bf16.mxu0 %v5004
    %5185 = vmatpush1.bf16.msra.mxu0 %v5003
    %5186 = vmatprep.subr.bf16.mxu0 %v5007
    %5187 = vmatpush1.bf16.msra.mxu0 %v5006
    %5188 = vmatprep.subr.bf16.mxu0 %v5010
    %5189 = vmatpush1.bf16.msra.mxu0 %v5009
    %5190 = vmatprep.subr.bf16.mxu0 %v5013
    %5191 = vmatpush1.bf16.msra.mxu0 %v5012
    %5192 = vmatprep.subr.bf16.mxu0 %v5016
    %5193 = vmatpush1.bf16.msra.mxu0 %v5015
    %5194 = vmatprep.subr.bf16.mxu0 %v5019
    %5195 = vmatpush1.bf16.msra.mxu0 %v5018
    %5196 = vmatprep.subr.bf16.mxu0 %v5022
    %5197 = vmatpush1.bf16.msra.mxu0 %v5021
    %5198 = vmatprep.subr.bf16.mxu0 %v5025
    %5199 = vmatpush1.bf16.msra.mxu0 %v5024
    %5200 = vmatprep.subr.bf16.mxu0 %v5028
    %5201 = vmatpush1.bf16.msra.mxu0 %v5027
    %5202 = vmatprep.subr.bf16.mxu0 %v5031
    %5203 = vmatpush1.bf16.msra.mxu0 %v5030
    %5204 = vmatprep.subr.bf16.mxu0 %v5034
    %5205 = vmatpush1.bf16.msra.mxu0 %v5033
    %5206 = vmatprep.subr.bf16.mxu0 %v5037
    %5207 = vmatpush1.bf16.msra.mxu0 %v5036
    %5208 = vmatprep.mubr.bf16.mxu0 %v4477
    %5209 = vmatmul.mubr.bf16.gmra.mrb[0].mxu0 %v4476
    %v5210 = vpop.f32.mrb[0].mxu0
    %v5211 = vadd.f32 %v5170, %v5210
    %v5212 = vpop.f32.mrb[0].mxu0
    %v5213 = vadd.f32 %v5172, %v5212
    %v5214 = vpop.f32.mrb[0].mxu0
    %v5215 = vpop.f32.mrb[0].mxu0
    %5216 = vdwg.mxu0
    %5217 = vmatprep.subr.bf16.mxu0 0
    %5218 = vmatpush1.bf16.msra.mxu0 %v4945
    %5219 = vmatprep.subr.bf16.mxu0 0
    %5220 = vmatpush1.bf16.msra.mxu0 %v4948
    %5221 = vmatprep.subr.bf16.mxu0 0
    %5222 = vmatpush1.bf16.msra.mxu0 %v4951
    %5223 = vmatprep.subr.bf16.mxu0 0
    %5224 = vmatpush1.bf16.msra.mxu0 %v4954
    %5225 = vmatprep.subr.bf16.mxu0 0
    %5226 = vmatpush1.bf16.msra.mxu0 %v4957
    %5227 = vmatprep.subr.bf16.mxu0 0
    %5228 = vmatpush1.bf16.msra.mxu0 %v4960
    %5229 = vmatprep.subr.bf16.mxu0 0
    %5230 = vmatpush1.bf16.msra.mxu0 %v4963
    %5231 = vmatprep.subr.bf16.mxu0 0
    %5232 = vmatpush1.bf16.msra.mxu0 %v4966
    %5233 = vmatprep.subr.bf16.mxu0 0
    %5234 = vmatpush1.bf16.msra.mxu0 %v4969
    %5235 = vmatprep.subr.bf16.mxu0 0
    %5236 = vmatpush1.bf16.msra.mxu0 %v4972
    %5237 = vmatprep.subr.bf16.mxu0 0
    %5238 = vmatpush1.bf16.msra.mxu0 %v4975
    %5239 = vmatprep.subr.bf16.mxu0 0
    %5240 = vmatpush1.bf16.msra.mxu0 %v4978
    %5241 = vmatprep.subr.bf16.mxu0 0
    %5242 = vmatpush1.bf16.msra.mxu0 %v4981
    %5243 = vmatprep.subr.bf16.mxu0 0
    %5244 = vmatpush1.bf16.msra.mxu0 %v4984
    %5245 = vmatprep.subr.bf16.mxu0 0
    %5246 = vmatpush1.bf16.msra.mxu0 %v4987
    %5247 = vmatprep.subr.bf16.mxu0 0
    %5248 = vmatpush1.bf16.msra.mxu0 %v4990
    %5249 = vmatprep.mubr.bf16.mxu0 %v4475
    %5250 = vmatmul.mubr.bf16.gmra.mrb[0].mxu0 %v4474
    %v5251 = vpop.f32.mrb[0].mxu0
    %v5252 = vadd.f32 %v4619, %v5251
    %v5253 = vpop.f32.mrb[0].mxu0
    %v5254 = vpop.f32.mrb[0].mxu0
    %v5255 = vpop.f32.mrb[0].mxu0
    %5256 = vdwg.mxu0
    %5257 = vmatprep.subr.bf16.mxu0 0
    %5258 = vmatpush1.bf16.msra.mxu0 %v4993
    %5259 = vmatprep.subr.bf16.mxu0 0
    %5260 = vmatpush1.bf16.msra.mxu0 %v4996
    %5261 = vmatprep.subr.bf16.mxu0 0
    %5262 = vmatpush1.bf16.msra.mxu0 %v4999
    %5263 = vmatprep.subr.bf16.mxu0 0
    %5264 = vmatpush1.bf16.msra.mxu0 %v5002
    %5265 = vmatprep.subr.bf16.mxu0 0
    %5266 = vmatpush1.bf16.msra.mxu0 %v5005
    %5267 = vmatprep.subr.bf16.mxu0 0
    %5268 = vmatpush1.bf16.msra.mxu0 %v5008
    %5269 = vmatprep.subr.bf16.mxu0 0
    %5270 = vmatpush1.bf16.msra.mxu0 %v5011
    %5271 = vmatprep.subr.bf16.mxu0 0
    %5272 = vmatpush1.bf16.msra.mxu0 %v5014
    %5273 = vmatprep.subr.bf16.mxu0 0
    %5274 = vmatpush1.bf16.msra.mxu0 %v5017
    %5275 = vmatprep.subr.bf16.mxu0 0
    %5276 = vmatpush1.bf16.msra.mxu0 %v5020
    %5277 = vmatprep.subr.bf16.mxu0 0
    %5278 = vmatpush1.bf16.msra.mxu0 %v5023
    %5279 = vmatprep.subr.bf16.mxu0 0
    %5280 = vmatpush1.bf16.msra.mxu0 %v5026
    %5281 = vmatprep.subr.bf16.mxu0 0
    %5282 = vmatpush1.bf16.msra.mxu0 %v5029
    %5283 = vmatprep.subr.bf16.mxu0 0
    %5284 = vmatpush1.bf16.msra.mxu0 %v5032
    %5285 = vmatprep.subr.bf16.mxu0 0
    %5286 = vmatpush1.bf16.msra.mxu0 %v5035
    %5287 = vmatprep.subr.bf16.mxu0 0
    %5288 = vmatpush1.bf16.msra.mxu0 %v5038
    %5289 = vmatprep.mubr.bf16.mxu0 %v4477
    %5290 = vmatmul.mubr.bf16.gmra.mrb[0].mxu0 %v4476
    %v5291 = vpop.f32.mrb[0].mxu0
    %v5292 = vadd.f32 %v5252, %v5291
    %v5293 = vpop.f32.mrb[0].mxu0
    %v5294 = vpop.f32.mrb[0].mxu0
    %v5295 = vpop.f32.mrb[0].mxu0
    %5296 = vdwg.mxu0
    %v5297 = vmax.f32 %v5211, 0.0
    %v5298 = vmax.f32 %v5213, 0.0
    %v5299 = vmax.f32 %v5292, 0.0
    %v5300 = vmul.u32 %v337, 384
    %v5301 = vadd.s32 %v5300, %v339
    %v5302 = vadd.s32 %v5300, %v340
    %v5303 = vadd.s32 %v5300, %v341
    %s5304 = sadd.s32 %s325, 4
    %s5305 = smul.u32 %s5304, 1640531527
    %v5306 = vstv %s5305
    %v5307 = vadd.s32 %v5301, %v5306
    %v5308 = vadd.s32 %v5302, %v5306
    %v5309 = vadd.s32 %v5303, %v5306
    %v5310 = vmul.u32 %v5307, 668265263
    %v5311 = vmul.u32 %v5308, 668265263
    %v5312 = vmul.u32 %v5309, 668265263
    %v5313 = vshra.s32 %v5310, 15
    %v5314 = vshra.s32 %v5311, 15
    %v5315 = vshra.s32 %v5312, 15
    %v5316 = vand.u32 %v5313, 131071
    %v5317 = vand.u32 %v5314, 131071
    %v5318 = vand.u32 %v5315, 131071
    %v5319 = vxor.u32 %v5310, %v5316
    %v5320 = vxor.u32 %v5311, %v5317
    %v5321 = vxor.u32 %v5312, %v5318
    %v5322 = vmul.u32 %v5319, 625341585
    %v5323 = vmul.u32 %v5320, 625341585
    %v5324 = vmul.u32 %v5321, 625341585
    %v5325 = vshra.s32 %v5322, 13
    %v5326 = vshra.s32 %v5323, 13
    %v5327 = vshra.s32 %v5324, 13
    %v5328 = vand.u32 %v5325, 524287
    %v5329 = vand.u32 %v5326, 524287
    %v5330 = vand.u32 %v5327, 524287
    %v5331 = vxor.u32 %v5322, %v5328
    %v5332 = vxor.u32 %v5323, %v5329
    %v5333 = vxor.u32 %v5324, %v5330
    %v5334 = vmul.u32 %v5331, 1640531527
    %v5335 = vmul.u32 %v5332, 1640531527
    %v5336 = vmul.u32 %v5333, 1640531527
    %v5337 = vshra.s32 %v5334, 16
    %v5338 = vshra.s32 %v5335, 16
    %v5339 = vshra.s32 %v5336, 16
    %v5340 = vand.u32 %v5337, 65535
    %v5341 = vand.u32 %v5338, 65535
    %v5342 = vand.u32 %v5339, 65535
    %v5343 = vxor.u32 %v5334, %v5340
    %v5344 = vxor.u32 %v5335, %v5341
    %v5345 = vxor.u32 %v5336, %v5342
    %v5346 = vand.u32 %v5343, 8388607
    %v5347 = vand.u32 %v5344, 8388607
    %v5348 = vand.u32 %v5345, 8388607
    %v5349 = vcvt.s32.f32 %v5346
    %v5350 = vcvt.s32.f32 %v5347
    %v5351 = vcvt.s32.f32 %v5348
    %v5352 = vmul.f32 %v5349, 1.1920929e-07
    %v5353 = vmul.f32 %v5350, 1.1920929e-07
    %v5354 = vmul.f32 %v5351, 1.1920929e-07
    %v5355 = vadd.f32 %v5352, 1e-07
    %v5356 = vadd.f32 %v5353, 1e-07
    %v5357 = vadd.f32 %v5354, 1e-07
    %v5358 = vsub.f32 1.0, %v5352
    %v5359 = vsub.f32 1.0, %v5353
    %v5360 = vsub.f32 1.0, %v5354
    %v5361 = vadd.f32 %v5358, 1e-07
    %v5362 = vadd.f32 %v5359, 1e-07
    %v5363 = vadd.f32 %v5360, 1e-07
    %v5364 = vrcp.pop %v5361
    %v5365 = vmul.f32 %v5355, %v5364
    %v5366 = vrcp.pop %v5362
    %v5367 = vmul.f32 %v5356, %v5366
    %v5368 = vrcp.pop %v5363
    %v5369 = vmul.f32 %v5357, %v5368
    %v5370 = vlog2.pop %v5365
    %v5371 = vmul.f32 %v5370, 0.6931472
    %v5372 = vlog2.pop %v5367
    %v5373 = vmul.f32 %v5372, 0.6931472
    %v5374 = vlog2.pop %v5369
    %v5375 = vmul.f32 %v5374, 0.6931472
    %v5376 = vadd.f32 %v5371, -2.1972237
    %v5377 = vadd.f32 %v5373, -2.1972237
    %v5378 = vadd.f32 %v5375, -2.1972237
    %v5379 = vmul.f32 %v5376, 10.0
    %v5380 = vmul.f32 %v5377, 10.0
    %v5381 = vmul.f32 %v5378, 10.0
    %v5382 = vxor.u32 %v5379, 2147483648
    %v5383 = vxor.u32 %v5380, 2147483648
    %v5384 = vxor.u32 %v5381, 2147483648
    %v5385 = vmul.f32 %v5382, 1.442695
    %v5386 = vpow.pop %v5385
    %v5387 = vmul.f32 %v5383, 1.442695
    %v5388 = vpow.pop %v5387
    %v5389 = vmul.f32 %v5384, 1.442695
    %v5390 = vpow.pop %v5389
    %v5391 = vadd.f32 %v5386, 1.0
    %v5392 = vadd.f32 %v5388, 1.0
    %v5393 = vadd.f32 %v5390, 1.0
    %v5394 = vrcp.pop %v5391
    %v5395 = vmul.f32 1.0, %v5394
    %v5396 = vrcp.pop %v5392
    %v5397 = vmul.f32 1.0, %v5396
    %v5398 = vrcp.pop %v5393
    %v5399 = vmul.f32 1.0, %v5398
    %v5400 = vsub.f32 1.0, %v5395
    %v5401 = vsub.f32 1.0, %v5397
    %v5402 = vsub.f32 1.0, %v5399
    %v5403 = vmul.f32 %v5297, %v5400
    %v5404 = vmul.f32 %v5298, %v5401
    %v5405 = vmul.f32 %v5299, %v5402
    %v5406 = vmul.f32 %v5403, 1.1111112
    %v5407 = vmul.f32 %v5404, 1.1111112
    %v5408 = vmul.f32 %v5405, 1.1111112
    %v5409 = vpack.c.bf16 %v5406, %v5406
    %v5410 = vpack.c.bf16 %v5407, %v5407
    %v5411 = vpack.c.bf16 %v5408, %v5408
    %v5412 = vld [vmem:[#allocation14] sm:$0xff]
    %v5413 = vld [vmem:[#allocation14 + $0x8] sm:$0xff]
    %v5414 = vld [vmem:[#allocation14 + $0x10] sm:$0xff]
    %v5415 = vld [vmem:[#allocation14 + $0x18] sm:$0xff]
    %v5416 = vld [vmem:[#allocation14 + $0x20] sm:$0xff]
    %v5417 = vld [vmem:[#allocation14 + $0x28] sm:$0xff]
    %v5418 = vld [vmem:[#allocation14 + $0x30] sm:$0xff]
    %v5419 = vld [vmem:[#allocation14 + $0x38] sm:$0xff]
    %v5420 = vld [vmem:[#allocation14 + $0x40] sm:$0xff]
    %v5421 = vld [vmem:[#allocation14 + $0x48] sm:$0xff]
    %v5422 = vld [vmem:[#allocation14 + $0x50] sm:$0xff]
    %v5423 = vld [vmem:[#allocation14 + $0x58] sm:$0xff]
    %v5424 = vld [vmem:[#allocation14 + $0x60] sm:$0xff]
    %v5425 = vld [vmem:[#allocation14 + $0x68] sm:$0xff]
    %v5426 = vld [vmem:[#allocation14 + $0x70] sm:$0xff]
    %v5427 = vld [vmem:[#allocation14 + $0x78] sm:$0xff]
    %v5428 = vld [vmem:[#allocation14 + $0x80] sm:$0xff]
    %v5429 = vld [vmem:[#allocation14 + $0x88] sm:$0xff]
    %v5430 = vld [vmem:[#allocation14 + $0x90] sm:$0xff]
    %v5431 = vld [vmem:[#allocation14 + $0x98] sm:$0xff]
    %v5432 = vld [vmem:[#allocation14 + $0xa0] sm:$0xff]
    %v5433 = vld [vmem:[#allocation14 + $0xa8] sm:$0xff]
    %v5434 = vld [vmem:[#allocation14 + $0xb0] sm:$0xff]
    %v5435 = vld [vmem:[#allocation14 + $0xb8] sm:$0xff]
    %v5436 = vld [vmem:[#allocation14 + $0xc0] sm:$0xff]
    %v5437 = vld [vmem:[#allocation14 + $0xc8] sm:$0xff]
    %v5438 = vld [vmem:[#allocation14 + $0xd0] sm:$0xff]
    %v5439 = vld [vmem:[#allocation14 + $0xd8] sm:$0xff]
    %v5440 = vld [vmem:[#allocation14 + $0xe0] sm:$0xff]
    %v5441 = vld [vmem:[#allocation14 + $0xe8] sm:$0xff]
    %v5442 = vld [vmem:[#allocation14 + $0xf0] sm:$0xff]
    %v5443 = vld [vmem:[#allocation14 + $0xf8] sm:$0xff]
    %v5444 = vld [vmem:[#allocation14 + $0x100] sm:$0xff]
    %v5445 = vld [vmem:[#allocation14 + $0x108] sm:$0xff]
    %v5446 = vld [vmem:[#allocation14 + $0x110] sm:$0xff]
    %v5447 = vld [vmem:[#allocation14 + $0x118] sm:$0xff]
    %v5448 = vld [vmem:[#allocation14 + $0x120] sm:$0xff]
    %v5449 = vld [vmem:[#allocation14 + $0x128] sm:$0xff]
    %v5450 = vld [vmem:[#allocation14 + $0x130] sm:$0xff]
    %v5451 = vld [vmem:[#allocation14 + $0x138] sm:$0xff]
    %v5452 = vld [vmem:[#allocation14 + $0x140] sm:$0xff]
    %v5453 = vld [vmem:[#allocation14 + $0x148] sm:$0xff]
    %v5454 = vld [vmem:[#allocation14 + $0x150] sm:$0xff]
    %v5455 = vld [vmem:[#allocation14 + $0x158] sm:$0xff]
    %v5456 = vld [vmem:[#allocation14 + $0x160] sm:$0xff]
    %v5457 = vld [vmem:[#allocation14 + $0x168] sm:$0xff]
    %v5458 = vld [vmem:[#allocation14 + $0x170] sm:$0xff]
    %v5459 = vld [vmem:[#allocation14 + $0x178] sm:$0xff]
    %v5460 = vld [vmem:[#allocation15] sm:$0x3]
    %v5462 = vlaneseq
    %v5463 = vshrl.u32 %v5462, 7
    %v5464 = vsub.s32 0, %v5463
    %v5465 = vrot.slane %v5460, %v5464
    %v5466 = vlaneseq
    %v5467 = vshrl.u32 %v5466, 7
    %v5468 = vsub.s32 1, %v5467
    %v5469 = vrot.slane %v5460, %v5468
    %v5520 = vunpack.c.l.b16 %v5412
    %v5521 = vunpack.c.h.b16 %v5412
    %v5522 = vunpack.c.l.b16 %v5413
    %v5523 = vunpack.c.h.b16 %v5413
    %v5524 = vunpack.c.l.b16 %v5414
    %v5525 = vunpack.c.h.b16 %v5414
    %v5526 = vunpack.c.l.b16 %v5415
    %v5527 = vunpack.c.h.b16 %v5415
    %v5528 = vunpack.c.l.b16 %v5416
    %v5529 = vunpack.c.h.b16 %v5416
    %v5530 = vunpack.c.l.b16 %v5417
    %v5531 = vunpack.c.h.b16 %v5417
    %v5532 = vunpack.c.l.b16 %v5418
    %v5533 = vunpack.c.h.b16 %v5418
    %v5534 = vunpack.c.l.b16 %v5419
    %v5535 = vunpack.c.h.b16 %v5419
    %v5536 = vunpack.c.l.b16 %v5420
    %v5537 = vunpack.c.h.b16 %v5420
    %v5538 = vunpack.c.l.b16 %v5421
    %v5539 = vunpack.c.h.b16 %v5421
    %v5540 = vunpack.c.l.b16 %v5422
    %v5541 = vunpack.c.h.b16 %v5422
    %v5542 = vunpack.c.l.b16 %v5423
    %v5543 = vunpack.c.h.b16 %v5423
    %v5544 = vunpack.c.l.b16 %v5424
    %v5545 = vunpack.c.h.b16 %v5424
    %v5546 = vunpack.c.l.b16 %v5425
    %v5547 = vunpack.c.h.b16 %v5425
    %v5548 = vunpack.c.l.b16 %v5426
    %v5549 = vunpack.c.h.b16 %v5426
    %v5550 = vunpack.c.l.b16 %v5427
    %v5551 = vunpack.c.h.b16 %v5427
    %v5552 = vunpack.c.l.b16 %v5428
    %v5553 = vunpack.c.h.b16 %v5428
    %v5554 = vunpack.c.l.b16 %v5429
    %v5555 = vunpack.c.h.b16 %v5429
    %v5556 = vunpack.c.l.b16 %v5430
    %v5557 = vunpack.c.h.b16 %v5430
    %v5558 = vunpack.c.l.b16 %v5431
    %v5559 = vunpack.c.h.b16 %v5431
    %v5560 = vunpack.c.l.b16 %v5432
    %v5561 = vunpack.c.h.b16 %v5432
    %v5562 = vunpack.c.l.b16 %v5433
    %v5563 = vunpack.c.h.b16 %v5433
    %v5564 = vunpack.c.l.b16 %v5434
    %v5565 = vunpack.c.h.b16 %v5434
    %v5566 = vunpack.c.l.b16 %v5435
    %v5567 = vunpack.c.h.b16 %v5435
    %v5568 = vunpack.c.l.b16 %v5436
    %v5569 = vunpack.c.h.b16 %v5436
    %v5570 = vunpack.c.l.b16 %v5437
    %v5571 = vunpack.c.h.b16 %v5437
    %v5572 = vunpack.c.l.b16 %v5438
    %v5573 = vunpack.c.h.b16 %v5438
    %v5574 = vunpack.c.l.b16 %v5439
    %v5575 = vunpack.c.h.b16 %v5439
    %v5576 = vunpack.c.l.b16 %v5440
    %v5577 = vunpack.c.h.b16 %v5440
    %v5578 = vunpack.c.l.b16 %v5441
    %v5579 = vunpack.c.h.b16 %v5441
    %v5580 = vunpack.c.l.b16 %v5442
    %v5581 = vunpack.c.h.b16 %v5442
    %v5582 = vunpack.c.l.b16 %v5443
    %v5583 = vunpack.c.h.b16 %v5443
    %v5584 = vunpack.c.l.b16 %v5444
    %v5585 = vunpack.c.h.b16 %v5444
    %v5586 = vunpack.c.l.b16 %v5445
    %v5587 = vunpack.c.h.b16 %v5445
    %v5588 = vunpack.c.l.b16 %v5446
    %v5589 = vunpack.c.h.b16 %v5446
    %v5590 = vunpack.c.l.b16 %v5447
    %v5591 = vunpack.c.h.b16 %v5447
    %v5592 = vunpack.c.l.b16 %v5448
    %v5593 = vunpack.c.h.b16 %v5448
    %v5594 = vunpack.c.l.b16 %v5449
    %v5595 = vunpack.c.h.b16 %v5449
    %v5596 = vunpack.c.l.b16 %v5450
    %v5597 = vunpack.c.h.b16 %v5450
    %v5598 = vunpack.c.l.b16 %v5451
    %v5599 = vunpack.c.h.b16 %v5451
    %v5600 = vunpack.c.l.b16 %v5452
    %v5601 = vunpack.c.h.b16 %v5452
    %v5602 = vunpack.c.l.b16 %v5453
    %v5603 = vunpack.c.h.b16 %v5453
    %v5604 = vunpack.c.l.b16 %v5454
    %v5605 = vunpack.c.h.b16 %v5454
    %v5606 = vunpack.c.l.b16 %v5455
    %v5607 = vunpack.c.h.b16 %v5455
    %v5608 = vunpack.c.l.b16 %v5456
    %v5609 = vunpack.c.h.b16 %v5456
    %v5610 = vunpack.c.l.b16 %v5457
    %v5611 = vunpack.c.h.b16 %v5457
    %v5612 = vunpack.c.l.b16 %v5458
    %v5613 = vunpack.c.h.b16 %v5458
    %v5614 = vunpack.c.l.b16 %v5459
    %v5615 = vunpack.c.h.b16 %v5459
    %v5616 = vpack.c.b16 %v5522, %v5520
    %v5617 = vpack.c.b16 %v5523, %v5521
    %v5618 = vpack.c.b16 %v5526, %v5524
    %v5619 = vpack.c.b16 %v5527, %v5525
    %v5620 = vpack.c.b16 %v5530, %v5528
    %v5621 = vpack.c.b16 %v5531, %v5529
    %v5622 = vpack.c.b16 %v5534, %v5532
    %v5623 = vpack.c.b16 %v5535, %v5533
    %v5624 = vpack.c.b16 %v5538, %v5536
    %v5625 = vpack.c.b16 %v5539, %v5537
    %v5626 = vpack.c.b16 %v5542, %v5540
    %v5627 = vpack.c.b16 %v5543, %v5541
    %v5628 = vpack.c.b16 %v5546, %v5544
    %v5629 = vpack.c.b16 %v5547, %v5545
    %v5630 = vpack.c.b16 %v5550, %v5548
    %v5631 = vpack.c.b16 %v5551, %v5549
    %v5632 = vpack.c.b16 %v5554, %v5552
    %v5633 = vpack.c.b16 %v5555, %v5553
    %v5634 = vpack.c.b16 %v5558, %v5556
    %v5635 = vpack.c.b16 %v5559, %v5557
    %v5636 = vpack.c.b16 %v5562, %v5560
    %v5637 = vpack.c.b16 %v5563, %v5561
    %v5638 = vpack.c.b16 %v5566, %v5564
    %v5639 = vpack.c.b16 %v5567, %v5565
    %v5640 = vpack.c.b16 %v5570, %v5568
    %v5641 = vpack.c.b16 %v5571, %v5569
    %v5642 = vpack.c.b16 %v5574, %v5572
    %v5643 = vpack.c.b16 %v5575, %v5573
    %v5644 = vpack.c.b16 %v5578, %v5576
    %v5645 = vpack.c.b16 %v5579, %v5577
    %v5646 = vpack.c.b16 %v5582, %v5580
    %v5647 = vpack.c.b16 %v5583, %v5581
    %v5648 = vpack.c.b16 %v5586, %v5584
    %v5649 = vpack.c.b16 %v5587, %v5585
    %v5650 = vpack.c.b16 %v5590, %v5588
    %v5651 = vpack.c.b16 %v5591, %v5589
    %v5652 = vpack.c.b16 %v5594, %v5592
    %v5653 = vpack.c.b16 %v5595, %v5593
    %v5654 = vpack.c.b16 %v5598, %v5596
    %v5655 = vpack.c.b16 %v5599, %v5597
    %v5656 = vpack.c.b16 %v5602, %v5600
    %v5657 = vpack.c.b16 %v5603, %v5601
    %v5658 = vpack.c.b16 %v5606, %v5604
    %v5659 = vpack.c.b16 %v5607, %v5605
    %v5660 = vpack.c.b16 %v5610, %v5608
    %v5661 = vpack.c.b16 %v5611, %v5609
    %v5662 = vpack.c.b16 %v5614, %v5612
    %v5663 = vpack.c.b16 %v5615, %v5613
    %5712 = vmatprep.subr.bf16.mxu0 %v5617
    %5713 = vmatpush1.bf16.msra.mxu0 %v5616
    %5714 = vmatprep.subr.bf16.mxu0 %v5619
    %5715 = vmatpush1.bf16.msra.mxu0 %v5618
    %5716 = vmatprep.subr.bf16.mxu0 %v5621
    %5717 = vmatpush1.bf16.msra.mxu0 %v5620
    %5718 = vmatprep.subr.bf16.mxu0 %v5623
    %5719 = vmatpush1.bf16.msra.mxu0 %v5622
    %5720 = vmatprep.subr.bf16.mxu0 %v5625
    %5721 = vmatpush1.bf16.msra.mxu0 %v5624
    %5722 = vmatprep.subr.bf16.mxu0 %v5627
    %5723 = vmatpush1.bf16.msra.mxu0 %v5626
    %5724 = vmatprep.subr.bf16.mxu0 %v5629
    %5725 = vmatpush1.bf16.msra.mxu0 %v5628
    %5726 = vmatprep.subr.bf16.mxu0 %v5631
    %5727 = vmatpush1.bf16.msra.mxu0 %v5630
    %5728 = vmatprep.subr.bf16.mxu0 %v5633
    %5729 = vmatpush1.bf16.msra.mxu0 %v5632
    %5730 = vmatprep.subr.bf16.mxu0 %v5635
    %5731 = vmatpush1.bf16.msra.mxu0 %v5634
    %5732 = vmatprep.subr.bf16.mxu0 %v5637
    %5733 = vmatpush1.bf16.msra.mxu0 %v5636
    %5734 = vmatprep.subr.bf16.mxu0 %v5639
    %5735 = vmatpush1.bf16.msra.mxu0 %v5638
    %5736 = vmatprep.subr.bf16.mxu0 %v5641
    %5737 = vmatpush1.bf16.msra.mxu0 %v5640
    %5738 = vmatprep.subr.bf16.mxu0 %v5643
    %5739 = vmatpush1.bf16.msra.mxu0 %v5642
    %5740 = vmatprep.subr.bf16.mxu0 %v5645
    %5741 = vmatpush1.bf16.msra.mxu0 %v5644
    %5742 = vmatprep.subr.bf16.mxu0 %v5647
    %5743 = vmatpush1.bf16.msra.mxu0 %v5646
    %5744 = vmatprep.mubr.bf16.mxu0 %v5410
    %5745 = vmatmul.mubr.bf16.gmra.mrb[0].mxu0 %v5409
    %v5746 = vpop.f32.mrb[0].mxu0
    %v5747 = vadd.f32 %v5465, %v5746
    %v5748 = vpop.f32.mrb[0].mxu0
    %v5749 = vadd.f32 %v5469, %v5748
    %v5750 = vpop.f32.mrb[0].mxu0
    %v5751 = vpop.f32.mrb[0].mxu0
    %5752 = vdwg.mxu0
    %5753 = vmatprep.subr.bf16.mxu0 %v5649
    %5754 = vmatpush1.bf16.msra.mxu0 %v5648
    %5755 = vmatprep.subr.bf16.mxu0 %v5651
    %5756 = vmatpush1.bf16.msra.mxu0 %v5650
    %5757 = vmatprep.subr.bf16.mxu0 %v5653
    %5758 = vmatpush1.bf16.msra.mxu0 %v5652
    %5759 = vmatprep.subr.bf16.mxu0 %v5655
    %5760 = vmatpush1.bf16.msra.mxu0 %v5654
    %5761 = vmatprep.subr.bf16.mxu0 %v5657
    %5762 = vmatpush1.bf16.msra.mxu0 %v5656
    %5763 = vmatprep.subr.bf16.mxu0 %v5659
    %5764 = vmatpush1.bf16.msra.mxu0 %v5658
    %5765 = vmatprep.subr.bf16.mxu0 %v5661
    %5766 = vmatpush1.bf16.msra.mxu0 %v5660
    %5767 = vmatprep.subr.bf16.mxu0 %v5663
    %5768 = vmatpush1.bf16.msra.mxu0 %v5662
    %5769 = vmatprep.subr.bf16.mxu0 0
    %5770 = vmatpush1.bf16.msra.mxu0 0
    %5771 = vmatprep.subr.bf16.mxu0 0
    %5772 = vmatpush1.bf16.msra.mxu0 0
    %5773 = vmatprep.subr.bf16.mxu0 0
    %5774 = vmatpush1.bf16.msra.mxu0 0
    %5775 = vmatprep.subr.bf16.mxu0 0
    %5776 = vmatpush1.bf16.msra.mxu0 0
    %5777 = vmatprep.subr.bf16.mxu0 0
    %5778 = vmatpush1.bf16.msra.mxu0 0
    %5779 = vmatprep.subr.bf16.mxu0 0
    %5780 = vmatpush1.bf16.msra.mxu0 0
    %5781 = vmatprep.subr.bf16.mxu0 0
    %5782 = vmatpush1.bf16.msra.mxu0 0
    %5783 = vmatprep.subr.bf16.mxu0 0
    %5784 = vmatpush1.bf16.msra.mxu0 0
    %5785 = vmatprep.mubr.bf16.mxu0 0
    %5786 = vmatmul.mubr.bf16.gmra.mrb[0].mxu0 %v5411
    %v5787 = vpop.f32.mrb[0].mxu0
    %v5788 = vadd.f32 %v5747, %v5787
    %v5789 = vpop.f32.mrb[0].mxu0
    %v5790 = vadd.f32 %v5749, %v5789
    %v5791 = vpop.f32.mrb[0].mxu0
    %v5792 = vpop.f32.mrb[0].mxu0
    %5793 = vdwg.mxu0
    %v5794 = vmax.f32 %v5788, 0.0
    %v5795 = vmax.f32 %v5790, 0.0
    %v5796 = vmul.u32 %v337, 256
    %v5797 = vadd.s32 %v5796, %v339
    %v5798 = vadd.s32 %v5796, %v340
    %s5799 = sadd.s32 %s325, 5
    %s5800 = smul.u32 %s5799, 1640531527
    %v5801 = vstv %s5800
    %v5802 = vadd.s32 %v5797, %v5801
    %v5803 = vadd.s32 %v5798, %v5801
    %v5804 = vmul.u32 %v5802, 668265263
    %v5805 = vmul.u32 %v5803, 668265263
    %v5806 = vshra.s32 %v5804, 15
    %v5807 = vshra.s32 %v5805, 15
    %v5808 = vand.u32 %v5806, 131071
    %v5809 = vand.u32 %v5807, 131071
    %v5810 = vxor.u32 %v5804, %v5808
    %v5811 = vxor.u32 %v5805, %v5809
    %v5812 = vmul.u32 %v5810, 625341585
    %v5813 = vmul.u32 %v5811, 625341585
    %v5814 = vshra.s32 %v5812, 13
    %v5815 = vshra.s32 %v5813, 13
    %v5816 = vand.u32 %v5814, 524287
    %v5817 = vand.u32 %v5815, 524287
    %v5818 = vxor.u32 %v5812, %v5816
    %v5819 = vxor.u32 %v5813, %v5817
    %v5820 = vmul.u32 %v5818, 1640531527
    %v5821 = vmul.u32 %v5819, 1640531527
    %v5822 = vshra.s32 %v5820, 16
    %v5823 = vshra.s32 %v5821, 16
    %v5824 = vand.u32 %v5822, 65535
    %v5825 = vand.u32 %v5823, 65535
    %v5826 = vxor.u32 %v5820, %v5824
    %v5827 = vxor.u32 %v5821, %v5825
    %v5828 = vand.u32 %v5826, 8388607
    %v5829 = vand.u32 %v5827, 8388607
    %v5830 = vcvt.s32.f32 %v5828
    %v5831 = vcvt.s32.f32 %v5829
    %v5832 = vmul.f32 %v5830, 1.1920929e-07
    %v5833 = vmul.f32 %v5831, 1.1920929e-07
    %v5834 = vadd.f32 %v5832, 1e-07
    %v5835 = vadd.f32 %v5833, 1e-07
    %v5836 = vsub.f32 1.0, %v5832
    %v5837 = vsub.f32 1.0, %v5833
    %v5838 = vadd.f32 %v5836, 1e-07
    %v5839 = vadd.f32 %v5837, 1e-07
    %v5840 = vrcp.pop %v5838
    %v5841 = vmul.f32 %v5834, %v5840
    %v5842 = vrcp.pop %v5839
    %v5843 = vmul.f32 %v5835, %v5842
    %v5844 = vlog2.pop %v5841
    %v5845 = vmul.f32 %v5844, 0.6931472
    %v5846 = vlog2.pop %v5843
    %v5847 = vmul.f32 %v5846, 0.6931472
    %v5848 = vadd.f32 %v5845, -2.1972237
    %v5849 = vadd.f32 %v5847, -2.1972237
    %v5850 = vmul.f32 %v5848, 10.0
    %v5851 = vmul.f32 %v5849, 10.0
    %v5852 = vxor.u32 %v5850, 2147483648
    %v5853 = vxor.u32 %v5851, 2147483648
    %v5854 = vmul.f32 %v5852, 1.442695
    %v5855 = vpow.pop %v5854
    %v5856 = vmul.f32 %v5853, 1.442695
    %v5857 = vpow.pop %v5856
    %v5858 = vadd.f32 %v5855, 1.0
    %v5859 = vadd.f32 %v5857, 1.0
    %v5860 = vrcp.pop %v5858
    %v5861 = vmul.f32 1.0, %v5860
    %v5862 = vrcp.pop %v5859
    %v5863 = vmul.f32 1.0, %v5862
    %v5864 = vsub.f32 1.0, %v5861
    %v5865 = vsub.f32 1.0, %v5863
    %v5866 = vmul.f32 %v5794, %v5864
    %v5867 = vmul.f32 %v5795, %v5865
    %v5868 = vmul.f32 %v5866, 1.1111112
    %v5869 = vmul.f32 %v5867, 1.1111112
    %v5870 = vpack.c.bf16 %v5868, %v5868
    %v5871 = vpack.c.bf16 %v5869, %v5869
    %v5872 = vld [vmem:[#allocation17] sm:$0xf]
    %v5873 = vld [vmem:[#allocation17 + $0x4] sm:$0xf]
    %v5874 = vld [vmem:[#allocation17 + $0x8] sm:$0xf]
    %v5875 = vld [vmem:[#allocation17 + $0xc] sm:$0xf]
    %v5876 = vld [vmem:[#allocation17 + $0x10] sm:$0xf]
    %v5877 = vld [vmem:[#allocation17 + $0x14] sm:$0xf]
    %v5878 = vld [vmem:[#allocation17 + $0x18] sm:$0xf]
    %v5879 = vld [vmem:[#allocation17 + $0x1c] sm:$0xf]
    %v5880 = vld [vmem:[#allocation17 + $0x20] sm:$0xf]
    %v5881 = vld [vmem:[#allocation17 + $0x24] sm:$0xf]
    %v5882 = vld [vmem:[#allocation17 + $0x28] sm:$0xf]
    %v5883 = vld [vmem:[#allocation17 + $0x2c] sm:$0xf]
    %v5884 = vld [vmem:[#allocation17 + $0x30] sm:$0xf]
    %v5885 = vld [vmem:[#allocation17 + $0x34] sm:$0xf]
    %v5886 = vld [vmem:[#allocation17 + $0x38] sm:$0xf]
    %v5887 = vld [vmem:[#allocation17 + $0x3c] sm:$0xf]
    %v5888 = vld [vmem:[#allocation17 + $0x40] sm:$0xf]
    %v5889 = vld [vmem:[#allocation17 + $0x44] sm:$0xf]
    %v5890 = vld [vmem:[#allocation17 + $0x48] sm:$0xf]
    %v5891 = vld [vmem:[#allocation17 + $0x4c] sm:$0xf]
    %v5892 = vld [vmem:[#allocation17 + $0x50] sm:$0xf]
    %v5893 = vld [vmem:[#allocation17 + $0x54] sm:$0xf]
    %v5894 = vld [vmem:[#allocation17 + $0x58] sm:$0xf]
    %v5895 = vld [vmem:[#allocation17 + $0x5c] sm:$0xf]
    %v5896 = vld [vmem:[#allocation17 + $0x60] sm:$0xf]
    %v5897 = vld [vmem:[#allocation17 + $0x64] sm:$0xf]
    %v5898 = vld [vmem:[#allocation17 + $0x68] sm:$0xf]
    %v5899 = vld [vmem:[#allocation17 + $0x6c] sm:$0xf]
    %v5900 = vld [vmem:[#allocation17 + $0x70] sm:$0xf]
    %v5901 = vld [vmem:[#allocation17 + $0x74] sm:$0xf]
    %v5902 = vld [vmem:[#allocation17 + $0x78] sm:$0xf]
    %v5903 = vld [vmem:[#allocation17 + $0x7c] sm:$0xf]
    %v5904 = vld [vmem:[#allocation18] sm:$0x1]
    %v5906 = vlaneseq
    %v5907 = vshrl.u32 %v5906, 7
    %v5908 = vsub.s32 0, %v5907
    %v5909 = vrot.slane %v5904, %v5908
    %v5943 = vunpack.c.l.b16 %v5872
    %v5944 = vunpack.c.l.b16 %v5873
    %v5945 = vunpack.c.l.b16 %v5874
    %v5946 = vunpack.c.l.b16 %v5875
    %v5947 = vunpack.c.l.b16 %v5876
    %v5948 = vunpack.c.l.b16 %v5877
    %v5949 = vunpack.c.l.b16 %v5878
    %v5950 = vunpack.c.l.b16 %v5879
    %v5951 = vunpack.c.l.b16 %v5880
    %v5952 = vunpack.c.l.b16 %v5881
    %v5953 = vunpack.c.l.b16 %v5882
    %v5954 = vunpack.c.l.b16 %v5883
    %v5955 = vunpack.c.l.b16 %v5884
    %v5956 = vunpack.c.l.b16 %v5885
    %v5957 = vunpack.c.l.b16 %v5886
    %v5958 = vunpack.c.l.b16 %v5887
    %v5959 = vunpack.c.l.b16 %v5888
    %v5960 = vunpack.c.l.b16 %v5889
    %v5961 = vunpack.c.l.b16 %v5890
    %v5962 = vunpack.c.l.b16 %v5891
    %v5963 = vunpack.c.l.b16 %v5892
    %v5964 = vunpack.c.l.b16 %v5893
    %v5965 = vunpack.c.l.b16 %v5894
    %v5966 = vunpack.c.l.b16 %v5895
    %v5967 = vunpack.c.l.b16 %v5896
    %v5968 = vunpack.c.l.b16 %v5897
    %v5969 = vunpack.c.l.b16 %v5898
    %v5970 = vunpack.c.l.b16 %v5899
    %v5971 = vunpack.c.l.b16 %v5900
    %v5972 = vunpack.c.l.b16 %v5901
    %v5973 = vunpack.c.l.b16 %v5902
    %v5974 = vunpack.c.l.b16 %v5903
    %v5975 = vpack.c.b16 %v5944, %v5943
    %v5976 = vpack.c.b16 %v5946, %v5945
    %v5977 = vpack.c.b16 %v5948, %v5947
    %v5978 = vpack.c.b16 %v5950, %v5949
    %v5979 = vpack.c.b16 %v5952, %v5951
    %v5980 = vpack.c.b16 %v5954, %v5953
    %v5981 = vpack.c.b16 %v5956, %v5955
    %v5982 = vpack.c.b16 %v5958, %v5957
    %v5983 = vpack.c.b16 %v5960, %v5959
    %v5984 = vpack.c.b16 %v5962, %v5961
    %v5985 = vpack.c.b16 %v5964, %v5963
    %v5986 = vpack.c.b16 %v5966, %v5965
    %v5987 = vpack.c.b16 %v5968, %v5967
    %v5988 = vpack.c.b16 %v5970, %v5969
    %v5989 = vpack.c.b16 %v5972, %v5971
    %v5990 = vpack.c.b16 %v5974, %v5973
    %6007 = vmatprep.subr.bf16.mxu0 0
    %6008 = vmatpush1.bf16.msra.mxu0 %v5975
    %6009 = vmatprep.subr.bf16.mxu0 0
    %6010 = vmatpush1.bf16.msra.mxu0 %v5976
    %6011 = vmatprep.subr.bf16.mxu0 0
    %6012 = vmatpush1.bf16.msra.mxu0 %v5977
    %6013 = vmatprep.subr.bf16.mxu0 0
    %6014 = vmatpush1.bf16.msra.mxu0 %v5978
    %6015 = vmatprep.subr.bf16.mxu0 0
    %6016 = vmatpush1.bf16.msra.mxu0 %v5979
    %6017 = vmatprep.subr.bf16.mxu0 0
    %6018 = vmatpush1.bf16.msra.mxu0 %v5980
    %6019 = vmatprep.subr.bf16.mxu0 0
    %6020 = vmatpush1.bf16.msra.mxu0 %v5981
    %6021 = vmatprep.subr.bf16.mxu0 0
    %6022 = vmatpush1.bf16.msra.mxu0 %v5982
    %6023 = vmatprep.subr.bf16.mxu0 0
    %6024 = vmatpush1.bf16.msra.mxu0 %v5983
    %6025 = vmatprep.subr.bf16.mxu0 0
    %6026 = vmatpush1.bf16.msra.mxu0 %v5984
    %6027 = vmatprep.subr.bf16.mxu0 0
    %6028 = vmatpush1.bf16.msra.mxu0 %v5985
    %6029 = vmatprep.subr.bf16.mxu0 0
    %6030 = vmatpush1.bf16.msra.mxu0 %v5986
    %6031 = vmatprep.subr.bf16.mxu0 0
    %6032 = vmatpush1.bf16.msra.mxu0 %v5987
    %6033 = vmatprep.subr.bf16.mxu0 0
    %6034 = vmatpush1.bf16.msra.mxu0 %v5988
    %6035 = vmatprep.subr.bf16.mxu0 0
    %6036 = vmatpush1.bf16.msra.mxu0 %v5989
    %6037 = vmatprep.subr.bf16.mxu0 0
    %6038 = vmatpush1.bf16.msra.mxu0 %v5990
    %6039 = vmatprep.mubr.bf16.mxu0 %v5871
    %6040 = vmatmul.mubr.bf16.gmra.mrb[0].mxu0 %v5870
    %v6041 = vpop.f32.mrb[0].mxu0
    %v6042 = vadd.f32 %v5909, %v6041
    %v6043 = vpop.f32.mrb[0].mxu0
    %v6044 = vpop.f32.mrb[0].mxu0
    %v6045 = vpop.f32.mrb[0].mxu0
    %6046 = vdwg.mxu0
    %v6047 = vxor.u32 %v6042, 2147483648
    %v6048 = vmul.f32 %v6047, 1.442695
    %v6049 = vpow.pop %v6048
    %v6050 = vadd.f32 %v6049, 1.0
    %v6051 = vrcp.pop %v6050
    %v6052 = vmul.f32 1.0, %v6051
    %v6053 = vmul.u32 %v337, 128
    %v6054 = vadd.s32 %v6053, %v339
    %s6055 = sadd.s32 %s325, 6
    %s6056 = smul.u32 %s6055, 1640531527
    %v6057 = vstv %s6056
    %v6058 = vadd.s32 %v6054, %v6057
    %v6059 = vmul.u32 %v6058, 668265263
    %v6060 = vshra.s32 %v6059, 15
    %v6061 = vand.u32 %v6060, 131071
    %v6062 = vxor.u32 %v6059, %v6061
    %v6063 = vmul.u32 %v6062, 625341585
    %v6064 = vshra.s32 %v6063, 13
    %v6065 = vand.u32 %v6064, 524287
    %v6066 = vxor.u32 %v6063, %v6065
    %v6067 = vmul.u32 %v6066, 1640531527
    %v6068 = vshra.s32 %v6067, 16
    %v6069 = vand.u32 %v6068, 65535
    %v6070 = vxor.u32 %v6067, %v6069
    %v6071 = vand.u32 %v6070, 8388607
    %v6072 = vcvt.s32.f32 %v6071
    %v6073 = vmul.f32 %v6072, 1.1920929e-07
    %v6074 = vadd.f32 %v6073, 1e-07
    %v6075 = vsub.f32 1.0, %v6073
    %v6076 = vadd.f32 %v6075, 1e-07
    %v6077 = vrcp.pop %v6076
    %v6078 = vmul.f32 %v6074, %v6077
    %v6079 = vlog2.pop %v6078
    %v6080 = vmul.f32 %v6079, 0.6931472
    %v6081 = vadd.f32 %v6080, -2.1972237
    %v6082 = vmul.f32 %v6081, 10.0
    %v6083 = vxor.u32 %v6082, 2147483648
    %v6084 = vmul.f32 %v6083, 1.442695
    %v6085 = vpow.pop %v6084
    %v6086 = vadd.f32 %v6085, 1.0
    %v6087 = vrcp.pop %v6086
    %v6088 = vmul.f32 1.0, %v6087
    %v6089 = vsub.f32 1.0, %v6088
    %v6090 = vmul.f32 %v6052, %v6089
    %v6091 = vmul.f32 %v6090, 1.1111112
    %v6092 = vpack.c.bf16 %v6091, %v6091
    %v6093 = vld [vmem:[#allocation20] sm:$0xff]
    %v6094 = vld [vmem:[#allocation20 + $0x8] sm:$0xff]
    %v6095 = vld [vmem:[#allocation20 + $0x10] sm:$0xff]
    %v6096 = vld [vmem:[#allocation20 + $0x18] sm:$0xff]
    %v6097 = vld [vmem:[#allocation20 + $0x20] sm:$0xff]
    %v6098 = vld [vmem:[#allocation20 + $0x28] sm:$0xff]
    %v6099 = vld [vmem:[#allocation20 + $0x30] sm:$0xff]
    %v6100 = vld [vmem:[#allocation20 + $0x38] sm:$0xff]
    %v6101 = vld [vmem:[#allocation20 + $0x40] sm:$0xff]
    %v6102 = vld [vmem:[#allocation20 + $0x48] sm:$0xff]
    %v6103 = vld [vmem:[#allocation20 + $0x50] sm:$0xff]
    %v6104 = vld [vmem:[#allocation20 + $0x58] sm:$0xff]
    %v6105 = vld [vmem:[#allocation20 + $0x60] sm:$0xff]
    %v6106 = vld [vmem:[#allocation20 + $0x68] sm:$0xff]
    %v6107 = vld [vmem:[#allocation20 + $0x70] sm:$0xff]
    %v6108 = vld [vmem:[#allocation20 + $0x78] sm:$0xff]
    %v6109 = vld [vmem:[#allocation21] sm:$0x3]
    %v6111 = vlaneseq
    %v6112 = vshrl.u32 %v6111, 7
    %v6113 = vsub.s32 0, %v6112
    %v6114 = vrot.slane %v6109, %v6113
    %v6115 = vlaneseq
    %v6116 = vshrl.u32 %v6115, 7
    %v6117 = vsub.s32 1, %v6116
    %v6118 = vrot.slane %v6109, %v6117
    %v6137 = vunpack.c.l.b16 %v6093
    %v6138 = vunpack.c.h.b16 %v6093
    %v6139 = vunpack.c.l.b16 %v6094
    %v6140 = vunpack.c.h.b16 %v6094
    %v6141 = vunpack.c.l.b16 %v6095
    %v6142 = vunpack.c.h.b16 %v6095
    %v6143 = vunpack.c.l.b16 %v6096
    %v6144 = vunpack.c.h.b16 %v6096
    %v6145 = vunpack.c.l.b16 %v6097
    %v6146 = vunpack.c.h.b16 %v6097
    %v6147 = vunpack.c.l.b16 %v6098
    %v6148 = vunpack.c.h.b16 %v6098
    %v6149 = vunpack.c.l.b16 %v6099
    %v6150 = vunpack.c.h.b16 %v6099
    %v6151 = vunpack.c.l.b16 %v6100
    %v6152 = vunpack.c.h.b16 %v6100
    %v6153 = vunpack.c.l.b16 %v6101
    %v6154 = vunpack.c.h.b16 %v6101
    %v6155 = vunpack.c.l.b16 %v6102
    %v6156 = vunpack.c.h.b16 %v6102
    %v6157 = vunpack.c.l.b16 %v6103
    %v6158 = vunpack.c.h.b16 %v6103
    %v6159 = vunpack.c.l.b16 %v6104
    %v6160 = vunpack.c.h.b16 %v6104
    %v6161 = vunpack.c.l.b16 %v6105
    %v6162 = vunpack.c.h.b16 %v6105
    %v6163 = vunpack.c.l.b16 %v6106
    %v6164 = vunpack.c.h.b16 %v6106
    %v6165 = vunpack.c.l.b16 %v6107
    %v6166 = vunpack.c.h.b16 %v6107
    %v6167 = vunpack.c.l.b16 %v6108
    %v6168 = vunpack.c.h.b16 %v6108
    %v6169 = vpack.c.b16 %v6139, %v6137
    %v6170 = vpack.c.b16 %v6140, %v6138
    %v6171 = vpack.c.b16 %v6143, %v6141
    %v6172 = vpack.c.b16 %v6144, %v6142
    %v6173 = vpack.c.b16 %v6147, %v6145
    %v6174 = vpack.c.b16 %v6148, %v6146
    %v6175 = vpack.c.b16 %v6151, %v6149
    %v6176 = vpack.c.b16 %v6152, %v6150
    %v6177 = vpack.c.b16 %v6155, %v6153
    %v6178 = vpack.c.b16 %v6156, %v6154
    %v6179 = vpack.c.b16 %v6159, %v6157
    %v6180 = vpack.c.b16 %v6160, %v6158
    %v6181 = vpack.c.b16 %v6163, %v6161
    %v6182 = vpack.c.b16 %v6164, %v6162
    %v6183 = vpack.c.b16 %v6167, %v6165
    %v6184 = vpack.c.b16 %v6168, %v6166
    %6201 = vmatprep.subr.bf16.mxu0 %v6170
    %6202 = vmatpush1.bf16.msra.mxu0 %v6169
    %6203 = vmatprep.subr.bf16.mxu0 %v6172
    %6204 = vmatpush1.bf16.msra.mxu0 %v6171
    %6205 = vmatprep.subr.bf16.mxu0 %v6174
    %6206 = vmatpush1.bf16.msra.mxu0 %v6173
    %6207 = vmatprep.subr.bf16.mxu0 %v6176
    %6208 = vmatpush1.bf16.msra.mxu0 %v6175
    %6209 = vmatprep.subr.bf16.mxu0 %v6178
    %6210 = vmatpush1.bf16.msra.mxu0 %v6177
    %6211 = vmatprep.subr.bf16.mxu0 %v6180
    %6212 = vmatpush1.bf16.msra.mxu0 %v6179
    %6213 = vmatprep.subr.bf16.mxu0 %v6182
    %6214 = vmatpush1.bf16.msra.mxu0 %v6181
    %6215 = vmatprep.subr.bf16.mxu0 %v6184
    %6216 = vmatpush1.bf16.msra.mxu0 %v6183
    %6217 = vmatprep.subr.bf16.mxu0 0
    %6218 = vmatpush1.bf16.msra.mxu0 0
    %6219 = vmatprep.subr.bf16.mxu0 0
    %6220 = vmatpush1.bf16.msra.mxu0 0
    %6221 = vmatprep.subr.bf16.mxu0 0
    %6222 = vmatpush1.bf16.msra.mxu0 0
    %6223 = vmatprep.subr.bf16.mxu0 0
    %6224 = vmatpush1.bf16.msra.mxu0 0
    %6225 = vmatprep.subr.bf16.mxu0 0
    %6226 = vmatpush1.bf16.msra.mxu0 0
    %6227 = vmatprep.subr.bf16.mxu0 0
    %6228 = vmatpush1.bf16.msra.mxu0 0
    %6229 = vmatprep.subr.bf16.mxu0 0
    %6230 = vmatpush1.bf16.msra.mxu0 0
    %6231 = vmatprep.subr.bf16.mxu0 0
    %6232 = vmatpush1.bf16.msra.mxu0 0
    %6233 = vmatprep.mubr.bf16.mxu0 0
    %6234 = vmatmul.mubr.bf16.gmra.mrb[0].mxu0 %v6092
    %v6235 = vpop.f32.mrb[0].mxu0
    %v6236 = vadd.f32 %v6114, %v6235
    %v6237 = vpop.f32.mrb[0].mxu0
    %v6238 = vadd.f32 %v6118, %v6237
    %v6239 = vpop.f32.mrb[0].mxu0
    %v6240 = vpop.f32.mrb[0].mxu0
    %6241 = vdwg.mxu0
    %v6242 = vmax.f32 %v6236, 0.0
    %v6243 = vmax.f32 %v6238, 0.0
    %s6244 = sadd.s32 %s325, 7
    %s6245 = smul.u32 %s6244, 1640531527
    %v6246 = vstv %s6245
    %v6247 = vadd.s32 %v5797, %v6246
    %v6248 = vadd.s32 %v5798, %v6246
    %v6249 = vmul.u32 %v6247, 668265263
    %v6250 = vmul.u32 %v6248, 668265263
    %v6251 = vshra.s32 %v6249, 15
    %v6252 = vshra.s32 %v6250, 15
    %v6253 = vand.u32 %v6251, 131071
    %v6254 = vand.u32 %v6252, 131071
    %v6255 = vxor.u32 %v6249, %v6253
    %v6256 = vxor.u32 %v6250, %v6254
    %v6257 = vmul.u32 %v6255, 625341585
    %v6258 = vmul.u32 %v6256, 625341585
    %v6259 = vshra.s32 %v6257, 13
    %v6260 = vshra.s32 %v6258, 13
    %v6261 = vand.u32 %v6259, 524287
    %v6262 = vand.u32 %v6260, 524287
    %v6263 = vxor.u32 %v6257, %v6261
    %v6264 = vxor.u32 %v6258, %v6262
    %v6265 = vmul.u32 %v6263, 1640531527
    %v6266 = vmul.u32 %v6264, 1640531527
    %v6267 = vshra.s32 %v6265, 16
    %v6268 = vshra.s32 %v6266, 16
    %v6269 = vand.u32 %v6267, 65535
    %v6270 = vand.u32 %v6268, 65535
    %v6271 = vxor.u32 %v6265, %v6269
    %v6272 = vxor.u32 %v6266, %v6270
    %v6273 = vand.u32 %v6271, 8388607
    %v6274 = vand.u32 %v6272, 8388607
    %v6275 = vcvt.s32.f32 %v6273
    %v6276 = vcvt.s32.f32 %v6274
    %v6277 = vmul.f32 %v6275, 1.1920929e-07
    %v6278 = vmul.f32 %v6276, 1.1920929e-07
    %v6279 = vadd.f32 %v6277, 1e-07
    %v6280 = vadd.f32 %v6278, 1e-07
    %v6281 = vsub.f32 1.0, %v6277
    %v6282 = vsub.f32 1.0, %v6278
    %v6283 = vadd.f32 %v6281, 1e-07
    %v6284 = vadd.f32 %v6282, 1e-07
    %v6285 = vrcp.pop %v6283
    %v6286 = vmul.f32 %v6279, %v6285
    %v6287 = vrcp.pop %v6284
    %v6288 = vmul.f32 %v6280, %v6287
    %v6289 = vlog2.pop %v6286
    %v6290 = vmul.f32 %v6289, 0.6931472
    %v6291 = vlog2.pop %v6288
    %v6292 = vmul.f32 %v6291, 0.6931472
    %v6293 = vadd.f32 %v6290, -2.1972237
    %v6294 = vadd.f32 %v6292, -2.1972237
    %v6295 = vmul.f32 %v6293, 10.0
    %v6296 = vmul.f32 %v6294, 10.0
    %v6297 = vxor.u32 %v6295, 2147483648
    %v6298 = vxor.u32 %v6296, 2147483648
    %v6299 = vmul.f32 %v6297, 1.442695
    %v6300 = vpow.pop %v6299
    %v6301 = vmul.f32 %v6298, 1.442695
    %v6302 = vpow.pop %v6301
    %v6303 = vadd.f32 %v6300, 1.0
    %v6304 = vadd.f32 %v6302, 1.0
    %v6305 = vrcp.pop %v6303
    %v6306 = vmul.f32 1.0, %v6305
    %v6307 = vrcp.pop %v6304
    %v6308 = vmul.f32 1.0, %v6307
    %v6309 = vsub.f32 1.0, %v6306
    %v6310 = vsub.f32 1.0, %v6308
    %v6311 = vmul.f32 %v6242, %v6309
    %v6312 = vmul.f32 %v6243, %v6310
    %v6313 = vmul.f32 %v6311, 1.1111112
    %v6314 = vmul.f32 %v6312, 1.1111112
    %v6315 = vpack.c.bf16 %v6313, %v6313
    %v6316 = vpack.c.bf16 %v6314, %v6314
    %v6317 = vld [vmem:[#allocation23] sm:$0xff]
    %v6318 = vld [vmem:[#allocation23 + $0x8] sm:$0xf]
    %v6319 = vld [vmem:[#allocation23 + $0xc] sm:$0xff]
    %v6320 = vld [vmem:[#allocation23 + $0x14] sm:$0xf]
    %v6321 = vld [vmem:[#allocation23 + $0x18] sm:$0xff]
    %v6322 = vld [vmem:[#allocation23 + $0x20] sm:$0xf]
    %v6323 = vld [vmem:[#allocation23 + $0x24] sm:$0xff]
    %v6324 = vld [vmem:[#allocation23 + $0x2c] sm:$0xf]
    %v6325 = vld [vmem:[#allocation23 + $0x30] sm:$0xff]
    %v6326 = vld [vmem:[#allocation23 + $0x38] sm:$0xf]
    %v6327 = vld [vmem:[#allocation23 + $0x3c] sm:$0xff]
    %v6328 = vld [vmem:[#allocation23 + $0x44] sm:$0xf]
    %v6329 = vld [vmem:[#allocation23 + $0x48] sm:$0xff]
    %v6330 = vld [vmem:[#allocation23 + $0x50] sm:$0xf]
    %v6331 = vld [vmem:[#allocation23 + $0x54] sm:$0xff]
    %v6332 = vld [vmem:[#allocation23 + $0x5c] sm:$0xf]
    %v6333 = vld [vmem:[#allocation23 + $0x60] sm:$0xff]
    %v6334 = vld [vmem:[#allocation23 + $0x68] sm:$0xf]
    %v6335 = vld [vmem:[#allocation23 + $0x6c] sm:$0xff]
    %v6336 = vld [vmem:[#allocation23 + $0x74] sm:$0xf]
    %v6337 = vld [vmem:[#allocation23 + $0x78] sm:$0xff]
    %v6338 = vld [vmem:[#allocation23 + $0x80] sm:$0xf]
    %v6339 = vld [vmem:[#allocation23 + $0x84] sm:$0xff]
    %v6340 = vld [vmem:[#allocation23 + $0x8c] sm:$0xf]
    %v6341 = vld [vmem:[#allocation23 + $0x90] sm:$0xff]
    %v6342 = vld [vmem:[#allocation23 + $0x98] sm:$0xf]
    %v6343 = vld [vmem:[#allocation23 + $0x9c] sm:$0xff]
    %v6344 = vld [vmem:[#allocation23 + $0xa4] sm:$0xf]
    %v6345 = vld [vmem:[#allocation23 + $0xa8] sm:$0xff]
    %v6346 = vld [vmem:[#allocation23 + $0xb0] sm:$0xf]
    %v6347 = vld [vmem:[#allocation23 + $0xb4] sm:$0xff]
    %v6348 = vld [vmem:[#allocation23 + $0xbc] sm:$0xf]
    %v6349 = vld [vmem:[#allocation23 + $0xc0] sm:$0xff]
    %v6350 = vld [vmem:[#allocation23 + $0xc8] sm:$0xf]
    %v6351 = vld [vmem:[#allocation23 + $0xcc] sm:$0xff]
    %v6352 = vld [vmem:[#allocation23 + $0xd4] sm:$0xf]
    %v6353 = vld [vmem:[#allocation23 + $0xd8] sm:$0xff]
    %v6354 = vld [vmem:[#allocation23 + $0xe0] sm:$0xf]
    %v6355 = vld [vmem:[#allocation23 + $0xe4] sm:$0xff]
    %v6356 = vld [vmem:[#allocation23 + $0xec] sm:$0xf]
    %v6357 = vld [vmem:[#allocation23 + $0xf0] sm:$0xff]
    %v6358 = vld [vmem:[#allocation23 + $0xf8] sm:$0xf]
    %v6359 = vld [vmem:[#allocation23 + $0xfc] sm:$0xff]
    %v6360 = vld [vmem:[#allocation23 + $0x104] sm:$0xf]
    %v6361 = vld [vmem:[#allocation23 + $0x108] sm:$0xff]
    %v6362 = vld [vmem:[#allocation23 + $0x110] sm:$0xf]
    %v6363 = vld [vmem:[#allocation23 + $0x114] sm:$0xff]
    %v6364 = vld [vmem:[#allocation23 + $0x11c] sm:$0xf]
    %v6365 = vld [vmem:[#allocation23 + $0x120] sm:$0xff]
    %v6366 = vld [vmem:[#allocation23 + $0x128] sm:$0xf]
    %v6367 = vld [vmem:[#allocation23 + $0x12c] sm:$0xff]
    %v6368 = vld [vmem:[#allocation23 + $0x134] sm:$0xf]
    %v6369 = vld [vmem:[#allocation23 + $0x138] sm:$0xff]
    %v6370 = vld [vmem:[#allocation23 + $0x140] sm:$0xf]
    %v6371 = vld [vmem:[#allocation23 + $0x144] sm:$0xff]
    %v6372 = vld [vmem:[#allocation23 + $0x14c] sm:$0xf]
    %v6373 = vld [vmem:[#allocation23 + $0x150] sm:$0xff]
    %v6374 = vld [vmem:[#allocation23 + $0x158] sm:$0xf]
    %v6375 = vld [vmem:[#allocation23 + $0x15c] sm:$0xff]
    %v6376 = vld [vmem:[#allocation23 + $0x164] sm:$0xf]
    %v6377 = vld [vmem:[#allocation23 + $0x168] sm:$0xff]
    %v6378 = vld [vmem:[#allocation23 + $0x170] sm:$0xf]
    %v6379 = vld [vmem:[#allocation23 + $0x174] sm:$0xff]
    %v6380 = vld [vmem:[#allocation23 + $0x17c] sm:$0xf]
    %v6381 = vld [vmem:[#allocation24] sm:$0x7]
    %v6383 = vlaneseq
    %v6384 = vshrl.u32 %v6383, 7
    %v6385 = vsub.s32 0, %v6384
    %v6386 = vrot.slane %v6381, %v6385
    %v6387 = vlaneseq
    %v6388 = vshrl.u32 %v6387, 7
    %v6389 = vsub.s32 1, %v6388
    %v6390 = vrot.slane %v6381, %v6389
    %v6391 = vlaneseq
    %v6392 = vshrl.u32 %v6391, 7
    %v6393 = vsub.s32 2, %v6392
    %v6394 = vrot.slane %v6381, %v6393
    %v6462 = vunpack.c.l.b16 %v6317
    %v6463 = vunpack.c.h.b16 %v6317
    %v6464 = vunpack.c.l.b16 %v6318
    %v6465 = vunpack.c.l.b16 %v6319
    %v6466 = vunpack.c.h.b16 %v6319
    %v6467 = vunpack.c.l.b16 %v6320
    %v6468 = vunpack.c.l.b16 %v6321
    %v6469 = vunpack.c.h.b16 %v6321
    %v6470 = vunpack.c.l.b16 %v6322
    %v6471 = vunpack.c.l.b16 %v6323
    %v6472 = vunpack.c.h.b16 %v6323
    %v6473 = vunpack.c.l.b16 %v6324
    %v6474 = vunpack.c.l.b16 %v6325
    %v6475 = vunpack.c.h.b16 %v6325
    %v6476 = vunpack.c.l.b16 %v6326
    %v6477 = vunpack.c.l.b16 %v6327
    %v6478 = vunpack.c.h.b16 %v6327
    %v6479 = vunpack.c.l.b16 %v6328
    %v6480 = vunpack.c.l.b16 %v6329
    %v6481 = vunpack.c.h.b16 %v6329
    %v6482 = vunpack.c.l.b16 %v6330
    %v6483 = vunpack.c.l.b16 %v6331
    %v6484 = vunpack.c.h.b16 %v6331
    %v6485 = vunpack.c.l.b16 %v6332
    %v6486 = vunpack.c.l.b16 %v6333
    %v6487 = vunpack.c.h.b16 %v6333
    %v6488 = vunpack.c.l.b16 %v6334
    %v6489 = vunpack.c.l.b16 %v6335
    %v6490 = vunpack.c.h.b16 %v6335
    %v6491 = vunpack.c.l.b16 %v6336
    %v6492 = vunpack.c.l.b16 %v6337
    %v6493 = vunpack.c.h.b16 %v6337
    %v6494 = vunpack.c.l.b16 %v6338
    %v6495 = vunpack.c.l.b16 %v6339
    %v6496 = vunpack.c.h.b16 %v6339
    %v6497 = vunpack.c.l.b16 %v6340
    %v6498 = vunpack.c.l.b16 %v6341
    %v6499 = vunpack.c.h.b16 %v6341
    %v6500 = vunpack.c.l.b16 %v6342
    %v6501 = vunpack.c.l.b16 %v6343
    %v6502 = vunpack.c.h.b16 %v6343
    %v6503 = vunpack.c.l.b16 %v6344
    %v6504 = vunpack.c.l.b16 %v6345
    %v6505 = vunpack.c.h.b16 %v6345
    %v6506 = vunpack.c.l.b16 %v6346
    %v6507 = vunpack.c.l.b16 %v6347
    %v6508 = vunpack.c.h.b16 %v6347
    %v6509 = vunpack.c.l.b16 %v6348
    %v6510 = vunpack.c.l.b16 %v6349
    %v6511 = vunpack.c.h.b16 %v6349
    %v6512 = vunpack.c.l.b16 %v6350
    %v6513 = vunpack.c.l.b16 %v6351
    %v6514 = vunpack.c.h.b16 %v6351
    %v6515 = vunpack.c.l.b16 %v6352
    %v6516 = vunpack.c.l.b16 %v6353
    %v6517 = vunpack.c.h.b16 %v6353
    %v6518 = vunpack.c.l.b16 %v6354
    %v6519 = vunpack.c.l.b16 %v6355
    %v6520 = vunpack.c.h.b16 %v6355
    %v6521 = vunpack.c.l.b16 %v6356
    %v6522 = vunpack.c.l.b16 %v6357
    %v6523 = vunpack.c.h.b16 %v6357
    %v6524 = vunpack.c.l.b16 %v6358
    %v6525 = vunpack.c.l.b16 %v6359
    %v6526 = vunpack.c.h.b16 %v6359
    %v6527 = vunpack.c.l.b16 %v6360
    %v6528 = vunpack.c.l.b16 %v6361
    %v6529 = vunpack.c.h.b16 %v6361
    %v6530 = vunpack.c.l.b16 %v6362
    %v6531 = vunpack.c.l.b16 %v6363
    %v6532 = vunpack.c.h.b16 %v6363
    %v6533 = vunpack.c.l.b16 %v6364
    %v6534 = vunpack.c.l.b16 %v6365
    %v6535 = vunpack.c.h.b16 %v6365
    %v6536 = vunpack.c.l.b16 %v6366
    %v6537 = vunpack.c.l.b16 %v6367
    %v6538 = vunpack.c.h.b16 %v6367
    %v6539 = vunpack.c.l.b16 %v6368
    %v6540 = vunpack.c.l.b16 %v6369
    %v6541 = vunpack.c.h.b16 %v6369
    %v6542 = vunpack.c.l.b16 %v6370
    %v6543 = vunpack.c.l.b16 %v6371
    %v6544 = vunpack.c.h.b16 %v6371
    %v6545 = vunpack.c.l.b16 %v6372
    %v6546 = vunpack.c.l.b16 %v6373
    %v6547 = vunpack.c.h.b16 %v6373
    %v6548 = vunpack.c.l.b16 %v6374
    %v6549 = vunpack.c.l.b16 %v6375
    %v6550 = vunpack.c.h.b16 %v6375
    %v6551 = vunpack.c.l.b16 %v6376
    %v6552 = vunpack.c.l.b16 %v6377
    %v6553 = vunpack.c.h.b16 %v6377
    %v6554 = vunpack.c.l.b16 %v6378
    %v6555 = vunpack.c.l.b16 %v6379
    %v6556 = vunpack.c.h.b16 %v6379
    %v6557 = vunpack.c.l.b16 %v6380
    %v6558 = vpack.c.b16 %v6465, %v6462
    %v6559 = vpack.c.b16 %v6466, %v6463
    %v6560 = vpack.c.b16 %v6467, %v6464
    %v6561 = vpack.c.b16 %v6471, %v6468
    %v6562 = vpack.c.b16 %v6472, %v6469
    %v6563 = vpack.c.b16 %v6473, %v6470
    %v6564 = vpack.c.b16 %v6477, %v6474
    %v6565 = vpack.c.b16 %v6478, %v6475
    %v6566 = vpack.c.b16 %v6479, %v6476
    %v6567 = vpack.c.b16 %v6483, %v6480
    %v6568 = vpack.c.b16 %v6484, %v6481
    %v6569 = vpack.c.b16 %v6485, %v6482
    %v6570 = vpack.c.b16 %v6489, %v6486
    %v6571 = vpack.c.b16 %v6490, %v6487
    %v6572 = vpack.c.b16 %v6491, %v6488
    %v6573 = vpack.c.b16 %v6495, %v6492
    %v6574 = vpack.c.b16 %v6496, %v6493
    %v6575 = vpack.c.b16 %v6497, %v6494
    %v6576 = vpack.c.b16 %v6501, %v6498
    %v6577 = vpack.c.b16 %v6502, %v6499
    %v6578 = vpack.c.b16 %v6503, %v6500
    %v6579 = vpack.c.b16 %v6507, %v6504
    %v6580 = vpack.c.b16 %v6508, %v6505
    %v6581 = vpack.c.b16 %v6509, %v6506
    %v6582 = vpack.c.b16 %v6513, %v6510
    %v6583 = vpack.c.b16 %v6514, %v6511
    %v6584 = vpack.c.b16 %v6515, %v6512
    %v6585 = vpack.c.b16 %v6519, %v6516
    %v6586 = vpack.c.b16 %v6520, %v6517
    %v6587 = vpack.c.b16 %v6521, %v6518
    %v6588 = vpack.c.b16 %v6525, %v6522
    %v6589 = vpack.c.b16 %v6526, %v6523
    %v6590 = vpack.c.b16 %v6527, %v6524
    %v6591 = vpack.c.b16 %v6531, %v6528
    %v6592 = vpack.c.b16 %v6532, %v6529
    %v6593 = vpack.c.b16 %v6533, %v6530
    %v6594 = vpack.c.b16 %v6537, %v6534
    %v6595 = vpack.c.b16 %v6538, %v6535
    %v6596 = vpack.c.b16 %v6539, %v6536
    %v6597 = vpack.c.b16 %v6543, %v6540
    %v6598 = vpack.c.b16 %v6544, %v6541
    %v6599 = vpack.c.b16 %v6545, %v6542
    %v6600 = vpack.c.b16 %v6549, %v6546
    %v6601 = vpack.c.b16 %v6550, %v6547
    %v6602 = vpack.c.b16 %v6551, %v6548
    %v6603 = vpack.c.b16 %v6555, %v6552
    %v6604 = vpack.c.b16 %v6556, %v6553
    %v6605 = vpack.c.b16 %v6557, %v6554
    %6654 = vmatprep.subr.bf16.mxu0 %v6559
    %6655 = vmatpush1.bf16.msra.mxu0 %v6558
    %6656 = vmatprep.subr.bf16.mxu0 %v6562
    %6657 = vmatpush1.bf16.msra.mxu0 %v6561
    %6658 = vmatprep.subr.bf16.mxu0 %v6565
    %6659 = vmatpush1.bf16.msra.mxu0 %v6564
    %6660 = vmatprep.subr.bf16.mxu0 %v6568
    %6661 = vmatpush1.bf16.msra.mxu0 %v6567
    %6662 = vmatprep.subr.bf16.mxu0 %v6571
    %6663 = vmatpush1.bf16.msra.mxu0 %v6570
    %6664 = vmatprep.subr.bf16.mxu0 %v6574
    %6665 = vmatpush1.bf16.msra.mxu0 %v6573
    %6666 = vmatprep.subr.bf16.mxu0 %v6577
    %6667 = vmatpush1.bf16.msra.mxu0 %v6576
    %6668 = vmatprep.subr.bf16.mxu0 %v6580
    %6669 = vmatpush1.bf16.msra.mxu0 %v6579
    %6670 = vmatprep.subr.bf16.mxu0 %v6583
    %6671 = vmatpush1.bf16.msra.mxu0 %v6582
    %6672 = vmatprep.subr.bf16.mxu0 %v6586
    %6673 = vmatpush1.bf16.msra.mxu0 %v6585
    %6674 = vmatprep.subr.bf16.mxu0 %v6589
    %6675 = vmatpush1.bf16.msra.mxu0 %v6588
    %6676 = vmatprep.subr.bf16.mxu0 %v6592
    %6677 = vmatpush1.bf16.msra.mxu0 %v6591
    %6678 = vmatprep.subr.bf16.mxu0 %v6595
    %6679 = vmatpush1.bf16.msra.mxu0 %v6594
    %6680 = vmatprep.subr.bf16.mxu0 %v6598
    %6681 = vmatpush1.bf16.msra.mxu0 %v6597
    %6682 = vmatprep.subr.bf16.mxu0 %v6601
    %6683 = vmatpush1.bf16.msra.mxu0 %v6600
    %6684 = vmatprep.subr.bf16.mxu0 %v6604
    %6685 = vmatpush1.bf16.msra.mxu0 %v6603
    %6686 = vmatprep.mubr.bf16.mxu0 %v6316
    %6687 = vmatmul.mubr.bf16.gmra.mrb[0].mxu0 %v6315
    %v6688 = vpop.f32.mrb[0].mxu0
    %v6689 = vadd.f32 %v6386, %v6688
    %v6690 = vpop.f32.mrb[0].mxu0
    %v6691 = vadd.f32 %v6390, %v6690
    %v6692 = vpop.f32.mrb[0].mxu0
    %v6693 = vpop.f32.mrb[0].mxu0
    %6694 = vdwg.mxu0
    %6695 = vmatprep.subr.bf16.mxu0 0
    %6696 = vmatpush1.bf16.msra.mxu0 %v6560
    %6697 = vmatprep.subr.bf16.mxu0 0
    %6698 = vmatpush1.bf16.msra.mxu0 %v6563
    %6699 = vmatprep.subr.bf16.mxu0 0
    %6700 = vmatpush1.bf16.msra.mxu0 %v6566
    %6701 = vmatprep.subr.bf16.mxu0 0
    %6702 = vmatpush1.bf16.msra.mxu0 %v6569
    %6703 = vmatprep.subr.bf16.mxu0 0
    %6704 = vmatpush1.bf16.msra.mxu0 %v6572
    %6705 = vmatprep.subr.bf16.mxu0 0
    %6706 = vmatpush1.bf16.msra.mxu0 %v6575
    %6707 = vmatprep.subr.bf16.mxu0 0
    %6708 = vmatpush1.bf16.msra.mxu0 %v6578
    %6709 = vmatprep.subr.bf16.mxu0 0
    %6710 = vmatpush1.bf16.msra.mxu0 %v6581
    %6711 = vmatprep.subr.bf16.mxu0 0
    %6712 = vmatpush1.bf16.msra.mxu0 %v6584
    %6713 = vmatprep.subr.bf16.mxu0 0
    %6714 = vmatpush1.bf16.msra.mxu0 %v6587
    %6715 = vmatprep.subr.bf16.mxu0 0
    %6716 = vmatpush1.bf16.msra.mxu0 %v6590
    %6717 = vmatprep.subr.bf16.mxu0 0
    %6718 = vmatpush1.bf16.msra.mxu0 %v6593
    %6719 = vmatprep.subr.bf16.mxu0 0
    %6720 = vmatpush1.bf16.msra.mxu0 %v6596
    %6721 = vmatprep.subr.bf16.mxu0 0
    %6722 = vmatpush1.bf16.msra.mxu0 %v6599
    %6723 = vmatprep.subr.bf16.mxu0 0
    %6724 = vmatpush1.bf16.msra.mxu0 %v6602
    %6725 = vmatprep.subr.bf16.mxu0 0
    %6726 = vmatpush1.bf16.msra.mxu0 %v6605
    %6727 = vmatprep.mubr.bf16.mxu0 %v6316
    %6728 = vmatmul.mubr.bf16.gmra.mrb[0].mxu0 %v6315
    %v6729 = vpop.f32.mrb[0].mxu0
    %v6730 = vadd.f32 %v6394, %v6729
    %v6731 = vpop.f32.mrb[0].mxu0
    %v6732 = vpop.f32.mrb[0].mxu0
    %v6733 = vpop.f32.mrb[0].mxu0
    %6734 = vdwg.mxu0
    %v6735 = vmax.f32 %v6689, 0.0
    %v6736 = vmax.f32 %v6691, 0.0
    %v6737 = vmax.f32 %v6730, 0.0
    %s6738 = sadd.s32 %s325, 8
    %s6739 = smul.u32 %s6738, 1640531527
    %v6740 = vstv %s6739
    %v6741 = vadd.s32 %v5301, %v6740
    %v6742 = vadd.s32 %v5302, %v6740
    %v6743 = vadd.s32 %v5303, %v6740
    %v6744 = vmul.u32 %v6741, 668265263
    %v6745 = vmul.u32 %v6742, 668265263
    %v6746 = vmul.u32 %v6743, 668265263
    %v6747 = vshra.s32 %v6744, 15
    %v6748 = vshra.s32 %v6745, 15
    %v6749 = vshra.s32 %v6746, 15
    %v6750 = vand.u32 %v6747, 131071
    %v6751 = vand.u32 %v6748, 131071
    %v6752 = vand.u32 %v6749, 131071
    %v6753 = vxor.u32 %v6744, %v6750
    %v6754 = vxor.u32 %v6745, %v6751
    %v6755 = vxor.u32 %v6746, %v6752
    %v6756 = vmul.u32 %v6753, 625341585
    %v6757 = vmul.u32 %v6754, 625341585
    %v6758 = vmul.u32 %v6755, 625341585
    %v6759 = vshra.s32 %v6756, 13
    %v6760 = vshra.s32 %v6757, 13
    %v6761 = vshra.s32 %v6758, 13
    %v6762 = vand.u32 %v6759, 524287
    %v6763 = vand.u32 %v6760, 524287
    %v6764 = vand.u32 %v6761, 524287
    %v6765 = vxor.u32 %v6756, %v6762
    %v6766 = vxor.u32 %v6757, %v6763
    %v6767 = vxor.u32 %v6758, %v6764
    %v6768 = vmul.u32 %v6765, 1640531527
    %v6769 = vmul.u32 %v6766, 1640531527
    %v6770 = vmul.u32 %v6767, 1640531527
    %v6771 = vshra.s32 %v6768, 16
    %v6772 = vshra.s32 %v6769, 16
    %v6773 = vshra.s32 %v6770, 16
    %v6774 = vand.u32 %v6771, 65535
    %v6775 = vand.u32 %v6772, 65535
    %v6776 = vand.u32 %v6773, 65535
    %v6777 = vxor.u32 %v6768, %v6774
    %v6778 = vxor.u32 %v6769, %v6775
    %v6779 = vxor.u32 %v6770, %v6776
    %v6780 = vand.u32 %v6777, 8388607
    %v6781 = vand.u32 %v6778, 8388607
    %v6782 = vand.u32 %v6779, 8388607
    %v6783 = vcvt.s32.f32 %v6780
    %v6784 = vcvt.s32.f32 %v6781
    %v6785 = vcvt.s32.f32 %v6782
    %v6786 = vmul.f32 %v6783, 1.1920929e-07
    %v6787 = vmul.f32 %v6784, 1.1920929e-07
    %v6788 = vmul.f32 %v6785, 1.1920929e-07
    %v6789 = vadd.f32 %v6786, 1e-07
    %v6790 = vadd.f32 %v6787, 1e-07
    %v6791 = vadd.f32 %v6788, 1e-07
    %v6792 = vsub.f32 1.0, %v6786
    %v6793 = vsub.f32 1.0, %v6787
    %v6794 = vsub.f32 1.0, %v6788
    %v6795 = vadd.f32 %v6792, 1e-07
    %v6796 = vadd.f32 %v6793, 1e-07
    %v6797 = vadd.f32 %v6794, 1e-07
    %v6798 = vrcp.pop %v6795
    %v6799 = vmul.f32 %v6789, %v6798
    %v6800 = vrcp.pop %v6796
    %v6801 = vmul.f32 %v6790, %v6800
    %v6802 = vrcp.pop %v6797
    %v6803 = vmul.f32 %v6791, %v6802
    %v6804 = vlog2.pop %v6799
    %v6805 = vmul.f32 %v6804, 0.6931472
    %v6806 = vlog2.pop %v6801
    %v6807 = vmul.f32 %v6806, 0.6931472
    %v6808 = vlog2.pop %v6803
    %v6809 = vmul.f32 %v6808, 0.6931472
    %v6810 = vadd.f32 %v6805, -2.1972237
    %v6811 = vadd.f32 %v6807, -2.1972237
    %v6812 = vadd.f32 %v6809, -2.1972237
    %v6813 = vmul.f32 %v6810, 10.0
    %v6814 = vmul.f32 %v6811, 10.0
    %v6815 = vmul.f32 %v6812, 10.0
    %v6816 = vxor.u32 %v6813, 2147483648
    %v6817 = vxor.u32 %v6814, 2147483648
    %v6818 = vxor.u32 %v6815, 2147483648
    %v6819 = vmul.f32 %v6816, 1.442695
    %v6820 = vpow.pop %v6819
    %v6821 = vmul.f32 %v6817, 1.442695
    %v6822 = vpow.pop %v6821
    %v6823 = vmul.f32 %v6818, 1.442695
    %v6824 = vpow.pop %v6823
    %v6825 = vadd.f32 %v6820, 1.0
    %v6826 = vadd.f32 %v6822, 1.0
    %v6827 = vadd.f32 %v6824, 1.0
    %v6828 = vrcp.pop %v6825
    %v6829 = vmul.f32 1.0, %v6828
    %v6830 = vrcp.pop %v6826
    %v6831 = vmul.f32 1.0, %v6830
    %v6832 = vrcp.pop %v6827
    %v6833 = vmul.f32 1.0, %v6832
    %v6834 = vsub.f32 1.0, %v6829
    %v6835 = vsub.f32 1.0, %v6831
    %v6836 = vsub.f32 1.0, %v6833
    %v6837 = vmul.f32 %v6735, %v6834
    %v6838 = vmul.f32 %v6736, %v6835
    %v6839 = vmul.f32 %v6737, %v6836
    %v6840 = vmul.f32 %v6837, 1.1111112
    %v6841 = vmul.f32 %v6838, 1.1111112
    %v6842 = vmul.f32 %v6839, 1.1111112
    %v6843 = vpack.c.bf16 %v6840, %v6840
    %v6844 = vpack.c.bf16 %v6841, %v6841
    %v6845 = vpack.c.bf16 %v6842, %v6842
    %v6846 = vld [vmem:[#allocation26] sm:$0xff]
    %v6847 = vld [vmem:[#allocation26 + $0x8] sm:$0xff]
    %v6848 = vld [vmem:[#allocation26 + $0x10] sm:$0xff]
    %v6849 = vld [vmem:[#allocation26 + $0x18] sm:$0xff]
    %v6850 = vld [vmem:[#allocation26 + $0x20] sm:$0xff]
    %v6851 = vld [vmem:[#allocation26 + $0x28] sm:$0xff]
    %v6852 = vld [vmem:[#allocation26 + $0x30] sm:$0xff]
    %v6853 = vld [vmem:[#allocation26 + $0x38] sm:$0xff]
    %v6854 = vld [vmem:[#allocation26 + $0x40] sm:$0xff]
    %v6855 = vld [vmem:[#allocation26 + $0x48] sm:$0xff]
    %v6856 = vld [vmem:[#allocation26 + $0x50] sm:$0xff]
    %v6857 = vld [vmem:[#allocation26 + $0x58] sm:$0xff]
    %v6858 = vld [vmem:[#allocation26 + $0x60] sm:$0xff]
    %v6859 = vld [vmem:[#allocation26 + $0x68] sm:$0xff]
    %v6860 = vld [vmem:[#allocation26 + $0x70] sm:$0xff]
    %v6861 = vld [vmem:[#allocation26 + $0x78] sm:$0xff]
    %v6862 = vld [vmem:[#allocation26 + $0x80] sm:$0xff]
    %v6863 = vld [vmem:[#allocation26 + $0x88] sm:$0xff]
    %v6864 = vld [vmem:[#allocation26 + $0x90] sm:$0xff]
    %v6865 = vld [vmem:[#allocation26 + $0x98] sm:$0xff]
    %v6866 = vld [vmem:[#allocation26 + $0xa0] sm:$0xff]
    %v6867 = vld [vmem:[#allocation26 + $0xa8] sm:$0xff]
    %v6868 = vld [vmem:[#allocation26 + $0xb0] sm:$0xff]
    %v6869 = vld [vmem:[#allocation26 + $0xb8] sm:$0xff]
    %v6870 = vld [vmem:[#allocation26 + $0xc0] sm:$0xff]
    %v6871 = vld [vmem:[#allocation26 + $0xc8] sm:$0xff]
    %v6872 = vld [vmem:[#allocation26 + $0xd0] sm:$0xff]
    %v6873 = vld [vmem:[#allocation26 + $0xd8] sm:$0xff]
    %v6874 = vld [vmem:[#allocation26 + $0xe0] sm:$0xff]
    %v6875 = vld [vmem:[#allocation26 + $0xe8] sm:$0xff]
    %v6876 = vld [vmem:[#allocation26 + $0xf0] sm:$0xff]
    %v6877 = vld [vmem:[#allocation26 + $0xf8] sm:$0xff]
    %v6878 = vld [vmem:[#allocation26 + $0x100] sm:$0xff]
    %v6879 = vld [vmem:[#allocation26 + $0x108] sm:$0xff]
    %v6880 = vld [vmem:[#allocation26 + $0x110] sm:$0xff]
    %v6881 = vld [vmem:[#allocation26 + $0x118] sm:$0xff]
    %v6882 = vld [vmem:[#allocation26 + $0x120] sm:$0xff]
    %v6883 = vld [vmem:[#allocation26 + $0x128] sm:$0xff]
    %v6884 = vld [vmem:[#allocation26 + $0x130] sm:$0xff]
    %v6885 = vld [vmem:[#allocation26 + $0x138] sm:$0xff]
    %v6886 = vld [vmem:[#allocation26 + $0x140] sm:$0xff]
    %v6887 = vld [vmem:[#allocation26 + $0x148] sm:$0xff]
    %v6888 = vld [vmem:[#allocation26 + $0x150] sm:$0xff]
    %v6889 = vld [vmem:[#allocation26 + $0x158] sm:$0xff]
    %v6890 = vld [vmem:[#allocation26 + $0x160] sm:$0xff]
    %v6891 = vld [vmem:[#allocation26 + $0x168] sm:$0xff]
    %v6892 = vld [vmem:[#allocation26 + $0x170] sm:$0xff]
    %v6893 = vld [vmem:[#allocation26 + $0x178] sm:$0xff]
    %v6894 = vld [vmem:[#allocation26 + $0x180] sm:$0xff]
    %v6895 = vld [vmem:[#allocation26 + $0x188] sm:$0xff]
    %v6896 = vld [vmem:[#allocation26 + $0x190] sm:$0xff]
    %v6897 = vld [vmem:[#allocation26 + $0x198] sm:$0xff]
    %v6898 = vld [vmem:[#allocation26 + $0x1a0] sm:$0xff]
    %v6899 = vld [vmem:[#allocation26 + $0x1a8] sm:$0xff]
    %v6900 = vld [vmem:[#allocation26 + $0x1b0] sm:$0xff]
    %v6901 = vld [vmem:[#allocation26 + $0x1b8] sm:$0xff]
    %v6902 = vld [vmem:[#allocation26 + $0x1c0] sm:$0xff]
    %v6903 = vld [vmem:[#allocation26 + $0x1c8] sm:$0xff]
    %v6904 = vld [vmem:[#allocation26 + $0x1d0] sm:$0xff]
    %v6905 = vld [vmem:[#allocation26 + $0x1d8] sm:$0xff]
    %v6906 = vld [vmem:[#allocation26 + $0x1e0] sm:$0xff]
    %v6907 = vld [vmem:[#allocation26 + $0x1e8] sm:$0xff]
    %v6908 = vld [vmem:[#allocation26 + $0x1f0] sm:$0xff]
    %v6909 = vld [vmem:[#allocation26 + $0x1f8] sm:$0xff]
    %v6910 = vld [vmem:[#allocation26 + $0x200] sm:$0xff]
    %v6911 = vld [vmem:[#allocation26 + $0x208] sm:$0xff]
    %v6912 = vld [vmem:[#allocation26 + $0x210] sm:$0xff]
    %v6913 = vld [vmem:[#allocation26 + $0x218] sm:$0xff]
    %v6914 = vld [vmem:[#allocation26 + $0x220] sm:$0xff]
    %v6915 = vld [vmem:[#allocation26 + $0x228] sm:$0xff]
    %v6916 = vld [vmem:[#allocation26 + $0x230] sm:$0xff]
    %v6917 = vld [vmem:[#allocation26 + $0x238] sm:$0xff]
    %v6918 = vld [vmem:[#allocation26 + $0x240] sm:$0xff]
    %v6919 = vld [vmem:[#allocation26 + $0x248] sm:$0xff]
    %v6920 = vld [vmem:[#allocation26 + $0x250] sm:$0xff]
    %v6921 = vld [vmem:[#allocation26 + $0x258] sm:$0xff]
    %v6922 = vld [vmem:[#allocation26 + $0x260] sm:$0xff]
    %v6923 = vld [vmem:[#allocation26 + $0x268] sm:$0xff]
    %v6924 = vld [vmem:[#allocation26 + $0x270] sm:$0xff]
    %v6925 = vld [vmem:[#allocation26 + $0x278] sm:$0xff]
    %v6926 = vld [vmem:[#allocation26 + $0x280] sm:$0xff]
    %v6927 = vld [vmem:[#allocation26 + $0x288] sm:$0xff]
    %v6928 = vld [vmem:[#allocation26 + $0x290] sm:$0xff]
    %v6929 = vld [vmem:[#allocation26 + $0x298] sm:$0xff]
    %v6930 = vld [vmem:[#allocation26 + $0x2a0] sm:$0xff]
    %v6931 = vld [vmem:[#allocation26 + $0x2a8] sm:$0xff]
    %v6932 = vld [vmem:[#allocation26 + $0x2b0] sm:$0xff]
    %v6933 = vld [vmem:[#allocation26 + $0x2b8] sm:$0xff]
    %v6934 = vld [vmem:[#allocation26 + $0x2c0] sm:$0xff]
    %v6935 = vld [vmem:[#allocation26 + $0x2c8] sm:$0xff]
    %v6936 = vld [vmem:[#allocation26 + $0x2d0] sm:$0xff]
    %v6937 = vld [vmem:[#allocation26 + $0x2d8] sm:$0xff]
    %v6938 = vld [vmem:[#allocation26 + $0x2e0] sm:$0xff]
    %v6939 = vld [vmem:[#allocation26 + $0x2e8] sm:$0xff]
    %v6940 = vld [vmem:[#allocation26 + $0x2f0] sm:$0xff]
    %v6941 = vld [vmem:[#allocation26 + $0x2f8] sm:$0xff]
    %v6942 = vld [vmem:[#allocation27] sm:$0xf]
    %v6944 = vlaneseq
    %v6945 = vshrl.u32 %v6944, 7
    %v6946 = vsub.s32 0, %v6945
    %v6947 = vrot.slane %v6942, %v6946
    %v6948 = vlaneseq
    %v6949 = vshrl.u32 %v6948, 7
    %v6950 = vsub.s32 1, %v6949
    %v6951 = vrot.slane %v6942, %v6950
    %v6952 = vlaneseq
    %v6953 = vshrl.u32 %v6952, 7
    %v6954 = vsub.s32 2, %v6953
    %v6955 = vrot.slane %v6942, %v6954
    %v6956 = vlaneseq
    %v6957 = vshrl.u32 %v6956, 7
    %v6958 = vsub.s32 3, %v6957
    %v6959 = vrot.slane %v6942, %v6958
    %v7060 = vunpack.c.l.b16 %v6846
    %v7061 = vunpack.c.h.b16 %v6846
    %v7062 = vunpack.c.l.b16 %v6847
    %v7063 = vunpack.c.h.b16 %v6847
    %v7064 = vunpack.c.l.b16 %v6848
    %v7065 = vunpack.c.h.b16 %v6848
    %v7066 = vunpack.c.l.b16 %v6849
    %v7067 = vunpack.c.h.b16 %v6849
    %v7068 = vunpack.c.l.b16 %v6850
    %v7069 = vunpack.c.h.b16 %v6850
    %v7070 = vunpack.c.l.b16 %v6851
    %v7071 = vunpack.c.h.b16 %v6851
    %v7072 = vunpack.c.l.b16 %v6852
    %v7073 = vunpack.c.h.b16 %v6852
    %v7074 = vunpack.c.l.b16 %v6853
    %v7075 = vunpack.c.h.b16 %v6853
    %v7076 = vunpack.c.l.b16 %v6854
    %v7077 = vunpack.c.h.b16 %v6854
    %v7078 = vunpack.c.l.b16 %v6855
    %v7079 = vunpack.c.h.b16 %v6855
    %v7080 = vunpack.c.l.b16 %v6856
    %v7081 = vunpack.c.h.b16 %v6856
    %v7082 = vunpack.c.l.b16 %v6857
    %v7083 = vunpack.c.h.b16 %v6857
    %v7084 = vunpack.c.l.b16 %v6858
    %v7085 = vunpack.c.h.b16 %v6858
    %v7086 = vunpack.c.l.b16 %v6859
    %v7087 = vunpack.c.h.b16 %v6859
    %v7088 = vunpack.c.l.b16 %v6860
    %v7089 = vunpack.c.h.b16 %v6860
    %v7090 = vunpack.c.l.b16 %v6861
    %v7091 = vunpack.c.h.b16 %v6861
    %v7092 = vunpack.c.l.b16 %v6862
    %v7093 = vunpack.c.h.b16 %v6862
    %v7094 = vunpack.c.l.b16 %v6863
    %v7095 = vunpack.c.h.b16 %v6863
    %v7096 = vunpack.c.l.b16 %v6864
    %v7097 = vunpack.c.h.b16 %v6864
    %v7098 = vunpack.c.l.b16 %v6865
    %v7099 = vunpack.c.h.b16 %v6865
    %v7100 = vunpack.c.l.b16 %v6866
    %v7101 = vunpack.c.h.b16 %v6866
    %v7102 = vunpack.c.l.b16 %v6867
    %v7103 = vunpack.c.h.b16 %v6867
    %v7104 = vunpack.c.l.b16 %v6868
    %v7105 = vunpack.c.h.b16 %v6868
    %v7106 = vunpack.c.l.b16 %v6869
    %v7107 = vunpack.c.h.b16 %v6869
    %v7108 = vunpack.c.l.b16 %v6870
    %v7109 = vunpack.c.h.b16 %v6870
    %v7110 = vunpack.c.l.b16 %v6871
    %v7111 = vunpack.c.h.b16 %v6871
    %v7112 = vunpack.c.l.b16 %v6872
    %v7113 = vunpack.c.h.b16 %v6872
    %v7114 = vunpack.c.l.b16 %v6873
    %v7115 = vunpack.c.h.b16 %v6873
    %v7116 = vunpack.c.l.b16 %v6874
    %v7117 = vunpack.c.h.b16 %v6874
    %v7118 = vunpack.c.l.b16 %v6875
    %v7119 = vunpack.c.h.b16 %v6875
    %v7120 = vunpack.c.l.b16 %v6876
    %v7121 = vunpack.c.h.b16 %v6876
    %v7122 = vunpack.c.l.b16 %v6877
    %v7123 = vunpack.c.h.b16 %v6877
    %v7124 = vunpack.c.l.b16 %v6878
    %v7125 = vunpack.c.h.b16 %v6878
    %v7126 = vunpack.c.l.b16 %v6879
    %v7127 = vunpack.c.h.b16 %v6879
    %v7128 = vunpack.c.l.b16 %v6880
    %v7129 = vunpack.c.h.b16 %v6880
    %v7130 = vunpack.c.l.b16 %v6881
    %v7131 = vunpack.c.h.b16 %v6881
    %v7132 = vunpack.c.l.b16 %v6882
    %v7133 = vunpack.c.h.b16 %v6882
    %v7134 = vunpack.c.l.b16 %v6883
    %v7135 = vunpack.c.h.b16 %v6883
    %v7136 = vunpack.c.l.b16 %v6884
    %v7137 = vunpack.c.h.b16 %v6884
    %v7138 = vunpack.c.l.b16 %v6885
    %v7139 = vunpack.c.h.b16 %v6885
    %v7140 = vunpack.c.l.b16 %v6886
    %v7141 = vunpack.c.h.b16 %v6886
    %v7142 = vunpack.c.l.b16 %v6887
    %v7143 = vunpack.c.h.b16 %v6887
    %v7144 = vunpack.c.l.b16 %v6888
    %v7145 = vunpack.c.h.b16 %v6888
    %v7146 = vunpack.c.l.b16 %v6889
    %v7147 = vunpack.c.h.b16 %v6889
    %v7148 = vunpack.c.l.b16 %v6890
    %v7149 = vunpack.c.h.b16 %v6890
    %v7150 = vunpack.c.l.b16 %v6891
    %v7151 = vunpack.c.h.b16 %v6891
    %v7152 = vunpack.c.l.b16 %v6892
    %v7153 = vunpack.c.h.b16 %v6892
    %v7154 = vunpack.c.l.b16 %v6893
    %v7155 = vunpack.c.h.b16 %v6893
    %v7156 = vunpack.c.l.b16 %v6894
    %v7157 = vunpack.c.h.b16 %v6894
    %v7158 = vunpack.c.l.b16 %v6895
    %v7159 = vunpack.c.h.b16 %v6895
    %v7160 = vunpack.c.l.b16 %v6896
    %v7161 = vunpack.c.h.b16 %v6896
    %v7162 = vunpack.c.l.b16 %v6897
    %v7163 = vunpack.c.h.b16 %v6897
    %v7164 = vunpack.c.l.b16 %v6898
    %v7165 = vunpack.c.h.b16 %v6898
    %v7166 = vunpack.c.l.b16 %v6899
    %v7167 = vunpack.c.h.b16 %v6899
    %v7168 = vunpack.c.l.b16 %v6900
    %v7169 = vunpack.c.h.b16 %v6900
    %v7170 = vunpack.c.l.b16 %v6901
    %v7171 = vunpack.c.h.b16 %v6901
    %v7172 = vunpack.c.l.b16 %v6902
    %v7173 = vunpack.c.h.b16 %v6902
    %v7174 = vunpack.c.l.b16 %v6903
    %v7175 = vunpack.c.h.b16 %v6903
    %v7176 = vunpack.c.l.b16 %v6904
    %v7177 = vunpack.c.h.b16 %v6904
    %v7178 = vunpack.c.l.b16 %v6905
    %v7179 = vunpack.c.h.b16 %v6905
    %v7180 = vunpack.c.l.b16 %v6906
    %v7181 = vunpack.c.h.b16 %v6906
    %v7182 = vunpack.c.l.b16 %v6907
    %v7183 = vunpack.c.h.b16 %v6907
    %v7184 = vunpack.c.l.b16 %v6908
    %v7185 = vunpack.c.h.b16 %v6908
    %v7186 = vunpack.c.l.b16 %v6909
    %v7187 = vunpack.c.h.b16 %v6909
    %v7188 = vunpack.c.l.b16 %v6910
    %v7189 = vunpack.c.h.b16 %v6910
    %v7190 = vunpack.c.l.b16 %v6911
    %v7191 = vunpack.c.h.b16 %v6911
    %v7192 = vunpack.c.l.b16 %v6912
    %v7193 = vunpack.c.h.b16 %v6912
    %v7194 = vunpack.c.l.b16 %v6913
    %v7195 = vunpack.c.h.b16 %v6913
    %v7196 = vunpack.c.l.b16 %v6914
    %v7197 = vunpack.c.h.b16 %v6914
    %v7198 = vunpack.c.l.b16 %v6915
    %v7199 = vunpack.c.h.b16 %v6915
    %v7200 = vunpack.c.l.b16 %v6916
    %v7201 = vunpack.c.h.b16 %v6916
    %v7202 = vunpack.c.l.b16 %v6917
    %v7203 = vunpack.c.h.b16 %v6917
    %v7204 = vunpack.c.l.b16 %v6918
    %v7205 = vunpack.c.h.b16 %v6918
    %v7206 = vunpack.c.l.b16 %v6919
    %v7207 = vunpack.c.h.b16 %v6919
    %v7208 = vunpack.c.l.b16 %v6920
    %v7209 = vunpack.c.h.b16 %v6920
    %v7210 = vunpack.c.l.b16 %v6921
    %v7211 = vunpack.c.h.b16 %v6921
    %v7212 = vunpack.c.l.b16 %v6922
    %v7213 = vunpack.c.h.b16 %v6922
    %v7214 = vunpack.c.l.b16 %v6923
    %v7215 = vunpack.c.h.b16 %v6923
    %v7216 = vunpack.c.l.b16 %v6924
    %v7217 = vunpack.c.h.b16 %v6924
    %v7218 = vunpack.c.l.b16 %v6925
    %v7219 = vunpack.c.h.b16 %v6925
    %v7220 = vunpack.c.l.b16 %v6926
    %v7221 = vunpack.c.h.b16 %v6926
    %v7222 = vunpack.c.l.b16 %v6927
    %v7223 = vunpack.c.h.b16 %v6927
    %v7224 = vunpack.c.l.b16 %v6928
    %v7225 = vunpack.c.h.b16 %v6928
    %v7226 = vunpack.c.l.b16 %v6929
    %v7227 = vunpack.c.h.b16 %v6929
    %v7228 = vunpack.c.l.b16 %v6930
    %v7229 = vunpack.c.h.b16 %v6930
    %v7230 = vunpack.c.l.b16 %v6931
    %v7231 = vunpack.c.h.b16 %v6931
    %v7232 = vunpack.c.l.b16 %v6932
    %v7233 = vunpack.c.h.b16 %v6932
    %v7234 = vunpack.c.l.b16 %v6933
    %v7235 = vunpack.c.h.b16 %v6933
    %v7236 = vunpack.c.l.b16 %v6934
    %v7237 = vunpack.c.h.b16 %v6934
    %v7238 = vunpack.c.l.b16 %v6935
    %v7239 = vunpack.c.h.b16 %v6935
    %v7240 = vunpack.c.l.b16 %v6936
    %v7241 = vunpack.c.h.b16 %v6936
    %v7242 = vunpack.c.l.b16 %v6937
    %v7243 = vunpack.c.h.b16 %v6937
    %v7244 = vunpack.c.l.b16 %v6938
    %v7245 = vunpack.c.h.b16 %v6938
    %v7246 = vunpack.c.l.b16 %v6939
    %v7247 = vunpack.c.h.b16 %v6939
    %v7248 = vunpack.c.l.b16 %v6940
    %v7249 = vunpack.c.h.b16 %v6940
    %v7250 = vunpack.c.l.b16 %v6941
    %v7251 = vunpack.c.h.b16 %v6941
    %v7252 = vpack.c.b16 %v7064, %v7060
    %v7253 = vpack.c.b16 %v7065, %v7061
    %v7254 = vpack.c.b16 %v7066, %v7062
    %v7255 = vpack.c.b16 %v7067, %v7063
    %v7256 = vpack.c.b16 %v7072, %v7068
    %v7257 = vpack.c.b16 %v7073, %v7069
    %v7258 = vpack.c.b16 %v7074, %v7070
    %v7259 = vpack.c.b16 %v7075, %v7071
    %v7260 = vpack.c.b16 %v7080, %v7076
    %v7261 = vpack.c.b16 %v7081, %v7077
    %v7262 = vpack.c.b16 %v7082, %v7078
    %v7263 = vpack.c.b16 %v7083, %v7079
    %v7264 = vpack.c.b16 %v7088, %v7084
    %v7265 = vpack.c.b16 %v7089, %v7085
    %v7266 = vpack.c.b16 %v7090, %v7086
    %v7267 = vpack.c.b16 %v7091, %v7087
    %v7268 = vpack.c.b16 %v7096, %v7092
    %v7269 = vpack.c.b16 %v7097, %v7093
    %v7270 = vpack.c.b16 %v7098, %v7094
    %v7271 = vpack.c.b16 %v7099, %v7095
    %v7272 = vpack.c.b16 %v7104, %v7100
    %v7273 = vpack.c.b16 %v7105, %v7101
    %v7274 = vpack.c.b16 %v7106, %v7102
    %v7275 = vpack.c.b16 %v7107, %v7103
    %v7276 = vpack.c.b16 %v7112, %v7108
    %v7277 = vpack.c.b16 %v7113, %v7109
    %v7278 = vpack.c.b16 %v7114, %v7110
    %v7279 = vpack.c.b16 %v7115, %v7111
    %v7280 = vpack.c.b16 %v7120, %v7116
    %v7281 = vpack.c.b16 %v7121, %v7117
    %v7282 = vpack.c.b16 %v7122, %v7118
    %v7283 = vpack.c.b16 %v7123, %v7119
    %v7284 = vpack.c.b16 %v7128, %v7124
    %v7285 = vpack.c.b16 %v7129, %v7125
    %v7286 = vpack.c.b16 %v7130, %v7126
    %v7287 = vpack.c.b16 %v7131, %v7127
    %v7288 = vpack.c.b16 %v7136, %v7132
    %v7289 = vpack.c.b16 %v7137, %v7133
    %v7290 = vpack.c.b16 %v7138, %v7134
    %v7291 = vpack.c.b16 %v7139, %v7135
    %v7292 = vpack.c.b16 %v7144, %v7140
    %v7293 = vpack.c.b16 %v7145, %v7141
    %v7294 = vpack.c.b16 %v7146, %v7142
    %v7295 = vpack.c.b16 %v7147, %v7143
    %v7296 = vpack.c.b16 %v7152, %v7148
    %v7297 = vpack.c.b16 %v7153, %v7149
    %v7298 = vpack.c.b16 %v7154, %v7150
    %v7299 = vpack.c.b16 %v7155, %v7151
    %v7300 = vpack.c.b16 %v7160, %v7156
    %v7301 = vpack.c.b16 %v7161, %v7157
    %v7302 = vpack.c.b16 %v7162, %v7158
    %v7303 = vpack.c.b16 %v7163, %v7159
    %v7304 = vpack.c.b16 %v7168, %v7164
    %v7305 = vpack.c.b16 %v7169, %v7165
    %v7306 = vpack.c.b16 %v7170, %v7166
    %v7307 = vpack.c.b16 %v7171, %v7167
    %v7308 = vpack.c.b16 %v7176, %v7172
    %v7309 = vpack.c.b16 %v7177, %v7173
    %v7310 = vpack.c.b16 %v7178, %v7174
    %v7311 = vpack.c.b16 %v7179, %v7175
    %v7312 = vpack.c.b16 %v7184, %v7180
    %v7313 = vpack.c.b16 %v7185, %v7181
    %v7314 = vpack.c.b16 %v7186, %v7182
    %v7315 = vpack.c.b16 %v7187, %v7183
    %v7316 = vpack.c.b16 %v7192, %v7188
    %v7317 = vpack.c.b16 %v7193, %v7189
    %v7318 = vpack.c.b16 %v7194, %v7190
    %v7319 = vpack.c.b16 %v7195, %v7191
    %v7320 = vpack.c.b16 %v7200, %v7196
    %v7321 = vpack.c.b16 %v7201, %v7197
    %v7322 = vpack.c.b16 %v7202, %v7198
    %v7323 = vpack.c.b16 %v7203, %v7199
    %v7324 = vpack.c.b16 %v7208, %v7204
    %v7325 = vpack.c.b16 %v7209, %v7205
    %v7326 = vpack.c.b16 %v7210, %v7206
    %v7327 = vpack.c.b16 %v7211, %v7207
    %v7328 = vpack.c.b16 %v7216, %v7212
    %v7329 = vpack.c.b16 %v7217, %v7213
    %v7330 = vpack.c.b16 %v7218, %v7214
    %v7331 = vpack.c.b16 %v7219, %v7215
    %v7332 = vpack.c.b16 %v7224, %v7220
    %v7333 = vpack.c.b16 %v7225, %v7221
    %v7334 = vpack.c.b16 %v7226, %v7222
    %v7335 = vpack.c.b16 %v7227, %v7223
    %v7336 = vpack.c.b16 %v7232, %v7228
    %v7337 = vpack.c.b16 %v7233, %v7229
    %v7338 = vpack.c.b16 %v7234, %v7230
    %v7339 = vpack.c.b16 %v7235, %v7231
    %v7340 = vpack.c.b16 %v7240, %v7236
    %v7341 = vpack.c.b16 %v7241, %v7237
    %v7342 = vpack.c.b16 %v7242, %v7238
    %v7343 = vpack.c.b16 %v7243, %v7239
    %v7344 = vpack.c.b16 %v7248, %v7244
    %v7345 = vpack.c.b16 %v7249, %v7245
    %v7346 = vpack.c.b16 %v7250, %v7246
    %v7347 = vpack.c.b16 %v7251, %v7247
    %7444 = vmatprep.subr.bf16.mxu0 %v7253
    %7445 = vmatpush1.bf16.msra.mxu0 %v7252
    %7446 = vmatprep.subr.bf16.mxu0 %v7257
    %7447 = vmatpush1.bf16.msra.mxu0 %v7256
    %7448 = vmatprep.subr.bf16.mxu0 %v7261
    %7449 = vmatpush1.bf16.msra.mxu0 %v7260
    %7450 = vmatprep.subr.bf16.mxu0 %v7265
    %7451 = vmatpush1.bf16.msra.mxu0 %v7264
    %7452 = vmatprep.subr.bf16.mxu0 %v7269
    %7453 = vmatpush1.bf16.msra.mxu0 %v7268
    %7454 = vmatprep.subr.bf16.mxu0 %v7273
    %7455 = vmatpush1.bf16.msra.mxu0 %v7272
    %7456 = vmatprep.subr.bf16.mxu0 %v7277
    %7457 = vmatpush1.bf16.msra.mxu0 %v7276
    %7458 = vmatprep.subr.bf16.mxu0 %v7281
    %7459 = vmatpush1.bf16.msra.mxu0 %v7280
    %7460 = vmatprep.subr.bf16.mxu0 %v7285
    %7461 = vmatpush1.bf16.msra.mxu0 %v7284
    %7462 = vmatprep.subr.bf16.mxu0 %v7289
    %7463 = vmatpush1.bf16.msra.mxu0 %v7288
    %7464 = vmatprep.subr.bf16.mxu0 %v7293
    %7465 = vmatpush1.bf16.msra.mxu0 %v7292
    %7466 = vmatprep.subr.bf16.mxu0 %v7297
    %7467 = vmatpush1.bf16.msra.mxu0 %v7296
    %7468 = vmatprep.subr.bf16.mxu0 %v7301
    %7469 = vmatpush1.bf16.msra.mxu0 %v7300
    %7470 = vmatprep.subr.bf16.mxu0 %v7305
    %7471 = vmatpush1.bf16.msra.mxu0 %v7304
    %7472 = vmatprep.subr.bf16.mxu0 %v7309
    %7473 = vmatpush1.bf16.msra.mxu0 %v7308
    %7474 = vmatprep.subr.bf16.mxu0 %v7313
    %7475 = vmatpush1.bf16.msra.mxu0 %v7312
    %7476 = vmatprep.mubr.bf16.mxu0 %v6844
    %7477 = vmatmul.mubr.bf16.gmra.mrb[0].mxu0 %v6843
    %v7478 = vpop.f32.mrb[0].mxu0
    %v7479 = vadd.f32 %v6947, %v7478
    %v7480 = vpop.f32.mrb[0].mxu0
    %v7481 = vadd.f32 %v6951, %v7480
    %v7482 = vpop.f32.mrb[0].mxu0
    %v7483 = vpop.f32.mrb[0].mxu0
    %7484 = vdwg.mxu0
    %7485 = vmatprep.subr.bf16.mxu0 %v7317
    %7486 = vmatpush1.bf16.msra.mxu0 %v7316
    %7487 = vmatprep.subr.bf16.mxu0 %v7321
    %7488 = vmatpush1.bf16.msra.mxu0 %v7320
    %7489 = vmatprep.subr.bf16.mxu0 %v7325
    %7490 = vmatpush1.bf16.msra.mxu0 %v7324
    %7491 = vmatprep.subr.bf16.mxu0 %v7329
    %7492 = vmatpush1.bf16.msra.mxu0 %v7328
    %7493 = vmatprep.subr.bf16.mxu0 %v7333
    %7494 = vmatpush1.bf16.msra.mxu0 %v7332
    %7495 = vmatprep.subr.bf16.mxu0 %v7337
    %7496 = vmatpush1.bf16.msra.mxu0 %v7336
    %7497 = vmatprep.subr.bf16.mxu0 %v7341
    %7498 = vmatpush1.bf16.msra.mxu0 %v7340
    %7499 = vmatprep.subr.bf16.mxu0 %v7345
    %7500 = vmatpush1.bf16.msra.mxu0 %v7344
    %7501 = vmatprep.subr.bf16.mxu0 0
    %7502 = vmatpush1.bf16.msra.mxu0 0
    %7503 = vmatprep.subr.bf16.mxu0 0
    %7504 = vmatpush1.bf16.msra.mxu0 0
    %7505 = vmatprep.subr.bf16.mxu0 0
    %7506 = vmatpush1.bf16.msra.mxu0 0
    %7507 = vmatprep.subr.bf16.mxu0 0
    %7508 = vmatpush1.bf16.msra.mxu0 0
    %7509 = vmatprep.subr.bf16.mxu0 0
    %7510 = vmatpush1.bf16.msra.mxu0 0
    %7511 = vmatprep.subr.bf16.mxu0 0
    %7512 = vmatpush1.bf16.msra.mxu0 0
    %7513 = vmatprep.subr.bf16.mxu0 0
    %7514 = vmatpush1.bf16.msra.mxu0 0
    %7515 = vmatprep.subr.bf16.mxu0 0
    %7516 = vmatpush1.bf16.msra.mxu0 0
    %7517 = vmatprep.mubr.bf16.mxu0 0
    %7518 = vmatmul.mubr.bf16.gmra.mrb[0].mxu0 %v6845
    %v7519 = vpop.f32.mrb[0].mxu0
    %v7520 = vadd.f32 %v7479, %v7519
    %v7521 = vpop.f32.mrb[0].mxu0
    %v7522 = vadd.f32 %v7481, %v7521
    %v7523 = vpop.f32.mrb[0].mxu0
    %v7524 = vpop.f32.mrb[0].mxu0
    %7525 = vdwg.mxu0
    %7526 = vmatprep.subr.bf16.mxu0 %v7255
    %7527 = vmatpush1.bf16.msra.mxu0 %v7254
    %7528 = vmatprep.subr.bf16.mxu0 %v7259
    %7529 = vmatpush1.bf16.msra.mxu0 %v7258
    %7530 = vmatprep.subr.bf16.mxu0 %v7263
    %7531 = vmatpush1.bf16.msra.mxu0 %v7262
    %7532 = vmatprep.subr.bf16.mxu0 %v7267
    %7533 = vmatpush1.bf16.msra.mxu0 %v7266
    %7534 = vmatprep.subr.bf16.mxu0 %v7271
    %7535 = vmatpush1.bf16.msra.mxu0 %v7270
    %7536 = vmatprep.subr.bf16.mxu0 %v7275
    %7537 = vmatpush1.bf16.msra.mxu0 %v7274
    %7538 = vmatprep.subr.bf16.mxu0 %v7279
    %7539 = vmatpush1.bf16.msra.mxu0 %v7278
    %7540 = vmatprep.subr.bf16.mxu0 %v7283
    %7541 = vmatpush1.bf16.msra.mxu0 %v7282
    %7542 = vmatprep.subr.bf16.mxu0 %v7287
    %7543 = vmatpush1.bf16.msra.mxu0 %v7286
    %7544 = vmatprep.subr.bf16.mxu0 %v7291
    %7545 = vmatpush1.bf16.msra.mxu0 %v7290
    %7546 = vmatprep.subr.bf16.mxu0 %v7295
    %7547 = vmatpush1.bf16.msra.mxu0 %v7294
    %7548 = vmatprep.subr.bf16.mxu0 %v7299
    %7549 = vmatpush1.bf16.msra.mxu0 %v7298
    %7550 = vmatprep.subr.bf16.mxu0 %v7303
    %7551 = vmatpush1.bf16.msra.mxu0 %v7302
    %7552 = vmatprep.subr.bf16.mxu0 %v7307
    %7553 = vmatpush1.bf16.msra.mxu0 %v7306
    %7554 = vmatprep.subr.bf16.mxu0 %v7311
    %7555 = vmatpush1.bf16.msra.mxu0 %v7310
    %7556 = vmatprep.subr.bf16.mxu0 %v7315
    %7557 = vmatpush1.bf16.msra.mxu0 %v7314
    %7558 = vmatprep.mubr.bf16.mxu0 %v6844
    %7559 = vmatmul.mubr.bf16.gmra.mrb[0].mxu0 %v6843
    %v7560 = vpop.f32.mrb[0].mxu0
    %v7561 = vadd.f32 %v6955, %v7560
    %v7562 = vpop.f32.mrb[0].mxu0
    %v7563 = vadd.f32 %v6959, %v7562
    %v7564 = vpop.f32.mrb[0].mxu0
    %v7565 = vpop.f32.mrb[0].mxu0
    %7566 = vdwg.mxu0
    %7567 = vmatprep.subr.bf16.mxu0 %v7319
    %7568 = vmatpush1.bf16.msra.mxu0 %v7318
    %7569 = vmatprep.subr.bf16.mxu0 %v7323
    %7570 = vmatpush1.bf16.msra.mxu0 %v7322
    %7571 = vmatprep.subr.bf16.mxu0 %v7327
    %7572 = vmatpush1.bf16.msra.mxu0 %v7326
    %7573 = vmatprep.subr.bf16.mxu0 %v7331
    %7574 = vmatpush1.bf16.msra.mxu0 %v7330
    %7575 = vmatprep.subr.bf16.mxu0 %v7335
    %7576 = vmatpush1.bf16.msra.mxu0 %v7334
    %7577 = vmatprep.subr.bf16.mxu0 %v7339
    %7578 = vmatpush1.bf16.msra.mxu0 %v7338
    %7579 = vmatprep.subr.bf16.mxu0 %v7343
    %7580 = vmatpush1.bf16.msra.mxu0 %v7342
    %7581 = vmatprep.subr.bf16.mxu0 %v7347
    %7582 = vmatpush1.bf16.msra.mxu0 %v7346
    %7583 = vmatprep.subr.bf16.mxu0 0
    %7584 = vmatpush1.bf16.msra.mxu0 0
    %7585 = vmatprep.subr.bf16.mxu0 0
    %7586 = vmatpush1.bf16.msra.mxu0 0
    %7587 = vmatprep.subr.bf16.mxu0 0
    %7588 = vmatpush1.bf16.msra.mxu0 0
    %7589 = vmatprep.subr.bf16.mxu0 0
    %7590 = vmatpush1.bf16.msra.mxu0 0
    %7591 = vmatprep.subr.bf16.mxu0 0
    %7592 = vmatpush1.bf16.msra.mxu0 0
    %7593 = vmatprep.subr.bf16.mxu0 0
    %7594 = vmatpush1.bf16.msra.mxu0 0
    %7595 = vmatprep.subr.bf16.mxu0 0
    %7596 = vmatpush1.bf16.msra.mxu0 0
    %7597 = vmatprep.subr.bf16.mxu0 0
    %7598 = vmatpush1.bf16.msra.mxu0 0
    %7599 = vmatprep.mubr.bf16.mxu0 0
    %7600 = vmatmul.mubr.bf16.gmra.mrb[0].mxu0 %v6845
    %v7601 = vpop.f32.mrb[0].mxu0
    %v7602 = vadd.f32 %v7561, %v7601
    %v7603 = vpop.f32.mrb[0].mxu0
    %v7604 = vadd.f32 %v7563, %v7603
    %v7605 = vpop.f32.mrb[0].mxu0
    %v7606 = vpop.f32.mrb[0].mxu0
    %7607 = vdwg.mxu0
    %v7608 = vmax.f32 %v7520, 0.0
    %v7609 = vmax.f32 %v7522, 0.0
    %v7610 = vmax.f32 %v7602, 0.0
    %v7611 = vmax.f32 %v7604, 0.0
    %s7612 = sadd.s32 %s325, 9
    %s7613 = smul.u32 %s7612, 1640531527
    %v7614 = vstv %s7613
    %v7615 = vadd.s32 %v4331, %v7614
    %v7616 = vadd.s32 %v4332, %v7614
    %v7617 = vadd.s32 %v4333, %v7614
    %v7618 = vadd.s32 %v4334, %v7614
    %v7619 = vmul.u32 %v7615, 668265263
    %v7620 = vmul.u32 %v7616, 668265263
    %v7621 = vmul.u32 %v7617, 668265263
    %v7622 = vmul.u32 %v7618, 668265263
    %v7623 = vshra.s32 %v7619, 15
    %v7624 = vshra.s32 %v7620, 15
    %v7625 = vshra.s32 %v7621, 15
    %v7626 = vshra.s32 %v7622, 15
    %v7627 = vand.u32 %v7623, 131071
    %v7628 = vand.u32 %v7624, 131071
    %v7629 = vand.u32 %v7625, 131071
    %v7630 = vand.u32 %v7626, 131071
    %v7631 = vxor.u32 %v7619, %v7627
    %v7632 = vxor.u32 %v7620, %v7628
    %v7633 = vxor.u32 %v7621, %v7629
    %v7634 = vxor.u32 %v7622, %v7630
    %v7635 = vmul.u32 %v7631, 625341585
    %v7636 = vmul.u32 %v7632, 625341585
    %v7637 = vmul.u32 %v7633, 625341585
    %v7638 = vmul.u32 %v7634, 625341585
    %v7639 = vshra.s32 %v7635, 13
    %v7640 = vshra.s32 %v7636, 13
    %v7641 = vshra.s32 %v7637, 13
    %v7642 = vshra.s32 %v7638, 13
    %v7643 = vand.u32 %v7639, 524287
    %v7644 = vand.u32 %v7640, 524287
    %v7645 = vand.u32 %v7641, 524287
    %v7646 = vand.u32 %v7642, 524287
    %v7647 = vxor.u32 %v7635, %v7643
    %v7648 = vxor.u32 %v7636, %v7644
    %v7649 = vxor.u32 %v7637, %v7645
    %v7650 = vxor.u32 %v7638, %v7646
    %v7651 = vmul.u32 %v7647, 1640531527
    %v7652 = vmul.u32 %v7648, 1640531527
    %v7653 = vmul.u32 %v7649, 1640531527
    %v7654 = vmul.u32 %v7650, 1640531527
    %v7655 = vshra.s32 %v7651, 16
    %v7656 = vshra.s32 %v7652, 16
    %v7657 = vshra.s32 %v7653, 16
    %v7658 = vshra.s32 %v7654, 16
    %v7659 = vand.u32 %v7655, 65535
    %v7660 = vand.u32 %v7656, 65535
    %v7661 = vand.u32 %v7657, 65535
    %v7662 = vand.u32 %v7658, 65535
    %v7663 = vxor.u32 %v7651, %v7659
    %v7664 = vxor.u32 %v7652, %v7660
    %v7665 = vxor.u32 %v7653, %v7661
    %v7666 = vxor.u32 %v7654, %v7662
    %v7667 = vand.u32 %v7663, 8388607
    %v7668 = vand.u32 %v7664, 8388607
    %v7669 = vand.u32 %v7665, 8388607
    %v7670 = vand.u32 %v7666, 8388607
    %v7671 = vcvt.s32.f32 %v7667
    %v7672 = vcvt.s32.f32 %v7668
    %v7673 = vcvt.s32.f32 %v7669
    %v7674 = vcvt.s32.f32 %v7670
    %v7675 = vmul.f32 %v7671, 1.1920929e-07
    %v7676 = vmul.f32 %v7672, 1.1920929e-07
    %v7677 = vmul.f32 %v7673, 1.1920929e-07
    %v7678 = vmul.f32 %v7674, 1.1920929e-07
    %v7679 = vadd.f32 %v7675, 1e-07
    %v7680 = vadd.f32 %v7676, 1e-07
    %v7681 = vadd.f32 %v7677, 1e-07
    %v7682 = vadd.f32 %v7678, 1e-07
    %v7683 = vsub.f32 1.0, %v7675
    %v7684 = vsub.f32 1.0, %v7676
    %v7685 = vsub.f32 1.0, %v7677
    %v7686 = vsub.f32 1.0, %v7678
    %v7687 = vadd.f32 %v7683, 1e-07
    %v7688 = vadd.f32 %v7684, 1e-07
    %v7689 = vadd.f32 %v7685, 1e-07
    %v7690 = vadd.f32 %v7686, 1e-07
    %v7691 = vrcp.pop %v7687
    %v7692 = vmul.f32 %v7679, %v7691
    %v7693 = vrcp.pop %v7688
    %v7694 = vmul.f32 %v7680, %v7693
    %v7695 = vrcp.pop %v7689
    %v7696 = vmul.f32 %v7681, %v7695
    %v7697 = vrcp.pop %v7690
    %v7698 = vmul.f32 %v7682, %v7697
    %v7699 = vlog2.pop %v7692
    %v7700 = vmul.f32 %v7699, 0.6931472
    %v7701 = vlog2.pop %v7694
    %v7702 = vmul.f32 %v7701, 0.6931472
    %v7703 = vlog2.pop %v7696
    %v7704 = vmul.f32 %v7703, 0.6931472
    %v7705 = vlog2.pop %v7698
    %v7706 = vmul.f32 %v7705, 0.6931472
    %v7707 = vadd.f32 %v7700, -2.1972237
    %v7708 = vadd.f32 %v7702, -2.1972237
    %v7709 = vadd.f32 %v7704, -2.1972237
    %v7710 = vadd.f32 %v7706, -2.1972237
    %v7711 = vmul.f32 %v7707, 10.0
    %v7712 = vmul.f32 %v7708, 10.0
    %v7713 = vmul.f32 %v7709, 10.0
    %v7714 = vmul.f32 %v7710, 10.0
    %v7715 = vxor.u32 %v7711, 2147483648
    %v7716 = vxor.u32 %v7712, 2147483648
    %v7717 = vxor.u32 %v7713, 2147483648
    %v7718 = vxor.u32 %v7714, 2147483648
    %v7719 = vmul.f32 %v7715, 1.442695
    %v7720 = vpow.pop %v7719
    %v7721 = vmul.f32 %v7716, 1.442695
    %v7722 = vpow.pop %v7721
    %v7723 = vmul.f32 %v7717, 1.442695
    %v7724 = vpow.pop %v7723
    %v7725 = vmul.f32 %v7718, 1.442695
    %v7726 = vpow.pop %v7725
    %v7727 = vadd.f32 %v7720, 1.0
    %v7728 = vadd.f32 %v7722, 1.0
    %v7729 = vadd.f32 %v7724, 1.0
    %v7730 = vadd.f32 %v7726, 1.0
    %v7731 = vrcp.pop %v7727
    %v7732 = vmul.f32 1.0, %v7731
    %v7733 = vrcp.pop %v7728
    %v7734 = vmul.f32 1.0, %v7733
    %v7735 = vrcp.pop %v7729
    %v7736 = vmul.f32 1.0, %v7735
    %v7737 = vrcp.pop %v7730
    %v7738 = vmul.f32 1.0, %v7737
    %v7739 = vsub.f32 1.0, %v7732
    %v7740 = vsub.f32 1.0, %v7734
    %v7741 = vsub.f32 1.0, %v7736
    %v7742 = vsub.f32 1.0, %v7738
    %v7743 = vmul.f32 %v7608, %v7739
    %v7744 = vmul.f32 %v7609, %v7740
    %v7745 = vmul.f32 %v7610, %v7741
    %v7746 = vmul.f32 %v7611, %v7742
    %v7747 = vmul.f32 %v7743, 1.1111112
    %v7748 = vmul.f32 %v7744, 1.1111112
    %v7749 = vmul.f32 %v7745, 1.1111112
    %v7750 = vmul.f32 %v7746, 1.1111112
    %v7751 = vpack.c.bf16 %v7747, %v7747
    %v7752 = vpack.c.bf16 %v7748, %v7748
    %v7753 = vpack.c.bf16 %v7749, %v7749
    %v7754 = vpack.c.bf16 %v7750, %v7750
    %v7755 = vld [vmem:[#allocation29] sm:$0xff]
    %v7756 = vld [vmem:[#allocation29 + $0x8] sm:$0xff]
    %v7757 = vld [vmem:[#allocation29 + $0x10] sm:$0xf]
    %v7758 = vld [vmem:[#allocation29 + $0x14] sm:$0xff]
    %v7759 = vld [vmem:[#allocation29 + $0x1c] sm:$0xff]
    %v7760 = vld [vmem:[#allocation29 + $0x24] sm:$0xf]
    %v7761 = vld [vmem:[#allocation29 + $0x28] sm:$0xff]
    %v7762 = vld [vmem:[#allocation29 + $0x30] sm:$0xff]
    %v7763 = vld [vmem:[#allocation29 + $0x38] sm:$0xf]
    %v7764 = vld [vmem:[#allocation29 + $0x3c] sm:$0xff]
    %v7765 = vld [vmem:[#allocation29 + $0x44] sm:$0xff]
    %v7766 = vld [vmem:[#allocation29 + $0x4c] sm:$0xf]
    %v7767 = vld [vmem:[#allocation29 + $0x50] sm:$0xff]
    %v7768 = vld [vmem:[#allocation29 + $0x58] sm:$0xff]
    %v7769 = vld [vmem:[#allocation29 + $0x60] sm:$0xf]
    %v7770 = vld [vmem:[#allocation29 + $0x64] sm:$0xff]
    %v7771 = vld [vmem:[#allocation29 + $0x6c] sm:$0xff]
    %v7772 = vld [vmem:[#allocation29 + $0x74] sm:$0xf]
    %v7773 = vld [vmem:[#allocation29 + $0x78] sm:$0xff]
    %v7774 = vld [vmem:[#allocation29 + $0x80] sm:$0xff]
    %v7775 = vld [vmem:[#allocation29 + $0x88] sm:$0xf]
    %v7776 = vld [vmem:[#allocation29 + $0x8c] sm:$0xff]
    %v7777 = vld [vmem:[#allocation29 + $0x94] sm:$0xff]
    %v7778 = vld [vmem:[#allocation29 + $0x9c] sm:$0xf]
    %v7779 = vld [vmem:[#allocation29 + $0xa0] sm:$0xff]
    %v7780 = vld [vmem:[#allocation29 + $0xa8] sm:$0xff]
    %v7781 = vld [vmem:[#allocation29 + $0xb0] sm:$0xf]
    %v7782 = vld [vmem:[#allocation29 + $0xb4] sm:$0xff]
    %v7783 = vld [vmem:[#allocation29 + $0xbc] sm:$0xff]
    %v7784 = vld [vmem:[#allocation29 + $0xc4] sm:$0xf]
    %v7785 = vld [vmem:[#allocation29 + $0xc8] sm:$0xff]
    %v7786 = vld [vmem:[#allocation29 + $0xd0] sm:$0xff]
    %v7787 = vld [vmem:[#allocation29 + $0xd8] sm:$0xf]
    %v7788 = vld [vmem:[#allocation29 + $0xdc] sm:$0xff]
    %v7789 = vld [vmem:[#allocation29 + $0xe4] sm:$0xff]
    %v7790 = vld [vmem:[#allocation29 + $0xec] sm:$0xf]
    %v7791 = vld [vmem:[#allocation29 + $0xf0] sm:$0xff]
    %v7792 = vld [vmem:[#allocation29 + $0xf8] sm:$0xff]
    %v7793 = vld [vmem:[#allocation29 + $0x100] sm:$0xf]
    %v7794 = vld [vmem:[#allocation29 + $0x104] sm:$0xff]
    %v7795 = vld [vmem:[#allocation29 + $0x10c] sm:$0xff]
    %v7796 = vld [vmem:[#allocation29 + $0x114] sm:$0xf]
    %v7797 = vld [vmem:[#allocation29 + $0x118] sm:$0xff]
    %v7798 = vld [vmem:[#allocation29 + $0x120] sm:$0xff]
    %v7799 = vld [vmem:[#allocation29 + $0x128] sm:$0xf]
    %v7800 = vld [vmem:[#allocation29 + $0x12c] sm:$0xff]
    %v7801 = vld [vmem:[#allocation29 + $0x134] sm:$0xff]
    %v7802 = vld [vmem:[#allocation29 + $0x13c] sm:$0xf]
    %v7803 = vld [vmem:[#allocation29 + $0x140] sm:$0xff]
    %v7804 = vld [vmem:[#allocation29 + $0x148] sm:$0xff]
    %v7805 = vld [vmem:[#allocation29 + $0x150] sm:$0xf]
    %v7806 = vld [vmem:[#allocation29 + $0x154] sm:$0xff]
    %v7807 = vld [vmem:[#allocation29 + $0x15c] sm:$0xff]
    %v7808 = vld [vmem:[#allocation29 + $0x164] sm:$0xf]
    %v7809 = vld [vmem:[#allocation29 + $0x168] sm:$0xff]
    %v7810 = vld [vmem:[#allocation29 + $0x170] sm:$0xff]
    %v7811 = vld [vmem:[#allocation29 + $0x178] sm:$0xf]
    %v7812 = vld [vmem:[#allocation29 + $0x17c] sm:$0xff]
    %v7813 = vld [vmem:[#allocation29 + $0x184] sm:$0xff]
    %v7814 = vld [vmem:[#allocation29 + $0x18c] sm:$0xf]
    %v7815 = vld [vmem:[#allocation29 + $0x190] sm:$0xff]
    %v7816 = vld [vmem:[#allocation29 + $0x198] sm:$0xff]
    %v7817 = vld [vmem:[#allocation29 + $0x1a0] sm:$0xf]
    %v7818 = vld [vmem:[#allocation29 + $0x1a4] sm:$0xff]
    %v7819 = vld [vmem:[#allocation29 + $0x1ac] sm:$0xff]
    %v7820 = vld [vmem:[#allocation29 + $0x1b4] sm:$0xf]
    %v7821 = vld [vmem:[#allocation29 + $0x1b8] sm:$0xff]
    %v7822 = vld [vmem:[#allocation29 + $0x1c0] sm:$0xff]
    %v7823 = vld [vmem:[#allocation29 + $0x1c8] sm:$0xf]
    %v7824 = vld [vmem:[#allocation29 + $0x1cc] sm:$0xff]
    %v7825 = vld [vmem:[#allocation29 + $0x1d4] sm:$0xff]
    %v7826 = vld [vmem:[#allocation29 + $0x1dc] sm:$0xf]
    %v7827 = vld [vmem:[#allocation29 + $0x1e0] sm:$0xff]
    %v7828 = vld [vmem:[#allocation29 + $0x1e8] sm:$0xff]
    %v7829 = vld [vmem:[#allocation29 + $0x1f0] sm:$0xf]
    %v7830 = vld [vmem:[#allocation29 + $0x1f4] sm:$0xff]
    %v7831 = vld [vmem:[#allocation29 + $0x1fc] sm:$0xff]
    %v7832 = vld [vmem:[#allocation29 + $0x204] sm:$0xf]
    %v7833 = vld [vmem:[#allocation29 + $0x208] sm:$0xff]
    %v7834 = vld [vmem:[#allocation29 + $0x210] sm:$0xff]
    %v7835 = vld [vmem:[#allocation29 + $0x218] sm:$0xf]
    %v7836 = vld [vmem:[#allocation29 + $0x21c] sm:$0xff]
    %v7837 = vld [vmem:[#allocation29 + $0x224] sm:$0xff]
    %v7838 = vld [vmem:[#allocation29 + $0x22c] sm:$0xf]
    %v7839 = vld [vmem:[#allocation29 + $0x230] sm:$0xff]
    %v7840 = vld [vmem:[#allocation29 + $0x238] sm:$0xff]
    %v7841 = vld [vmem:[#allocation29 + $0x240] sm:$0xf]
    %v7842 = vld [vmem:[#allocation29 + $0x244] sm:$0xff]
    %v7843 = vld [vmem:[#allocation29 + $0x24c] sm:$0xff]
    %v7844 = vld [vmem:[#allocation29 + $0x254] sm:$0xf]
    %v7845 = vld [vmem:[#allocation29 + $0x258] sm:$0xff]
    %v7846 = vld [vmem:[#allocation29 + $0x260] sm:$0xff]
    %v7847 = vld [vmem:[#allocation29 + $0x268] sm:$0xf]
    %v7848 = vld [vmem:[#allocation29 + $0x26c] sm:$0xff]
    %v7849 = vld [vmem:[#allocation29 + $0x274] sm:$0xff]
    %v7850 = vld [vmem:[#allocation29 + $0x27c] sm:$0xf]
    %v7851 = vld [vmem:[#allocation29 + $0x280] sm:$0xff]
    %v7852 = vld [vmem:[#allocation29 + $0x288] sm:$0xff]
    %v7853 = vld [vmem:[#allocation29 + $0x290] sm:$0xf]
    %v7854 = vld [vmem:[#allocation29 + $0x294] sm:$0xff]
    %v7855 = vld [vmem:[#allocation29 + $0x29c] sm:$0xff]
    %v7856 = vld [vmem:[#allocation29 + $0x2a4] sm:$0xf]
    %v7857 = vld [vmem:[#allocation29 + $0x2a8] sm:$0xff]
    %v7858 = vld [vmem:[#allocation29 + $0x2b0] sm:$0xff]
    %v7859 = vld [vmem:[#allocation29 + $0x2b8] sm:$0xf]
    %v7860 = vld [vmem:[#allocation29 + $0x2bc] sm:$0xff]
    %v7861 = vld [vmem:[#allocation29 + $0x2c4] sm:$0xff]
    %v7862 = vld [vmem:[#allocation29 + $0x2cc] sm:$0xf]
    %v7863 = vld [vmem:[#allocation29 + $0x2d0] sm:$0xff]
    %v7864 = vld [vmem:[#allocation29 + $0x2d8] sm:$0xff]
    %v7865 = vld [vmem:[#allocation29 + $0x2e0] sm:$0xf]
    %v7866 = vld [vmem:[#allocation29 + $0x2e4] sm:$0xff]
    %v7867 = vld [vmem:[#allocation29 + $0x2ec] sm:$0xff]
    %v7868 = vld [vmem:[#allocation29 + $0x2f4] sm:$0xf]
    %v7869 = vld [vmem:[#allocation29 + $0x2f8] sm:$0xff]
    %v7870 = vld [vmem:[#allocation29 + $0x300] sm:$0xff]
    %v7871 = vld [vmem:[#allocation29 + $0x308] sm:$0xf]
    %v7872 = vld [vmem:[#allocation29 + $0x30c] sm:$0xff]
    %v7873 = vld [vmem:[#allocation29 + $0x314] sm:$0xff]
    %v7874 = vld [vmem:[#allocation29 + $0x31c] sm:$0xf]
    %v7875 = vld [vmem:[#allocation29 + $0x320] sm:$0xff]
    %v7876 = vld [vmem:[#allocation29 + $0x328] sm:$0xff]
    %v7877 = vld [vmem:[#allocation29 + $0x330] sm:$0xf]
    %v7878 = vld [vmem:[#allocation29 + $0x334] sm:$0xff]
    %v7879 = vld [vmem:[#allocation29 + $0x33c] sm:$0xff]
    %v7880 = vld [vmem:[#allocation29 + $0x344] sm:$0xf]
    %v7881 = vld [vmem:[#allocation29 + $0x348] sm:$0xff]
    %v7882 = vld [vmem:[#allocation29 + $0x350] sm:$0xff]
    %v7883 = vld [vmem:[#allocation29 + $0x358] sm:$0xf]
    %v7884 = vld [vmem:[#allocation29 + $0x35c] sm:$0xff]
    %v7885 = vld [vmem:[#allocation29 + $0x364] sm:$0xff]
    %v7886 = vld [vmem:[#allocation29 + $0x36c] sm:$0xf]
    %v7887 = vld [vmem:[#allocation29 + $0x370] sm:$0xff]
    %v7888 = vld [vmem:[#allocation29 + $0x378] sm:$0xff]
    %v7889 = vld [vmem:[#allocation29 + $0x380] sm:$0xf]
    %v7890 = vld [vmem:[#allocation29 + $0x384] sm:$0xff]
    %v7891 = vld [vmem:[#allocation29 + $0x38c] sm:$0xff]
    %v7892 = vld [vmem:[#allocation29 + $0x394] sm:$0xf]
    %v7893 = vld [vmem:[#allocation29 + $0x398] sm:$0xff]
    %v7894 = vld [vmem:[#allocation29 + $0x3a0] sm:$0xff]
    %v7895 = vld [vmem:[#allocation29 + $0x3a8] sm:$0xf]
    %v7896 = vld [vmem:[#allocation29 + $0x3ac] sm:$0xff]
    %v7897 = vld [vmem:[#allocation29 + $0x3b4] sm:$0xff]
    %v7898 = vld [vmem:[#allocation29 + $0x3bc] sm:$0xf]
    %v7899 = vld [vmem:[#allocation29 + $0x3c0] sm:$0xff]
    %v7900 = vld [vmem:[#allocation29 + $0x3c8] sm:$0xff]
    %v7901 = vld [vmem:[#allocation29 + $0x3d0] sm:$0xf]
    %v7902 = vld [vmem:[#allocation29 + $0x3d4] sm:$0xff]
    %v7903 = vld [vmem:[#allocation29 + $0x3dc] sm:$0xff]
    %v7904 = vld [vmem:[#allocation29 + $0x3e4] sm:$0xf]
    %v7905 = vld [vmem:[#allocation29 + $0x3e8] sm:$0xff]
    %v7906 = vld [vmem:[#allocation29 + $0x3f0] sm:$0xff]
    %v7907 = vld [vmem:[#allocation29 + $0x3f8] sm:$0xf]
    %v7908 = vld [vmem:[#allocation29 + $0x3fc] sm:$0xff]
    %v7909 = vld [vmem:[#allocation29 + $0x404] sm:$0xff]
    %v7910 = vld [vmem:[#allocation29 + $0x40c] sm:$0xf]
    %v7911 = vld [vmem:[#allocation29 + $0x410] sm:$0xff]
    %v7912 = vld [vmem:[#allocation29 + $0x418] sm:$0xff]
    %v7913 = vld [vmem:[#allocation29 + $0x420] sm:$0xf]
    %v7914 = vld [vmem:[#allocation29 + $0x424] sm:$0xff]
    %v7915 = vld [vmem:[#allocation29 + $0x42c] sm:$0xff]
    %v7916 = vld [vmem:[#allocation29 + $0x434] sm:$0xf]
    %v7917 = vld [vmem:[#allocation29 + $0x438] sm:$0xff]
    %v7918 = vld [vmem:[#allocation29 + $0x440] sm:$0xff]
    %v7919 = vld [vmem:[#allocation29 + $0x448] sm:$0xf]
    %v7920 = vld [vmem:[#allocation29 + $0x44c] sm:$0xff]
    %v7921 = vld [vmem:[#allocation29 + $0x454] sm:$0xff]
    %v7922 = vld [vmem:[#allocation29 + $0x45c] sm:$0xf]
    %v7923 = vld [vmem:[#allocation29 + $0x460] sm:$0xff]
    %v7924 = vld [vmem:[#allocation29 + $0x468] sm:$0xff]
    %v7925 = vld [vmem:[#allocation29 + $0x470] sm:$0xf]
    %v7926 = vld [vmem:[#allocation29 + $0x474] sm:$0xff]
    %v7927 = vld [vmem:[#allocation29 + $0x47c] sm:$0xff]
    %v7928 = vld [vmem:[#allocation29 + $0x484] sm:$0xf]
    %v7929 = vld [vmem:[#allocation29 + $0x488] sm:$0xff]
    %v7930 = vld [vmem:[#allocation29 + $0x490] sm:$0xff]
    %v7931 = vld [vmem:[#allocation29 + $0x498] sm:$0xf]
    %v7932 = vld [vmem:[#allocation29 + $0x49c] sm:$0xff]
    %v7933 = vld [vmem:[#allocation29 + $0x4a4] sm:$0xff]
    %v7934 = vld [vmem:[#allocation29 + $0x4ac] sm:$0xf]
    %v7935 = vld [vmem:[#allocation29 + $0x4b0] sm:$0xff]
    %v7936 = vld [vmem:[#allocation29 + $0x4b8] sm:$0xff]
    %v7937 = vld [vmem:[#allocation29 + $0x4c0] sm:$0xf]
    %v7938 = vld [vmem:[#allocation29 + $0x4c4] sm:$0xff]
    %v7939 = vld [vmem:[#allocation29 + $0x4cc] sm:$0xff]
    %v7940 = vld [vmem:[#allocation29 + $0x4d4] sm:$0xf]
    %v7941 = vld [vmem:[#allocation29 + $0x4d8] sm:$0xff]
    %v7942 = vld [vmem:[#allocation29 + $0x4e0] sm:$0xff]
    %v7943 = vld [vmem:[#allocation29 + $0x4e8] sm:$0xf]
    %v7944 = vld [vmem:[#allocation29 + $0x4ec] sm:$0xff]
    %v7945 = vld [vmem:[#allocation29 + $0x4f4] sm:$0xff]
    %v7946 = vld [vmem:[#allocation29 + $0x4fc] sm:$0xf]
    %v7947 = vld [vmem:[#allocation30] sm:$0x1f]
    %v7949 = vlaneseq
    %v7950 = vshrl.u32 %v7949, 7
    %v7951 = vsub.s32 0, %v7950
    %v7952 = vrot.slane %v7947, %v7951
    %v7953 = vlaneseq
    %v7954 = vshrl.u32 %v7953, 7
    %v7955 = vsub.s32 1, %v7954
    %v7956 = vrot.slane %v7947, %v7955
    %v7957 = vlaneseq
    %v7958 = vshrl.u32 %v7957, 7
    %v7959 = vsub.s32 2, %v7958
    %v7960 = vrot.slane %v7947, %v7959
    %v7961 = vlaneseq
    %v7962 = vshrl.u32 %v7961, 7
    %v7963 = vsub.s32 3, %v7962
    %v7964 = vrot.slane %v7947, %v7963
    %v7965 = vlaneseq
    %v7966 = vshrl.u32 %v7965, 7
    %v7967 = vsub.s32 4, %v7966
    %v7968 = vrot.slane %v7947, %v7967
    %v8166 = vunpack.c.l.b16 %v7755
    %v8167 = vunpack.c.h.b16 %v7755
    %v8168 = vunpack.c.l.b16 %v7756
    %v8169 = vunpack.c.h.b16 %v7756
    %v8170 = vunpack.c.l.b16 %v7757
    %v8171 = vunpack.c.l.b16 %v7758
    %v8172 = vunpack.c.h.b16 %v7758
    %v8173 = vunpack.c.l.b16 %v7759
    %v8174 = vunpack.c.h.b16 %v7759
    %v8175 = vunpack.c.l.b16 %v7760
    %v8176 = vunpack.c.l.b16 %v7761
    %v8177 = vunpack.c.h.b16 %v7761
    %v8178 = vunpack.c.l.b16 %v7762
    %v8179 = vunpack.c.h.b16 %v7762
    %v8180 = vunpack.c.l.b16 %v7763
    %v8181 = vunpack.c.l.b16 %v7764
    %v8182 = vunpack.c.h.b16 %v7764
    %v8183 = vunpack.c.l.b16 %v7765
    %v8184 = vunpack.c.h.b16 %v7765
    %v8185 = vunpack.c.l.b16 %v7766
    %v8186 = vunpack.c.l.b16 %v7767
    %v8187 = vunpack.c.h.b16 %v7767
    %v8188 = vunpack.c.l.b16 %v7768
    %v8189 = vunpack.c.h.b16 %v7768
    %v8190 = vunpack.c.l.b16 %v7769
    %v8191 = vunpack.c.l.b16 %v7770
    %v8192 = vunpack.c.h.b16 %v7770
    %v8193 = vunpack.c.l.b16 %v7771
    %v8194 = vunpack.c.h.b16 %v7771
    %v8195 = vunpack.c.l.b16 %v7772
    %v8196 = vunpack.c.l.b16 %v7773
    %v8197 = vunpack.c.h.b16 %v7773
    %v8198 = vunpack.c.l.b16 %v7774
    %v8199 = vunpack.c.h.b16 %v7774
    %v8200 = vunpack.c.l.b16 %v7775
    %v8201 = vunpack.c.l.b16 %v7776
    %v8202 = vunpack.c.h.b16 %v7776
    %v8203 = vunpack.c.l.b16 %v7777
    %v8204 = vunpack.c.h.b16 %v7777
    %v8205 = vunpack.c.l.b16 %v7778
    %v8206 = vunpack.c.l.b16 %v7779
    %v8207 = vunpack.c.h.b16 %v7779
    %v8208 = vunpack.c.l.b16 %v7780
    %v8209 = vunpack.c.h.b16 %v7780
    %v8210 = vunpack.c.l.b16 %v7781
    %v8211 = vunpack.c.l.b16 %v7782
    %v8212 = vunpack.c.h.b16 %v7782
    %v8213 = vunpack.c.l.b16 %v7783
    %v8214 = vunpack.c.h.b16 %v7783
    %v8215 = vunpack.c.l.b16 %v7784
    %v8216 = vunpack.c.l.b16 %v7785
    %v8217 = vunpack.c.h.b16 %v7785
    %v8218 = vunpack.c.l.b16 %v7786
    %v8219 = vunpack.c.h.b16 %v7786
    %v8220 = vunpack.c.l.b16 %v7787
    %v8221 = vunpack.c.l.b16 %v7788
    %v8222 = vunpack.c.h.b16 %v7788
    %v8223 = vunpack.c.l.b16 %v7789
    %v8224 = vunpack.c.h.b16 %v7789
    %v8225 = vunpack.c.l.b16 %v7790
    %v8226 = vunpack.c.l.b16 %v7791
    %v8227 = vunpack.c.h.b16 %v7791
    %v8228 = vunpack.c.l.b16 %v7792
    %v8229 = vunpack.c.h.b16 %v7792
    %v8230 = vunpack.c.l.b16 %v7793
    %v8231 = vunpack.c.l.b16 %v7794
    %v8232 = vunpack.c.h.b16 %v7794
    %v8233 = vunpack.c.l.b16 %v7795
    %v8234 = vunpack.c.h.b16 %v7795
    %v8235 = vunpack.c.l.b16 %v7796
    %v8236 = vunpack.c.l.b16 %v7797
    %v8237 = vunpack.c.h.b16 %v7797
    %v8238 = vunpack.c.l.b16 %v7798
    %v8239 = vunpack.c.h.b16 %v7798
    %v8240 = vunpack.c.l.b16 %v7799
    %v8241 = vunpack.c.l.b16 %v7800
    %v8242 = vunpack.c.h.b16 %v7800
    %v8243 = vunpack.c.l.b16 %v7801
    %v8244 = vunpack.c.h.b16 %v7801
    %v8245 = vunpack.c.l.b16 %v7802
    %v8246 = vunpack.c.l.b16 %v7803
    %v8247 = vunpack.c.h.b16 %v7803
    %v8248 = vunpack.c.l.b16 %v7804
    %v8249 = vunpack.c.h.b16 %v7804
    %v8250 = vunpack.c.l.b16 %v7805
    %v8251 = vunpack.c.l.b16 %v7806
    %v8252 = vunpack.c.h.b16 %v7806
    %v8253 = vunpack.c.l.b16 %v7807
    %v8254 = vunpack.c.h.b16 %v7807
    %v8255 = vunpack.c.l.b16 %v7808
    %v8256 = vunpack.c.l.b16 %v7809
    %v8257 = vunpack.c.h.b16 %v7809
    %v8258 = vunpack.c.l.b16 %v7810
    %v8259 = vunpack.c.h.b16 %v7810
    %v8260 = vunpack.c.l.b16 %v7811
    %v8261 = vunpack.c.l.b16 %v7812
    %v8262 = vunpack.c.h.b16 %v7812
    %v8263 = vunpack.c.l.b16 %v7813
    %v8264 = vunpack.c.h.b16 %v7813
    %v8265 = vunpack.c.l.b16 %v7814
    %v8266 = vunpack.c.l.b16 %v7815
    %v8267 = vunpack.c.h.b16 %v7815
    %v8268 = vunpack.c.l.b16 %v7816
    %v8269 = vunpack.c.h.b16 %v7816
    %v8270 = vunpack.c.l.b16 %v7817
    %v8271 = vunpack.c.l.b16 %v7818
    %v8272 = vunpack.c.h.b16 %v7818
    %v8273 = vunpack.c.l.b16 %v7819
    %v8274 = vunpack.c.h.b16 %v7819
    %v8275 = vunpack.c.l.b16 %v7820
    %v8276 = vunpack.c.l.b16 %v7821
    %v8277 = vunpack.c.h.b16 %v7821
    %v8278 = vunpack.c.l.b16 %v7822
    %v8279 = vunpack.c.h.b16 %v7822
    %v8280 = vunpack.c.l.b16 %v7823
    %v8281 = vunpack.c.l.b16 %v7824
    %v8282 = vunpack.c.h.b16 %v7824
    %v8283 = vunpack.c.l.b16 %v7825
    %v8284 = vunpack.c.h.b16 %v7825
    %v8285 = vunpack.c.l.b16 %v7826
    %v8286 = vunpack.c.l.b16 %v7827
    %v8287 = vunpack.c.h.b16 %v7827
    %v8288 = vunpack.c.l.b16 %v7828
    %v8289 = vunpack.c.h.b16 %v7828
    %v8290 = vunpack.c.l.b16 %v7829
    %v8291 = vunpack.c.l.b16 %v7830
    %v8292 = vunpack.c.h.b16 %v7830
    %v8293 = vunpack.c.l.b16 %v7831
    %v8294 = vunpack.c.h.b16 %v7831
    %v8295 = vunpack.c.l.b16 %v7832
    %v8296 = vunpack.c.l.b16 %v7833
    %v8297 = vunpack.c.h.b16 %v7833
    %v8298 = vunpack.c.l.b16 %v7834
    %v8299 = vunpack.c.h.b16 %v7834
    %v8300 = vunpack.c.l.b16 %v7835
    %v8301 = vunpack.c.l.b16 %v7836
    %v8302 = vunpack.c.h.b16 %v7836
    %v8303 = vunpack.c.l.b16 %v7837
    %v8304 = vunpack.c.h.b16 %v7837
    %v8305 = vunpack.c.l.b16 %v7838
    %v8306 = vunpack.c.l.b16 %v7839
    %v8307 = vunpack.c.h.b16 %v7839
    %v8308 = vunpack.c.l.b16 %v7840
    %v8309 = vunpack.c.h.b16 %v7840
    %v8310 = vunpack.c.l.b16 %v7841
    %v8311 = vunpack.c.l.b16 %v7842
    %v8312 = vunpack.c.h.b16 %v7842
    %v8313 = vunpack.c.l.b16 %v7843
    %v8314 = vunpack.c.h.b16 %v7843
    %v8315 = vunpack.c.l.b16 %v7844
    %v8316 = vunpack.c.l.b16 %v7845
    %v8317 = vunpack.c.h.b16 %v7845
    %v8318 = vunpack.c.l.b16 %v7846
    %v8319 = vunpack.c.h.b16 %v7846
    %v8320 = vunpack.c.l.b16 %v7847
    %v8321 = vunpack.c.l.b16 %v7848
    %v8322 = vunpack.c.h.b16 %v7848
    %v8323 = vunpack.c.l.b16 %v7849
    %v8324 = vunpack.c.h.b16 %v7849
    %v8325 = vunpack.c.l.b16 %v7850
    %v8326 = vunpack.c.l.b16 %v7851
    %v8327 = vunpack.c.h.b16 %v7851
    %v8328 = vunpack.c.l.b16 %v7852
    %v8329 = vunpack.c.h.b16 %v7852
    %v8330 = vunpack.c.l.b16 %v7853
    %v8331 = vunpack.c.l.b16 %v7854
    %v8332 = vunpack.c.h.b16 %v7854
    %v8333 = vunpack.c.l.b16 %v7855
    %v8334 = vunpack.c.h.b16 %v7855
    %v8335 = vunpack.c.l.b16 %v7856
    %v8336 = vunpack.c.l.b16 %v7857
    %v8337 = vunpack.c.h.b16 %v7857
    %v8338 = vunpack.c.l.b16 %v7858
    %v8339 = vunpack.c.h.b16 %v7858
    %v8340 = vunpack.c.l.b16 %v7859
    %v8341 = vunpack.c.l.b16 %v7860
    %v8342 = vunpack.c.h.b16 %v7860
    %v8343 = vunpack.c.l.b16 %v7861
    %v8344 = vunpack.c.h.b16 %v7861
    %v8345 = vunpack.c.l.b16 %v7862
    %v8346 = vunpack.c.l.b16 %v7863
    %v8347 = vunpack.c.h.b16 %v7863
    %v8348 = vunpack.c.l.b16 %v7864
    %v8349 = vunpack.c.h.b16 %v7864
    %v8350 = vunpack.c.l.b16 %v7865
    %v8351 = vunpack.c.l.b16 %v7866
    %v8352 = vunpack.c.h.b16 %v7866
    %v8353 = vunpack.c.l.b16 %v7867
    %v8354 = vunpack.c.h.b16 %v7867
    %v8355 = vunpack.c.l.b16 %v7868
    %v8356 = vunpack.c.l.b16 %v7869
    %v8357 = vunpack.c.h.b16 %v7869
    %v8358 = vunpack.c.l.b16 %v7870
    %v8359 = vunpack.c.h.b16 %v7870
    %v8360 = vunpack.c.l.b16 %v7871
    %v8361 = vunpack.c.l.b16 %v7872
    %v8362 = vunpack.c.h.b16 %v7872
    %v8363 = vunpack.c.l.b16 %v7873
    %v8364 = vunpack.c.h.b16 %v7873
    %v8365 = vunpack.c.l.b16 %v7874
    %v8366 = vunpack.c.l.b16 %v7875
    %v8367 = vunpack.c.h.b16 %v7875
    %v8368 = vunpack.c.l.b16 %v7876
    %v8369 = vunpack.c.h.b16 %v7876
    %v8370 = vunpack.c.l.b16 %v7877
    %v8371 = vunpack.c.l.b16 %v7878
    %v8372 = vunpack.c.h.b16 %v7878
    %v8373 = vunpack.c.l.b16 %v7879
    %v8374 = vunpack.c.h.b16 %v7879
    %v8375 = vunpack.c.l.b16 %v7880
    %v8376 = vunpack.c.l.b16 %v7881
    %v8377 = vunpack.c.h.b16 %v7881
    %v8378 = vunpack.c.l.b16 %v7882
    %v8379 = vunpack.c.h.b16 %v7882
    %v8380 = vunpack.c.l.b16 %v7883
    %v8381 = vunpack.c.l.b16 %v7884
    %v8382 = vunpack.c.h.b16 %v7884
    %v8383 = vunpack.c.l.b16 %v7885
    %v8384 = vunpack.c.h.b16 %v7885
    %v8385 = vunpack.c.l.b16 %v7886
    %v8386 = vunpack.c.l.b16 %v7887
    %v8387 = vunpack.c.h.b16 %v7887
    %v8388 = vunpack.c.l.b16 %v7888
    %v8389 = vunpack.c.h.b16 %v7888
    %v8390 = vunpack.c.l.b16 %v7889
    %v8391 = vunpack.c.l.b16 %v7890
    %v8392 = vunpack.c.h.b16 %v7890
    %v8393 = vunpack.c.l.b16 %v7891
    %v8394 = vunpack.c.h.b16 %v7891
    %v8395 = vunpack.c.l.b16 %v7892
    %v8396 = vunpack.c.l.b16 %v7893
    %v8397 = vunpack.c.h.b16 %v7893
    %v8398 = vunpack.c.l.b16 %v7894
    %v8399 = vunpack.c.h.b16 %v7894
    %v8400 = vunpack.c.l.b16 %v7895
    %v8401 = vunpack.c.l.b16 %v7896
    %v8402 = vunpack.c.h.b16 %v7896
    %v8403 = vunpack.c.l.b16 %v7897
    %v8404 = vunpack.c.h.b16 %v7897
    %v8405 = vunpack.c.l.b16 %v7898
    %v8406 = vunpack.c.l.b16 %v7899
    %v8407 = vunpack.c.h.b16 %v7899
    %v8408 = vunpack.c.l.b16 %v7900
    %v8409 = vunpack.c.h.b16 %v7900
    %v8410 = vunpack.c.l.b16 %v7901
    %v8411 = vunpack.c.l.b16 %v7902
    %v8412 = vunpack.c.h.b16 %v7902
    %v8413 = vunpack.c.l.b16 %v7903
    %v8414 = vunpack.c.h.b16 %v7903
    %v8415 = vunpack.c.l.b16 %v7904
    %v8416 = vunpack.c.l.b16 %v7905
    %v8417 = vunpack.c.h.b16 %v7905
    %v8418 = vunpack.c.l.b16 %v7906
    %v8419 = vunpack.c.h.b16 %v7906
    %v8420 = vunpack.c.l.b16 %v7907
    %v8421 = vunpack.c.l.b16 %v7908
    %v8422 = vunpack.c.h.b16 %v7908
    %v8423 = vunpack.c.l.b16 %v7909
    %v8424 = vunpack.c.h.b16 %v7909
    %v8425 = vunpack.c.l.b16 %v7910
    %v8426 = vunpack.c.l.b16 %v7911
    %v8427 = vunpack.c.h.b16 %v7911
    %v8428 = vunpack.c.l.b16 %v7912
    %v8429 = vunpack.c.h.b16 %v7912
    %v8430 = vunpack.c.l.b16 %v7913
    %v8431 = vunpack.c.l.b16 %v7914
    %v8432 = vunpack.c.h.b16 %v7914
    %v8433 = vunpack.c.l.b16 %v7915
    %v8434 = vunpack.c.h.b16 %v7915
    %v8435 = vunpack.c.l.b16 %v7916
    %v8436 = vunpack.c.l.b16 %v7917
    %v8437 = vunpack.c.h.b16 %v7917
    %v8438 = vunpack.c.l.b16 %v7918
    %v8439 = vunpack.c.h.b16 %v7918
    %v8440 = vunpack.c.l.b16 %v7919
    %v8441 = vunpack.c.l.b16 %v7920
    %v8442 = vunpack.c.h.b16 %v7920
    %v8443 = vunpack.c.l.b16 %v7921
    %v8444 = vunpack.c.h.b16 %v7921
    %v8445 = vunpack.c.l.b16 %v7922
    %v8446 = vunpack.c.l.b16 %v7923
    %v8447 = vunpack.c.h.b16 %v7923
    %v8448 = vunpack.c.l.b16 %v7924
    %v8449 = vunpack.c.h.b16 %v7924
    %v8450 = vunpack.c.l.b16 %v7925
    %v8451 = vunpack.c.l.b16 %v7926
    %v8452 = vunpack.c.h.b16 %v7926
    %v8453 = vunpack.c.l.b16 %v7927
    %v8454 = vunpack.c.h.b16 %v7927
    %v8455 = vunpack.c.l.b16 %v7928
    %v8456 = vunpack.c.l.b16 %v7929
    %v8457 = vunpack.c.h.b16 %v7929
    %v8458 = vunpack.c.l.b16 %v7930
    %v8459 = vunpack.c.h.b16 %v7930
    %v8460 = vunpack.c.l.b16 %v7931
    %v8461 = vunpack.c.l.b16 %v7932
    %v8462 = vunpack.c.h.b16 %v7932
    %v8463 = vunpack.c.l.b16 %v7933
    %v8464 = vunpack.c.h.b16 %v7933
    %v8465 = vunpack.c.l.b16 %v7934
    %v8466 = vunpack.c.l.b16 %v7935
    %v8467 = vunpack.c.h.b16 %v7935
    %v8468 = vunpack.c.l.b16 %v7936
    %v8469 = vunpack.c.h.b16 %v7936
    %v8470 = vunpack.c.l.b16 %v7937
    %v8471 = vunpack.c.l.b16 %v7938
    %v8472 = vunpack.c.h.b16 %v7938
    %v8473 = vunpack.c.l.b16 %v7939
    %v8474 = vunpack.c.h.b16 %v7939
    %v8475 = vunpack.c.l.b16 %v7940
    %v8476 = vunpack.c.l.b16 %v7941
    %v8477 = vunpack.c.h.b16 %v7941
    %v8478 = vunpack.c.l.b16 %v7942
    %v8479 = vunpack.c.h.b16 %v7942
    %v8480 = vunpack.c.l.b16 %v7943
    %v8481 = vunpack.c.l.b16 %v7944
    %v8482 = vunpack.c.h.b16 %v7944
    %v8483 = vunpack.c.l.b16 %v7945
    %v8484 = vunpack.c.h.b16 %v7945
    %v8485 = vunpack.c.l.b16 %v7946
    %v8486 = vpack.c.b16 %v8171, %v8166
    %v8487 = vpack.c.b16 %v8172, %v8167
    %v8488 = vpack.c.b16 %v8173, %v8168
    %v8489 = vpack.c.b16 %v8174, %v8169
    %v8490 = vpack.c.b16 %v8175, %v8170
    %v8491 = vpack.c.b16 %v8181, %v8176
    %v8492 = vpack.c.b16 %v8182, %v8177
    %v8493 = vpack.c.b16 %v8183, %v8178
    %v8494 = vpack.c.b16 %v8184, %v8179
    %v8495 = vpack.c.b16 %v8185, %v8180
    %v8496 = vpack.c.b16 %v8191, %v8186
    %v8497 = vpack.c.b16 %v8192, %v8187
    %v8498 = vpack.c.b16 %v8193, %v8188
    %v8499 = vpack.c.b16 %v8194, %v8189
    %v8500 = vpack.c.b16 %v8195, %v8190
    %v8501 = vpack.c.b16 %v8201, %v8196
    %v8502 = vpack.c.b16 %v8202, %v8197
    %v8503 = vpack.c.b16 %v8203, %v8198
    %v8504 = vpack.c.b16 %v8204, %v8199
    %v8505 = vpack.c.b16 %v8205, %v8200
    %v8506 = vpack.c.b16 %v8211, %v8206
    %v8507 = vpack.c.b16 %v8212, %v8207
    %v8508 = vpack.c.b16 %v8213, %v8208
    %v8509 = vpack.c.b16 %v8214, %v8209
    %v8510 = vpack.c.b16 %v8215, %v8210
    %v8511 = vpack.c.b16 %v8221, %v8216
    %v8512 = vpack.c.b16 %v8222, %v8217
    %v8513 = vpack.c.b16 %v8223, %v8218
    %v8514 = vpack.c.b16 %v8224, %v8219
    %v8515 = vpack.c.b16 %v8225, %v8220
    %v8516 = vpack.c.b16 %v8231, %v8226
    %v8517 = vpack.c.b16 %v8232, %v8227
    %v8518 = vpack.c.b16 %v8233, %v8228
    %v8519 = vpack.c.b16 %v8234, %v8229
    %v8520 = vpack.c.b16 %v8235, %v8230
    %v8521 = vpack.c.b16 %v8241, %v8236
    %v8522 = vpack.c.b16 %v8242, %v8237
    %v8523 = vpack.c.b16 %v8243, %v8238
    %v8524 = vpack.c.b16 %v8244, %v8239
    %v8525 = vpack.c.b16 %v8245, %v8240
    %v8526 = vpack.c.b16 %v8251, %v8246
    %v8527 = vpack.c.b16 %v8252, %v8247
    %v8528 = vpack.c.b16 %v8253, %v8248
    %v8529 = vpack.c.b16 %v8254, %v8249
    %v8530 = vpack.c.b16 %v8255, %v8250
    %v8531 = vpack.c.b16 %v8261, %v8256
    %v8532 = vpack.c.b16 %v8262, %v8257
    %v8533 = vpack.c.b16 %v8263, %v8258
    %v8534 = vpack.c.b16 %v8264, %v8259
    %v8535 = vpack.c.b16 %v8265, %v8260
    %v8536 = vpack.c.b16 %v8271, %v8266
    %v8537 = vpack.c.b16 %v8272, %v8267
    %v8538 = vpack.c.b16 %v8273, %v8268
    %v8539 = vpack.c.b16 %v8274, %v8269
    %v8540 = vpack.c.b16 %v8275, %v8270
    %v8541 = vpack.c.b16 %v8281, %v8276
    %v8542 = vpack.c.b16 %v8282, %v8277
    %v8543 = vpack.c.b16 %v8283, %v8278
    %v8544 = vpack.c.b16 %v8284, %v8279
    %v8545 = vpack.c.b16 %v8285, %v8280
    %v8546 = vpack.c.b16 %v8291, %v8286
    %v8547 = vpack.c.b16 %v8292, %v8287
    %v8548 = vpack.c.b16 %v8293, %v8288
    %v8549 = vpack.c.b16 %v8294, %v8289
    %v8550 = vpack.c.b16 %v8295, %v8290
    %v8551 = vpack.c.b16 %v8301, %v8296
    %v8552 = vpack.c.b16 %v8302, %v8297
    %v8553 = vpack.c.b16 %v8303, %v8298
    %v8554 = vpack.c.b16 %v8304, %v8299
    %v8555 = vpack.c.b16 %v8305, %v8300
    %v8556 = vpack.c.b16 %v8311, %v8306
    %v8557 = vpack.c.b16 %v8312, %v8307
    %v8558 = vpack.c.b16 %v8313, %v8308
    %v8559 = vpack.c.b16 %v8314, %v8309
    %v8560 = vpack.c.b16 %v8315, %v8310
    %v8561 = vpack.c.b16 %v8321, %v8316
    %v8562 = vpack.c.b16 %v8322, %v8317
    %v8563 = vpack.c.b16 %v8323, %v8318
    %v8564 = vpack.c.b16 %v8324, %v8319
    %v8565 = vpack.c.b16 %v8325, %v8320
    %v8566 = vpack.c.b16 %v8331, %v8326
    %v8567 = vpack.c.b16 %v8332, %v8327
    %v8568 = vpack.c.b16 %v8333, %v8328
    %v8569 = vpack.c.b16 %v8334, %v8329
    %v8570 = vpack.c.b16 %v8335, %v8330
    %v8571 = vpack.c.b16 %v8341, %v8336
    %v8572 = vpack.c.b16 %v8342, %v8337
    %v8573 = vpack.c.b16 %v8343, %v8338
    %v8574 = vpack.c.b16 %v8344, %v8339
    %v8575 = vpack.c.b16 %v8345, %v8340
    %v8576 = vpack.c.b16 %v8351, %v8346
    %v8577 = vpack.c.b16 %v8352, %v8347
    %v8578 = vpack.c.b16 %v8353, %v8348
    %v8579 = vpack.c.b16 %v8354, %v8349
    %v8580 = vpack.c.b16 %v8355, %v8350
    %v8581 = vpack.c.b16 %v8361, %v8356
    %v8582 = vpack.c.b16 %v8362, %v8357
    %v8583 = vpack.c.b16 %v8363, %v8358
    %v8584 = vpack.c.b16 %v8364, %v8359
    %v8585 = vpack.c.b16 %v8365, %v8360
    %v8586 = vpack.c.b16 %v8371, %v8366
    %v8587 = vpack.c.b16 %v8372, %v8367
    %v8588 = vpack.c.b16 %v8373, %v8368
    %v8589 = vpack.c.b16 %v8374, %v8369
    %v8590 = vpack.c.b16 %v8375, %v8370
    %v8591 = vpack.c.b16 %v8381, %v8376
    %v8592 = vpack.c.b16 %v8382, %v8377
    %v8593 = vpack.c.b16 %v8383, %v8378
    %v8594 = vpack.c.b16 %v8384, %v8379
    %v8595 = vpack.c.b16 %v8385, %v8380
    %v8596 = vpack.c.b16 %v8391, %v8386
    %v8597 = vpack.c.b16 %v8392, %v8387
    %v8598 = vpack.c.b16 %v8393, %v8388
    %v8599 = vpack.c.b16 %v8394, %v8389
    %v8600 = vpack.c.b16 %v8395, %v8390
    %v8601 = vpack.c.b16 %v8401, %v8396
    %v8602 = vpack.c.b16 %v8402, %v8397
    %v8603 = vpack.c.b16 %v8403, %v8398
    %v8604 = vpack.c.b16 %v8404, %v8399
    %v8605 = vpack.c.b16 %v8405, %v8400
    %v8606 = vpack.c.b16 %v8411, %v8406
    %v8607 = vpack.c.b16 %v8412, %v8407
    %v8608 = vpack.c.b16 %v8413, %v8408
    %v8609 = vpack.c.b16 %v8414, %v8409
    %v8610 = vpack.c.b16 %v8415, %v8410
    %v8611 = vpack.c.b16 %v8421, %v8416
    %v8612 = vpack.c.b16 %v8422, %v8417
    %v8613 = vpack.c.b16 %v8423, %v8418
    %v8614 = vpack.c.b16 %v8424, %v8419
    %v8615 = vpack.c.b16 %v8425, %v8420
    %v8616 = vpack.c.b16 %v8431, %v8426
    %v8617 = vpack.c.b16 %v8432, %v8427
    %v8618 = vpack.c.b16 %v8433, %v8428
    %v8619 = vpack.c.b16 %v8434, %v8429
    %v8620 = vpack.c.b16 %v8435, %v8430
    %v8621 = vpack.c.b16 %v8441, %v8436
    %v8622 = vpack.c.b16 %v8442, %v8437
    %v8623 = vpack.c.b16 %v8443, %v8438
    %v8624 = vpack.c.b16 %v8444, %v8439
    %v8625 = vpack.c.b16 %v8445, %v8440
    %v8626 = vpack.c.b16 %v8451, %v8446
    %v8627 = vpack.c.b16 %v8452, %v8447
    %v8628 = vpack.c.b16 %v8453, %v8448
    %v8629 = vpack.c.b16 %v8454, %v8449
    %v8630 = vpack.c.b16 %v8455, %v8450
    %v8631 = vpack.c.b16 %v8461, %v8456
    %v8632 = vpack.c.b16 %v8462, %v8457
    %v8633 = vpack.c.b16 %v8463, %v8458
    %v8634 = vpack.c.b16 %v8464, %v8459
    %v8635 = vpack.c.b16 %v8465, %v8460
    %v8636 = vpack.c.b16 %v8471, %v8466
    %v8637 = vpack.c.b16 %v8472, %v8467
    %v8638 = vpack.c.b16 %v8473, %v8468
    %v8639 = vpack.c.b16 %v8474, %v8469
    %v8640 = vpack.c.b16 %v8475, %v8470
    %v8641 = vpack.c.b16 %v8481, %v8476
    %v8642 = vpack.c.b16 %v8482, %v8477
    %v8643 = vpack.c.b16 %v8483, %v8478
    %v8644 = vpack.c.b16 %v8484, %v8479
    %v8645 = vpack.c.b16 %v8485, %v8480
    %8806 = vmatprep.subr.bf16.mxu0 %v8487
    %8807 = vmatpush1.bf16.msra.mxu0 %v8486
    %8808 = vmatprep.subr.bf16.mxu0 %v8492
    %8809 = vmatpush1.bf16.msra.mxu0 %v8491
    %8810 = vmatprep.subr.bf16.mxu0 %v8497
    %8811 = vmatpush1.bf16.msra.mxu0 %v8496
    %8812 = vmatprep.subr.bf16.mxu0 %v8502
    %8813 = vmatpush1.bf16.msra.mxu0 %v8501
    %8814 = vmatprep.subr.bf16.mxu0 %v8507
    %8815 = vmatpush1.bf16.msra.mxu0 %v8506
    %8816 = vmatprep.subr.bf16.mxu0 %v8512
    %8817 = vmatpush1.bf16.msra.mxu0 %v8511
    %8818 = vmatprep.subr.bf16.mxu0 %v8517
    %8819 = vmatpush1.bf16.msra.mxu0 %v8516
    %8820 = vmatprep.subr.bf16.mxu0 %v8522
    %8821 = vmatpush1.bf16.msra.mxu0 %v8521
    %8822 = vmatprep.subr.bf16.mxu0 %v8527
    %8823 = vmatpush1.bf16.msra.mxu0 %v8526
    %8824 = vmatprep.subr.bf16.mxu0 %v8532
    %8825 = vmatpush1.bf16.msra.mxu0 %v8531
    %8826 = vmatprep.subr.bf16.mxu0 %v8537
    %8827 = vmatpush1.bf16.msra.mxu0 %v8536
    %8828 = vmatprep.subr.bf16.mxu0 %v8542
    %8829 = vmatpush1.bf16.msra.mxu0 %v8541
    %8830 = vmatprep.subr.bf16.mxu0 %v8547
    %8831 = vmatpush1.bf16.msra.mxu0 %v8546
    %8832 = vmatprep.subr.bf16.mxu0 %v8552
    %8833 = vmatpush1.bf16.msra.mxu0 %v8551
    %8834 = vmatprep.subr.bf16.mxu0 %v8557
    %8835 = vmatpush1.bf16.msra.mxu0 %v8556
    %8836 = vmatprep.subr.bf16.mxu0 %v8562
    %8837 = vmatpush1.bf16.msra.mxu0 %v8561
    %8838 = vmatprep.mubr.bf16.mxu0 %v7752
    %8839 = vmatmul.mubr.bf16.gmra.mrb[0].mxu0 %v7751
    %v8840 = vpop.f32.mrb[0].mxu0
    %v8841 = vadd.f32 %v7952, %v8840
    %v8842 = vpop.f32.mrb[0].mxu0
    %v8843 = vadd.f32 %v7956, %v8842
    %v8844 = vpop.f32.mrb[0].mxu0
    %v8845 = vpop.f32.mrb[0].mxu0
    %8846 = vdwg.mxu0
    %8847 = vmatprep.subr.bf16.mxu0 %v8567
    %8848 = vmatpush1.bf16.msra.mxu0 %v8566
    %8849 = vmatprep.subr.bf16.mxu0 %v8572
    %8850 = vmatpush1.bf16.msra.mxu0 %v8571
    %8851 = vmatprep.subr.bf16.mxu0 %v8577
    %8852 = vmatpush1.bf16.msra.mxu0 %v8576
    %8853 = vmatprep.subr.bf16.mxu0 %v8582
    %8854 = vmatpush1.bf16.msra.mxu0 %v8581
    %8855 = vmatprep.subr.bf16.mxu0 %v8587
    %8856 = vmatpush1.bf16.msra.mxu0 %v8586
    %8857 = vmatprep.subr.bf16.mxu0 %v8592
    %8858 = vmatpush1.bf16.msra.mxu0 %v8591
    %8859 = vmatprep.subr.bf16.mxu0 %v8597
    %8860 = vmatpush1.bf16.msra.mxu0 %v8596
    %8861 = vmatprep.subr.bf16.mxu0 %v8602
    %8862 = vmatpush1.bf16.msra.mxu0 %v8601
    %8863 = vmatprep.subr.bf16.mxu0 %v8607
    %8864 = vmatpush1.bf16.msra.mxu0 %v8606
    %8865 = vmatprep.subr.bf16.mxu0 %v8612
    %8866 = vmatpush1.bf16.msra.mxu0 %v8611
    %8867 = vmatprep.subr.bf16.mxu0 %v8617
    %8868 = vmatpush1.bf16.msra.mxu0 %v8616
    %8869 = vmatprep.subr.bf16.mxu0 %v8622
    %8870 = vmatpush1.bf16.msra.mxu0 %v8621
    %8871 = vmatprep.subr.bf16.mxu0 %v8627
    %8872 = vmatpush1.bf16.msra.mxu0 %v8626
    %8873 = vmatprep.subr.bf16.mxu0 %v8632
    %8874 = vmatpush1.bf16.msra.mxu0 %v8631
    %8875 = vmatprep.subr.bf16.mxu0 %v8637
    %8876 = vmatpush1.bf16.msra.mxu0 %v8636
    %8877 = vmatprep.subr.bf16.mxu0 %v8642
    %8878 = vmatpush1.bf16.msra.mxu0 %v8641
    %8879 = vmatprep.mubr.bf16.mxu0 %v7754
    %8880 = vmatmul.mubr.bf16.gmra.mrb[0].mxu0 %v7753
    %v8881 = vpop.f32.mrb[0].mxu0
    %v8882 = vadd.f32 %v8841, %v8881
    %v8883 = vpop.f32.mrb[0].mxu0
    %v8884 = vadd.f32 %v8843, %v8883
    %v8885 = vpop.f32.mrb[0].mxu0
    %v8886 = vpop.f32.mrb[0].mxu0
    %8887 = vdwg.mxu0
    %8888 = vmatprep.subr.bf16.mxu0 %v8489
    %8889 = vmatpush1.bf16.msra.mxu0 %v8488
    %8890 = vmatprep.subr.bf16.mxu0 %v8494
    %8891 = vmatpush1.bf16.msra.mxu0 %v8493
    %8892 = vmatprep.subr.bf16.mxu0 %v8499
    %8893 = vmatpush1.bf16.msra.mxu0 %v8498
    %8894 = vmatprep.subr.bf16.mxu0 %v8504
    %8895 = vmatpush1.bf16.msra.mxu0 %v8503
    %8896 = vmatprep.subr.bf16.mxu0 %v8509
    %8897 = vmatpush1.bf16.msra.mxu0 %v8508
    %8898 = vmatprep.subr.bf16.mxu0 %v8514
    %8899 = vmatpush1.bf16.msra.mxu0 %v8513
    %8900 = vmatprep.subr.bf16.mxu0 %v8519
    %8901 = vmatpush1.bf16.msra.mxu0 %v8518
    %8902 = vmatprep.subr.bf16.mxu0 %v8524
    %8903 = vmatpush1.bf16.msra.mxu0 %v8523
    %8904 = vmatprep.subr.bf16.mxu0 %v8529
    %8905 = vmatpush1.bf16.msra.mxu0 %v8528
    %8906 = vmatprep.subr.bf16.mxu0 %v8534
    %8907 = vmatpush1.bf16.msra.mxu0 %v8533
    %8908 = vmatprep.subr.bf16.mxu0 %v8539
    %8909 = vmatpush1.bf16.msra.mxu0 %v8538
    %8910 = vmatprep.subr.bf16.mxu0 %v8544
    %8911 = vmatpush1.bf16.msra.mxu0 %v8543
    %8912 = vmatprep.subr.bf16.mxu0 %v8549
    %8913 = vmatpush1.bf16.msra.mxu0 %v8548
    %8914 = vmatprep.subr.bf16.mxu0 %v8554
    %8915 = vmatpush1.bf16.msra.mxu0 %v8553
    %8916 = vmatprep.subr.bf16.mxu0 %v8559
    %8917 = vmatpush1.bf16.msra.mxu0 %v8558
    %8918 = vmatprep.subr.bf16.mxu0 %v8564
    %8919 = vmatpush1.bf16.msra.mxu0 %v8563
    %8920 = vmatprep.mubr.bf16.mxu0 %v7752
    %8921 = vmatmul.mubr.bf16.gmra.mrb[0].mxu0 %v7751
    %v8922 = vpop.f32.mrb[0].mxu0
    %v8923 = vadd.f32 %v7960, %v8922
    %v8924 = vpop.f32.mrb[0].mxu0
    %v8925 = vadd.f32 %v7964, %v8924
    %v8926 = vpop.f32.mrb[0].mxu0
    %v8927 = vpop.f32.mrb[0].mxu0
    %8928 = vdwg.mxu0
    %8929 = vmatprep.subr.bf16.mxu0 %v8569
    %8930 = vmatpush1.bf16.msra.mxu0 %v8568
    %8931 = vmatprep.subr.bf16.mxu0 %v8574
    %8932 = vmatpush1.bf16.msra.mxu0 %v8573
    %8933 = vmatprep.subr.bf16.mxu0 %v8579
    %8934 = vmatpush1.bf16.msra.mxu0 %v8578
    %8935 = vmatprep.subr.bf16.mxu0 %v8584
    %8936 = vmatpush1.bf16.msra.mxu0 %v8583
    %8937 = vmatprep.subr.bf16.mxu0 %v8589
    %8938 = vmatpush1.bf16.msra.mxu0 %v8588
    %8939 = vmatprep.subr.bf16.mxu0 %v8594
    %8940 = vmatpush1.bf16.msra.mxu0 %v8593
    %8941 = vmatprep.subr.bf16.mxu0 %v8599
    %8942 = vmatpush1.bf16.msra.mxu0 %v8598
    %8943 = vmatprep.subr.bf16.mxu0 %v8604
    %8944 = vmatpush1.bf16.msra.mxu0 %v8603
    %8945 = vmatprep.subr.bf16.mxu0 %v8609
    %8946 = vmatpush1.bf16.msra.mxu0 %v8608
    %8947 = vmatprep.subr.bf16.mxu0 %v8614
    %8948 = vmatpush1.bf16.msra.mxu0 %v8613
    %8949 = vmatprep.subr.bf16.mxu0 %v8619
    %8950 = vmatpush1.bf16.msra.mxu0 %v8618
    %8951 = vmatprep.subr.bf16.mxu0 %v8624
    %8952 = vmatpush1.bf16.msra.mxu0 %v8623
    %8953 = vmatprep.subr.bf16.mxu0 %v8629
    %8954 = vmatpush1.bf16.msra.mxu0 %v8628
    %8955 = vmatprep.subr.bf16.mxu0 %v8634
    %8956 = vmatpush1.bf16.msra.mxu0 %v8633
    %8957 = vmatprep.subr.bf16.mxu0 %v8639
    %8958 = vmatpush1.bf16.msra.mxu0 %v8638
    %8959 = vmatprep.subr.bf16.mxu0 %v8644
    %8960 = vmatpush1.bf16.msra.mxu0 %v8643
    %8961 = vmatprep.mubr.bf16.mxu0 %v7754
    %8962 = vmatmul.mubr.bf16.gmra.mrb[0].mxu0 %v7753
    %v8963 = vpop.f32.mrb[0].mxu0
    %v8964 = vadd.f32 %v8923, %v8963
    %v8965 = vpop.f32.mrb[0].mxu0
    %v8966 = vadd.f32 %v8925, %v8965
    %v8967 = vpop.f32.mrb[0].mxu0
    %v8968 = vpop.f32.mrb[0].mxu0
    %8969 = vdwg.mxu0
    %8970 = vmatprep.subr.bf16.mxu0 0
    %8971 = vmatpush1.bf16.msra.mxu0 %v8490
    %8972 = vmatprep.subr.bf16.mxu0 0
    %8973 = vmatpush1.bf16.msra.mxu0 %v8495
    %8974 = vmatprep.subr.bf16.mxu0 0
    %8975 = vmatpush1.bf16.msra.mxu0 %v8500
    %8976 = vmatprep.subr.bf16.mxu0 0
    %8977 = vmatpush1.bf16.msra.mxu0 %v8505
    %8978 = vmatprep.subr.bf16.mxu0 0
    %8979 = vmatpush1.bf16.msra.mxu0 %v8510
    %8980 = vmatprep.subr.bf16.mxu0 0
    %8981 = vmatpush1.bf16.msra.mxu0 %v8515
    %8982 = vmatprep.subr.bf16.mxu0 0
    %8983 = vmatpush1.bf16.msra.mxu0 %v8520
    %8984 = vmatprep.subr.bf16.mxu0 0
    %8985 = vmatpush1.bf16.msra.mxu0 %v8525
    %8986 = vmatprep.subr.bf16.mxu0 0
    %8987 = vmatpush1.bf16.msra.mxu0 %v8530
    %8988 = vmatprep.subr.bf16.mxu0 0
    %8989 = vmatpush1.bf16.msra.mxu0 %v8535
    %8990 = vmatprep.subr.bf16.mxu0 0
    %8991 = vmatpush1.bf16.msra.mxu0 %v8540
    %8992 = vmatprep.subr.bf16.mxu0 0
    %8993 = vmatpush1.bf16.msra.mxu0 %v8545
    %8994 = vmatprep.subr.bf16.mxu0 0
    %8995 = vmatpush1.bf16.msra.mxu0 %v8550
    %8996 = vmatprep.subr.bf16.mxu0 0
    %8997 = vmatpush1.bf16.msra.mxu0 %v8555
    %8998 = vmatprep.subr.bf16.mxu0 0
    %8999 = vmatpush1.bf16.msra.mxu0 %v8560
    %9000 = vmatprep.subr.bf16.mxu0 0
    %9001 = vmatpush1.bf16.msra.mxu0 %v8565
    %9002 = vmatprep.mubr.bf16.mxu0 %v7752
    %9003 = vmatmul.mubr.bf16.gmra.mrb[0].mxu0 %v7751
    %v9004 = vpop.f32.mrb[0].mxu0
    %v9005 = vadd.f32 %v7968, %v9004
    %v9006 = vpop.f32.mrb[0].mxu0
    %v9007 = vpop.f32.mrb[0].mxu0
    %v9008 = vpop.f32.mrb[0].mxu0
    %9009 = vdwg.mxu0
    %9010 = vmatprep.subr.bf16.mxu0 0
    %9011 = vmatpush1.bf16.msra.mxu0 %v8570
    %9012 = vmatprep.subr.bf16.mxu0 0
    %9013 = vmatpush1.bf16.msra.mxu0 %v8575
    %9014 = vmatprep.subr.bf16.mxu0 0
    %9015 = vmatpush1.bf16.msra.mxu0 %v8580
    %9016 = vmatprep.subr.bf16.mxu0 0
    %9017 = vmatpush1.bf16.msra.mxu0 %v8585
    %9018 = vmatprep.subr.bf16.mxu0 0
    %9019 = vmatpush1.bf16.msra.mxu0 %v8590
    %9020 = vmatprep.subr.bf16.mxu0 0
    %9021 = vmatpush1.bf16.msra.mxu0 %v8595
    %9022 = vmatprep.subr.bf16.mxu0 0
    %9023 = vmatpush1.bf16.msra.mxu0 %v8600
    %9024 = vmatprep.subr.bf16.mxu0 0
    %9025 = vmatpush1.bf16.msra.mxu0 %v8605
    %9026 = vmatprep.subr.bf16.mxu0 0
    %9027 = vmatpush1.bf16.msra.mxu0 %v8610
    %9028 = vmatprep.subr.bf16.mxu0 0
    %9029 = vmatpush1.bf16.msra.mxu0 %v8615
    %9030 = vmatprep.subr.bf16.mxu0 0
    %9031 = vmatpush1.bf16.msra.mxu0 %v8620
    %9032 = vmatprep.subr.bf16.mxu0 0
    %9033 = vmatpush1.bf16.msra.mxu0 %v8625
    %9034 = vmatprep.subr.bf16.mxu0 0
    %9035 = vmatpush1.bf16.msra.mxu0 %v8630
    %9036 = vmatprep.subr.bf16.mxu0 0
    %9037 = vmatpush1.bf16.msra.mxu0 %v8635
    %9038 = vmatprep.subr.bf16.mxu0 0
    %9039 = vmatpush1.bf16.msra.mxu0 %v8640
    %9040 = vmatprep.subr.bf16.mxu0 0
    %9041 = vmatpush1.bf16.msra.mxu0 %v8645
    %9042 = vmatprep.mubr.bf16.mxu0 %v7754
    %9043 = vmatmul.mubr.bf16.gmra.mrb[0].mxu0 %v7753
    %v9044 = vpop.f32.mrb[0].mxu0
    %v9045 = vadd.f32 %v9005, %v9044
    %v9046 = vpop.f32.mrb[0].mxu0
    %v9047 = vpop.f32.mrb[0].mxu0
    %v9048 = vpop.f32.mrb[0].mxu0
    %9049 = vdwg.mxu0
    %v9050 = vmax.f32 %v8882, 0.0
    %v9051 = vmax.f32 %v8884, 0.0
    %v9052 = vmax.f32 %v8964, 0.0
    %v9053 = vmax.f32 %v8966, 0.0
    %v9054 = vmax.f32 %v9045, 0.0
    %s9055 = sadd.s32 %s325, 10
    %s9056 = smul.u32 %s9055, 1640531527
    %v9057 = vstv %s9056
    %v9058 = vadd.s32 %v2915, %v9057
    %v9059 = vadd.s32 %v2916, %v9057
    %v9060 = vadd.s32 %v2917, %v9057
    %v9061 = vadd.s32 %v2918, %v9057
    %v9062 = vadd.s32 %v2919, %v9057
    %v9063 = vmul.u32 %v9058, 668265263
    %v9064 = vmul.u32 %v9059, 668265263
    %v9065 = vmul.u32 %v9060, 668265263
    %v9066 = vmul.u32 %v9061, 668265263
    %v9067 = vmul.u32 %v9062, 668265263
    %v9068 = vshra.s32 %v9063, 15
    %v9069 = vshra.s32 %v9064, 15
    %v9070 = vshra.s32 %v9065, 15
    %v9071 = vshra.s32 %v9066, 15
    %v9072 = vshra.s32 %v9067, 15
    %v9073 = vand.u32 %v9068, 131071
    %v9074 = vand.u32 %v9069, 131071
    %v9075 = vand.u32 %v9070, 131071
    %v9076 = vand.u32 %v9071, 131071
    %v9077 = vand.u32 %v9072, 131071
    %v9078 = vxor.u32 %v9063, %v9073
    %v9079 = vxor.u32 %v9064, %v9074
    %v9080 = vxor.u32 %v9065, %v9075
    %v9081 = vxor.u32 %v9066, %v9076
    %v9082 = vxor.u32 %v9067, %v9077
    %v9083 = vmul.u32 %v9078, 625341585
    %v9084 = vmul.u32 %v9079, 625341585
    %v9085 = vmul.u32 %v9080, 625341585
    %v9086 = vmul.u32 %v9081, 625341585
    %v9087 = vmul.u32 %v9082, 625341585
    %v9088 = vshra.s32 %v9083, 13
    %v9089 = vshra.s32 %v9084, 13
    %v9090 = vshra.s32 %v9085, 13
    %v9091 = vshra.s32 %v9086, 13
    %v9092 = vshra.s32 %v9087, 13
    %v9093 = vand.u32 %v9088, 524287
    %v9094 = vand.u32 %v9089, 524287
    %v9095 = vand.u32 %v9090, 524287
    %v9096 = vand.u32 %v9091, 524287
    %v9097 = vand.u32 %v9092, 524287
    %v9098 = vxor.u32 %v9083, %v9093
    %v9099 = vxor.u32 %v9084, %v9094
    %v9100 = vxor.u32 %v9085, %v9095
    %v9101 = vxor.u32 %v9086, %v9096
    %v9102 = vxor.u32 %v9087, %v9097
    %v9103 = vmul.u32 %v9098, 1640531527
    %v9104 = vmul.u32 %v9099, 1640531527
    %v9105 = vmul.u32 %v9100, 1640531527
    %v9106 = vmul.u32 %v9101, 1640531527
    %v9107 = vmul.u32 %v9102, 1640531527
    %v9108 = vshra.s32 %v9103, 16
    %v9109 = vshra.s32 %v9104, 16
    %v9110 = vshra.s32 %v9105, 16
    %v9111 = vshra.s32 %v9106, 16
    %v9112 = vshra.s32 %v9107, 16
    %v9113 = vand.u32 %v9108, 65535
    %v9114 = vand.u32 %v9109, 65535
    %v9115 = vand.u32 %v9110, 65535
    %v9116 = vand.u32 %v9111, 65535
    %v9117 = vand.u32 %v9112, 65535
    %v9118 = vxor.u32 %v9103, %v9113
    %v9119 = vxor.u32 %v9104, %v9114
    %v9120 = vxor.u32 %v9105, %v9115
    %v9121 = vxor.u32 %v9106, %v9116
    %v9122 = vxor.u32 %v9107, %v9117
    %v9123 = vand.u32 %v9118, 8388607
    %v9124 = vand.u32 %v9119, 8388607
    %v9125 = vand.u32 %v9120, 8388607
    %v9126 = vand.u32 %v9121, 8388607
    %v9127 = vand.u32 %v9122, 8388607
    %v9128 = vcvt.s32.f32 %v9123
    %v9129 = vcvt.s32.f32 %v9124
    %v9130 = vcvt.s32.f32 %v9125
    %v9131 = vcvt.s32.f32 %v9126
    %v9132 = vcvt.s32.f32 %v9127
    %v9133 = vmul.f32 %v9128, 1.1920929e-07
    %v9134 = vmul.f32 %v9129, 1.1920929e-07
    %v9135 = vmul.f32 %v9130, 1.1920929e-07
    %v9136 = vmul.f32 %v9131, 1.1920929e-07
    %v9137 = vmul.f32 %v9132, 1.1920929e-07
    %v9138 = vadd.f32 %v9133, 1e-07
    %v9139 = vadd.f32 %v9134, 1e-07
    %v9140 = vadd.f32 %v9135, 1e-07
    %v9141 = vadd.f32 %v9136, 1e-07
    %v9142 = vadd.f32 %v9137, 1e-07
    %v9143 = vsub.f32 1.0, %v9133
    %v9144 = vsub.f32 1.0, %v9134
    %v9145 = vsub.f32 1.0, %v9135
    %v9146 = vsub.f32 1.0, %v9136
    %v9147 = vsub.f32 1.0, %v9137
    %v9148 = vadd.f32 %v9143, 1e-07
    %v9149 = vadd.f32 %v9144, 1e-07
    %v9150 = vadd.f32 %v9145, 1e-07
    %v9151 = vadd.f32 %v9146, 1e-07
    %v9152 = vadd.f32 %v9147, 1e-07
    %v9153 = vrcp.pop %v9148
    %v9154 = vmul.f32 %v9138, %v9153
    %v9155 = vrcp.pop %v9149
    %v9156 = vmul.f32 %v9139, %v9155
    %v9157 = vrcp.pop %v9150
    %v9158 = vmul.f32 %v9140, %v9157
    %v9159 = vrcp.pop %v9151
    %v9160 = vmul.f32 %v9141, %v9159
    %v9161 = vrcp.pop %v9152
    %v9162 = vmul.f32 %v9142, %v9161
    %v9163 = vlog2.pop %v9154
    %v9164 = vmul.f32 %v9163, 0.6931472
    %v9165 = vlog2.pop %v9156
    %v9166 = vmul.f32 %v9165, 0.6931472
    %v9167 = vlog2.pop %v9158
    %v9168 = vmul.f32 %v9167, 0.6931472
    %v9169 = vlog2.pop %v9160
    %v9170 = vmul.f32 %v9169, 0.6931472
    %v9171 = vlog2.pop %v9162
    %v9172 = vmul.f32 %v9171, 0.6931472
    %v9173 = vadd.f32 %v9164, -2.1972237
    %v9174 = vadd.f32 %v9166, -2.1972237
    %v9175 = vadd.f32 %v9168, -2.1972237
    %v9176 = vadd.f32 %v9170, -2.1972237
    %v9177 = vadd.f32 %v9172, -2.1972237
    %v9178 = vmul.f32 %v9173, 10.0
    %v9179 = vmul.f32 %v9174, 10.0
    %v9180 = vmul.f32 %v9175, 10.0
    %v9181 = vmul.f32 %v9176, 10.0
    %v9182 = vmul.f32 %v9177, 10.0
    %v9183 = vxor.u32 %v9178, 2147483648
    %v9184 = vxor.u32 %v9179, 2147483648
    %v9185 = vxor.u32 %v9180, 2147483648
    %v9186 = vxor.u32 %v9181, 2147483648
    %v9187 = vxor.u32 %v9182, 2147483648
    %v9188 = vmul.f32 %v9183, 1.442695
    %v9189 = vpow.pop %v9188
    %v9190 = vmul.f32 %v9184, 1.442695
    %v9191 = vpow.pop %v9190
    %v9192 = vmul.f32 %v9185, 1.442695
    %v9193 = vpow.pop %v9192
    %v9194 = vmul.f32 %v9186, 1.442695
    %v9195 = vpow.pop %v9194
    %v9196 = vmul.f32 %v9187, 1.442695
    %v9197 = vpow.pop %v9196
    %v9198 = vadd.f32 %v9189, 1.0
    %v9199 = vadd.f32 %v9191, 1.0
    %v9200 = vadd.f32 %v9193, 1.0
    %v9201 = vadd.f32 %v9195, 1.0
    %v9202 = vadd.f32 %v9197, 1.0
    %v9203 = vrcp.pop %v9198
    %v9204 = vmul.f32 1.0, %v9203
    %v9205 = vrcp.pop %v9199
    %v9206 = vmul.f32 1.0, %v9205
    %v9207 = vrcp.pop %v9200
    %v9208 = vmul.f32 1.0, %v9207
    %v9209 = vrcp.pop %v9201
    %v9210 = vmul.f32 1.0, %v9209
    %v9211 = vrcp.pop %v9202
    %v9212 = vmul.f32 1.0, %v9211
    %v9213 = vsub.f32 1.0, %v9204
    %v9214 = vsub.f32 1.0, %v9206
    %v9215 = vsub.f32 1.0, %v9208
    %v9216 = vsub.f32 1.0, %v9210
    %v9217 = vsub.f32 1.0, %v9212
    %v9218 = vmul.f32 %v9050, %v9213
    %v9219 = vmul.f32 %v9051, %v9214
    %v9220 = vmul.f32 %v9052, %v9215
    %v9221 = vmul.f32 %v9053, %v9216
    %v9222 = vmul.f32 %v9054, %v9217
    %v9223 = vmul.f32 %v9218, 1.1111112
    %v9224 = vmul.f32 %v9219, 1.1111112
    %v9225 = vmul.f32 %v9220, 1.1111112
    %v9226 = vmul.f32 %v9221, 1.1111112
    %v9227 = vmul.f32 %v9222, 1.1111112
    %v9228 = vpack.c.bf16 %v9223, %v9223
    %v9229 = vpack.c.bf16 %v9224, %v9224
    %v9230 = vpack.c.bf16 %v9225, %v9225
    %v9231 = vpack.c.bf16 %v9226, %v9226
    %v9232 = vpack.c.bf16 %v9227, %v9227
    %v9233 = vld [vmem:[#allocation32] sm:$0xff]
    %v9234 = vld [vmem:[#allocation32 + $0x8] sm:$0xff]
    %v9235 = vld [vmem:[#allocation32 + $0x10] sm:$0xff]
    %v9236 = vld [vmem:[#allocation32 + $0x18] sm:$0xf]
    %v9237 = vld [vmem:[#allocation32 + $0x1c] sm:$0xff]
    %v9238 = vld [vmem:[#allocation32 + $0x24] sm:$0xff]
    %v9239 = vld [vmem:[#allocation32 + $0x2c] sm:$0xff]
    %v9240 = vld [vmem:[#allocation32 + $0x34] sm:$0xf]
    %v9241 = vld [vmem:[#allocation32 + $0x38] sm:$0xff]
    %v9242 = vld [vmem:[#allocation32 + $0x40] sm:$0xff]
    %v9243 = vld [vmem:[#allocation32 + $0x48] sm:$0xff]
    %v9244 = vld [vmem:[#allocation32 + $0x50] sm:$0xf]
    %v9245 = vld [vmem:[#allocation32 + $0x54] sm:$0xff]
    %v9246 = vld [vmem:[#allocation32 + $0x5c] sm:$0xff]
    %v9247 = vld [vmem:[#allocation32 + $0x64] sm:$0xff]
    %v9248 = vld [vmem:[#allocation32 + $0x6c] sm:$0xf]
    %v9249 = vld [vmem:[#allocation32 + $0x70] sm:$0xff]
    %v9250 = vld [vmem:[#allocation32 + $0x78] sm:$0xff]
    %v9251 = vld [vmem:[#allocation32 + $0x80] sm:$0xff]
    %v9252 = vld [vmem:[#allocation32 + $0x88] sm:$0xf]
    %v9253 = vld [vmem:[#allocation32 + $0x8c] sm:$0xff]
    %v9254 = vld [vmem:[#allocation32 + $0x94] sm:$0xff]
    %v9255 = vld [vmem:[#allocation32 + $0x9c] sm:$0xff]
    %v9256 = vld [vmem:[#allocation32 + $0xa4] sm:$0xf]
    %v9257 = vld [vmem:[#allocation32 + $0xa8] sm:$0xff]
    %v9258 = vld [vmem:[#allocation32 + $0xb0] sm:$0xff]
    %v9259 = vld [vmem:[#allocation32 + $0xb8] sm:$0xff]
    %v9260 = vld [vmem:[#allocation32 + $0xc0] sm:$0xf]
    %v9261 = vld [vmem:[#allocation32 + $0xc4] sm:$0xff]
    %v9262 = vld [vmem:[#allocation32 + $0xcc] sm:$0xff]
    %v9263 = vld [vmem:[#allocation32 + $0xd4] sm:$0xff]
    %v9264 = vld [vmem:[#allocation32 + $0xdc] sm:$0xf]
    %v9265 = vld [vmem:[#allocation32 + $0xe0] sm:$0xff]
    %v9266 = vld [vmem:[#allocation32 + $0xe8] sm:$0xff]
    %v9267 = vld [vmem:[#allocation32 + $0xf0] sm:$0xff]
    %v9268 = vld [vmem:[#allocation32 + $0xf8] sm:$0xf]
    %v9269 = vld [vmem:[#allocation32 + $0xfc] sm:$0xff]
    %v9270 = vld [vmem:[#allocation32 + $0x104] sm:$0xff]
    %v9271 = vld [vmem:[#allocation32 + $0x10c] sm:$0xff]
    %v9272 = vld [vmem:[#allocation32 + $0x114] sm:$0xf]
    %v9273 = vld [vmem:[#allocation32 + $0x118] sm:$0xff]
    %v9274 = vld [vmem:[#allocation32 + $0x120] sm:$0xff]
    %v9275 = vld [vmem:[#allocation32 + $0x128] sm:$0xff]
    %v9276 = vld [vmem:[#allocation32 + $0x130] sm:$0xf]
    %v9277 = vld [vmem:[#allocation32 + $0x134] sm:$0xff]
    %v9278 = vld [vmem:[#allocation32 + $0x13c] sm:$0xff]
    %v9279 = vld [vmem:[#allocation32 + $0x144] sm:$0xff]
    %v9280 = vld [vmem:[#allocation32 + $0x14c] sm:$0xf]
    %v9281 = vld [vmem:[#allocation32 + $0x150] sm:$0xff]
    %v9282 = vld [vmem:[#allocation32 + $0x158] sm:$0xff]
    %v9283 = vld [vmem:[#allocation32 + $0x160] sm:$0xff]
    %v9284 = vld [vmem:[#allocation32 + $0x168] sm:$0xf]
    %v9285 = vld [vmem:[#allocation32 + $0x16c] sm:$0xff]
    %v9286 = vld [vmem:[#allocation32 + $0x174] sm:$0xff]
    %v9287 = vld [vmem:[#allocation32 + $0x17c] sm:$0xff]
    %v9288 = vld [vmem:[#allocation32 + $0x184] sm:$0xf]
    %v9289 = vld [vmem:[#allocation32 + $0x188] sm:$0xff]
    %v9290 = vld [vmem:[#allocation32 + $0x190] sm:$0xff]
    %v9291 = vld [vmem:[#allocation32 + $0x198] sm:$0xff]
    %v9292 = vld [vmem:[#allocation32 + $0x1a0] sm:$0xf]
    %v9293 = vld [vmem:[#allocation32 + $0x1a4] sm:$0xff]
    %v9294 = vld [vmem:[#allocation32 + $0x1ac] sm:$0xff]
    %v9295 = vld [vmem:[#allocation32 + $0x1b4] sm:$0xff]
    %v9296 = vld [vmem:[#allocation32 + $0x1bc] sm:$0xf]
    %v9297 = vld [vmem:[#allocation32 + $0x1c0] sm:$0xff]
    %v9298 = vld [vmem:[#allocation32 + $0x1c8] sm:$0xff]
    %v9299 = vld [vmem:[#allocation32 + $0x1d0] sm:$0xff]
    %v9300 = vld [vmem:[#allocation32 + $0x1d8] sm:$0xf]
    %v9301 = vld [vmem:[#allocation32 + $0x1dc] sm:$0xff]
    %v9302 = vld [vmem:[#allocation32 + $0x1e4] sm:$0xff]
    %v9303 = vld [vmem:[#allocation32 + $0x1ec] sm:$0xff]
    %v9304 = vld [vmem:[#allocation32 + $0x1f4] sm:$0xf]
    %v9305 = vld [vmem:[#allocation32 + $0x1f8] sm:$0xff]
    %v9306 = vld [vmem:[#allocation32 + $0x200] sm:$0xff]
    %v9307 = vld [vmem:[#allocation32 + $0x208] sm:$0xff]
    %v9308 = vld [vmem:[#allocation32 + $0x210] sm:$0xf]
    %v9309 = vld [vmem:[#allocation32 + $0x214] sm:$0xff]
    %v9310 = vld [vmem:[#allocation32 + $0x21c] sm:$0xff]
    %v9311 = vld [vmem:[#allocation32 + $0x224] sm:$0xff]
    %v9312 = vld [vmem:[#allocation32 + $0x22c] sm:$0xf]
    %v9313 = vld [vmem:[#allocation32 + $0x230] sm:$0xff]
    %v9314 = vld [vmem:[#allocation32 + $0x238] sm:$0xff]
    %v9315 = vld [vmem:[#allocation32 + $0x240] sm:$0xff]
    %v9316 = vld [vmem:[#allocation32 + $0x248] sm:$0xf]
    %v9317 = vld [vmem:[#allocation32 + $0x24c] sm:$0xff]
    %v9318 = vld [vmem:[#allocation32 + $0x254] sm:$0xff]
    %v9319 = vld [vmem:[#allocation32 + $0x25c] sm:$0xff]
    %v9320 = vld [vmem:[#allocation32 + $0x264] sm:$0xf]
    %v9321 = vld [vmem:[#allocation32 + $0x268] sm:$0xff]
    %v9322 = vld [vmem:[#allocation32 + $0x270] sm:$0xff]
    %v9323 = vld [vmem:[#allocation32 + $0x278] sm:$0xff]
    %v9324 = vld [vmem:[#allocation32 + $0x280] sm:$0xf]
    %v9325 = vld [vmem:[#allocation32 + $0x284] sm:$0xff]
    %v9326 = vld [vmem:[#allocation32 + $0x28c] sm:$0xff]
    %v9327 = vld [vmem:[#allocation32 + $0x294] sm:$0xff]
    %v9328 = vld [vmem:[#allocation32 + $0x29c] sm:$0xf]
    %v9329 = vld [vmem:[#allocation32 + $0x2a0] sm:$0xff]
    %v9330 = vld [vmem:[#allocation32 + $0x2a8] sm:$0xff]
    %v9331 = vld [vmem:[#allocation32 + $0x2b0] sm:$0xff]
    %v9332 = vld [vmem:[#allocation32 + $0x2b8] sm:$0xf]
    %v9333 = vld [vmem:[#allocation32 + $0x2bc] sm:$0xff]
    %v9334 = vld [vmem:[#allocation32 + $0x2c4] sm:$0xff]
    %v9335 = vld [vmem:[#allocation32 + $0x2cc] sm:$0xff]
    %v9336 = vld [vmem:[#allocation32 + $0x2d4] sm:$0xf]
    %v9337 = vld [vmem:[#allocation32 + $0x2d8] sm:$0xff]
    %v9338 = vld [vmem:[#allocation32 + $0x2e0] sm:$0xff]
    %v9339 = vld [vmem:[#allocation32 + $0x2e8] sm:$0xff]
    %v9340 = vld [vmem:[#allocation32 + $0x2f0] sm:$0xf]
    %v9341 = vld [vmem:[#allocation32 + $0x2f4] sm:$0xff]
    %v9342 = vld [vmem:[#allocation32 + $0x2fc] sm:$0xff]
    %v9343 = vld [vmem:[#allocation32 + $0x304] sm:$0xff]
    %v9344 = vld [vmem:[#allocation32 + $0x30c] sm:$0xf]
    %v9345 = vld [vmem:[#allocation32 + $0x310] sm:$0xff]
    %v9346 = vld [vmem:[#allocation32 + $0x318] sm:$0xff]
    %v9347 = vld [vmem:[#allocation32 + $0x320] sm:$0xff]
    %v9348 = vld [vmem:[#allocation32 + $0x328] sm:$0xf]
    %v9349 = vld [vmem:[#allocation32 + $0x32c] sm:$0xff]
    %v9350 = vld [vmem:[#allocation32 + $0x334] sm:$0xff]
    %v9351 = vld [vmem:[#allocation32 + $0x33c] sm:$0xff]
    %v9352 = vld [vmem:[#allocation32 + $0x344] sm:$0xf]
    %v9353 = vld [vmem:[#allocation32 + $0x348] sm:$0xff]
    %v9354 = vld [vmem:[#allocation32 + $0x350] sm:$0xff]
    %v9355 = vld [vmem:[#allocation32 + $0x358] sm:$0xff]
    %v9356 = vld [vmem:[#allocation32 + $0x360] sm:$0xf]
    %v9357 = vld [vmem:[#allocation32 + $0x364] sm:$0xff]
    %v9358 = vld [vmem:[#allocation32 + $0x36c] sm:$0xff]
    %v9359 = vld [vmem:[#allocation32 + $0x374] sm:$0xff]
    %v9360 = vld [vmem:[#allocation32 + $0x37c] sm:$0xf]
    %v9361 = vld [vmem:[#allocation32 + $0x380] sm:$0xff]
    %v9362 = vld [vmem:[#allocation32 + $0x388] sm:$0xff]
    %v9363 = vld [vmem:[#allocation32 + $0x390] sm:$0xff]
    %v9364 = vld [vmem:[#allocation32 + $0x398] sm:$0xf]
    %v9365 = vld [vmem:[#allocation32 + $0x39c] sm:$0xff]
    %v9366 = vld [vmem:[#allocation32 + $0x3a4] sm:$0xff]
    %v9367 = vld [vmem:[#allocation32 + $0x3ac] sm:$0xff]
    %v9368 = vld [vmem:[#allocation32 + $0x3b4] sm:$0xf]
    %v9369 = vld [vmem:[#allocation32 + $0x3b8] sm:$0xff]
    %v9370 = vld [vmem:[#allocation32 + $0x3c0] sm:$0xff]
    %v9371 = vld [vmem:[#allocation32 + $0x3c8] sm:$0xff]
    %v9372 = vld [vmem:[#allocation32 + $0x3d0] sm:$0xf]
    %v9373 = vld [vmem:[#allocation32 + $0x3d4] sm:$0xff]
    %v9374 = vld [vmem:[#allocation32 + $0x3dc] sm:$0xff]
    %v9375 = vld [vmem:[#allocation32 + $0x3e4] sm:$0xff]
    %v9376 = vld [vmem:[#allocation32 + $0x3ec] sm:$0xf]
    %v9377 = vld [vmem:[#allocation32 + $0x3f0] sm:$0xff]
    %v9378 = vld [vmem:[#allocation32 + $0x3f8] sm:$0xff]
    %v9379 = vld [vmem:[#allocation32 + $0x400] sm:$0xff]
    %v9380 = vld [vmem:[#allocation32 + $0x408] sm:$0xf]
    %v9381 = vld [vmem:[#allocation32 + $0x40c] sm:$0xff]
    %v9382 = vld [vmem:[#allocation32 + $0x414] sm:$0xff]
    %v9383 = vld [vmem:[#allocation32 + $0x41c] sm:$0xff]
    %v9384 = vld [vmem:[#allocation32 + $0x424] sm:$0xf]
    %v9385 = vld [vmem:[#allocation32 + $0x428] sm:$0xff]
    %v9386 = vld [vmem:[#allocation32 + $0x430] sm:$0xff]
    %v9387 = vld [vmem:[#allocation32 + $0x438] sm:$0xff]
    %v9388 = vld [vmem:[#allocation32 + $0x440] sm:$0xf]
    %v9389 = vld [vmem:[#allocation32 + $0x444] sm:$0xff]
    %v9390 = vld [vmem:[#allocation32 + $0x44c] sm:$0xff]
    %v9391 = vld [vmem:[#allocation32 + $0x454] sm:$0xff]
    %v9392 = vld [vmem:[#allocation32 + $0x45c] sm:$0xf]
    %v9393 = vld [vmem:[#allocation32 + $0x460] sm:$0xff]
    %v9394 = vld [vmem:[#allocation32 + $0x468] sm:$0xff]
    %v9395 = vld [vmem:[#allocation32 + $0x470] sm:$0xff]
    %v9396 = vld [vmem:[#allocation32 + $0x478] sm:$0xf]
    %v9397 = vld [vmem:[#allocation32 + $0x47c] sm:$0xff]
    %v9398 = vld [vmem:[#allocation32 + $0x484] sm:$0xff]
    %v9399 = vld [vmem:[#allocation32 + $0x48c] sm:$0xff]
    %v9400 = vld [vmem:[#allocation32 + $0x494] sm:$0xf]
    %v9401 = vld [vmem:[#allocation32 + $0x498] sm:$0xff]
    %v9402 = vld [vmem:[#allocation32 + $0x4a0] sm:$0xff]
    %v9403 = vld [vmem:[#allocation32 + $0x4a8] sm:$0xff]
    %v9404 = vld [vmem:[#allocation32 + $0x4b0] sm:$0xf]
    %v9405 = vld [vmem:[#allocation32 + $0x4b4] sm:$0xff]
    %v9406 = vld [vmem:[#allocation32 + $0x4bc] sm:$0xff]
    %v9407 = vld [vmem:[#allocation32 + $0x4c4] sm:$0xff]
    %v9408 = vld [vmem:[#allocation32 + $0x4cc] sm:$0xf]
    %v9409 = vld [vmem:[#allocation32 + $0x4d0] sm:$0xff]
    %v9410 = vld [vmem:[#allocation32 + $0x4d8] sm:$0xff]
    %v9411 = vld [vmem:[#allocation32 + $0x4e0] sm:$0xff]
    %v9412 = vld [vmem:[#allocation32 + $0x4e8] sm:$0xf]
    %v9413 = vld [vmem:[#allocation32 + $0x4ec] sm:$0xff]
    %v9414 = vld [vmem:[#allocation32 + $0x4f4] sm:$0xff]
    %v9415 = vld [vmem:[#allocation32 + $0x4fc] sm:$0xff]
    %v9416 = vld [vmem:[#allocation32 + $0x504] sm:$0xf]
    %v9417 = vld [vmem:[#allocation32 + $0x508] sm:$0xff]
    %v9418 = vld [vmem:[#allocation32 + $0x510] sm:$0xff]
    %v9419 = vld [vmem:[#allocation32 + $0x518] sm:$0xff]
    %v9420 = vld [vmem:[#allocation32 + $0x520] sm:$0xf]
    %v9421 = vld [vmem:[#allocation32 + $0x524] sm:$0xff]
    %v9422 = vld [vmem:[#allocation32 + $0x52c] sm:$0xff]
    %v9423 = vld [vmem:[#allocation32 + $0x534] sm:$0xff]
    %v9424 = vld [vmem:[#allocation32 + $0x53c] sm:$0xf]
    %v9425 = vld [vmem:[#allocation32 + $0x540] sm:$0xff]
    %v9426 = vld [vmem:[#allocation32 + $0x548] sm:$0xff]
    %v9427 = vld [vmem:[#allocation32 + $0x550] sm:$0xff]
    %v9428 = vld [vmem:[#allocation32 + $0x558] sm:$0xf]
    %v9429 = vld [vmem:[#allocation32 + $0x55c] sm:$0xff]
    %v9430 = vld [vmem:[#allocation32 + $0x564] sm:$0xff]
    %v9431 = vld [vmem:[#allocation32 + $0x56c] sm:$0xff]
    %v9432 = vld [vmem:[#allocation32 + $0x574] sm:$0xf]
    %v9433 = vld [vmem:[#allocation32 + $0x578] sm:$0xff]
    %v9434 = vld [vmem:[#allocation32 + $0x580] sm:$0xff]
    %v9435 = vld [vmem:[#allocation32 + $0x588] sm:$0xff]
    %v9436 = vld [vmem:[#allocation32 + $0x590] sm:$0xf]
    %v9437 = vld [vmem:[#allocation32 + $0x594] sm:$0xff]
    %v9438 = vld [vmem:[#allocation32 + $0x59c] sm:$0xff]
    %v9439 = vld [vmem:[#allocation32 + $0x5a4] sm:$0xff]
    %v9440 = vld [vmem:[#allocation32 + $0x5ac] sm:$0xf]
    %v9441 = vld [vmem:[#allocation32 + $0x5b0] sm:$0xff]
    %v9442 = vld [vmem:[#allocation32 + $0x5b8] sm:$0xff]
    %v9443 = vld [vmem:[#allocation32 + $0x5c0] sm:$0xff]
    %v9444 = vld [vmem:[#allocation32 + $0x5c8] sm:$0xf]
    %v9445 = vld [vmem:[#allocation32 + $0x5cc] sm:$0xff]
    %v9446 = vld [vmem:[#allocation32 + $0x5d4] sm:$0xff]
    %v9447 = vld [vmem:[#allocation32 + $0x5dc] sm:$0xff]
    %v9448 = vld [vmem:[#allocation32 + $0x5e4] sm:$0xf]
    %v9449 = vld [vmem:[#allocation32 + $0x5e8] sm:$0xff]
    %v9450 = vld [vmem:[#allocation32 + $0x5f0] sm:$0xff]
    %v9451 = vld [vmem:[#allocation32 + $0x5f8] sm:$0xff]
    %v9452 = vld [vmem:[#allocation32 + $0x600] sm:$0xf]
    %v9453 = vld [vmem:[#allocation32 + $0x604] sm:$0xff]
    %v9454 = vld [vmem:[#allocation32 + $0x60c] sm:$0xff]
    %v9455 = vld [vmem:[#allocation32 + $0x614] sm:$0xff]
    %v9456 = vld [vmem:[#allocation32 + $0x61c] sm:$0xf]
    %v9457 = vld [vmem:[#allocation32 + $0x620] sm:$0xff]
    %v9458 = vld [vmem:[#allocation32 + $0x628] sm:$0xff]
    %v9459 = vld [vmem:[#allocation32 + $0x630] sm:$0xff]
    %v9460 = vld [vmem:[#allocation32 + $0x638] sm:$0xf]
    %v9461 = vld [vmem:[#allocation32 + $0x63c] sm:$0xff]
    %v9462 = vld [vmem:[#allocation32 + $0x644] sm:$0xff]
    %v9463 = vld [vmem:[#allocation32 + $0x64c] sm:$0xff]
    %v9464 = vld [vmem:[#allocation32 + $0x654] sm:$0xf]
    %v9465 = vld [vmem:[#allocation32 + $0x658] sm:$0xff]
    %v9466 = vld [vmem:[#allocation32 + $0x660] sm:$0xff]
    %v9467 = vld [vmem:[#allocation32 + $0x668] sm:$0xff]
    %v9468 = vld [vmem:[#allocation32 + $0x670] sm:$0xf]
    %v9469 = vld [vmem:[#allocation32 + $0x674] sm:$0xff]
    %v9470 = vld [vmem:[#allocation32 + $0x67c] sm:$0xff]
    %v9471 = vld [vmem:[#allocation32 + $0x684] sm:$0xff]
    %v9472 = vld [vmem:[#allocation32 + $0x68c] sm:$0xf]
    %v9473 = vld [vmem:[#allocation32 + $0x690] sm:$0xff]
    %v9474 = vld [vmem:[#allocation32 + $0x698] sm:$0xff]
    %v9475 = vld [vmem:[#allocation32 + $0x6a0] sm:$0xff]
    %v9476 = vld [vmem:[#allocation32 + $0x6a8] sm:$0xf]
    %v9477 = vld [vmem:[#allocation32 + $0x6ac] sm:$0xff]
    %v9478 = vld [vmem:[#allocation32 + $0x6b4] sm:$0xff]
    %v9479 = vld [vmem:[#allocation32 + $0x6bc] sm:$0xff]
    %v9480 = vld [vmem:[#allocation32 + $0x6c4] sm:$0xf]
    %v9481 = vld [vmem:[#allocation32 + $0x6c8] sm:$0xff]
    %v9482 = vld [vmem:[#allocation32 + $0x6d0] sm:$0xff]
    %v9483 = vld [vmem:[#allocation32 + $0x6d8] sm:$0xff]
    %v9484 = vld [vmem:[#allocation32 + $0x6e0] sm:$0xf]
    %v9485 = vld [vmem:[#allocation32 + $0x6e4] sm:$0xff]
    %v9486 = vld [vmem:[#allocation32 + $0x6ec] sm:$0xff]
    %v9487 = vld [vmem:[#allocation32 + $0x6f4] sm:$0xff]
    %v9488 = vld [vmem:[#allocation32 + $0x6fc] sm:$0xf]
    %v9489 = vld [vmem:[#allocation32 + $0x700] sm:$0xff]
    %v9490 = vld [vmem:[#allocation32 + $0x708] sm:$0xff]
    %v9491 = vld [vmem:[#allocation32 + $0x710] sm:$0xff]
    %v9492 = vld [vmem:[#allocation32 + $0x718] sm:$0xf]
    %v9493 = vld [vmem:[#allocation32 + $0x71c] sm:$0xff]
    %v9494 = vld [vmem:[#allocation32 + $0x724] sm:$0xff]
    %v9495 = vld [vmem:[#allocation32 + $0x72c] sm:$0xff]
    %v9496 = vld [vmem:[#allocation32 + $0x734] sm:$0xf]
    %v9497 = vld [vmem:[#allocation32 + $0x738] sm:$0xff]
    %v9498 = vld [vmem:[#allocation32 + $0x740] sm:$0xff]
    %v9499 = vld [vmem:[#allocation32 + $0x748] sm:$0xff]
    %v9500 = vld [vmem:[#allocation32 + $0x750] sm:$0xf]
    %v9501 = vld [vmem:[#allocation32 + $0x754] sm:$0xff]
    %v9502 = vld [vmem:[#allocation32 + $0x75c] sm:$0xff]
    %v9503 = vld [vmem:[#allocation32 + $0x764] sm:$0xff]
    %v9504 = vld [vmem:[#allocation32 + $0x76c] sm:$0xf]
    %v9505 = vld [vmem:[#allocation32 + $0x770] sm:$0xff]
    %v9506 = vld [vmem:[#allocation32 + $0x778] sm:$0xff]
    %v9507 = vld [vmem:[#allocation32 + $0x780] sm:$0xff]
    %v9508 = vld [vmem:[#allocation32 + $0x788] sm:$0xf]
    %v9509 = vld [vmem:[#allocation32 + $0x78c] sm:$0xff]
    %v9510 = vld [vmem:[#allocation32 + $0x794] sm:$0xff]
    %v9511 = vld [vmem:[#allocation32 + $0x79c] sm:$0xff]
    %v9512 = vld [vmem:[#allocation32 + $0x7a4] sm:$0xf]
    %v9513 = vld [vmem:[#allocation32 + $0x7a8] sm:$0xff]
    %v9514 = vld [vmem:[#allocation32 + $0x7b0] sm:$0xff]
    %v9515 = vld [vmem:[#allocation32 + $0x7b8] sm:$0xff]
    %v9516 = vld [vmem:[#allocation32 + $0x7c0] sm:$0xf]
    %v9517 = vld [vmem:[#allocation32 + $0x7c4] sm:$0xff]
    %v9518 = vld [vmem:[#allocation32 + $0x7cc] sm:$0xff]
    %v9519 = vld [vmem:[#allocation32 + $0x7d4] sm:$0xff]
    %v9520 = vld [vmem:[#allocation32 + $0x7dc] sm:$0xf]
    %v9521 = vld [vmem:[#allocation32 + $0x7e0] sm:$0xff]
    %v9522 = vld [vmem:[#allocation32 + $0x7e8] sm:$0xff]
    %v9523 = vld [vmem:[#allocation32 + $0x7f0] sm:$0xff]
    %v9524 = vld [vmem:[#allocation32 + $0x7f8] sm:$0xf]
    %v9525 = vld [vmem:[#allocation32 + $0x7fc] sm:$0xff]
    %v9526 = vld [vmem:[#allocation32 + $0x804] sm:$0xff]
    %v9527 = vld [vmem:[#allocation32 + $0x80c] sm:$0xff]
    %v9528 = vld [vmem:[#allocation32 + $0x814] sm:$0xf]
    %v9529 = vld [vmem:[#allocation32 + $0x818] sm:$0xff]
    %v9530 = vld [vmem:[#allocation32 + $0x820] sm:$0xff]
    %v9531 = vld [vmem:[#allocation32 + $0x828] sm:$0xff]
    %v9532 = vld [vmem:[#allocation32 + $0x830] sm:$0xf]
    %v9533 = vld [vmem:[#allocation32 + $0x834] sm:$0xff]
    %v9534 = vld [vmem:[#allocation32 + $0x83c] sm:$0xff]
    %v9535 = vld [vmem:[#allocation32 + $0x844] sm:$0xff]
    %v9536 = vld [vmem:[#allocation32 + $0x84c] sm:$0xf]
    %v9537 = vld [vmem:[#allocation32 + $0x850] sm:$0xff]
    %v9538 = vld [vmem:[#allocation32 + $0x858] sm:$0xff]
    %v9539 = vld [vmem:[#allocation32 + $0x860] sm:$0xff]
    %v9540 = vld [vmem:[#allocation32 + $0x868] sm:$0xf]
    %v9541 = vld [vmem:[#allocation32 + $0x86c] sm:$0xff]
    %v9542 = vld [vmem:[#allocation32 + $0x874] sm:$0xff]
    %v9543 = vld [vmem:[#allocation32 + $0x87c] sm:$0xff]
    %v9544 = vld [vmem:[#allocation32 + $0x884] sm:$0xf]
    %v9545 = vld [vmem:[#allocation32 + $0x888] sm:$0xff]
    %v9546 = vld [vmem:[#allocation32 + $0x890] sm:$0xff]
    %v9547 = vld [vmem:[#allocation32 + $0x898] sm:$0xff]
    %v9548 = vld [vmem:[#allocation32 + $0x8a0] sm:$0xf]
    %v9549 = vld [vmem:[#allocation32 + $0x8a4] sm:$0xff]
    %v9550 = vld [vmem:[#allocation32 + $0x8ac] sm:$0xff]
    %v9551 = vld [vmem:[#allocation32 + $0x8b4] sm:$0xff]
    %v9552 = vld [vmem:[#allocation32 + $0x8bc] sm:$0xf]
    %v9553 = vld [vmem:[#allocation33] sm:$0xff]
    %v9555 = vlaneseq
    %v9556 = vshrl.u32 %v9555, 7
    %v9557 = vsub.s32 0, %v9556
    %v9558 = vrot.slane %v9553, %v9557
    %v9559 = vlaneseq
    %v9560 = vshrl.u32 %v9559, 7
    %v9561 = vsub.s32 1, %v9560
    %v9562 = vrot.slane %v9553, %v9561
    %v9563 = vlaneseq
    %v9564 = vshrl.u32 %v9563, 7
    %v9565 = vsub.s32 2, %v9564
    %v9566 = vrot.slane %v9553, %v9565
    %v9567 = vlaneseq
    %v9568 = vshrl.u32 %v9567, 7
    %v9569 = vsub.s32 3, %v9568
    %v9570 = vrot.slane %v9553, %v9569
    %v9571 = vlaneseq
    %v9572 = vshrl.u32 %v9571, 7
    %v9573 = vsub.s32 4, %v9572
    %v9574 = vrot.slane %v9553, %v9573
    %v9575 = vlaneseq
    %v9576 = vshrl.u32 %v9575, 7
    %v9577 = vsub.s32 5, %v9576
    %v9578 = vrot.slane %v9553, %v9577
    %v9579 = vlaneseq
    %v9580 = vshrl.u32 %v9579, 7
    %v9581 = vsub.s32 6, %v9580
    %v9582 = vrot.slane %v9553, %v9581
    %v9910 = vunpack.c.l.b16 %v9233
    %v9911 = vunpack.c.h.b16 %v9233
    %v9912 = vunpack.c.l.b16 %v9234
    %v9913 = vunpack.c.h.b16 %v9234
    %v9914 = vunpack.c.l.b16 %v9235
    %v9915 = vunpack.c.h.b16 %v9235
    %v9916 = vunpack.c.l.b16 %v9236
    %v9917 = vunpack.c.l.b16 %v9237
    %v9918 = vunpack.c.h.b16 %v9237
    %v9919 = vunpack.c.l.b16 %v9238
    %v9920 = vunpack.c.h.b16 %v9238
    %v9921 = vunpack.c.l.b16 %v9239
    %v9922 = vunpack.c.h.b16 %v9239
    %v9923 = vunpack.c.l.b16 %v9240
    %v9924 = vunpack.c.l.b16 %v9241
    %v9925 = vunpack.c.h.b16 %v9241
    %v9926 = vunpack.c.l.b16 %v9242
    %v9927 = vunpack.c.h.b16 %v9242
    %v9928 = vunpack.c.l.b16 %v9243
    %v9929 = vunpack.c.h.b16 %v9243
    %v9930 = vunpack.c.l.b16 %v9244
    %v9931 = vunpack.c.l.b16 %v9245
    %v9932 = vunpack.c.h.b16 %v9245
    %v9933 = vunpack.c.l.b16 %v9246
    %v9934 = vunpack.c.h.b16 %v9246
    %v9935 = vunpack.c.l.b16 %v9247
    %v9936 = vunpack.c.h.b16 %v9247
    %v9937 = vunpack.c.l.b16 %v9248
    %v9938 = vunpack.c.l.b16 %v9249
    %v9939 = vunpack.c.h.b16 %v9249
    %v9940 = vunpack.c.l.b16 %v9250
    %v9941 = vunpack.c.h.b16 %v9250
    %v9942 = vunpack.c.l.b16 %v9251
    %v9943 = vunpack.c.h.b16 %v9251
    %v9944 = vunpack.c.l.b16 %v9252
    %v9945 = vunpack.c.l.b16 %v9253
    %v9946 = vunpack.c.h.b16 %v9253
    %v9947 = vunpack.c.l.b16 %v9254
    %v9948 = vunpack.c.h.b16 %v9254
    %v9949 = vunpack.c.l.b16 %v9255
    %v9950 = vunpack.c.h.b16 %v9255
    %v9951 = vunpack.c.l.b16 %v9256
    %v9952 = vunpack.c.l.b16 %v9257
    %v9953 = vunpack.c.h.b16 %v9257
    %v9954 = vunpack.c.l.b16 %v9258
    %v9955 = vunpack.c.h.b16 %v9258
    %v9956 = vunpack.c.l.b16 %v9259
    %v9957 = vunpack.c.h.b16 %v9259
    %v9958 = vunpack.c.l.b16 %v9260
    %v9959 = vunpack.c.l.b16 %v9261
    %v9960 = vunpack.c.h.b16 %v9261
    %v9961 = vunpack.c.l.b16 %v9262
    %v9962 = vunpack.c.h.b16 %v9262
    %v9963 = vunpack.c.l.b16 %v9263
    %v9964 = vunpack.c.h.b16 %v9263
    %v9965 = vunpack.c.l.b16 %v9264
    %v9966 = vunpack.c.l.b16 %v9265
    %v9967 = vunpack.c.h.b16 %v9265
    %v9968 = vunpack.c.l.b16 %v9266
    %v9969 = vunpack.c.h.b16 %v9266
    %v9970 = vunpack.c.l.b16 %v9267
    %v9971 = vunpack.c.h.b16 %v9267
    %v9972 = vunpack.c.l.b16 %v9268
    %v9973 = vunpack.c.l.b16 %v9269
    %v9974 = vunpack.c.h.b16 %v9269
    %v9975 = vunpack.c.l.b16 %v9270
    %v9976 = vunpack.c.h.b16 %v9270
    %v9977 = vunpack.c.l.b16 %v9271
    %v9978 = vunpack.c.h.b16 %v9271
    %v9979 = vunpack.c.l.b16 %v9272
    %v9980 = vunpack.c.l.b16 %v9273
    %v9981 = vunpack.c.h.b16 %v9273
    %v9982 = vunpack.c.l.b16 %v9274
    %v9983 = vunpack.c.h.b16 %v9274
    %v9984 = vunpack.c.l.b16 %v9275
    %v9985 = vunpack.c.h.b16 %v9275
    %v9986 = vunpack.c.l.b16 %v9276
    %v9987 = vunpack.c.l.b16 %v9277
    %v9988 = vunpack.c.h.b16 %v9277
    %v9989 = vunpack.c.l.b16 %v9278
    %v9990 = vunpack.c.h.b16 %v9278
    %v9991 = vunpack.c.l.b16 %v9279
    %v9992 = vunpack.c.h.b16 %v9279
    %v9993 = vunpack.c.l.b16 %v9280
    %v9994 = vunpack.c.l.b16 %v9281
    %v9995 = vunpack.c.h.b16 %v9281
    %v9996 = vunpack.c.l.b16 %v9282
    %v9997 = vunpack.c.h.b16 %v9282
    %v9998 = vunpack.c.l.b16 %v9283
    %v9999 = vunpack.c.h.b16 %v9283
    %v10000 = vunpack.c.l.b16 %v9284
    %v10001 = vunpack.c.l.b16 %v9285
    %v10002 = vunpack.c.h.b16 %v9285
    %v10003 = vunpack.c.l.b16 %v9286
    %v10004 = vunpack.c.h.b16 %v9286
    %v10005 = vunpack.c.l.b16 %v9287
    %v10006 = vunpack.c.h.b16 %v9287
    %v10007 = vunpack.c.l.b16 %v9288
    %v10008 = vunpack.c.l.b16 %v9289
    %v10009 = vunpack.c.h.b16 %v9289
    %v10010 = vunpack.c.l.b16 %v9290
    %v10011 = vunpack.c.h.b16 %v9290
    %v10012 = vunpack.c.l.b16 %v9291
    %v10013 = vunpack.c.h.b16 %v9291
    %v10014 = vunpack.c.l.b16 %v9292
    %v10015 = vunpack.c.l.b16 %v9293
    %v10016 = vunpack.c.h.b16 %v9293
    %v10017 = vunpack.c.l.b16 %v9294
    %v10018 = vunpack.c.h.b16 %v9294
    %v10019 = vunpack.c.l.b16 %v9295
    %v10020 = vunpack.c.h.b16 %v9295
    %v10021 = vunpack.c.l.b16 %v9296
    %v10022 = vunpack.c.l.b16 %v9297
    %v10023 = vunpack.c.h.b16 %v9297
    %v10024 = vunpack.c.l.b16 %v9298
    %v10025 = vunpack.c.h.b16 %v9298
    %v10026 = vunpack.c.l.b16 %v9299
    %v10027 = vunpack.c.h.b16 %v9299
    %v10028 = vunpack.c.l.b16 %v9300
    %v10029 = vunpack.c.l.b16 %v9301
    %v10030 = vunpack.c.h.b16 %v9301
    %v10031 = vunpack.c.l.b16 %v9302
    %v10032 = vunpack.c.h.b16 %v9302
    %v10033 = vunpack.c.l.b16 %v9303
    %v10034 = vunpack.c.h.b16 %v9303
    %v10035 = vunpack.c.l.b16 %v9304
    %v10036 = vunpack.c.l.b16 %v9305
    %v10037 = vunpack.c.h.b16 %v9305
    %v10038 = vunpack.c.l.b16 %v9306
    %v10039 = vunpack.c.h.b16 %v9306
    %v10040 = vunpack.c.l.b16 %v9307
    %v10041 = vunpack.c.h.b16 %v9307
    %v10042 = vunpack.c.l.b16 %v9308
    %v10043 = vunpack.c.l.b16 %v9309
    %v10044 = vunpack.c.h.b16 %v9309
    %v10045 = vunpack.c.l.b16 %v9310
    %v10046 = vunpack.c.h.b16 %v9310
    %v10047 = vunpack.c.l.b16 %v9311
    %v10048 = vunpack.c.h.b16 %v9311
    %v10049 = vunpack.c.l.b16 %v9312
    %v10050 = vunpack.c.l.b16 %v9313
    %v10051 = vunpack.c.h.b16 %v9313
    %v10052 = vunpack.c.l.b16 %v9314
    %v10053 = vunpack.c.h.b16 %v9314
    %v10054 = vunpack.c.l.b16 %v9315
    %v10055 = vunpack.c.h.b16 %v9315
    %v10056 = vunpack.c.l.b16 %v9316
    %v10057 = vunpack.c.l.b16 %v9317
    %v10058 = vunpack.c.h.b16 %v9317
    %v10059 = vunpack.c.l.b16 %v9318
    %v10060 = vunpack.c.h.b16 %v9318
    %v10061 = vunpack.c.l.b16 %v9319
    %v10062 = vunpack.c.h.b16 %v9319
    %v10063 = vunpack.c.l.b16 %v9320
    %v10064 = vunpack.c.l.b16 %v9321
    %v10065 = vunpack.c.h.b16 %v9321
    %v10066 = vunpack.c.l.b16 %v9322
    %v10067 = vunpack.c.h.b16 %v9322
    %v10068 = vunpack.c.l.b16 %v9323
    %v10069 = vunpack.c.h.b16 %v9323
    %v10070 = vunpack.c.l.b16 %v9324
    %v10071 = vunpack.c.l.b16 %v9325
    %v10072 = vunpack.c.h.b16 %v9325
    %v10073 = vunpack.c.l.b16 %v9326
    %v10074 = vunpack.c.h.b16 %v9326
    %v10075 = vunpack.c.l.b16 %v9327
    %v10076 = vunpack.c.h.b16 %v9327
    %v10077 = vunpack.c.l.b16 %v9328
    %v10078 = vunpack.c.l.b16 %v9329
    %v10079 = vunpack.c.h.b16 %v9329
    %v10080 = vunpack.c.l.b16 %v9330
    %v10081 = vunpack.c.h.b16 %v9330
    %v10082 = vunpack.c.l.b16 %v9331
    %v10083 = vunpack.c.h.b16 %v9331
    %v10084 = vunpack.c.l.b16 %v9332
    %v10085 = vunpack.c.l.b16 %v9333
    %v10086 = vunpack.c.h.b16 %v9333
    %v10087 = vunpack.c.l.b16 %v9334
    %v10088 = vunpack.c.h.b16 %v9334
    %v10089 = vunpack.c.l.b16 %v9335
    %v10090 = vunpack.c.h.b16 %v9335
    %v10091 = vunpack.c.l.b16 %v9336
    %v10092 = vunpack.c.l.b16 %v9337
    %v10093 = vunpack.c.h.b16 %v9337
    %v10094 = vunpack.c.l.b16 %v9338
    %v10095 = vunpack.c.h.b16 %v9338
    %v10096 = vunpack.c.l.b16 %v9339
    %v10097 = vunpack.c.h.b16 %v9339
    %v10098 = vunpack.c.l.b16 %v9340
    %v10099 = vunpack.c.l.b16 %v9341
    %v10100 = vunpack.c.h.b16 %v9341
    %v10101 = vunpack.c.l.b16 %v9342
    %v10102 = vunpack.c.h.b16 %v9342
    %v10103 = vunpack.c.l.b16 %v9343
    %v10104 = vunpack.c.h.b16 %v9343
    %v10105 = vunpack.c.l.b16 %v9344
    %v10106 = vunpack.c.l.b16 %v9345
    %v10107 = vunpack.c.h.b16 %v9345
    %v10108 = vunpack.c.l.b16 %v9346
    %v10109 = vunpack.c.h.b16 %v9346
    %v10110 = vunpack.c.l.b16 %v9347
    %v10111 = vunpack.c.h.b16 %v9347
    %v10112 = vunpack.c.l.b16 %v9348
    %v10113 = vunpack.c.l.b16 %v9349
    %v10114 = vunpack.c.h.b16 %v9349
    %v10115 = vunpack.c.l.b16 %v9350
    %v10116 = vunpack.c.h.b16 %v9350
    %v10117 = vunpack.c.l.b16 %v9351
    %v10118 = vunpack.c.h.b16 %v9351
    %v10119 = vunpack.c.l.b16 %v9352
    %v10120 = vunpack.c.l.b16 %v9353
    %v10121 = vunpack.c.h.b16 %v9353
    %v10122 = vunpack.c.l.b16 %v9354
    %v10123 = vunpack.c.h.b16 %v9354
    %v10124 = vunpack.c.l.b16 %v9355
    %v10125 = vunpack.c.h.b16 %v9355
    %v10126 = vunpack.c.l.b16 %v9356
    %v10127 = vunpack.c.l.b16 %v9357
    %v10128 = vunpack.c.h.b16 %v9357
    %v10129 = vunpack.c.l.b16 %v9358
    %v10130 = vunpack.c.h.b16 %v9358
    %v10131 = vunpack.c.l.b16 %v9359
    %v10132 = vunpack.c.h.b16 %v9359
    %v10133 = vunpack.c.l.b16 %v9360
    %v10134 = vunpack.c.l.b16 %v9361
    %v10135 = vunpack.c.h.b16 %v9361
    %v10136 = vunpack.c.l.b16 %v9362
    %v10137 = vunpack.c.h.b16 %v9362
    %v10138 = vunpack.c.l.b16 %v9363
    %v10139 = vunpack.c.h.b16 %v9363
    %v10140 = vunpack.c.l.b16 %v9364
    %v10141 = vunpack.c.l.b16 %v9365
    %v10142 = vunpack.c.h.b16 %v9365
    %v10143 = vunpack.c.l.b16 %v9366
    %v10144 = vunpack.c.h.b16 %v9366
    %v10145 = vunpack.c.l.b16 %v9367
    %v10146 = vunpack.c.h.b16 %v9367
    %v10147 = vunpack.c.l.b16 %v9368
    %v10148 = vunpack.c.l.b16 %v9369
    %v10149 = vunpack.c.h.b16 %v9369
    %v10150 = vunpack.c.l.b16 %v9370
    %v10151 = vunpack.c.h.b16 %v9370
    %v10152 = vunpack.c.l.b16 %v9371
    %v10153 = vunpack.c.h.b16 %v9371
    %v10154 = vunpack.c.l.b16 %v9372
    %v10155 = vunpack.c.l.b16 %v9373
    %v10156 = vunpack.c.h.b16 %v9373
    %v10157 = vunpack.c.l.b16 %v9374
    %v10158 = vunpack.c.h.b16 %v9374
    %v10159 = vunpack.c.l.b16 %v9375
    %v10160 = vunpack.c.h.b16 %v9375
    %v10161 = vunpack.c.l.b16 %v9376
    %v10162 = vunpack.c.l.b16 %v9377
    %v10163 = vunpack.c.h.b16 %v9377
    %v10164 = vunpack.c.l.b16 %v9378
    %v10165 = vunpack.c.h.b16 %v9378
    %v10166 = vunpack.c.l.b16 %v9379
    %v10167 = vunpack.c.h.b16 %v9379
    %v10168 = vunpack.c.l.b16 %v9380
    %v10169 = vunpack.c.l.b16 %v9381
    %v10170 = vunpack.c.h.b16 %v9381
    %v10171 = vunpack.c.l.b16 %v9382
    %v10172 = vunpack.c.h.b16 %v9382
    %v10173 = vunpack.c.l.b16 %v9383
    %v10174 = vunpack.c.h.b16 %v9383
    %v10175 = vunpack.c.l.b16 %v9384
    %v10176 = vunpack.c.l.b16 %v9385
    %v10177 = vunpack.c.h.b16 %v9385
    %v10178 = vunpack.c.l.b16 %v9386
    %v10179 = vunpack.c.h.b16 %v9386
    %v10180 = vunpack.c.l.b16 %v9387
    %v10181 = vunpack.c.h.b16 %v9387
    %v10182 = vunpack.c.l.b16 %v9388
    %v10183 = vunpack.c.l.b16 %v9389
    %v10184 = vunpack.c.h.b16 %v9389
    %v10185 = vunpack.c.l.b16 %v9390
    %v10186 = vunpack.c.h.b16 %v9390
    %v10187 = vunpack.c.l.b16 %v9391
    %v10188 = vunpack.c.h.b16 %v9391
    %v10189 = vunpack.c.l.b16 %v9392
    %v10190 = vunpack.c.l.b16 %v9393
    %v10191 = vunpack.c.h.b16 %v9393
    %v10192 = vunpack.c.l.b16 %v9394
    %v10193 = vunpack.c.h.b16 %v9394
    %v10194 = vunpack.c.l.b16 %v9395
    %v10195 = vunpack.c.h.b16 %v9395
    %v10196 = vunpack.c.l.b16 %v9396
    %v10197 = vunpack.c.l.b16 %v9397
    %v10198 = vunpack.c.h.b16 %v9397
    %v10199 = vunpack.c.l.b16 %v9398
    %v10200 = vunpack.c.h.b16 %v9398
    %v10201 = vunpack.c.l.b16 %v9399
    %v10202 = vunpack.c.h.b16 %v9399
    %v10203 = vunpack.c.l.b16 %v9400
    %v10204 = vunpack.c.l.b16 %v9401
    %v10205 = vunpack.c.h.b16 %v9401
    %v10206 = vunpack.c.l.b16 %v9402
    %v10207 = vunpack.c.h.b16 %v9402
    %v10208 = vunpack.c.l.b16 %v9403
    %v10209 = vunpack.c.h.b16 %v9403
    %v10210 = vunpack.c.l.b16 %v9404
    %v10211 = vunpack.c.l.b16 %v9405
    %v10212 = vunpack.c.h.b16 %v9405
    %v10213 = vunpack.c.l.b16 %v9406
    %v10214 = vunpack.c.h.b16 %v9406
    %v10215 = vunpack.c.l.b16 %v9407
    %v10216 = vunpack.c.h.b16 %v9407
    %v10217 = vunpack.c.l.b16 %v9408
    %v10218 = vunpack.c.l.b16 %v9409
    %v10219 = vunpack.c.h.b16 %v9409
    %v10220 = vunpack.c.l.b16 %v9410
    %v10221 = vunpack.c.h.b16 %v9410
    %v10222 = vunpack.c.l.b16 %v9411
    %v10223 = vunpack.c.h.b16 %v9411
    %v10224 = vunpack.c.l.b16 %v9412
    %v10225 = vunpack.c.l.b16 %v9413
    %v10226 = vunpack.c.h.b16 %v9413
    %v10227 = vunpack.c.l.b16 %v9414
    %v10228 = vunpack.c.h.b16 %v9414
    %v10229 = vunpack.c.l.b16 %v9415
    %v10230 = vunpack.c.h.b16 %v9415
    %v10231 = vunpack.c.l.b16 %v9416
    %v10232 = vunpack.c.l.b16 %v9417
    %v10233 = vunpack.c.h.b16 %v9417
    %v10234 = vunpack.c.l.b16 %v9418
    %v10235 = vunpack.c.h.b16 %v9418
    %v10236 = vunpack.c.l.b16 %v9419
    %v10237 = vunpack.c.h.b16 %v9419
    %v10238 = vunpack.c.l.b16 %v9420
    %v10239 = vunpack.c.l.b16 %v9421
    %v10240 = vunpack.c.h.b16 %v9421
    %v10241 = vunpack.c.l.b16 %v9422
    %v10242 = vunpack.c.h.b16 %v9422
    %v10243 = vunpack.c.l.b16 %v9423
    %v10244 = vunpack.c.h.b16 %v9423
    %v10245 = vunpack.c.l.b16 %v9424
    %v10246 = vunpack.c.l.b16 %v9425
    %v10247 = vunpack.c.h.b16 %v9425
    %v10248 = vunpack.c.l.b16 %v9426
    %v10249 = vunpack.c.h.b16 %v9426
    %v10250 = vunpack.c.l.b16 %v9427
    %v10251 = vunpack.c.h.b16 %v9427
    %v10252 = vunpack.c.l.b16 %v9428
    %v10253 = vunpack.c.l.b16 %v9429
    %v10254 = vunpack.c.h.b16 %v9429
    %v10255 = vunpack.c.l.b16 %v9430
    %v10256 = vunpack.c.h.b16 %v9430
    %v10257 = vunpack.c.l.b16 %v9431
    %v10258 = vunpack.c.h.b16 %v9431
    %v10259 = vunpack.c.l.b16 %v9432
    %v10260 = vunpack.c.l.b16 %v9433
    %v10261 = vunpack.c.h.b16 %v9433
    %v10262 = vunpack.c.l.b16 %v9434
    %v10263 = vunpack.c.h.b16 %v9434
    %v10264 = vunpack.c.l.b16 %v9435
    %v10265 = vunpack.c.h.b16 %v9435
    %v10266 = vunpack.c.l.b16 %v9436
    %v10267 = vunpack.c.l.b16 %v9437
    %v10268 = vunpack.c.h.b16 %v9437
    %v10269 = vunpack.c.l.b16 %v9438
    %v10270 = vunpack.c.h.b16 %v9438
    %v10271 = vunpack.c.l.b16 %v9439
    %v10272 = vunpack.c.h.b16 %v9439
    %v10273 = vunpack.c.l.b16 %v9440
    %v10274 = vunpack.c.l.b16 %v9441
    %v10275 = vunpack.c.h.b16 %v9441
    %v10276 = vunpack.c.l.b16 %v9442
    %v10277 = vunpack.c.h.b16 %v9442
    %v10278 = vunpack.c.l.b16 %v9443
    %v10279 = vunpack.c.h.b16 %v9443
    %v10280 = vunpack.c.l.b16 %v9444
    %v10281 = vunpack.c.l.b16 %v9445
    %v10282 = vunpack.c.h.b16 %v9445
    %v10283 = vunpack.c.l.b16 %v9446
    %v10284 = vunpack.c.h.b16 %v9446
    %v10285 = vunpack.c.l.b16 %v9447
    %v10286 = vunpack.c.h.b16 %v9447
    %v10287 = vunpack.c.l.b16 %v9448
    %v10288 = vunpack.c.l.b16 %v9449
    %v10289 = vunpack.c.h.b16 %v9449
    %v10290 = vunpack.c.l.b16 %v9450
    %v10291 = vunpack.c.h.b16 %v9450
    %v10292 = vunpack.c.l.b16 %v9451
    %v10293 = vunpack.c.h.b16 %v9451
    %v10294 = vunpack.c.l.b16 %v9452
    %v10295 = vunpack.c.l.b16 %v9453
    %v10296 = vunpack.c.h.b16 %v9453
    %v10297 = vunpack.c.l.b16 %v9454
    %v10298 = vunpack.c.h.b16 %v9454
    %v10299 = vunpack.c.l.b16 %v9455
    %v10300 = vunpack.c.h.b16 %v9455
    %v10301 = vunpack.c.l.b16 %v9456
    %v10302 = vunpack.c.l.b16 %v9457
    %v10303 = vunpack.c.h.b16 %v9457
    %v10304 = vunpack.c.l.b16 %v9458
    %v10305 = vunpack.c.h.b16 %v9458
    %v10306 = vunpack.c.l.b16 %v9459
    %v10307 = vunpack.c.h.b16 %v9459
    %v10308 = vunpack.c.l.b16 %v9460
    %v10309 = vunpack.c.l.b16 %v9461
    %v10310 = vunpack.c.h.b16 %v9461
    %v10311 = vunpack.c.l.b16 %v9462
    %v10312 = vunpack.c.h.b16 %v9462
    %v10313 = vunpack.c.l.b16 %v9463
    %v10314 = vunpack.c.h.b16 %v9463
    %v10315 = vunpack.c.l.b16 %v9464
    %v10316 = vunpack.c.l.b16 %v9465
    %v10317 = vunpack.c.h.b16 %v9465
    %v10318 = vunpack.c.l.b16 %v9466
    %v10319 = vunpack.c.h.b16 %v9466
    %v10320 = vunpack.c.l.b16 %v9467
    %v10321 = vunpack.c.h.b16 %v9467
    %v10322 = vunpack.c.l.b16 %v9468
    %v10323 = vunpack.c.l.b16 %v9469
    %v10324 = vunpack.c.h.b16 %v9469
    %v10325 = vunpack.c.l.b16 %v9470
    %v10326 = vunpack.c.h.b16 %v9470
    %v10327 = vunpack.c.l.b16 %v9471
    %v10328 = vunpack.c.h.b16 %v9471
    %v10329 = vunpack.c.l.b16 %v9472
    %v10330 = vunpack.c.l.b16 %v9473
    %v10331 = vunpack.c.h.b16 %v9473
    %v10332 = vunpack.c.l.b16 %v9474
    %v10333 = vunpack.c.h.b16 %v9474
    %v10334 = vunpack.c.l.b16 %v9475
    %v10335 = vunpack.c.h.b16 %v9475
    %v10336 = vunpack.c.l.b16 %v9476
    %v10337 = vunpack.c.l.b16 %v9477
    %v10338 = vunpack.c.h.b16 %v9477
    %v10339 = vunpack.c.l.b16 %v9478
    %v10340 = vunpack.c.h.b16 %v9478
    %v10341 = vunpack.c.l.b16 %v9479
    %v10342 = vunpack.c.h.b16 %v9479
    %v10343 = vunpack.c.l.b16 %v9480
    %v10344 = vunpack.c.l.b16 %v9481
    %v10345 = vunpack.c.h.b16 %v9481
    %v10346 = vunpack.c.l.b16 %v9482
    %v10347 = vunpack.c.h.b16 %v9482
    %v10348 = vunpack.c.l.b16 %v9483
    %v10349 = vunpack.c.h.b16 %v9483
    %v10350 = vunpack.c.l.b16 %v9484
    %v10351 = vunpack.c.l.b16 %v9485
    %v10352 = vunpack.c.h.b16 %v9485
    %v10353 = vunpack.c.l.b16 %v9486
    %v10354 = vunpack.c.h.b16 %v9486
    %v10355 = vunpack.c.l.b16 %v9487
    %v10356 = vunpack.c.h.b16 %v9487
    %v10357 = vunpack.c.l.b16 %v9488
    %v10358 = vunpack.c.l.b16 %v9489
    %v10359 = vunpack.c.h.b16 %v9489
    %v10360 = vunpack.c.l.b16 %v9490
    %v10361 = vunpack.c.h.b16 %v9490
    %v10362 = vunpack.c.l.b16 %v9491
    %v10363 = vunpack.c.h.b16 %v9491
    %v10364 = vunpack.c.l.b16 %v9492
    %v10365 = vunpack.c.l.b16 %v9493
    %v10366 = vunpack.c.h.b16 %v9493
    %v10367 = vunpack.c.l.b16 %v9494
    %v10368 = vunpack.c.h.b16 %v9494
    %v10369 = vunpack.c.l.b16 %v9495
    %v10370 = vunpack.c.h.b16 %v9495
    %v10371 = vunpack.c.l.b16 %v9496
    %v10372 = vunpack.c.l.b16 %v9497
    %v10373 = vunpack.c.h.b16 %v9497
    %v10374 = vunpack.c.l.b16 %v9498
    %v10375 = vunpack.c.h.b16 %v9498
    %v10376 = vunpack.c.l.b16 %v9499
    %v10377 = vunpack.c.h.b16 %v9499
    %v10378 = vunpack.c.l.b16 %v9500
    %v10379 = vunpack.c.l.b16 %v9501
    %v10380 = vunpack.c.h.b16 %v9501
    %v10381 = vunpack.c.l.b16 %v9502
    %v10382 = vunpack.c.h.b16 %v9502
    %v10383 = vunpack.c.l.b16 %v9503
    %v10384 = vunpack.c.h.b16 %v9503
    %v10385 = vunpack.c.l.b16 %v9504
    %v10386 = vunpack.c.l.b16 %v9505
    %v10387 = vunpack.c.h.b16 %v9505
    %v10388 = vunpack.c.l.b16 %v9506
    %v10389 = vunpack.c.h.b16 %v9506
    %v10390 = vunpack.c.l.b16 %v9507
    %v10391 = vunpack.c.h.b16 %v9507
    %v10392 = vunpack.c.l.b16 %v9508
    %v10393 = vunpack.c.l.b16 %v9509
    %v10394 = vunpack.c.h.b16 %v9509
    %v10395 = vunpack.c.l.b16 %v9510
    %v10396 = vunpack.c.h.b16 %v9510
    %v10397 = vunpack.c.l.b16 %v9511
    %v10398 = vunpack.c.h.b16 %v9511
    %v10399 = vunpack.c.l.b16 %v9512
    %v10400 = vunpack.c.l.b16 %v9513
    %v10401 = vunpack.c.h.b16 %v9513
    %v10402 = vunpack.c.l.b16 %v9514
    %v10403 = vunpack.c.h.b16 %v9514
    %v10404 = vunpack.c.l.b16 %v9515
    %v10405 = vunpack.c.h.b16 %v9515
    %v10406 = vunpack.c.l.b16 %v9516
    %v10407 = vunpack.c.l.b16 %v9517
    %v10408 = vunpack.c.h.b16 %v9517
    %v10409 = vunpack.c.l.b16 %v9518
    %v10410 = vunpack.c.h.b16 %v9518
    %v10411 = vunpack.c.l.b16 %v9519
    %v10412 = vunpack.c.h.b16 %v9519
    %v10413 = vunpack.c.l.b16 %v9520
    %v10414 = vunpack.c.l.b16 %v9521
    %v10415 = vunpack.c.h.b16 %v9521
    %v10416 = vunpack.c.l.b16 %v9522
    %v10417 = vunpack.c.h.b16 %v9522
    %v10418 = vunpack.c.l.b16 %v9523
    %v10419 = vunpack.c.h.b16 %v9523
    %v10420 = vunpack.c.l.b16 %v9524
    %v10421 = vunpack.c.l.b16 %v9525
    %v10422 = vunpack.c.h.b16 %v9525
    %v10423 = vunpack.c.l.b16 %v9526
    %v10424 = vunpack.c.h.b16 %v9526
    %v10425 = vunpack.c.l.b16 %v9527
    %v10426 = vunpack.c.h.b16 %v9527
    %v10427 = vunpack.c.l.b16 %v9528
    %v10428 = vunpack.c.l.b16 %v9529
    %v10429 = vunpack.c.h.b16 %v9529
    %v10430 = vunpack.c.l.b16 %v9530
    %v10431 = vunpack.c.h.b16 %v9530
    %v10432 = vunpack.c.l.b16 %v9531
    %v10433 = vunpack.c.h.b16 %v9531
    %v10434 = vunpack.c.l.b16 %v9532
    %v10435 = vunpack.c.l.b16 %v9533
    %v10436 = vunpack.c.h.b16 %v9533
    %v10437 = vunpack.c.l.b16 %v9534
    %v10438 = vunpack.c.h.b16 %v9534
    %v10439 = vunpack.c.l.b16 %v9535
    %v10440 = vunpack.c.h.b16 %v9535
    %v10441 = vunpack.c.l.b16 %v9536
    %v10442 = vunpack.c.l.b16 %v9537
    %v10443 = vunpack.c.h.b16 %v9537
    %v10444 = vunpack.c.l.b16 %v9538
    %v10445 = vunpack.c.h.b16 %v9538
    %v10446 = vunpack.c.l.b16 %v9539
    %v10447 = vunpack.c.h.b16 %v9539
    %v10448 = vunpack.c.l.b16 %v9540
    %v10449 = vunpack.c.l.b16 %v9541
    %v10450 = vunpack.c.h.b16 %v9541
    %v10451 = vunpack.c.l.b16 %v9542
    %v10452 = vunpack.c.h.b16 %v9542
    %v10453 = vunpack.c.l.b16 %v9543
    %v10454 = vunpack.c.h.b16 %v9543
    %v10455 = vunpack.c.l.b16 %v9544
    %v10456 = vunpack.c.l.b16 %v9545
    %v10457 = vunpack.c.h.b16 %v9545
    %v10458 = vunpack.c.l.b16 %v9546
    %v10459 = vunpack.c.h.b16 %v9546
    %v10460 = vunpack.c.l.b16 %v9547
    %v10461 = vunpack.c.h.b16 %v9547
    %v10462 = vunpack.c.l.b16 %v9548
    %v10463 = vunpack.c.l.b16 %v9549
    %v10464 = vunpack.c.h.b16 %v9549
    %v10465 = vunpack.c.l.b16 %v9550
    %v10466 = vunpack.c.h.b16 %v9550
    %v10467 = vunpack.c.l.b16 %v9551
    %v10468 = vunpack.c.h.b16 %v9551
    %v10469 = vunpack.c.l.b16 %v9552
    %v10470 = vpack.c.b16 %v9917, %v9910
    %v10471 = vpack.c.b16 %v9918, %v9911
    %v10472 = vpack.c.b16 %v9919, %v9912
    %v10473 = vpack.c.b16 %v9920, %v9913
    %v10474 = vpack.c.b16 %v9921, %v9914
    %v10475 = vpack.c.b16 %v9922, %v9915
    %v10476 = vpack.c.b16 %v9923, %v9916
    %v10477 = vpack.c.b16 %v9931, %v9924
    %v10478 = vpack.c.b16 %v9932, %v9925
    %v10479 = vpack.c.b16 %v9933, %v9926
    %v10480 = vpack.c.b16 %v9934, %v9927
    %v10481 = vpack.c.b16 %v9935, %v9928
    %v10482 = vpack.c.b16 %v9936, %v9929
    %v10483 = vpack.c.b16 %v9937, %v9930
    %v10484 = vpack.c.b16 %v9945, %v9938
    %v10485 = vpack.c.b16 %v9946, %v9939
    %v10486 = vpack.c.b16 %v9947, %v9940
    %v10487 = vpack.c.b16 %v9948, %v9941
    %v10488 = vpack.c.b16 %v9949, %v9942
    %v10489 = vpack.c.b16 %v9950, %v9943
    %v10490 = vpack.c.b16 %v9951, %v9944
    %v10491 = vpack.c.b16 %v9959, %v9952
    %v10492 = vpack.c.b16 %v9960, %v9953
    %v10493 = vpack.c.b16 %v9961, %v9954
    %v10494 = vpack.c.b16 %v9962, %v9955
    %v10495 = vpack.c.b16 %v9963, %v9956
    %v10496 = vpack.c.b16 %v9964, %v9957
    %v10497 = vpack.c.b16 %v9965, %v9958
    %v10498 = vpack.c.b16 %v9973, %v9966
    %v10499 = vpack.c.b16 %v9974, %v9967
    %v10500 = vpack.c.b16 %v9975, %v9968
    %v10501 = vpack.c.b16 %v9976, %v9969
    %v10502 = vpack.c.b16 %v9977, %v9970
    %v10503 = vpack.c.b16 %v9978, %v9971
    %v10504 = vpack.c.b16 %v9979, %v9972
    %v10505 = vpack.c.b16 %v9987, %v9980
    %v10506 = vpack.c.b16 %v9988, %v9981
    %v10507 = vpack.c.b16 %v9989, %v9982
    %v10508 = vpack.c.b16 %v9990, %v9983
    %v10509 = vpack.c.b16 %v9991, %v9984
    %v10510 = vpack.c.b16 %v9992, %v9985
    %v10511 = vpack.c.b16 %v9993, %v9986
    %v10512 = vpack.c.b16 %v10001, %v9994
    %v10513 = vpack.c.b16 %v10002, %v9995
    %v10514 = vpack.c.b16 %v10003, %v9996
    %v10515 = vpack.c.b16 %v10004, %v9997
    %v10516 = vpack.c.b16 %v10005, %v9998
    %v10517 = vpack.c.b16 %v10006, %v9999
    %v10518 = vpack.c.b16 %v10007, %v10000
    %v10519 = vpack.c.b16 %v10015, %v10008
    %v10520 = vpack.c.b16 %v10016, %v10009
    %v10521 = vpack.c.b16 %v10017, %v10010
    %v10522 = vpack.c.b16 %v10018, %v10011
    %v10523 = vpack.c.b16 %v10019, %v10012
    %v10524 = vpack.c.b16 %v10020, %v10013
    %v10525 = vpack.c.b16 %v10021, %v10014
    %v10526 = vpack.c.b16 %v10029, %v10022
    %v10527 = vpack.c.b16 %v10030, %v10023
    %v10528 = vpack.c.b16 %v10031, %v10024
    %v10529 = vpack.c.b16 %v10032, %v10025
    %v10530 = vpack.c.b16 %v10033, %v10026
    %v10531 = vpack.c.b16 %v10034, %v10027
    %v10532 = vpack.c.b16 %v10035, %v10028
    %v10533 = vpack.c.b16 %v10043, %v10036
    %v10534 = vpack.c.b16 %v10044, %v10037
    %v10535 = vpack.c.b16 %v10045, %v10038
    %v10536 = vpack.c.b16 %v10046, %v10039
    %v10537 = vpack.c.b16 %v10047, %v10040
    %v10538 = vpack.c.b16 %v10048, %v10041
    %v10539 = vpack.c.b16 %v10049, %v10042
    %v10540 = vpack.c.b16 %v10057, %v10050
    %v10541 = vpack.c.b16 %v10058, %v10051
    %v10542 = vpack.c.b16 %v10059, %v10052
    %v10543 = vpack.c.b16 %v10060, %v10053
    %v10544 = vpack.c.b16 %v10061, %v10054
    %v10545 = vpack.c.b16 %v10062, %v10055
    %v10546 = vpack.c.b16 %v10063, %v10056
    %v10547 = vpack.c.b16 %v10071, %v10064
    %v10548 = vpack.c.b16 %v10072, %v10065
    %v10549 = vpack.c.b16 %v10073, %v10066
    %v10550 = vpack.c.b16 %v10074, %v10067
    %v10551 = vpack.c.b16 %v10075, %v10068
    %v10552 = vpack.c.b16 %v10076, %v10069
    %v10553 = vpack.c.b16 %v10077, %v10070
    %v10554 = vpack.c.b16 %v10085, %v10078
    %v10555 = vpack.c.b16 %v10086, %v10079
    %v10556 = vpack.c.b16 %v10087, %v10080
    %v10557 = vpack.c.b16 %v10088, %v10081
    %v10558 = vpack.c.b16 %v10089, %v10082
    %v10559 = vpack.c.b16 %v10090, %v10083
    %v10560 = vpack.c.b16 %v10091, %v10084
    %v10561 = vpack.c.b16 %v10099, %v10092
    %v10562 = vpack.c.b16 %v10100, %v10093
    %v10563 = vpack.c.b16 %v10101, %v10094
    %v10564 = vpack.c.b16 %v10102, %v10095
    %v10565 = vpack.c.b16 %v10103, %v10096
    %v10566 = vpack.c.b16 %v10104, %v10097
    %v10567 = vpack.c.b16 %v10105, %v10098
    %v10568 = vpack.c.b16 %v10113, %v10106
    %v10569 = vpack.c.b16 %v10114, %v10107
    %v10570 = vpack.c.b16 %v10115, %v10108
    %v10571 = vpack.c.b16 %v10116, %v10109
    %v10572 = vpack.c.b16 %v10117, %v10110
    %v10573 = vpack.c.b16 %v10118, %v10111
    %v10574 = vpack.c.b16 %v10119, %v10112
    %v10575 = vpack.c.b16 %v10127, %v10120
    %v10576 = vpack.c.b16 %v10128, %v10121
    %v10577 = vpack.c.b16 %v10129, %v10122
    %v10578 = vpack.c.b16 %v10130, %v10123
    %v10579 = vpack.c.b16 %v10131, %v10124
    %v10580 = vpack.c.b16 %v10132, %v10125
    %v10581 = vpack.c.b16 %v10133, %v10126
    %v10582 = vpack.c.b16 %v10141, %v10134
    %v10583 = vpack.c.b16 %v10142, %v10135
    %v10584 = vpack.c.b16 %v10143, %v10136
    %v10585 = vpack.c.b16 %v10144, %v10137
    %v10586 = vpack.c.b16 %v10145, %v10138
    %v10587 = vpack.c.b16 %v10146, %v10139
    %v10588 = vpack.c.b16 %v10147, %v10140
    %v10589 = vpack.c.b16 %v10155, %v10148
    %v10590 = vpack.c.b16 %v10156, %v10149
    %v10591 = vpack.c.b16 %v10157, %v10150
    %v10592 = vpack.c.b16 %v10158, %v10151
    %v10593 = vpack.c.b16 %v10159, %v10152
    %v10594 = vpack.c.b16 %v10160, %v10153
    %v10595 = vpack.c.b16 %v10161, %v10154
    %v10596 = vpack.c.b16 %v10169, %v10162
    %v10597 = vpack.c.b16 %v10170, %v10163
    %v10598 = vpack.c.b16 %v10171, %v10164
    %v10599 = vpack.c.b16 %v10172, %v10165
    %v10600 = vpack.c.b16 %v10173, %v10166
    %v10601 = vpack.c.b16 %v10174, %v10167
    %v10602 = vpack.c.b16 %v10175, %v10168
    %v10603 = vpack.c.b16 %v10183, %v10176
    %v10604 = vpack.c.b16 %v10184, %v10177
    %v10605 = vpack.c.b16 %v10185, %v10178
    %v10606 = vpack.c.b16 %v10186, %v10179
    %v10607 = vpack.c.b16 %v10187, %v10180
    %v10608 = vpack.c.b16 %v10188, %v10181
    %v10609 = vpack.c.b16 %v10189, %v10182
    %v10610 = vpack.c.b16 %v10197, %v10190
    %v10611 = vpack.c.b16 %v10198, %v10191
    %v10612 = vpack.c.b16 %v10199, %v10192
    %v10613 = vpack.c.b16 %v10200, %v10193
    %v10614 = vpack.c.b16 %v10201, %v10194
    %v10615 = vpack.c.b16 %v10202, %v10195
    %v10616 = vpack.c.b16 %v10203, %v10196
    %v10617 = vpack.c.b16 %v10211, %v10204
    %v10618 = vpack.c.b16 %v10212, %v10205
    %v10619 = vpack.c.b16 %v10213, %v10206
    %v10620 = vpack.c.b16 %v10214, %v10207
    %v10621 = vpack.c.b16 %v10215, %v10208
    %v10622 = vpack.c.b16 %v10216, %v10209
    %v10623 = vpack.c.b16 %v10217, %v10210
    %v10624 = vpack.c.b16 %v10225, %v10218
    %v10625 = vpack.c.b16 %v10226, %v10219
    %v10626 = vpack.c.b16 %v10227, %v10220
    %v10627 = vpack.c.b16 %v10228, %v10221
    %v10628 = vpack.c.b16 %v10229, %v10222
    %v10629 = vpack.c.b16 %v10230, %v10223
    %v10630 = vpack.c.b16 %v10231, %v10224
    %v10631 = vpack.c.b16 %v10239, %v10232
    %v10632 = vpack.c.b16 %v10240, %v10233
    %v10633 = vpack.c.b16 %v10241, %v10234
    %v10634 = vpack.c.b16 %v10242, %v10235
    %v10635 = vpack.c.b16 %v10243, %v10236
    %v10636 = vpack.c.b16 %v10244, %v10237
    %v10637 = vpack.c.b16 %v10245, %v10238
    %v10638 = vpack.c.b16 %v10253, %v10246
    %v10639 = vpack.c.b16 %v10254, %v10247
    %v10640 = vpack.c.b16 %v10255, %v10248
    %v10641 = vpack.c.b16 %v10256, %v10249
    %v10642 = vpack.c.b16 %v10257, %v10250
    %v10643 = vpack.c.b16 %v10258, %v10251
    %v10644 = vpack.c.b16 %v10259, %v10252
    %v10645 = vpack.c.b16 %v10267, %v10260
    %v10646 = vpack.c.b16 %v10268, %v10261
    %v10647 = vpack.c.b16 %v10269, %v10262
    %v10648 = vpack.c.b16 %v10270, %v10263
    %v10649 = vpack.c.b16 %v10271, %v10264
    %v10650 = vpack.c.b16 %v10272, %v10265
    %v10651 = vpack.c.b16 %v10273, %v10266
    %v10652 = vpack.c.b16 %v10281, %v10274
    %v10653 = vpack.c.b16 %v10282, %v10275
    %v10654 = vpack.c.b16 %v10283, %v10276
    %v10655 = vpack.c.b16 %v10284, %v10277
    %v10656 = vpack.c.b16 %v10285, %v10278
    %v10657 = vpack.c.b16 %v10286, %v10279
    %v10658 = vpack.c.b16 %v10287, %v10280
    %v10659 = vpack.c.b16 %v10295, %v10288
    %v10660 = vpack.c.b16 %v10296, %v10289
    %v10661 = vpack.c.b16 %v10297, %v10290
    %v10662 = vpack.c.b16 %v10298, %v10291
    %v10663 = vpack.c.b16 %v10299, %v10292
    %v10664 = vpack.c.b16 %v10300, %v10293
    %v10665 = vpack.c.b16 %v10301, %v10294
    %v10666 = vpack.c.b16 %v10309, %v10302
    %v10667 = vpack.c.b16 %v10310, %v10303
    %v10668 = vpack.c.b16 %v10311, %v10304
    %v10669 = vpack.c.b16 %v10312, %v10305
    %v10670 = vpack.c.b16 %v10313, %v10306
    %v10671 = vpack.c.b16 %v10314, %v10307
    %v10672 = vpack.c.b16 %v10315, %v10308
    %v10673 = vpack.c.b16 %v10323, %v10316
    %v10674 = vpack.c.b16 %v10324, %v10317
    %v10675 = vpack.c.b16 %v10325, %v10318
    %v10676 = vpack.c.b16 %v10326, %v10319
    %v10677 = vpack.c.b16 %v10327, %v10320
    %v10678 = vpack.c.b16 %v10328, %v10321
    %v10679 = vpack.c.b16 %v10329, %v10322
    %v10680 = vpack.c.b16 %v10337, %v10330
    %v10681 = vpack.c.b16 %v10338, %v10331
    %v10682 = vpack.c.b16 %v10339, %v10332
    %v10683 = vpack.c.b16 %v10340, %v10333
    %v10684 = vpack.c.b16 %v10341, %v10334
    %v10685 = vpack.c.b16 %v10342, %v10335
    %v10686 = vpack.c.b16 %v10343, %v10336
    %v10687 = vpack.c.b16 %v10351, %v10344
    %v10688 = vpack.c.b16 %v10352, %v10345
    %v10689 = vpack.c.b16 %v10353, %v10346
    %v10690 = vpack.c.b16 %v10354, %v10347
    %v10691 = vpack.c.b16 %v10355, %v10348
    %v10692 = vpack.c.b16 %v10356, %v10349
    %v10693 = vpack.c.b16 %v10357, %v10350
    %v10694 = vpack.c.b16 %v10365, %v10358
    %v10695 = vpack.c.b16 %v10366, %v10359
    %v10696 = vpack.c.b16 %v10367, %v10360
    %v10697 = vpack.c.b16 %v10368, %v10361
    %v10698 = vpack.c.b16 %v10369, %v10362
    %v10699 = vpack.c.b16 %v10370, %v10363
    %v10700 = vpack.c.b16 %v10371, %v10364
    %v10701 = vpack.c.b16 %v10379, %v10372
    %v10702 = vpack.c.b16 %v10380, %v10373
    %v10703 = vpack.c.b16 %v10381, %v10374
    %v10704 = vpack.c.b16 %v10382, %v10375
    %v10705 = vpack.c.b16 %v10383, %v10376
    %v10706 = vpack.c.b16 %v10384, %v10377
    %v10707 = vpack.c.b16 %v10385, %v10378
    %v10708 = vpack.c.b16 %v10393, %v10386
    %v10709 = vpack.c.b16 %v10394, %v10387
    %v10710 = vpack.c.b16 %v10395, %v10388
    %v10711 = vpack.c.b16 %v10396, %v10389
    %v10712 = vpack.c.b16 %v10397, %v10390
    %v10713 = vpack.c.b16 %v10398, %v10391
    %v10714 = vpack.c.b16 %v10399, %v10392
    %v10715 = vpack.c.b16 %v10407, %v10400
    %v10716 = vpack.c.b16 %v10408, %v10401
    %v10717 = vpack.c.b16 %v10409, %v10402
    %v10718 = vpack.c.b16 %v10410, %v10403
    %v10719 = vpack.c.b16 %v10411, %v10404
    %v10720 = vpack.c.b16 %v10412, %v10405
    %v10721 = vpack.c.b16 %v10413, %v10406
    %v10722 = vpack.c.b16 %v10421, %v10414
    %v10723 = vpack.c.b16 %v10422, %v10415
    %v10724 = vpack.c.b16 %v10423, %v10416
    %v10725 = vpack.c.b16 %v10424, %v10417
    %v10726 = vpack.c.b16 %v10425, %v10418
    %v10727 = vpack.c.b16 %v10426, %v10419
    %v10728 = vpack.c.b16 %v10427, %v10420
    %v10729 = vpack.c.b16 %v10435, %v10428
    %v10730 = vpack.c.b16 %v10436, %v10429
    %v10731 = vpack.c.b16 %v10437, %v10430
    %v10732 = vpack.c.b16 %v10438, %v10431
    %v10733 = vpack.c.b16 %v10439, %v10432
    %v10734 = vpack.c.b16 %v10440, %v10433
    %v10735 = vpack.c.b16 %v10441, %v10434
    %v10736 = vpack.c.b16 %v10449, %v10442
    %v10737 = vpack.c.b16 %v10450, %v10443
    %v10738 = vpack.c.b16 %v10451, %v10444
    %v10739 = vpack.c.b16 %v10452, %v10445
    %v10740 = vpack.c.b16 %v10453, %v10446
    %v10741 = vpack.c.b16 %v10454, %v10447
    %v10742 = vpack.c.b16 %v10455, %v10448
    %v10743 = vpack.c.b16 %v10463, %v10456
    %v10744 = vpack.c.b16 %v10464, %v10457
    %v10745 = vpack.c.b16 %v10465, %v10458
    %v10746 = vpack.c.b16 %v10466, %v10459
    %v10747 = vpack.c.b16 %v10467, %v10460
    %v10748 = vpack.c.b16 %v10468, %v10461
    %v10749 = vpack.c.b16 %v10469, %v10462
    %11030 = vmatprep.subr.bf16.mxu0 %v10471
    %11031 = vmatpush1.bf16.msra.mxu0 %v10470
    %11032 = vmatprep.subr.bf16.mxu0 %v10478
    %11033 = vmatpush1.bf16.msra.mxu0 %v10477
    %11034 = vmatprep.subr.bf16.mxu0 %v10485
    %11035 = vmatpush1.bf16.msra.mxu0 %v10484
    %11036 = vmatprep.subr.bf16.mxu0 %v10492
    %11037 = vmatpush1.bf16.msra.mxu0 %v10491
    %11038 = vmatprep.subr.bf16.mxu0 %v10499
    %11039 = vmatpush1.bf16.msra.mxu0 %v10498
    %11040 = vmatprep.subr.bf16.mxu0 %v10506
    %11041 = vmatpush1.bf16.msra.mxu0 %v10505
    %11042 = vmatprep.subr.bf16.mxu0 %v10513
    %11043 = vmatpush1.bf16.msra.mxu0 %v10512
    %11044 = vmatprep.subr.bf16.mxu0 %v10520
    %11045 = vmatpush1.bf16.msra.mxu0 %v10519
    %11046 = vmatprep.subr.bf16.mxu0 %v10527
    %11047 = vmatpush1.bf16.msra.mxu0 %v10526
    %11048 = vmatprep.subr.bf16.mxu0 %v10534
    %11049 = vmatpush1.bf16.msra.mxu0 %v10533
    %11050 = vmatprep.subr.bf16.mxu0 %v10541
    %11051 = vmatpush1.bf16.msra.mxu0 %v10540
    %11052 = vmatprep.subr.bf16.mxu0 %v10548
    %11053 = vmatpush1.bf16.msra.mxu0 %v10547
    %11054 = vmatprep.subr.bf16.mxu0 %v10555
    %11055 = vmatpush1.bf16.msra.mxu0 %v10554
    %11056 = vmatprep.subr.bf16.mxu0 %v10562
    %11057 = vmatpush1.bf16.msra.mxu0 %v10561
    %11058 = vmatprep.subr.bf16.mxu0 %v10569
    %11059 = vmatpush1.bf16.msra.mxu0 %v10568
    %11060 = vmatprep.subr.bf16.mxu0 %v10576
    %11061 = vmatpush1.bf16.msra.mxu0 %v10575
    %11062 = vmatprep.mubr.bf16.mxu0 %v9229
    %11063 = vmatmul.mubr.bf16.gmra.mrb[0].mxu0 %v9228
    %v11064 = vpop.f32.mrb[0].mxu0
    %v11065 = vadd.f32 %v9558, %v11064
    %v11066 = vpop.f32.mrb[0].mxu0
    %v11067 = vadd.f32 %v9562, %v11066
    %v11068 = vpop.f32.mrb[0].mxu0
    %v11069 = vpop.f32.mrb[0].mxu0
    %11070 = vdwg.mxu0
    %11071 = vmatprep.subr.bf16.mxu0 %v10583
    %11072 = vmatpush1.bf16.msra.mxu0 %v10582
    %11073 = vmatprep.subr.bf16.mxu0 %v10590
    %11074 = vmatpush1.bf16.msra.mxu0 %v10589
    %11075 = vmatprep.subr.bf16.mxu0 %v10597
    %11076 = vmatpush1.bf16.msra.mxu0 %v10596
    %11077 = vmatprep.subr.bf16.mxu0 %v10604
    %11078 = vmatpush1.bf16.msra.mxu0 %v10603
    %11079 = vmatprep.subr.bf16.mxu0 %v10611
    %11080 = vmatpush1.bf16.msra.mxu0 %v10610
    %11081 = vmatprep.subr.bf16.mxu0 %v10618
    %11082 = vmatpush1.bf16.msra.mxu0 %v10617
    %11083 = vmatprep.subr.bf16.mxu0 %v10625
    %11084 = vmatpush1.bf16.msra.mxu0 %v10624
    %11085 = vmatprep.subr.bf16.mxu0 %v10632
    %11086 = vmatpush1.bf16.msra.mxu0 %v10631
    %11087 = vmatprep.subr.bf16.mxu0 %v10639
    %11088 = vmatpush1.bf16.msra.mxu0 %v10638
    %11089 = vmatprep.subr.bf16.mxu0 %v10646
    %11090 = vmatpush1.bf16.msra.mxu0 %v10645
    %11091 = vmatprep.subr.bf16.mxu0 %v10653
    %11092 = vmatpush1.bf16.msra.mxu0 %v10652
    %11093 = vmatprep.subr.bf16.mxu0 %v10660
    %11094 = vmatpush1.bf16.msra.mxu0 %v10659
    %11095 = vmatprep.subr.bf16.mxu0 %v10667
    %11096 = vmatpush1.bf16.msra.mxu0 %v10666
    %11097 = vmatprep.subr.bf16.mxu0 %v10674
    %11098 = vmatpush1.bf16.msra.mxu0 %v10673
    %11099 = vmatprep.subr.bf16.mxu0 %v10681
    %11100 = vmatpush1.bf16.msra.mxu0 %v10680
    %11101 = vmatprep.subr.bf16.mxu0 %v10688
    %11102 = vmatpush1.bf16.msra.mxu0 %v10687
    %11103 = vmatprep.mubr.bf16.mxu0 %v9231
    %11104 = vmatmul.mubr.bf16.gmra.mrb[0].mxu0 %v9230
    %v11105 = vpop.f32.mrb[0].mxu0
    %v11106 = vadd.f32 %v11065, %v11105
    %v11107 = vpop.f32.mrb[0].mxu0
    %v11108 = vadd.f32 %v11067, %v11107
    %v11109 = vpop.f32.mrb[0].mxu0
    %v11110 = vpop.f32.mrb[0].mxu0
    %11111 = vdwg.mxu0
    %11112 = vmatprep.subr.bf16.mxu0 %v10695
    %11113 = vmatpush1.bf16.msra.mxu0 %v10694
    %11114 = vmatprep.subr.bf16.mxu0 %v10702
    %11115 = vmatpush1.bf16.msra.mxu0 %v10701
    %11116 = vmatprep.subr.bf16.mxu0 %v10709
    %11117 = vmatpush1.bf16.msra.mxu0 %v10708
    %11118 = vmatprep.subr.bf16.mxu0 %v10716
    %11119 = vmatpush1.bf16.msra.mxu0 %v10715
    %11120 = vmatprep.subr.bf16.mxu0 %v10723
    %11121 = vmatpush1.bf16.msra.mxu0 %v10722
    %11122 = vmatprep.subr.bf16.mxu0 %v10730
    %11123 = vmatpush1.bf16.msra.mxu0 %v10729
    %11124 = vmatprep.subr.bf16.mxu0 %v10737
    %11125 = vmatpush1.bf16.msra.mxu0 %v10736
    %11126 = vmatprep.subr.bf16.mxu0 %v10744
    %11127 = vmatpush1.bf16.msra.mxu0 %v10743
    %11128 = vmatprep.subr.bf16.mxu0 0
    %11129 = vmatpush1.bf16.msra.mxu0 0
    %11130 = vmatprep.subr.bf16.mxu0 0
    %11131 = vmatpush1.bf16.msra.mxu0 0
    %11132 = vmatprep.subr.bf16.mxu0 0
    %11133 = vmatpush1.bf16.msra.mxu0 0
    %11134 = vmatprep.subr.bf16.mxu0 0
    %11135 = vmatpush1.bf16.msra.mxu0 0
    %11136 = vmatprep.subr.bf16.mxu0 0
    %11137 = vmatpush1.bf16.msra.mxu0 0
    %11138 = vmatprep.subr.bf16.mxu0 0
    %11139 = vmatpush1.bf16.msra.mxu0 0
    %11140 = vmatprep.subr.bf16.mxu0 0
    %11141 = vmatpush1.bf16.msra.mxu0 0
    %11142 = vmatprep.subr.bf16.mxu0 0
    %11143 = vmatpush1.bf16.msra.mxu0 0
    %11144 = vmatprep.mubr.bf16.mxu0 0
    %11145 = vmatmul.mubr.bf16.gmra.mrb[0].mxu0 %v9232
    %v11146 = vpop.f32.mrb[0].mxu0
    %v11147 = vadd.f32 %v11106, %v11146
    %v11148 = vpop.f32.mrb[0].mxu0
    %v11149 = vadd.f32 %v11108, %v11148
    %v11150 = vpop.f32.mrb[0].mxu0
    %v11151 = vpop.f32.mrb[0].mxu0
    %11152 = vdwg.mxu0
    %11153 = vmatprep.subr.bf16.mxu0 %v10473
    %11154 = vmatpush1.bf16.msra.mxu0 %v10472
    %11155 = vmatprep.subr.bf16.mxu0 %v10480
    %11156 = vmatpush1.bf16.msra.mxu0 %v10479
    %11157 = vmatprep.subr.bf16.mxu0 %v10487
    %11158 = vmatpush1.bf16.msra.mxu0 %v10486
    %11159 = vmatprep.subr.bf16.mxu0 %v10494
    %11160 = vmatpush1.bf16.msra.mxu0 %v10493
    %11161 = vmatprep.subr.bf16.mxu0 %v10501
    %11162 = vmatpush1.bf16.msra.mxu0 %v10500
    %11163 = vmatprep.subr.bf16.mxu0 %v10508
    %11164 = vmatpush1.bf16.msra.mxu0 %v10507
    %11165 = vmatprep.subr.bf16.mxu0 %v10515
    %11166 = vmatpush1.bf16.msra.mxu0 %v10514
    %11167 = vmatprep.subr.bf16.mxu0 %v10522
    %11168 = vmatpush1.bf16.msra.mxu0 %v10521
    %11169 = vmatprep.subr.bf16.mxu0 %v10529
    %11170 = vmatpush1.bf16.msra.mxu0 %v10528
    %11171 = vmatprep.subr.bf16.mxu0 %v10536
    %11172 = vmatpush1.bf16.msra.mxu0 %v10535
    %11173 = vmatprep.subr.bf16.mxu0 %v10543
    %11174 = vmatpush1.bf16.msra.mxu0 %v10542
    %11175 = vmatprep.subr.bf16.mxu0 %v10550
    %11176 = vmatpush1.bf16.msra.mxu0 %v10549
    %11177 = vmatprep.subr.bf16.mxu0 %v10557
    %11178 = vmatpush1.bf16.msra.mxu0 %v10556
    %11179 = vmatprep.subr.bf16.mxu0 %v10564
    %11180 = vmatpush1.bf16.msra.mxu0 %v10563
    %11181 = vmatprep.subr.bf16.mxu0 %v10571
    %11182 = vmatpush1.bf16.msra.mxu0 %v10570
    %11183 = vmatprep.subr.bf16.mxu0 %v10578
    %11184 = vmatpush1.bf16.msra.mxu0 %v10577
    %11185 = vmatprep.mubr.bf16.mxu0 %v9229
    %11186 = vmatmul.mubr.bf16.gmra.mrb[0].mxu0 %v9228
    %v11187 = vpop.f32.mrb[0].mxu0
    %v11188 = vadd.f32 %v9566, %v11187
    %v11189 = vpop.f32.mrb[0].mxu0
    %v11190 = vadd.f32 %v9570, %v11189
    %v11191 = vpop.f32.mrb[0].mxu0
    %v11192 = vpop.f32.mrb[0].mxu0
    %11193 = vdwg.mxu0
    %11194 = vmatprep.subr.bf16.mxu0 %v10585
    %11195 = vmatpush1.bf16.msra.mxu0 %v10584
    %11196 = vmatprep.subr.bf16.mxu0 %v10592
    %11197 = vmatpush1.bf16.msra.mxu0 %v10591
    %11198 = vmatprep.subr.bf16.mxu0 %v10599
    %11199 = vmatpush1.bf16.msra.mxu0 %v10598
    %11200 = vmatprep.subr.bf16.mxu0 %v10606
    %11201 = vmatpush1.bf16.msra.mxu0 %v10605
    %11202 = vmatprep.subr.bf16.mxu0 %v10613
    %11203 = vmatpush1.bf16.msra.mxu0 %v10612
    %11204 = vmatprep.subr.bf16.mxu0 %v10620
    %11205 = vmatpush1.bf16.msra.mxu0 %v10619
    %11206 = vmatprep.subr.bf16.mxu0 %v10627
    %11207 = vmatpush1.bf16.msra.mxu0 %v10626
    %11208 = vmatprep.subr.bf16.mxu0 %v10634
    %11209 = vmatpush1.bf16.msra.mxu0 %v10633
    %11210 = vmatprep.subr.bf16.mxu0 %v10641
    %11211 = vmatpush1.bf16.msra.mxu0 %v10640
    %11212 = vmatprep.subr.bf16.mxu0 %v10648
    %11213 = vmatpush1.bf16.msra.mxu0 %v10647
    %11214 = vmatprep.subr.bf16.mxu0 %v10655
    %11215 = vmatpush1.bf16.msra.mxu0 %v10654
    %11216 = vmatprep.subr.bf16.mxu0 %v10662
    %11217 = vmatpush1.bf16.msra.mxu0 %v10661
    %11218 = vmatprep.subr.bf16.mxu0 %v10669
    %11219 = vmatpush1.bf16.msra.mxu0 %v10668
    %11220 = vmatprep.subr.bf16.mxu0 %v10676
    %11221 = vmatpush1.bf16.msra.mxu0 %v10675
    %11222 = vmatprep.subr.bf16.mxu0 %v10683
    %11223 = vmatpush1.bf16.msra.mxu0 %v10682
    %11224 = vmatprep.subr.bf16.mxu0 %v10690
    %11225 = vmatpush1.bf16.msra.mxu0 %v10689
    %11226 = vmatprep.mubr.bf16.mxu0 %v9231
    %11227 = vmatmul.mubr.bf16.gmra.mrb[0].mxu0 %v9230
    %v11228 = vpop.f32.mrb[0].mxu0
    %v11229 = vadd.f32 %v11188, %v11228
    %v11230 = vpop.f32.mrb[0].mxu0
    %v11231 = vadd.f32 %v11190, %v11230
    %v11232 = vpop.f32.mrb[0].mxu0
    %v11233 = vpop.f32.mrb[0].mxu0
    %11234 = vdwg.mxu0
    %11235 = vmatprep.subr.bf16.mxu0 %v10697
    %11236 = vmatpush1.bf16.msra.mxu0 %v10696
    %11237 = vmatprep.subr.bf16.mxu0 %v10704
    %11238 = vmatpush1.bf16.msra.mxu0 %v10703
    %11239 = vmatprep.subr.bf16.mxu0 %v10711
    %11240 = vmatpush1.bf16.msra.mxu0 %v10710
    %11241 = vmatprep.subr.bf16.mxu0 %v10718
    %11242 = vmatpush1.bf16.msra.mxu0 %v10717
    %11243 = vmatprep.subr.bf16.mxu0 %v10725
    %11244 = vmatpush1.bf16.msra.mxu0 %v10724
    %11245 = vmatprep.subr.bf16.mxu0 %v10732
    %11246 = vmatpush1.bf16.msra.mxu0 %v10731
    %11247 = vmatprep.subr.bf16.mxu0 %v10739
    %11248 = vmatpush1.bf16.msra.mxu0 %v10738
    %11249 = vmatprep.subr.bf16.mxu0 %v10746
    %11250 = vmatpush1.bf16.msra.mxu0 %v10745
    %11251 = vmatprep.subr.bf16.mxu0 0
    %11252 = vmatpush1.bf16.msra.mxu0 0
    %11253 = vmatprep.subr.bf16.mxu0 0
    %11254 = vmatpush1.bf16.msra.mxu0 0
    %11255 = vmatprep.subr.bf16.mxu0 0
    %11256 = vmatpush1.bf16.msra.mxu0 0
    %11257 = vmatprep.subr.bf16.mxu0 0
    %11258 = vmatpush1.bf16.msra.mxu0 0
    %11259 = vmatprep.subr.bf16.mxu0 0
    %11260 = vmatpush1.bf16.msra.mxu0 0
    %11261 = vmatprep.subr.bf16.mxu0 0
    %11262 = vmatpush1.bf16.msra.mxu0 0
    %11263 = vmatprep.subr.bf16.mxu0 0
    %11264 = vmatpush1.bf16.msra.mxu0 0
    %11265 = vmatprep.subr.bf16.mxu0 0
    %11266 = vmatpush1.bf16.msra.mxu0 0
    %11267 = vmatprep.mubr.bf16.mxu0 0
    %11268 = vmatmul.mubr.bf16.gmra.mrb[0].mxu0 %v9232
    %v11269 = vpop.f32.mrb[0].mxu0
    %v11270 = vadd.f32 %v11229, %v11269
    %v11271 = vpop.f32.mrb[0].mxu0
    %v11272 = vadd.f32 %v11231, %v11271
    %v11273 = vpop.f32.mrb[0].mxu0
    %v11274 = vpop.f32.mrb[0].mxu0
    %11275 = vdwg.mxu0
    %11276 = vmatprep.subr.bf16.mxu0 %v10475
    %11277 = vmatpush1.bf16.msra.mxu0 %v10474
    %11278 = vmatprep.subr.bf16.mxu0 %v10482
    %11279 = vmatpush1.bf16.msra.mxu0 %v10481
    %11280 = vmatprep.subr.bf16.mxu0 %v10489
    %11281 = vmatpush1.bf16.msra.mxu0 %v10488
    %11282 = vmatprep.subr.bf16.mxu0 %v10496
    %11283 = vmatpush1.bf16.msra.mxu0 %v10495
    %11284 = vmatprep.subr.bf16.mxu0 %v10503
    %11285 = vmatpush1.bf16.msra.mxu0 %v10502
    %11286 = vmatprep.subr.bf16.mxu0 %v10510
    %11287 = vmatpush1.bf16.msra.mxu0 %v10509
    %11288 = vmatprep.subr.bf16.mxu0 %v10517
    %11289 = vmatpush1.bf16.msra.mxu0 %v10516
    %11290 = vmatprep.subr.bf16.mxu0 %v10524
    %11291 = vmatpush1.bf16.msra.mxu0 %v10523
    %11292 = vmatprep.subr.bf16.mxu0 %v10531
    %11293 = vmatpush1.bf16.msra.mxu0 %v10530
    %11294 = vmatprep.subr.bf16.mxu0 %v10538
    %11295 = vmatpush1.bf16.msra.mxu0 %v10537
    %11296 = vmatprep.subr.bf16.mxu0 %v10545
    %11297 = vmatpush1.bf16.msra.mxu0 %v10544
    %11298 = vmatprep.subr.bf16.mxu0 %v10552
    %11299 = vmatpush1.bf16.msra.mxu0 %v10551
    %11300 = vmatprep.subr.bf16.mxu0 %v10559
    %11301 = vmatpush1.bf16.msra.mxu0 %v10558
    %11302 = vmatprep.subr.bf16.mxu0 %v10566
    %11303 = vmatpush1.bf16.msra.mxu0 %v10565
    %11304 = vmatprep.subr.bf16.mxu0 %v10573
    %11305 = vmatpush1.bf16.msra.mxu0 %v10572
    %11306 = vmatprep.subr.bf16.mxu0 %v10580
    %11307 = vmatpush1.bf16.msra.mxu0 %v10579
    %11308 = vmatprep.mubr.bf16.mxu0 %v9229
    %11309 = vmatmul.mubr.bf16.gmra.mrb[0].mxu0 %v9228
    %v11310 = vpop.f32.mrb[0].mxu0
    %v11311 = vadd.f32 %v9574, %v11310
    %v11312 = vpop.f32.mrb[0].mxu0
    %v11313 = vadd.f32 %v9578, %v11312
    %v11314 = vpop.f32.mrb[0].mxu0
    %v11315 = vpop.f32.mrb[0].mxu0
    %11316 = vdwg.mxu0
    %11317 = vmatprep.subr.bf16.mxu0 %v10587
    %11318 = vmatpush1.bf16.msra.mxu0 %v10586
    %11319 = vmatprep.subr.bf16.mxu0 %v10594
    %11320 = vmatpush1.bf16.msra.mxu0 %v10593
    %11321 = vmatprep.subr.bf16.mxu0 %v10601
    %11322 = vmatpush1.bf16.msra.mxu0 %v10600
    %11323 = vmatprep.subr.bf16.mxu0 %v10608
    %11324 = vmatpush1.bf16.msra.mxu0 %v10607
    %11325 = vmatprep.subr.bf16.mxu0 %v10615
    %11326 = vmatpush1.bf16.msra.mxu0 %v10614
    %11327 = vmatprep.subr.bf16.mxu0 %v10622
    %11328 = vmatpush1.bf16.msra.mxu0 %v10621
    %11329 = vmatprep.subr.bf16.mxu0 %v10629
    %11330 = vmatpush1.bf16.msra.mxu0 %v10628
    %11331 = vmatprep.subr.bf16.mxu0 %v10636
    %11332 = vmatpush1.bf16.msra.mxu0 %v10635
    %11333 = vmatprep.subr.bf16.mxu0 %v10643
    %11334 = vmatpush1.bf16.msra.mxu0 %v10642
    %11335 = vmatprep.subr.bf16.mxu0 %v10650
    %11336 = vmatpush1.bf16.msra.mxu0 %v10649
    %11337 = vmatprep.subr.bf16.mxu0 %v10657
    %11338 = vmatpush1.bf16.msra.mxu0 %v10656
    %11339 = vmatprep.subr.bf16.mxu0 %v10664
    %11340 = vmatpush1.bf16.msra.mxu0 %v10663
    %11341 = vmatprep.subr.bf16.mxu0 %v10671
    %11342 = vmatpush1.bf16.msra.mxu0 %v10670
    %11343 = vmatprep.subr.bf16.mxu0 %v10678
    %11344 = vmatpush1.bf16.msra.mxu0 %v10677
    %11345 = vmatprep.subr.bf16.mxu0 %v10685
    %11346 = vmatpush1.bf16.msra.mxu0 %v10684
    %11347 = vmatprep.subr.bf16.mxu0 %v10692
    %11348 = vmatpush1.bf16.msra.mxu0 %v10691
    %11349 = vmatprep.mubr.bf16.mxu0 %v9231
    %11350 = vmatmul.mubr.bf16.gmra.mrb[0].mxu0 %v9230
    %v11351 = vpop.f32.mrb[0].mxu0
    %v11352 = vadd.f32 %v11311, %v11351
    %v11353 = vpop.f32.mrb[0].mxu0
    %v11354 = vadd.f32 %v11313, %v11353
    %v11355 = vpop.f32.mrb[0].mxu0
    %v11356 = vpop.f32.mrb[0].mxu0
    %11357 = vdwg.mxu0
    %11358 = vmatprep.subr.bf16.mxu0 %v10699
    %11359 = vmatpush1.bf16.msra.mxu0 %v10698
    %11360 = vmatprep.subr.bf16.mxu0 %v10706
    %11361 = vmatpush1.bf16.msra.mxu0 %v10705
    %11362 = vmatprep.subr.bf16.mxu0 %v10713
    %11363 = vmatpush1.bf16.msra.mxu0 %v10712
    %11364 = vmatprep.subr.bf16.mxu0 %v10720
    %11365 = vmatpush1.bf16.msra.mxu0 %v10719
    %11366 = vmatprep.subr.bf16.mxu0 %v10727
    %11367 = vmatpush1.bf16.msra.mxu0 %v10726
    %11368 = vmatprep.subr.bf16.mxu0 %v10734
    %11369 = vmatpush1.bf16.msra.mxu0 %v10733
    %11370 = vmatprep.subr.bf16.mxu0 %v10741
    %11371 = vmatpush1.bf16.msra.mxu0 %v10740
    %11372 = vmatprep.subr.bf16.mxu0 %v10748
    %11373 = vmatpush1.bf16.msra.mxu0 %v10747
    %11374 = vmatprep.subr.bf16.mxu0 0
    %11375 = vmatpush1.bf16.msra.mxu0 0
    %11376 = vmatprep.subr.bf16.mxu0 0
    %11377 = vmatpush1.bf16.msra.mxu0 0
    %11378 = vmatprep.subr.bf16.mxu0 0
    %11379 = vmatpush1.bf16.msra.mxu0 0
    %11380 = vmatprep.subr.bf16.mxu0 0
    %11381 = vmatpush1.bf16.msra.mxu0 0
    %11382 = vmatprep.subr.bf16.mxu0 0
    %11383 = vmatpush1.bf16.msra.mxu0 0
    %11384 = vmatprep.subr.bf16.mxu0 0
    %11385 = vmatpush1.bf16.msra.mxu0 0
    %11386 = vmatprep.subr.bf16.mxu0 0
    %11387 = vmatpush1.bf16.msra.mxu0 0
    %11388 = vmatprep.subr.bf16.mxu0 0
    %11389 = vmatpush1.bf16.msra.mxu0 0
    %11390 = vmatprep.mubr.bf16.mxu0 0
    %11391 = vmatmul.mubr.bf16.gmra.mrb[0].mxu0 %v9232
    %v11392 = vpop.f32.mrb[0].mxu0
    %v11393 = vadd.f32 %v11352, %v11392
    %v11394 = vpop.f32.mrb[0].mxu0
    %v11395 = vadd.f32 %v11354, %v11394
    %v11396 = vpop.f32.mrb[0].mxu0
    %v11397 = vpop.f32.mrb[0].mxu0
    %11398 = vdwg.mxu0
    %11399 = vmatprep.subr.bf16.mxu0 0
    %11400 = vmatpush1.bf16.msra.mxu0 %v10476
    %11401 = vmatprep.subr.bf16.mxu0 0
    %11402 = vmatpush1.bf16.msra.mxu0 %v10483
    %11403 = vmatprep.subr.bf16.mxu0 0
    %11404 = vmatpush1.bf16.msra.mxu0 %v10490
    %11405 = vmatprep.subr.bf16.mxu0 0
    %11406 = vmatpush1.bf16.msra.mxu0 %v10497
    %11407 = vmatprep.subr.bf16.mxu0 0
    %11408 = vmatpush1.bf16.msra.mxu0 %v10504
    %11409 = vmatprep.subr.bf16.mxu0 0
    %11410 = vmatpush1.bf16.msra.mxu0 %v10511
    %11411 = vmatprep.subr.bf16.mxu0 0
    %11412 = vmatpush1.bf16.msra.mxu0 %v10518
    %11413 = vmatprep.subr.bf16.mxu0 0
    %11414 = vmatpush1.bf16.msra.mxu0 %v10525
    %11415 = vmatprep.subr.bf16.mxu0 0
    %11416 = vmatpush1.bf16.msra.mxu0 %v10532
    %11417 = vmatprep.subr.bf16.mxu0 0
    %11418 = vmatpush1.bf16.msra.mxu0 %v10539
    %11419 = vmatprep.subr.bf16.mxu0 0
    %11420 = vmatpush1.bf16.msra.mxu0 %v10546
    %11421 = vmatprep.subr.bf16.mxu0 0
    %11422 = vmatpush1.bf16.msra.mxu0 %v10553
    %11423 = vmatprep.subr.bf16.mxu0 0
    %11424 = vmatpush1.bf16.msra.mxu0 %v10560
    %11425 = vmatprep.subr.bf16.mxu0 0
    %11426 = vmatpush1.bf16.msra.mxu0 %v10567
    %11427 = vmatprep.subr.bf16.mxu0 0
    %11428 = vmatpush1.bf16.msra.mxu0 %v10574
    %11429 = vmatprep.subr.bf16.mxu0 0
    %11430 = vmatpush1.bf16.msra.mxu0 %v10581
    %11431 = vmatprep.mubr.bf16.mxu0 %v9229
    %11432 = vmatmul.mubr.bf16.gmra.mrb[0].mxu0 %v9228
    %v11433 = vpop.f32.mrb[0].mxu0
    %v11434 = vadd.f32 %v9582, %v11433
    %v11435 = vpop.f32.mrb[0].mxu0
    %v11436 = vpop.f32.mrb[0].mxu0
    %v11437 = vpop.f32.mrb[0].mxu0
    %11438 = vdwg.mxu0
    %11439 = vmatprep.subr.bf16.mxu0 0
    %11440 = vmatpush1.bf16.msra.mxu0 %v10588
    %11441 = vmatprep.subr.bf16.mxu0 0
    %11442 = vmatpush1.bf16.msra.mxu0 %v10595
    %11443 = vmatprep.subr.bf16.mxu0 0
    %11444 = vmatpush1.bf16.msra.mxu0 %v10602
    %11445 = vmatprep.subr.bf16.mxu0 0
    %11446 = vmatpush1.bf16.msra.mxu0 %v10609
    %11447 = vmatprep.subr.bf16.mxu0 0
    %11448 = vmatpush1.bf16.msra.mxu0 %v10616
    %11449 = vmatprep.subr.bf16.mxu0 0
    %11450 = vmatpush1.bf16.msra.mxu0 %v10623
    %11451 = vmatprep.subr.bf16.mxu0 0
    %11452 = vmatpush1.bf16.msra.mxu0 %v10630
    %11453 = vmatprep.subr.bf16.mxu0 0
    %11454 = vmatpush1.bf16.msra.mxu0 %v10637
    %11455 = vmatprep.subr.bf16.mxu0 0
    %11456 = vmatpush1.bf16.msra.mxu0 %v10644
    %11457 = vmatprep.subr.bf16.mxu0 0
    %11458 = vmatpush1.bf16.msra.mxu0 %v10651
    %11459 = vmatprep.subr.bf16.mxu0 0
    %11460 = vmatpush1.bf16.msra.mxu0 %v10658
    %11461 = vmatprep.subr.bf16.mxu0 0
    %11462 = vmatpush1.bf16.msra.mxu0 %v10665
    %11463 = vmatprep.subr.bf16.mxu0 0
    %11464 = vmatpush1.bf16.msra.mxu0 %v10672
    %11465 = vmatprep.subr.bf16.mxu0 0
    %11466 = vmatpush1.bf16.msra.mxu0 %v10679
    %11467 = vmatprep.subr.bf16.mxu0 0
    %11468 = vmatpush1.bf16.msra.mxu0 %v10686
    %11469 = vmatprep.subr.bf16.mxu0 0
    %11470 = vmatpush1.bf16.msra.mxu0 %v10693
    %11471 = vmatprep.mubr.bf16.mxu0 %v9231
    %11472 = vmatmul.mubr.bf16.gmra.mrb[0].mxu0 %v9230
    %v11473 = vpop.f32.mrb[0].mxu0
    %v11474 = vadd.f32 %v11434, %v11473
    %v11475 = vpop.f32.mrb[0].mxu0
    %v11476 = vpop.f32.mrb[0].mxu0
    %v11477 = vpop.f32.mrb[0].mxu0
    %11478 = vdwg.mxu0
    %11479 = vmatprep.subr.bf16.mxu0 0
    %11480 = vmatpush1.bf16.msra.mxu0 %v10700
    %11481 = vmatprep.subr.bf16.mxu0 0
    %11482 = vmatpush1.bf16.msra.mxu0 %v10707
    %11483 = vmatprep.subr.bf16.mxu0 0
    %11484 = vmatpush1.bf16.msra.mxu0 %v10714
    %11485 = vmatprep.subr.bf16.mxu0 0
    %11486 = vmatpush1.bf16.msra.mxu0 %v10721
    %11487 = vmatprep.subr.bf16.mxu0 0
    %11488 = vmatpush1.bf16.msra.mxu0 %v10728
    %11489 = vmatprep.subr.bf16.mxu0 0
    %11490 = vmatpush1.bf16.msra.mxu0 %v10735
    %11491 = vmatprep.subr.bf16.mxu0 0
    %11492 = vmatpush1.bf16.msra.mxu0 %v10742
    %11493 = vmatprep.subr.bf16.mxu0 0
    %11494 = vmatpush1.bf16.msra.mxu0 %v10749
    %11495 = vmatprep.subr.bf16.mxu0 0
    %11496 = vmatpush1.bf16.msra.mxu0 0
    %11497 = vmatprep.subr.bf16.mxu0 0
    %11498 = vmatpush1.bf16.msra.mxu0 0
    %11499 = vmatprep.subr.bf16.mxu0 0
    %11500 = vmatpush1.bf16.msra.mxu0 0
    %11501 = vmatprep.subr.bf16.mxu0 0
    %11502 = vmatpush1.bf16.msra.mxu0 0
    %11503 = vmatprep.subr.bf16.mxu0 0
    %11504 = vmatpush1.bf16.msra.mxu0 0
    %11505 = vmatprep.subr.bf16.mxu0 0
    %11506 = vmatpush1.bf16.msra.mxu0 0
    %11507 = vmatprep.subr.bf16.mxu0 0
    %11508 = vmatpush1.bf16.msra.mxu0 0
    %11509 = vmatprep.subr.bf16.mxu0 0
    %11510 = vmatpush1.bf16.msra.mxu0 0
    %11511 = vmatprep.mubr.bf16.mxu0 0
    %11512 = vmatmul.mubr.bf16.gmra.mrb[0].mxu0 %v9232
    %v11513 = vpop.f32.mrb[0].mxu0
    %v11514 = vadd.f32 %v11474, %v11513
    %v11515 = vpop.f32.mrb[0].mxu0
    %v11516 = vpop.f32.mrb[0].mxu0
    %v11517 = vpop.f32.mrb[0].mxu0
    %11518 = vdwg.mxu0
    %v11519 = vxor.u32 %v11147, 2147483648
    %v11520 = vxor.u32 %v11149, 2147483648
    %v11521 = vxor.u32 %v11270, 2147483648
    %v11522 = vxor.u32 %v11272, 2147483648
    %v11523 = vxor.u32 %v11393, 2147483648
    %v11524 = vxor.u32 %v11395, 2147483648
    %v11525 = vxor.u32 %v11514, 2147483648
    %v11526 = vmul.f32 %v11519, 1.442695
    %v11527 = vpow.pop %v11526
    %v11528 = vmul.f32 %v11520, 1.442695
    %v11529 = vpow.pop %v11528
    %v11530 = vmul.f32 %v11521, 1.442695
    %v11531 = vpow.pop %v11530
    %v11532 = vmul.f32 %v11522, 1.442695
    %v11533 = vpow.pop %v11532
    %v11534 = vmul.f32 %v11523, 1.442695
    %v11535 = vpow.pop %v11534
    %v11536 = vmul.f32 %v11524, 1.442695
    %v11537 = vpow.pop %v11536
    %v11538 = vmul.f32 %v11525, 1.442695
    %v11539 = vpow.pop %v11538
    %v11540 = vadd.f32 %v11527, 1.0
    %v11541 = vadd.f32 %v11529, 1.0
    %v11542 = vadd.f32 %v11531, 1.0
    %v11543 = vadd.f32 %v11533, 1.0
    %v11544 = vadd.f32 %v11535, 1.0
    %v11545 = vadd.f32 %v11537, 1.0
    %v11546 = vadd.f32 %v11539, 1.0
    %v11547 = vrcp.pop %v11540
    %v11548 = vmul.f32 1.0, %v11547
    %v11549 = vrcp.pop %v11541
    %v11550 = vmul.f32 1.0, %v11549
    %v11551 = vrcp.pop %v11542
    %v11552 = vmul.f32 1.0, %v11551
    %v11553 = vrcp.pop %v11543
    %v11554 = vmul.f32 1.0, %v11553
    %v11555 = vrcp.pop %v11544
    %v11556 = vmul.f32 1.0, %v11555
    %v11557 = vrcp.pop %v11545
    %v11558 = vmul.f32 1.0, %v11557
    %v11559 = vrcp.pop %v11546
    %v11560 = vmul.f32 1.0, %v11559
    %11561 = vst [vmem:[#allocation35] sm:$0xff] %v11548
    %11562 = vst [vmem:[#allocation35 + $0x8] sm:$0xff] %v11550
    %11563 = vst [vmem:[#allocation35 + $0x10] sm:$0xff] %v11552
    %11564 = vst [vmem:[#allocation35 + $0x18] sm:$0xff] %v11554
    %11565 = vst [vmem:[#allocation35 + $0x20] sm:$0xff] %v11556
    %11566 = vst [vmem:[#allocation35 + $0x28] sm:$0xff] %v11558
    %11567 = vst [vmem:[#allocation35 + $0x30] sm:$0xff] %v11560
    // Predicated region
    $region170: #{dropout_autoencoder_forward.1} parent=1 // pred_check
      _
    $region171: #{dropout_autoencoder_forward.1} parent=1 // pred_check_branch
      %11569 = sbr.rel (0) target = $region173
    $region172: #{dropout_autoencoder_forward.1} parent=1 // pred_region
      %s11571 = ssub.s32 896, 896
      %11572 = vsyncadd [#allocation5], %s11571
      %s11574 = sshll.u32 [#allocation35], 4
      %s11575 = int_to_ptr.vmem [resolvable:$true] %s11574
      %11577 = dma.vmem_to_hbm [thread:$0]  %s11575, 896, %s22, [#allocation5]
    $region173: #{dropout_autoencoder_forward.1} parent=1 // pred_fallthru
      _
    // Predicated region
    $region174: #{dropout_autoencoder_forward.1} parent=1 // pred_check
      _
    $region175: #{dropout_autoencoder_forward.1} parent=1 // pred_check_branch
      %11579 = sbr.rel (0) target = $region177
    $region176: #{dropout_autoencoder_forward.1} parent=1 // pred_region
      %11580 = dma.done [#allocation5], 896
    $region177: #{dropout_autoencoder_forward.1} parent=1 // pred_fallthru
      _
    %11581 = vsyncpa [#allocation4], 1
    %11582 = vsyncpa [#allocation7], 1
    %11583 = vsyncpa [#allocation10], 1
    %11584 = vsyncpa [#allocation13], 1
    %11585 = vsyncpa [#allocation16], 1
    %11586 = vsyncpa [#allocation19], 1
    %11587 = vsyncpa [#allocation22], 1
    %11588 = vsyncpa [#allocation25], 1
    %11589 = vsyncpa [#allocation28], 1
    %11590 = vsyncpa [#allocation31], 1
    %11591 = vsyncpa [#allocation34], 1
    %11592 = vsyncpa [#allocation5], 1

</llo_original>
